<compile_context>
chip_gen: v7x
topology: tpu7x:2x2x1
jax: 0.10.0
libtpu: 0.0.40
codegen_flags: <defaults>
</compile_context>

<pallas_src>
import functools
import jax
import jax.numpy as jnp
from jax import lax
from jax.experimental import pallas as pl
from jax.experimental.pallas import tpu as pltpu


def _default_vmem_limit():
    # Per-generation scoped-VMEM budget: ~3/4 of physical capacity, capped at 100 MiB.
    try:
        cap = int(pltpu.get_tpu_info().vmem_capacity_bytes)
    except Exception:
        cap = 64 * 1024 * 1024
    return max(32 * 1024 * 1024, min((cap * 3) // 4, 100 * 1024 * 1024))


_VMEM_LIMIT = _default_vmem_limit()


# ----------------------------- in-kernel helpers ----------------------------

def _layernorm(z, g, b):
    # z: (S, D) f32, g/b: (1, D) f32; eps = 1e-5 (PyTorch default)
    mu = jnp.mean(z, axis=-1, keepdims=True)
    var = jnp.mean((z - mu) ** 2, axis=-1, keepdims=True)
    return (z - mu) * lax.rsqrt(var + 1e-5) * g + b


def _mha_core(q, k, v, wo, bo, num_heads):
    # q: (Sq, D) f32, k/v: (Sk, D) f32, wo: (D, D) bf16, bo: (1, D) f32
    Sq, D = q.shape
    dh = D // num_heads
    # Scale folded into Q once (cheaper than scaling each (Sq,Sk) score tile).
    qb = (q * (1.0 / (dh ** 0.5))).astype(jnp.bfloat16)
    kb = k.astype(jnp.bfloat16)
    vb = v.astype(jnp.bfloat16)

    # Per-head scores stacked into one (H, Sq, Sk) tensor -> ONE batched softmax.
    s = jnp.stack(
        [lax.dot_general(qb[:, h * dh:(h + 1) * dh], kb[:, h * dh:(h + 1) * dh],
                         (((1,), (1,)), ((), ())),
                         preferred_element_type=jnp.float32)
         for h in range(num_heads)],
        axis=0)                                           # (H, Sq, Sk) f32
    s = s - jnp.max(s, axis=-1, keepdims=True)
    p = jnp.exp(s)
    p = p * pl.reciprocal(jnp.sum(p, axis=-1, keepdims=True), approx=True)
    pb = p.astype(jnp.bfloat16)

    # Per-head contexts land in adjacent lane blocks of one (Sq, D) buffer.
    ctx = jnp.concatenate(
        [jnp.dot(pb[h], vb[:, h * dh:(h + 1) * dh],
                 preferred_element_type=jnp.float32)
         for h in range(num_heads)],
        axis=-1)                                          # (Sq, D) f32

    # Single full-width output projection on the MXU (bf16 operands, f32 accumulate).
    return jnp.dot(ctx.astype(jnp.bfloat16), wo,
                   preferred_element_type=jnp.float32) + bo


def _ffn(x, w1, b1, w2, b2):
    # x f32, w1/w2 bf16, b1/b2 f32
    h = jnp.dot(x.astype(jnp.bfloat16), w1, preferred_element_type=jnp.float32) + b1
    h = jnp.maximum(h, 0.0)
    return jnp.dot(h.astype(jnp.bfloat16), w2, preferred_element_type=jnp.float32) + b2


# ------------------------------- fused kernels -------------------------------

def _encoder_block_kernel(x_ref, wqkv_ref, bqkv_ref, wo_ref, bo_ref,
                          ln1g_ref, ln1b_ref,
                          w1_ref, b1_ref, w2_ref, b2_ref,
                          ln2g_ref, ln2b_ref,
                          o_ref, *, num_heads):
    x = x_ref[0]                                            # (S, D) f32
    D = x.shape[-1]

    # fused QKV projection: one (D, 3D) bf16 matmul
    qkv = (jnp.dot(x.astype(jnp.bfloat16), wqkv_ref[...],
                   preferred_element_type=jnp.float32) + bqkv_ref[...])
    q = qkv[:, :D]
    k = qkv[:, D:2 * D]
    v = qkv[:, 2 * D:]

    attn = _mha_core(q, k, v, wo_ref[...], bo_ref[...], num_heads)
    x1 = _layernorm(x + attn, ln1g_ref[...], ln1b_ref[...])

    ff = _ffn(x1, w1_ref[...], b1_ref[...], w2_ref[...], b2_ref[...])
    o_ref[0] = _layernorm(x1 + ff, ln2g_ref[...], ln2b_ref[...])


def _decoder_block_kernel(x_ref, enc_ref,
                          wqkv1_ref, bqkv1_ref, wo1_ref, bo1_ref,
                          ln1g_ref, ln1b_ref,
                          wq2_ref, bq2_ref, wkv2_ref, bkv2_ref, wo2_ref, bo2_ref,
                          ln2g_ref, ln2b_ref,
                          w1_ref, b1_ref, w2_ref, b2_ref,
                          ln3g_ref, ln3b_ref,
                          o_ref, *, num_heads):
    x = x_ref[0]                                            # (S_t, D) f32
    enc = enc_ref[0]                                        # (S_e, D) f32
    D = x.shape[-1]

    # --- decoder self-attention (fused QKV) ---
    # TODO(synk): tgt_mask is None at the reference call site, so no causal mask here either.
    qkv = (jnp.dot(x.astype(jnp.bfloat16), wqkv1_ref[...],
                   preferred_element_type=jnp.float32) + bqkv1_ref[...])
    q1 = qkv[:, :D]
    k1 = qkv[:, D:2 * D]
    v1 = qkv[:, 2 * D:]
    a1 = _mha_core(q1, k1, v1, wo1_ref[...], bo1_ref[...], num_heads)
    x1 = _layernorm(x + a1, ln1g_ref[...], ln1b_ref[...])

    # --- encoder-decoder cross-attention (fused KV) ---
    q2 = (jnp.dot(x1.astype(jnp.bfloat16), wq2_ref[...],
                  preferred_element_type=jnp.float32) + bq2_ref[...])
    kv = (jnp.dot(enc.astype(jnp.bfloat16), wkv2_ref[...],
                  preferred_element_type=jnp.float32) + bkv2_ref[...])
    k2 = kv[:, :D]
    v2 = kv[:, D:]
    a2 = _mha_core(q2, k2, v2, wo2_ref[...], bo2_ref[...], num_heads)
    x2 = _layernorm(x1 + a2, ln2g_ref[...], ln2b_ref[...])

    # --- feed-forward ---
    ff = _ffn(x2, w1_ref[...], b1_ref[...], w2_ref[...], b2_ref[...])
    o_ref[0] = _layernorm(x2 + ff, ln3g_ref[...], ln3b_ref[...])


def _linear_kernel(x_ref, w_ref, b_ref, o_ref):
    o_ref[...] = (jnp.dot(x_ref[...].astype(jnp.bfloat16), w_ref[...],
                          preferred_element_type=jnp.float32) + b_ref[...])


# ------------------------------- wrappers ------------------------------------

def _full_spec(shape):
    nd = len(shape)
    return pl.BlockSpec(shape, lambda b, _nd=nd: (0,) * _nd)


def encoder_block(x, layer, num_heads):
    B, S, D = x.shape
    F = layer["ff_w1"].shape[1]
    kernel = functools.partial(_encoder_block_kernel, num_heads=num_heads)
    return pl.pallas_call(
        kernel,
        out_shape=jax.ShapeDtypeStruct((B, S, D), jnp.float32),
        grid=(B,),
        in_specs=[
            pl.BlockSpec((1, S, D), lambda b: (b, 0, 0)),
            _full_spec((D, 3 * D)), _full_spec((1, 3 * D)),
            _full_spec((D, D)), _full_spec((1, D)),
            _full_spec((1, D)), _full_spec((1, D)),
            _full_spec((D, F)), _full_spec((1, F)),
            _full_spec((F, D)), _full_spec((1, D)),
            _full_spec((1, D)), _full_spec((1, D)),
        ],
        out_specs=pl.BlockSpec((1, S, D), lambda b: (b, 0, 0)),
        compiler_params=pltpu.CompilerParams(
            dimension_semantics=("parallel",),
            vmem_limit_bytes=_VMEM_LIMIT),
    )(x,
      layer["wqkv"], layer["bqkv"], layer["wo"], layer["bo"],
      layer["ln1_g"], layer["ln1_b"],
      layer["ff_w1"], layer["ff_b1"], layer["ff_w2"], layer["ff_b2"],
      layer["ln2_g"], layer["ln2_b"])


def decoder_block(x, enc, layer, num_heads):
    B, S_t, D = x.shape
    S_e = enc.shape[1]
    F = layer["ff_w1"].shape[1]
    kernel = functools.partial(_decoder_block_kernel, num_heads=num_heads)
    return pl.pallas_call(
        kernel,
        out_shape=jax.ShapeDtypeStruct((B, S_t, D), jnp.float32),
        grid=(B,),
        in_specs=[
            pl.BlockSpec((1, S_t, D), lambda b: (b, 0, 0)),
            pl.BlockSpec((1, S_e, D), lambda b: (b, 0, 0)),
            _full_spec((D, 3 * D)), _full_spec((1, 3 * D)),
            _full_spec((D, D)), _full_spec((1, D)),
            _full_spec((1, D)), _full_spec((1, D)),
            _full_spec((D, D)), _full_spec((1, D)),
            _full_spec((D, 2 * D)), _full_spec((1, 2 * D)),
            _full_spec((D, D)), _full_spec((1, D)),
            _full_spec((1, D)), _full_spec((1, D)),
            _full_spec((D, F)), _full_spec((1, F)),
            _full_spec((F, D)), _full_spec((1, D)),
            _full_spec((1, D)), _full_spec((1, D)),
        ],
        out_specs=pl.BlockSpec((1, S_t, D), lambda b: (b, 0, 0)),
        compiler_params=pltpu.CompilerParams(
            dimension_semantics=("parallel",),
            vmem_limit_bytes=_VMEM_LIMIT),
    )(x, enc,
      layer["wqkv1"], layer["bqkv1"], layer["wo1"], layer["bo1"],
      layer["ln1_g"], layer["ln1_b"],
      layer["wq2"], layer["bq2"], layer["wkv2"], layer["bkv2"],
      layer["wo2"], layer["bo2"],
      layer["ln2_g"], layer["ln2_b"],
      layer["ff_w1"], layer["ff_b1"], layer["ff_w2"], layer["ff_b2"],
      layer["ln3_g"], layer["ln3_b"])


def _pick_tile(dim, pref, align):
    # Largest tile <= pref that divides dim and is a multiple of `align`; else full dim.
    if dim <= pref:
        return dim
    t = (pref // align) * align
    while t >= align:
        if dim % t == 0:
            return t
        t -= align
    return dim


def linear(x2d, w, b):
    # Tiled x2d @ w + b with (M-tiles, N-tiles) parallel grid; K stays VMEM-resident.
    # N is padded to a multiple of 128 at init, so output tiles are lane-dense.
    M, K = x2d.shape
    N = w.shape[1]
    tm = _pick_tile(M, 512, 8)     # sublane axis tile
    tn = _pick_tile(N, 512, 128)   # lane axis tile (lane-dense)
    return pl.pallas_call(
        _linear_kernel,
        out_shape=jax.ShapeDtypeStruct((M, N), jnp.float32),
        grid=(M // tm, N // tn),
        in_specs=[
            pl.BlockSpec((tm, K), lambda i, j: (i, 0)),
            pl.BlockSpec((K, tn), lambda i, j: (0, j)),
            pl.BlockSpec((1, tn), lambda i, j: (0, j)),
        ],
        out_specs=pl.BlockSpec((tm, tn), lambda i, j: (i, j)),
        compiler_params=pltpu.CompilerParams(
            dimension_semantics=("parallel", "parallel"),
            vmem_limit_bytes=_VMEM_LIMIT),
    )(x2d, w, b)


# ------------------------------- Model glue ----------------------------------

def transformer_forward(src, tgt, params, num_heads, vocab_size):
    # Embedding gather + learned positional encoding: plain-JAX glue (gather has no
    # tiled BlockSpec form).  Dropout is identity (eval mode).
    emb = params["embedding"]
    pos = params["pos_embedding"]
    src_x = emb[src] + pos[: src.shape[1]][None, :, :]
    tgt_x = emb[tgt] + pos[: tgt.shape[1]][None, :, :]

    enc = src_x
    for layer in params["enc_layers"]:
        enc = encoder_block(enc, layer, num_heads)

    dec = tgt_x
    for layer in params["dec_layers"]:
        dec = decoder_block(dec, enc, layer, num_heads)

    B, S, D = dec.shape
    logits = linear(dec.reshape(B * S, D), params["out_w"], params["out_b"])
    # Slice off the lane-padding columns of the vocab projection.
    return logits[:, :vocab_size].reshape(B, S, vocab_size)


# ------------------------------ Param init -----------------------------------

def init_params(key, vocab_size, d_model, num_heads, num_layers, d_ff, max_len):
    assert d_model % num_heads == 0
    keys = iter(jax.random.split(key, 4096))

    def nrm(shape, scale=0.02, dtype=jnp.bfloat16):
        return (scale * jax.random.normal(next(keys), shape)).astype(dtype)

    def zeros(n):
        return jnp.zeros((1, n), jnp.float32)

    def ones(n):
        return jnp.ones((1, n), jnp.float32)

    def enc_layer():
        return {
            "wqkv": nrm((d_model, 3 * d_model)), "bqkv": zeros(3 * d_model),
            "wo": nrm((d_model, d_model)), "bo": zeros(d_model),
            "ln1_g": ones(d_model), "ln1_b": zeros(d_model),
            "ff_w1": nrm((d_model, d_ff)), "ff_b1": zeros(d_ff),
            "ff_w2": nrm((d_ff, d_model)), "ff_b2": zeros(d_model),
            "ln2_g": ones(d_model), "ln2_b": zeros(d_model),
        }

    def dec_layer():
        return {
            "wqkv1": nrm((d_model, 3 * d_model)), "bqkv1": zeros(3 * d_model),
            "wo1": nrm((d_model, d_model)), "bo1": zeros(d_model),
            "ln1_g": ones(d_model), "ln1_b": zeros(d_model),
            "wq2": nrm((d_model, d_model)), "bq2": zeros(d_model),
            "wkv2": nrm((d_model, 2 * d_model)), "bkv2": zeros(2 * d_model),
            "wo2": nrm((d_model, d_model)), "bo2": zeros(d_model),
            "ln2_g": ones(d_model), "ln2_b": zeros(d_model),
            "ff_w1": nrm((d_model, d_ff)), "ff_b1": zeros(d_ff),
            "ff_w2": nrm((d_ff, d_model)), "ff_b2": zeros(d_model),
            "ln3_g": ones(d_model), "ln3_b": zeros(d_model),
        }

    # Vocab projection padded to a multiple of 128 output columns (lane-dense stores);
    # the padding is zero and is sliced off after the kernel.
    vocab_pad = ((vocab_size + 127) // 128) * 128
    out_w = jnp.zeros((d_model, vocab_pad), jnp.bfloat16)
    out_w = out_w.at[:, :vocab_size].set(nrm((d_model, vocab_size)))
    out_b = jnp.zeros((1, vocab_pad), jnp.float32)

    return {
        "embedding": nrm((vocab_size, d_model), scale=1.0, dtype=jnp.float32),
        "pos_embedding": nrm((max_len, d_model), scale=0.02, dtype=jnp.float32),
        "enc_layers": [enc_layer() for _ in range(num_layers)],
        "dec_layers": [dec_layer() for _ in range(num_layers)],
        "out_w": out_w,
        "out_b": out_b,
    }


# --------------------------------- Main ---------------------------------------

if __name__ == "__main__":
    vocab_size = 50
    d_model = 32
    num_heads = 4
    num_layers = 2
    d_ff = 64
    max_len = 16
    batch = 2
    seq = 8

    key = jax.random.PRNGKey(0)
    k_src, k_tgt, k_params = jax.random.split(key, 3)
    src = jax.random.randint(k_src, (batch, seq), 0, vocab_size, dtype=jnp.int32)
    tgt = jax.random.randint(k_tgt, (batch, seq), 0, vocab_size, dtype=jnp.int32)

    params = init_params(k_params, vocab_size, d_model, num_heads, num_layers, d_ff, max_len)

    fwd = jax.jit(functools.partial(transformer_forward,
                                    num_heads=num_heads, vocab_size=vocab_size))
    out = fwd(src, tgt, params)
    jax.block_until_ready(out)

    assert out.shape == (batch, seq, vocab_size)
    assert bool(jnp.all(jnp.isfinite(out)))
    print("KERNEL_OK")
</pallas_src>

<mosaic_0001>
module attributes {stable_mosaic.version = 11 : i64} {
  func.func @_linear_kernel(%arg0: i32, %arg1: i32, %arg2: memref<16x32xf32, #tpu.memory_space<vmem>>, %arg3: memref<32x128xbf16, #tpu.memory_space<vmem>>, %arg4: memref<1x128xf32, #tpu.memory_space<vmem>>, %arg5: memref<16x128xf32, #tpu.memory_space<vmem>>) attributes {dimension_semantics = [#tpu.dimension_semantics<parallel>, #tpu.dimension_semantics<parallel>], iteration_bounds = array<i64: 1, 1>, scalar_prefetch = 0 : i64, scratch_operands = 0 : i64, tpu.core_type = #tpu.core_type<tc>, window_params = [{transform_indices = @transform_0, window_bounds = array<i64: 16, 32>}, {transform_indices = @transform_1, window_bounds = array<i64: 32, 128>}, {transform_indices = @transform_2, window_bounds = array<i64: 1, 128>}, {transform_indices = @transform_3, window_bounds = array<i64: 16, 128>}]} {
    %c0 = arith.constant 0 : index
    %c0_0 = arith.constant 0 : index
    %0 = vector.load %arg2[%c0, %c0_0] : memref<16x32xf32, #tpu.memory_space<vmem>>, vector<16x32xf32>
    %1 = arith.truncf %0 : vector<16x32xf32> to vector<16x32xbf16>
    %c0_1 = arith.constant 0 : index
    %c0_2 = arith.constant 0 : index
    %2 = vector.load %arg3[%c0_1, %c0_2] : memref<32x128xbf16, #tpu.memory_space<vmem>>, vector<32x128xbf16>
    %cst = arith.constant dense<0.000000e+00> : vector<16x128xf32>
    %3 = tpu.matmul %1, %2, %cst {dimension_numbers = #tpu.dot_dimension_numbers<[1], [0], [0], [1], [0, 0, 1, 1], [], []>} : vector<16x32xbf16>, vector<32x128xbf16>, vector<16x128xf32> -> vector<16x128xf32>
    %c0_3 = arith.constant 0 : index
    %c0_4 = arith.constant 0 : index
    %4 = vector.load %arg4[%c0_3, %c0_4] : memref<1x128xf32, #tpu.memory_space<vmem>>, vector<1x128xf32>
    %5 = vector.broadcast %4 : vector<1x128xf32> to vector<16x128xf32>
    %6 = arith.addf %3, %5 : vector<16x128xf32>
    %c0_5 = arith.constant 0 : index
    %c0_6 = arith.constant 0 : index
    %7 = vector.load %arg5[%c0_5, %c0_6] : memref<16x128xf32, #tpu.memory_space<vmem>>, vector<16x128xf32>
    tpu.vector_store %arg5[%c0_5, %c0_6], %6 {strides = array<i32>} : memref<16x128xf32, #tpu.memory_space<vmem>>, vector<16x128xf32>,
    return
  }
  func.func @transform_0(%arg0: i32, %arg1: i32) -> (i32, i32) {
    %c0_i32 = arith.constant 0 : i32
    %c0_i32_0 = arith.constant 0 : i32
    return %arg0, %c0_i32 : i32, i32
  }
  func.func @transform_1(%arg0: i32, %arg1: i32) -> (i32, i32) {
    %c0_i32 = arith.constant 0 : i32
    %c0_i32_0 = arith.constant 0 : i32
    return %c0_i32, %arg1 : i32, i32
  }
  func.func @transform_2(%arg0: i32, %arg1: i32) -> (i32, i32) {
    %c0_i32 = arith.constant 0 : i32
    %c0_i32_0 = arith.constant 0 : i32
    return %c0_i32, %arg1 : i32, i32
  }
  func.func @transform_3(%arg0: i32, %arg1: i32) -> (i32, i32) {
    %c0_i32 = arith.constant 0 : i32
    return %arg0, %arg1 : i32, i32
  }
}

module attributes {stable_mosaic.version = 11 : i64} {
  func.func @_encoder_block_kernel(%arg0: i32, %arg1: memref<1x8x32xf32, #tpu.memory_space<vmem>>, %arg2: memref<32x96xbf16, #tpu.memory_space<vmem>>, %arg3: memref<1x96xf32, #tpu.memory_space<vmem>>, %arg4: memref<32x32xbf16, #tpu.memory_space<vmem>>, %arg5: memref<1x32xf32, #tpu.memory_space<vmem>>, %arg6: memref<1x32xf32, #tpu.memory_space<vmem>>, %arg7: memref<1x32xf32, #tpu.memory_space<vmem>>, %arg8: memref<32x64xbf16, #tpu.memory_space<vmem>>, %arg9: memref<1x64xf32, #tpu.memory_space<vmem>>, %arg10: memref<64x32xbf16, #tpu.memory_space<vmem>>, %arg11: memref<1x32xf32, #tpu.memory_space<vmem>>, %arg12: memref<1x32xf32, #tpu.memory_space<vmem>>, %arg13: memref<1x32xf32, #tpu.memory_space<vmem>>, %arg14: memref<1x8x32xf32, #tpu.memory_space<vmem>>) attributes {dimension_semantics = [#tpu.dimension_semantics<parallel>], iteration_bounds = array<i64: 2>, scalar_prefetch = 0 : i64, scratch_operands = 0 : i64, tpu.core_type = #tpu.core_type<tc>, window_params = [{transform_indices = @transform_0, window_bounds = array<i64: 1, 8, 32>}, {pipeline_mode = #tpu.pipeline_mode<synchronous>, transform_indices = @transform_1, window_bounds = array<i64: 32, 96>}, {pipeline_mode = #tpu.pipeline_mode<synchronous>, transform_indices = @transform_2, window_bounds = array<i64: 1, 96>}, {pipeline_mode = #tpu.pipeline_mode<synchronous>, transform_indices = @transform_3, window_bounds = array<i64: 32, 32>}, {pipeline_mode = #tpu.pipeline_mode<synchronous>, transform_indices = @transform_4, window_bounds = array<i64: 1, 32>}, {pipeline_mode = #tpu.pipeline_mode<synchronous>, transform_indices = @transform_5, window_bounds = array<i64: 1, 32>}, {pipeline_mode = #tpu.pipeline_mode<synchronous>, transform_indices = @transform_6, window_bounds = array<i64: 1, 32>}, {pipeline_mode = #tpu.pipeline_mode<synchronous>, transform_indices = @transform_7, window_bounds = array<i64: 32, 64>}, {pipeline_mode = #tpu.pipeline_mode<synchronous>, transform_indices = @transform_8, window_bounds = array<i64: 1, 64>}, {pipeline_mode = #tpu.pipeline_mode<synchronous>, transform_indices = @transform_9, window_bounds = array<i64: 64, 32>}, {pipeline_mode = #tpu.pipeline_mode<synchronous>, transform_indices = @transform_10, window_bounds = array<i64: 1, 32>}, {pipeline_mode = #tpu.pipeline_mode<synchronous>, transform_indices = @transform_11, window_bounds = array<i64: 1, 32>}, {pipeline_mode = #tpu.pipeline_mode<synchronous>, transform_indices = @transform_12, window_bounds = array<i64: 1, 32>}, {transform_indices = @transform_13, window_bounds = array<i64: 1, 8, 32>}]} {
    %c0 = arith.constant 0 : index
    %c0_0 = arith.constant 0 : index
    %c0_1 = arith.constant 0 : index
    %0 = vector.load %arg1[%c0, %c0_0, %c0_1] : memref<1x8x32xf32, #tpu.memory_space<vmem>>, vector<1x8x32xf32>
    %1 = vector.shape_cast %0 : vector<1x8x32xf32> to vector<8x32xf32>
    %2 = arith.truncf %1 : vector<8x32xf32> to vector<8x32xbf16>
    %c0_2 = arith.constant 0 : index
    %c0_3 = arith.constant 0 : index
    %3 = vector.load %arg2[%c0_2, %c0_3] : memref<32x96xbf16, #tpu.memory_space<vmem>>, vector<32x96xbf16>
    %cst = arith.constant dense<0.000000e+00> : vector<8x96xf32>
    %4 = tpu.matmul %2, %3, %cst {dimension_numbers = #tpu.dot_dimension_numbers<[1], [0], [0], [1], [0, 0, 1, 1], [], []>} : vector<8x32xbf16>, vector<32x96xbf16>, vector<8x96xf32> -> vector<8x96xf32>
    %c0_4 = arith.constant 0 : index
    %c0_5 = arith.constant 0 : index
    %5 = vector.load %arg3[%c0_4, %c0_5] : memref<1x96xf32, #tpu.memory_space<vmem>>, vector<1x96xf32>
    %6 = vector.broadcast %5 : vector<1x96xf32> to vector<8x96xf32>
    %7 = arith.addf %4, %6 : vector<8x96xf32>
    %8 = vector.extract_strided_slice %7 {offsets = [0, 0], sizes = [8, 32], strides = [1, 1]} : vector<8x96xf32> to vector<8x32xf32>
    %9 = vector.extract_strided_slice %7 {offsets = [0, 32], sizes = [8, 32], strides = [1, 1]} : vector<8x96xf32> to vector<8x32xf32>
    %10 = vector.extract_strided_slice %7 {offsets = [0, 64], sizes = [8, 32], strides = [1, 1]} : vector<8x96xf32> to vector<8x32xf32>
    %c0_6 = arith.constant 0 : index
    %c0_7 = arith.constant 0 : index
    %11 = vector.load %arg4[%c0_6, %c0_7] : memref<32x32xbf16, #tpu.memory_space<vmem>>, vector<32x32xbf16>
    %c0_8 = arith.constant 0 : index
    %c0_9 = arith.constant 0 : index
    %12 = vector.load %arg5[%c0_8, %c0_9] : memref<1x32xf32, #tpu.memory_space<vmem>>, vector<1x32xf32>
    %cst_10 = arith.constant 0.353553385 : f32
    %13 = vector.broadcast %cst_10 : f32 to vector<8x32xf32>
    %14 = arith.mulf %8, %13 : vector<8x32xf32>
    %15 = arith.truncf %14 : vector<8x32xf32> to vector<8x32xbf16>
    %16 = arith.truncf %9 : vector<8x32xf32> to vector<8x32xbf16>
    %17 = arith.truncf %10 : vector<8x32xf32> to vector<8x32xbf16>
    %18 = vector.extract_strided_slice %15 {offsets = [0, 0], sizes = [8, 8], strides = [1, 1]} : vector<8x32xbf16> to vector<8x8xbf16>
    %19 = vector.extract_strided_slice %16 {offsets = [0, 0], sizes = [8, 8], strides = [1, 1]} : vector<8x32xbf16> to vector<8x8xbf16>
    %cst_11 = arith.constant dense<0.000000e+00> : vector<8x8xf32>
    %20 = tpu.matmul %18, %19, %cst_11 {dimension_numbers = #tpu.dot_dimension_numbers<[1], [1], [0], [0], [0, 0, 1, 0], [], []>} : vector<8x8xbf16>, vector<8x8xbf16>, vector<8x8xf32> -> vector<8x8xf32>
    %21 = vector.extract_strided_slice %15 {offsets = [0, 8], sizes = [8, 8], strides = [1, 1]} : vector<8x32xbf16> to vector<8x8xbf16>
    %22 = vector.extract_strided_slice %16 {offsets = [0, 8], sizes = [8, 8], strides = [1, 1]} : vector<8x32xbf16> to vector<8x8xbf16>
    %cst_12 = arith.constant dense<0.000000e+00> : vector<8x8xf32>
    %23 = tpu.matmul %21, %22, %cst_12 {dimension_numbers = #tpu.dot_dimension_numbers<[1], [1], [0], [0], [0, 0, 1, 0], [], []>} : vector<8x8xbf16>, vector<8x8xbf16>, vector<8x8xf32> -> vector<8x8xf32>
    %24 = vector.extract_strided_slice %15 {offsets = [0, 16], sizes = [8, 8], strides = [1, 1]} : vector<8x32xbf16> to vector<8x8xbf16>
    %25 = vector.extract_strided_slice %16 {offsets = [0, 16], sizes = [8, 8], strides = [1, 1]} : vector<8x32xbf16> to vector<8x8xbf16>
    %cst_13 = arith.constant dense<0.000000e+00> : vector<8x8xf32>
    %26 = tpu.matmul %24, %25, %cst_13 {dimension_numbers = #tpu.dot_dimension_numbers<[1], [1], [0], [0], [0, 0, 1, 0], [], []>} : vector<8x8xbf16>, vector<8x8xbf16>, vector<8x8xf32> -> vector<8x8xf32>
    %27 = vector.extract_strided_slice %15 {offsets = [0, 24], sizes = [8, 8], strides = [1, 1]} : vector<8x32xbf16> to vector<8x8xbf16>
    %28 = vector.extract_strided_slice %16 {offsets = [0, 24], sizes = [8, 8], strides = [1, 1]} : vector<8x32xbf16> to vector<8x8xbf16>
    %cst_14 = arith.constant dense<0.000000e+00> : vector<8x8xf32>
    %29 = tpu.matmul %27, %28, %cst_14 {dimension_numbers = #tpu.dot_dimension_numbers<[1], [1], [0], [0], [0, 0, 1, 0], [], []>} : vector<8x8xbf16>, vector<8x8xbf16>, vector<8x8xf32> -> vector<8x8xf32>
    %30 = vector.shape_cast %20 : vector<8x8xf32> to vector<1x8x8xf32>
    %31 = vector.shape_cast %23 : vector<8x8xf32> to vector<1x8x8xf32>
    %32 = vector.shape_cast %26 : vector<8x8xf32> to vector<1x8x8xf32>
    %33 = vector.shape_cast %29 : vector<8x8xf32> to vector<1x8x8xf32>
    %34 = tpu.concatenate %30, %31, %32, %33 in 0 : vector<1x8x8xf32>, vector<1x8x8xf32>, vector<1x8x8xf32>, vector<1x8x8xf32> -> vector<4x8x8xf32>
    %cst_15 = arith.constant dense<0xFF800000> : vector<4x8xf32>
    %35 = vector.multi_reduction <maximumf>, %34, %cst_15 [2] : vector<4x8x8xf32> to vector<4x8xf32>
    %36 = vector.shape_cast %35 : vector<4x8xf32> to vector<4x8x1xf32>
    %37 = vector.broadcast %36 : vector<4x8x1xf32> to vector<4x8x8xf32>
    %38 = arith.subf %34, %37 : vector<4x8x8xf32>
    %39 = math.exp %38 : vector<4x8x8xf32>
    %cst_16 = arith.constant dense<0.000000e+00> : vector<4x8xf32>
    %40 = vector.multi_reduction <add>, %39, %cst_16 [2] : vector<4x8x8xf32> to vector<4x8xf32>
    %41 = vector.shape_cast %40 : vector<4x8xf32> to vector<4x8x1xf32>
    %42 = tpu.reciprocal %41 {approx = true} : vector<4x8x1xf32> -> vector<4x8x1xf32>
    %43 = vector.broadcast %42 : vector<4x8x1xf32> to vector<4x8x8xf32>
    %44 = arith.mulf %39, %43 : vector<4x8x8xf32>
    %45 = arith.truncf %44 : vector<4x8x8xf32> to vector<4x8x8xbf16>
    %46 = vector.extract_strided_slice %45 {offsets = [0, 0, 0], sizes = [1, 8, 8], strides = [1, 1, 1]} : vector<4x8x8xbf16> to vector<1x8x8xbf16>
    %47 = vector.shape_cast %46 : vector<1x8x8xbf16> to vector<8x8xbf16>
    %48 = vector.extract_strided_slice %17 {offsets = [0, 0], sizes = [8, 8], strides = [1, 1]} : vector<8x32xbf16> to vector<8x8xbf16>
    %cst_17 = arith.constant dense<0.000000e+00> : vector<8x8xf32>
    %49 = tpu.matmul %47, %48, %cst_17 {dimension_numbers = #tpu.dot_dimension_numbers<[1], [0], [0], [1], [0, 0, 1, 1], [], []>} : vector<8x8xbf16>, vector<8x8xbf16>, vector<8x8xf32> -> vector<8x8xf32>
    %50 = vector.extract_strided_slice %45 {offsets = [1, 0, 0], sizes = [1, 8, 8], strides = [1, 1, 1]} : vector<4x8x8xbf16> to vector<1x8x8xbf16>
    %51 = vector.shape_cast %50 : vector<1x8x8xbf16> to vector<8x8xbf16>
    %52 = vector.extract_strided_slice %17 {offsets = [0, 8], sizes = [8, 8], strides = [1, 1]} : vector<8x32xbf16> to vector<8x8xbf16>
    %cst_18 = arith.constant dense<0.000000e+00> : vector<8x8xf32>
    %53 = tpu.matmul %51, %52, %cst_18 {dimension_numbers = #tpu.dot_dimension_numbers<[1], [0], [0], [1], [0, 0, 1, 1], [], []>} : vector<8x8xbf16>, vector<8x8xbf16>, vector<8x8xf32> -> vector<8x8xf32>
    %54 = vector.extract_strided_slice %45 {offsets = [2, 0, 0], sizes = [1, 8, 8], strides = [1, 1, 1]} : vector<4x8x8xbf16> to vector<1x8x8xbf16>
    %55 = vector.shape_cast %54 : vector<1x8x8xbf16> to vector<8x8xbf16>
    %56 = vector.extract_strided_slice %17 {offsets = [0, 16], sizes = [8, 8], strides = [1, 1]} : vector<8x32xbf16> to vector<8x8xbf16>
    %cst_19 = arith.constant dense<0.000000e+00> : vector<8x8xf32>
    %57 = tpu.matmul %55, %56, %cst_19 {dimension_numbers = #tpu.dot_dimension_numbers<[1], [0], [0], [1], [0, 0, 1, 1], [], []>} : vector<8x8xbf16>, vector<8x8xbf16>, vector<8x8xf32> -> vector<8x8xf32>
    %58 = vector.extract_strided_slice %45 {offsets = [3, 0, 0], sizes = [1, 8, 8], strides = [1, 1, 1]} : vector<4x8x8xbf16> to vector<1x8x8xbf16>
    %59 = vector.shape_cast %58 : vector<1x8x8xbf16> to vector<8x8xbf16>
    %60 = vector.extract_strided_slice %17 {offsets = [0, 24], sizes = [8, 8], strides = [1, 1]} : vector<8x32xbf16> to vector<8x8xbf16>
    %cst_20 = arith.constant dense<0.000000e+00> : vector<8x8xf32>
    %61 = tpu.matmul %59, %60, %cst_20 {dimension_numbers = #tpu.dot_dimension_numbers<[1], [0], [0], [1], [0, 0, 1, 1], [], []>} : vector<8x8xbf16>, vector<8x8xbf16>, vector<8x8xf32> -> vector<8x8xf32>
    %62 = tpu.concatenate %49, %53, %57, %61 in 1 : vector<8x8xf32>, vector<8x8xf32>, vector<8x8xf32>, vector<8x8xf32> -> vector<8x32xf32>
    %63 = arith.truncf %62 : vector<8x32xf32> to vector<8x32xbf16>
    %cst_21 = arith.constant dense<0.000000e+00> : vector<8x32xf32>
    %64 = tpu.matmul %63, %11, %cst_21 {dimension_numbers = #tpu.dot_dimension_numbers<[1], [0], [0], [1], [0, 0, 1, 1], [], []>} : vector<8x32xbf16>, vector<32x32xbf16>, vector<8x32xf32> -> vector<8x32xf32>
    %65 = vector.broadcast %12 : vector<1x32xf32> to vector<8x32xf32>
    %66 = arith.addf %64, %65 : vector<8x32xf32>
    %67 = arith.addf %1, %66 : vector<8x32xf32>
    %c0_22 = arith.constant 0 : index
    %c0_23 = arith.constant 0 : index
    %68 = vector.load %arg6[%c0_22, %c0_23] : memref<1x32xf32, #tpu.memory_space<vmem>>, vector<1x32xf32>
    %c0_24 = arith.constant 0 : index
    %c0_25 = arith.constant 0 : index
    %69 = vector.load %arg7[%c0_24, %c0_25] : memref<1x32xf32, #tpu.memory_space<vmem>>, vector<1x32xf32>
    %cst_26 = arith.constant dense<0.000000e+00> : vector<8xf32>
    %70 = vector.multi_reduction <add>, %67, %cst_26 [1] : vector<8x32xf32> to vector<8xf32>
    %71 = vector.shape_cast %70 : vector<8xf32> to vector<8x1xf32>
    %cst_27 = arith.constant 3.200000e+01 : f32
    %72 = vector.broadcast %cst_27 : f32 to vector<8x1xf32>
    %73 = arith.divf %71, %72 : vector<8x1xf32>
    %74 = vector.broadcast %73 : vector<8x1xf32> to vector<8x32xf32>
    %75 = arith.subf %67, %74 : vector<8x32xf32>
    %76 = arith.mulf %75, %75 : vector<8x32xf32>
    %cst_28 = arith.constant dense<0.000000e+00> : vector<8xf32>
    %77 = vector.multi_reduction <add>, %76, %cst_28 [1] : vector<8x32xf32> to vector<8xf32>
    %78 = vector.shape_cast %77 : vector<8xf32> to vector<8x1xf32>
    %cst_29 = arith.constant 3.200000e+01 : f32
    %79 = vector.broadcast %cst_29 : f32 to vector<8x1xf32>
    %80 = arith.divf %78, %79 : vector<8x1xf32>
    %81 = vector.broadcast %73 : vector<8x1xf32> to vector<8x32xf32>
    %82 = arith.subf %67, %81 : vector<8x32xf32>
    %cst_30 = arith.constant 9.99999974E-6 : f32
    %83 = vector.broadcast %cst_30 : f32 to vector<8x1xf32>
    %84 = arith.addf %80, %83 : vector<8x1xf32>
    %85 = math.rsqrt %84 : vector<8x1xf32>
    %86 = vector.broadcast %85 : vector<8x1xf32> to vector<8x32xf32>
    %87 = arith.mulf %82, %86 : vector<8x32xf32>
    %88 = vector.broadcast %68 : vector<1x32xf32> to vector<8x32xf32>
    %89 = arith.mulf %87, %88 : vector<8x32xf32>
    %90 = vector.broadcast %69 : vector<1x32xf32> to vector<8x32xf32>
    %91 = arith.addf %89, %90 : vector<8x32xf32>
    %c0_31 = arith.constant 0 : index
    %c0_32 = arith.constant 0 : index
    %92 = vector.load %arg8[%c0_31, %c0_32] : memref<32x64xbf16, #tpu.memory_space<vmem>>, vector<32x64xbf16>
    %c0_33 = arith.constant 0 : index
    %c0_34 = arith.constant 0 : index
    %93 = vector.load %arg9[%c0_33, %c0_34] : memref<1x64xf32, #tpu.memory_space<vmem>>, vector<1x64xf32>
    %c0_35 = arith.constant 0 : index
    %c0_36 = arith.constant 0 : index
    %94 = vector.load %arg10[%c0_35, %c0_36] : memref<64x32xbf16, #tpu.memory_space<vmem>>, vector<64x32xbf16>
    %c0_37 = arith.constant 0 : index
    %c0_38 = arith.constant 0 : index
    %95 = vector.load %arg11[%c0_37, %c0_38] : memref<1x32xf32, #tpu.memory_space<vmem>>, vector<1x32xf32>
    %96 = arith.truncf %91 : vector<8x32xf32> to vector<8x32xbf16>
    %cst_39 = arith.constant dense<0.000000e+00> : vector<8x64xf32>
    %97 = tpu.matmul %96, %92, %cst_39 {dimension_numbers = #tpu.dot_dimension_numbers<[1], [0], [0], [1], [0, 0, 1, 1], [], []>} : vector<8x32xbf16>, vector<32x64xbf16>, vector<8x64xf32> -> vector<8x64xf32>
    %98 = vector.broadcast %93 : vector<1x64xf32> to vector<8x64xf32>
    %99 = arith.addf %97, %98 : vector<8x64xf32>
    %cst_40 = arith.constant 0.000000e+00 : f32
    %100 = vector.broadcast %cst_40 : f32 to vector<8x64xf32>
    %101 = arith.maximumf %99, %100 : vector<8x64xf32>
    %102 = arith.truncf %101 : vector<8x64xf32> to vector<8x64xbf16>
    %cst_41 = arith.constant dense<0.000000e+00> : vector<8x32xf32>
    %103 = tpu.matmul %102, %94, %cst_41 {dimension_numbers = #tpu.dot_dimension_numbers<[1], [0], [0], [1], [0, 0, 1, 1], [], []>} : vector<8x64xbf16>, vector<64x32xbf16>, vector<8x32xf32> -> vector<8x32xf32>
    %104 = vector.broadcast %95 : vector<1x32xf32> to vector<8x32xf32>
    %105 = arith.addf %103, %104 : vector<8x32xf32>
    %106 = arith.addf %91, %105 : vector<8x32xf32>
    %c0_42 = arith.constant 0 : index
    %c0_43 = arith.constant 0 : index
    %107 = vector.load %arg12[%c0_42, %c0_43] : memref<1x32xf32, #tpu.memory_space<vmem>>, vector<1x32xf32>
    %c0_44 = arith.constant 0 : index
    %c0_45 = arith.constant 0 : index
    %108 = vector.load %arg13[%c0_44, %c0_45] : memref<1x32xf32, #tpu.memory_space<vmem>>, vector<1x32xf32>
    %cst_46 = arith.constant dense<0.000000e+00> : vector<8xf32>
    %109 = vector.multi_reduction <add>, %106, %cst_46 [1] : vector<8x32xf32> to vector<8xf32>
    %110 = vector.shape_cast %109 : vector<8xf32> to vector<8x1xf32>
    %cst_47 = arith.constant 3.200000e+01 : f32
    %111 = vector.broadcast %cst_47 : f32 to vector<8x1xf32>
    %112 = arith.divf %110, %111 : vector<8x1xf32>
    %113 = vector.broadcast %112 : vector<8x1xf32> to vector<8x32xf32>
    %114 = arith.subf %106, %113 : vector<8x32xf32>
    %115 = arith.mulf %114, %114 : vector<8x32xf32>
    %cst_48 = arith.constant dense<0.000000e+00> : vector<8xf32>
    %116 = vector.multi_reduction <add>, %115, %cst_48 [1] : vector<8x32xf32> to vector<8xf32>
    %117 = vector.shape_cast %116 : vector<8xf32> to vector<8x1xf32>
    %cst_49 = arith.constant 3.200000e+01 : f32
    %118 = vector.broadcast %cst_49 : f32 to vector<8x1xf32>
    %119 = arith.divf %117, %118 : vector<8x1xf32>
    %120 = vector.broadcast %112 : vector<8x1xf32> to vector<8x32xf32>
    %121 = arith.subf %106, %120 : vector<8x32xf32>
    %cst_50 = arith.constant 9.99999974E-6 : f32
    %122 = vector.broadcast %cst_50 : f32 to vector<8x1xf32>
    %123 = arith.addf %119, %122 : vector<8x1xf32>
    %124 = math.rsqrt %123 : vector<8x1xf32>
    %125 = vector.broadcast %124 : vector<8x1xf32> to vector<8x32xf32>
    %126 = arith.mulf %121, %125 : vector<8x32xf32>
    %127 = vector.broadcast %107 : vector<1x32xf32> to vector<8x32xf32>
    %128 = arith.mulf %126, %127 : vector<8x32xf32>
    %129 = vector.broadcast %108 : vector<1x32xf32> to vector<8x32xf32>
    %130 = arith.addf %128, %129 : vector<8x32xf32>
    %c0_51 = arith.constant 0 : index
    %c0_52 = arith.constant 0 : index
    %c0_53 = arith.constant 0 : index
    %131 = vector.load %arg14[%c0_51, %c0_52, %c0_53] : memref<1x8x32xf32, #tpu.memory_space<vmem>>, vector<1x8x32xf32>
    %132 = vector.shape_cast %131 : vector<1x8x32xf32> to vector<8x32xf32>
    %133 = vector.shape_cast %130 : vector<8x32xf32> to vector<1x8x32xf32>
    tpu.vector_store %arg14[%c0_51, %c0_52, %c0_53], %133 {strides = array<i32>} : memref<1x8x32xf32, #tpu.memory_space<vmem>>, vector<1x8x32xf32>,
    return
  }
  func.func @transform_0(%arg0: i32) -> (i32, i32, i32) {
    %c0_i32 = arith.constant 0 : i32
    %c0_i32_0 = arith.constant 0 : i32
    %c0_i32_1 = arith.constant 0 : i32
    return %arg0, %c0_i32, %c0_i32_0 : i32, i32, i32
  }
  func.func @transform_1(%arg0: i32) -> (i32, i32) {
    %c0_i32 = arith.constant 0 : i32
    %c0_i32_0 = arith.constant 0 : i32
    %c0_i32_1 = arith.constant 0 : i32
    return %c0_i32, %c0_i32_0 : i32, i32
  }
  func.func @transform_2(%arg0: i32) -> (i32, i32) {
    %c0_i32 = arith.constant 0 : i32
    %c0_i32_0 = arith.constant 0 : i32
    %c0_i32_1 = arith.constant 0 : i32
    return %c0_i32, %c0_i32_0 : i32, i32
  }
  func.func @transform_3(%arg0: i32) -> (i32, i32) {
    %c0_i32 = arith.constant 0 : i32
    %c0_i32_0 = arith.constant 0 : i32
    %c0_i32_1 = arith.constant 0 : i32
    return %c0_i32, %c0_i32_0 : i32, i32
  }
  func.func @transform_4(%arg0: i32) -> (i32, i32) {
    %c0_i32 = arith.constant 0 : i32
    %c0_i32_0 = arith.constant 0 : i32
    %c0_i32_1 = arith.constant 0 : i32
    return %c0_i32, %c0_i32_0 : i32, i32
  }
  func.func @transform_5(%arg0: i32) -> (i32, i32) {
    %c0_i32 = arith.constant 0 : i32
    %c0_i32_0 = arith.constant 0 : i32
    %c0_i32_1 = arith.constant 0 : i32
    return %c0_i32, %c0_i32_0 : i32, i32
  }
  func.func @transform_6(%arg0: i32) -> (i32, i32) {
    %c0_i32 = arith.constant 0 : i32
    %c0_i32_0 = arith.constant 0 : i32
    %c0_i32_1 = arith.constant 0 : i32
    return %c0_i32, %c0_i32_0 : i32, i32
  }
  func.func @transform_7(%arg0: i32) -> (i32, i32) {
    %c0_i32 = arith.constant 0 : i32
    %c0_i32_0 = arith.constant 0 : i32
    %c0_i32_1 = arith.constant 0 : i32
    return %c0_i32, %c0_i32_0 : i32, i32
  }
  func.func @transform_8(%arg0: i32) -> (i32, i32) {
    %c0_i32 = arith.constant 0 : i32
    %c0_i32_0 = arith.constant 0 : i32
    %c0_i32_1 = arith.constant 0 : i32
    return %c0_i32, %c0_i32_0 : i32, i32
  }
  func.func @transform_9(%arg0: i32) -> (i32, i32) {
    %c0_i32 = arith.constant 0 : i32
    %c0_i32_0 = arith.constant 0 : i32
    %c0_i32_1 = arith.constant 0 : i32
    return %c0_i32, %c0_i32_0 : i32, i32
  }
  func.func @transform_10(%arg0: i32) -> (i32, i32) {
    %c0_i32 = arith.constant 0 : i32
    %c0_i32_0 = arith.constant 0 : i32
    %c0_i32_1 = arith.constant 0 : i32
    return %c0_i32, %c0_i32_0 : i32, i32
  }
  func.func @transform_11(%arg0: i32) -> (i32, i32) {
    %c0_i32 = arith.constant 0 : i32
    %c0_i32_0 = arith.constant 0 : i32
    %c0_i32_1 = arith.constant 0 : i32
    return %c0_i32, %c0_i32_0 : i32, i32
  }
  func.func @transform_12(%arg0: i32) -> (i32, i32) {
    %c0_i32 = arith.constant 0 : i32
    %c0_i32_0 = arith.constant 0 : i32
    %c0_i32_1 = arith.constant 0 : i32
    return %c0_i32, %c0_i32_0 : i32, i32
  }
  func.func @transform_13(%arg0: i32) -> (i32, i32, i32) {
    %c0_i32 = arith.constant 0 : i32
    %c0_i32_0 = arith.constant 0 : i32
    %c0_i32_1 = arith.constant 0 : i32
    return %arg0, %c0_i32, %c0_i32_0 : i32, i32, i32
  }
}

module attributes {stable_mosaic.version = 11 : i64} {
  func.func @_decoder_block_kernel(%arg0: i32, %arg1: memref<1x8x32xf32, #tpu.memory_space<vmem>>, %arg2: memref<1x8x32xf32, #tpu.memory_space<vmem>>, %arg3: memref<32x96xbf16, #tpu.memory_space<vmem>>, %arg4: memref<1x96xf32, #tpu.memory_space<vmem>>, %arg5: memref<32x32xbf16, #tpu.memory_space<vmem>>, %arg6: memref<1x32xf32, #tpu.memory_space<vmem>>, %arg7: memref<1x32xf32, #tpu.memory_space<vmem>>, %arg8: memref<1x32xf32, #tpu.memory_space<vmem>>, %arg9: memref<32x32xbf16, #tpu.memory_space<vmem>>, %arg10: memref<1x32xf32, #tpu.memory_space<vmem>>, %arg11: memref<32x64xbf16, #tpu.memory_space<vmem>>, %arg12: memref<1x64xf32, #tpu.memory_space<vmem>>, %arg13: memref<32x32xbf16, #tpu.memory_space<vmem>>, %arg14: memref<1x32xf32, #tpu.memory_space<vmem>>, %arg15: memref<1x32xf32, #tpu.memory_space<vmem>>, %arg16: memref<1x32xf32, #tpu.memory_space<vmem>>, %arg17: memref<32x64xbf16, #tpu.memory_space<vmem>>, %arg18: memref<1x64xf32, #tpu.memory_space<vmem>>, %arg19: memref<64x32xbf16, #tpu.memory_space<vmem>>, %arg20: memref<1x32xf32, #tpu.memory_space<vmem>>, %arg21: memref<1x32xf32, #tpu.memory_space<vmem>>, %arg22: memref<1x32xf32, #tpu.memory_space<vmem>>, %arg23: memref<1x8x32xf32, #tpu.memory_space<vmem>>) attributes {dimension_semantics = [#tpu.dimension_semantics<parallel>], iteration_bounds = array<i64: 2>, scalar_prefetch = 0 : i64, scratch_operands = 0 : i64, tpu.core_type = #tpu.core_type<tc>, window_params = [{transform_indices = @transform_0, window_bounds = array<i64: 1, 8, 32>}, {transform_indices = @transform_1, window_bounds = array<i64: 1, 8, 32>}, {pipeline_mode = #tpu.pipeline_mode<synchronous>, transform_indices = @transform_2, window_bounds = array<i64: 32, 96>}, {pipeline_mode = #tpu.pipeline_mode<synchronous>, transform_indices = @transform_3, window_bounds = array<i64: 1, 96>}, {pipeline_mode = #tpu.pipeline_mode<synchronous>, transform_indices = @transform_4, window_bounds = array<i64: 32, 32>}, {pipeline_mode = #tpu.pipeline_mode<synchronous>, transform_indices = @transform_5, window_bounds = array<i64: 1, 32>}, {pipeline_mode = #tpu.pipeline_mode<synchronous>, transform_indices = @transform_6, window_bounds = array<i64: 1, 32>}, {pipeline_mode = #tpu.pipeline_mode<synchronous>, transform_indices = @transform_7, window_bounds = array<i64: 1, 32>}, {pipeline_mode = #tpu.pipeline_mode<synchronous>, transform_indices = @transform_8, window_bounds = array<i64: 32, 32>}, {pipeline_mode = #tpu.pipeline_mode<synchronous>, transform_indices = @transform_9, window_bounds = array<i64: 1, 32>}, {pipeline_mode = #tpu.pipeline_mode<synchronous>, transform_indices = @transform_10, window_bounds = array<i64: 32, 64>}, {pipeline_mode = #tpu.pipeline_mode<synchronous>, transform_indices = @transform_11, window_bounds = array<i64: 1, 64>}, {pipeline_mode = #tpu.pipeline_mode<synchronous>, transform_indices = @transform_12, window_bounds = array<i64: 32, 32>}, {pipeline_mode = #tpu.pipeline_mode<synchronous>, transform_indices = @transform_13, window_bounds = array<i64: 1, 32>}, {pipeline_mode = #tpu.pipeline_mode<synchronous>, transform_indices = @transform_14, window_bounds = array<i64: 1, 32>}, {pipeline_mode = #tpu.pipeline_mode<synchronous>, transform_indices = @transform_15, window_bounds = array<i64: 1, 32>}, {pipeline_mode = #tpu.pipeline_mode<synchronous>, transform_indices = @transform_16, window_bounds = array<i64: 32, 64>}, {pipeline_mode = #tpu.pipeline_mode<synchronous>, transform_indices = @transform_17, window_bounds = array<i64: 1, 64>}, {pipeline_mode = #tpu.pipeline_mode<synchronous>, transform_indices = @transform_18, window_bounds = array<i64: 64, 32>}, {pipeline_mode = #tpu.pipeline_mode<synchronous>, transform_indices = @transform_19, window_bounds = array<i64: 1, 32>}, {pipeline_mode = #tpu.pipeline_mode<synchronous>, transform_indices = @transform_20, window_bounds = array<i64: 1, 32>}, {pipeline_mode = #tpu.pipeline_mode<synchronous>, transform_indices = @transform_21, window_bounds = array<i64: 1, 32>}, {transform_indices = @transform_22, window_bounds = array<i64: 1, 8, 32>}]} {
    %c0 = arith.constant 0 : index
    %c0_0 = arith.constant 0 : index
    %c0_1 = arith.constant 0 : index
    %0 = vector.load %arg1[%c0, %c0_0, %c0_1] : memref<1x8x32xf32, #tpu.memory_space<vmem>>, vector<1x8x32xf32>
    %1 = vector.shape_cast %0 : vector<1x8x32xf32> to vector<8x32xf32>
    %c0_2 = arith.constant 0 : index
    %c0_3 = arith.constant 0 : index
    %c0_4 = arith.constant 0 : index
    %2 = vector.load %arg2[%c0_2, %c0_3, %c0_4] : memref<1x8x32xf32, #tpu.memory_space<vmem>>, vector<1x8x32xf32>
    %3 = vector.shape_cast %2 : vector<1x8x32xf32> to vector<8x32xf32>
    %4 = arith.truncf %1 : vector<8x32xf32> to vector<8x32xbf16>
    %c0_5 = arith.constant 0 : index
    %c0_6 = arith.constant 0 : index
    %5 = vector.load %arg3[%c0_5, %c0_6] : memref<32x96xbf16, #tpu.memory_space<vmem>>, vector<32x96xbf16>
    %cst = arith.constant dense<0.000000e+00> : vector<8x96xf32>
    %6 = tpu.matmul %4, %5, %cst {dimension_numbers = #tpu.dot_dimension_numbers<[1], [0], [0], [1], [0, 0, 1, 1], [], []>} : vector<8x32xbf16>, vector<32x96xbf16>, vector<8x96xf32> -> vector<8x96xf32>
    %c0_7 = arith.constant 0 : index
    %c0_8 = arith.constant 0 : index
    %7 = vector.load %arg4[%c0_7, %c0_8] : memref<1x96xf32, #tpu.memory_space<vmem>>, vector<1x96xf32>
    %8 = vector.broadcast %7 : vector<1x96xf32> to vector<8x96xf32>
    %9 = arith.addf %6, %8 : vector<8x96xf32>
    %10 = vector.extract_strided_slice %9 {offsets = [0, 0], sizes = [8, 32], strides = [1, 1]} : vector<8x96xf32> to vector<8x32xf32>
    %11 = vector.extract_strided_slice %9 {offsets = [0, 32], sizes = [8, 32], strides = [1, 1]} : vector<8x96xf32> to vector<8x32xf32>
    %12 = vector.extract_strided_slice %9 {offsets = [0, 64], sizes = [8, 32], strides = [1, 1]} : vector<8x96xf32> to vector<8x32xf32>
    %c0_9 = arith.constant 0 : index
    %c0_10 = arith.constant 0 : index
    %13 = vector.load %arg5[%c0_9, %c0_10] : memref<32x32xbf16, #tpu.memory_space<vmem>>, vector<32x32xbf16>
    %c0_11 = arith.constant 0 : index
    %c0_12 = arith.constant 0 : index
    %14 = vector.load %arg6[%c0_11, %c0_12] : memref<1x32xf32, #tpu.memory_space<vmem>>, vector<1x32xf32>
    %cst_13 = arith.constant 0.353553385 : f32
    %15 = vector.broadcast %cst_13 : f32 to vector<8x32xf32>
    %16 = arith.mulf %10, %15 : vector<8x32xf32>
    %17 = arith.truncf %16 : vector<8x32xf32> to vector<8x32xbf16>
    %18 = arith.truncf %11 : vector<8x32xf32> to vector<8x32xbf16>
    %19 = arith.truncf %12 : vector<8x32xf32> to vector<8x32xbf16>
    %20 = vector.extract_strided_slice %17 {offsets = [0, 0], sizes = [8, 8], strides = [1, 1]} : vector<8x32xbf16> to vector<8x8xbf16>
    %21 = vector.extract_strided_slice %18 {offsets = [0, 0], sizes = [8, 8], strides = [1, 1]} : vector<8x32xbf16> to vector<8x8xbf16>
    %cst_14 = arith.constant dense<0.000000e+00> : vector<8x8xf32>
    %22 = tpu.matmul %20, %21, %cst_14 {dimension_numbers = #tpu.dot_dimension_numbers<[1], [1], [0], [0], [0, 0, 1, 0], [], []>} : vector<8x8xbf16>, vector<8x8xbf16>, vector<8x8xf32> -> vector<8x8xf32>
    %23 = vector.extract_strided_slice %17 {offsets = [0, 8], sizes = [8, 8], strides = [1, 1]} : vector<8x32xbf16> to vector<8x8xbf16>
    %24 = vector.extract_strided_slice %18 {offsets = [0, 8], sizes = [8, 8], strides = [1, 1]} : vector<8x32xbf16> to vector<8x8xbf16>
    %cst_15 = arith.constant dense<0.000000e+00> : vector<8x8xf32>
    %25 = tpu.matmul %23, %24, %cst_15 {dimension_numbers = #tpu.dot_dimension_numbers<[1], [1], [0], [0], [0, 0, 1, 0], [], []>} : vector<8x8xbf16>, vector<8x8xbf16>, vector<8x8xf32> -> vector<8x8xf32>
    %26 = vector.extract_strided_slice %17 {offsets = [0, 16], sizes = [8, 8], strides = [1, 1]} : vector<8x32xbf16> to vector<8x8xbf16>
    %27 = vector.extract_strided_slice %18 {offsets = [0, 16], sizes = [8, 8], strides = [1, 1]} : vector<8x32xbf16> to vector<8x8xbf16>
    %cst_16 = arith.constant dense<0.000000e+00> : vector<8x8xf32>
    %28 = tpu.matmul %26, %27, %cst_16 {dimension_numbers = #tpu.dot_dimension_numbers<[1], [1], [0], [0], [0, 0, 1, 0], [], []>} : vector<8x8xbf16>, vector<8x8xbf16>, vector<8x8xf32> -> vector<8x8xf32>
    %29 = vector.extract_strided_slice %17 {offsets = [0, 24], sizes = [8, 8], strides = [1, 1]} : vector<8x32xbf16> to vector<8x8xbf16>
    %30 = vector.extract_strided_slice %18 {offsets = [0, 24], sizes = [8, 8], strides = [1, 1]} : vector<8x32xbf16> to vector<8x8xbf16>
    %cst_17 = arith.constant dense<0.000000e+00> : vector<8x8xf32>
    %31 = tpu.matmul %29, %30, %cst_17 {dimension_numbers = #tpu.dot_dimension_numbers<[1], [1], [0], [0], [0, 0, 1, 0], [], []>} : vector<8x8xbf16>, vector<8x8xbf16>, vector<8x8xf32> -> vector<8x8xf32>
    %32 = vector.shape_cast %22 : vector<8x8xf32> to vector<1x8x8xf32>
    %33 = vector.shape_cast %25 : vector<8x8xf32> to vector<1x8x8xf32>
    %34 = vector.shape_cast %28 : vector<8x8xf32> to vector<1x8x8xf32>
    %35 = vector.shape_cast %31 : vector<8x8xf32> to vector<1x8x8xf32>
    %36 = tpu.concatenate %32, %33, %34, %35 in 0 : vector<1x8x8xf32>, vector<1x8x8xf32>, vector<1x8x8xf32>, vector<1x8x8xf32> -> vector<4x8x8xf32>
    %cst_18 = arith.constant dense<0xFF800000> : vector<4x8xf32>
    %37 = vector.multi_reduction <maximumf>, %36, %cst_18 [2] : vector<4x8x8xf32> to vector<4x8xf32>
    %38 = vector.shape_cast %37 : vector<4x8xf32> to vector<4x8x1xf32>
    %39 = vector.broadcast %38 : vector<4x8x1xf32> to vector<4x8x8xf32>
    %40 = arith.subf %36, %39 : vector<4x8x8xf32>
    %41 = math.exp %40 : vector<4x8x8xf32>
    %cst_19 = arith.constant dense<0.000000e+00> : vector<4x8xf32>
    %42 = vector.multi_reduction <add>, %41, %cst_19 [2] : vector<4x8x8xf32> to vector<4x8xf32>
    %43 = vector.shape_cast %42 : vector<4x8xf32> to vector<4x8x1xf32>
    %44 = tpu.reciprocal %43 {approx = true} : vector<4x8x1xf32> -> vector<4x8x1xf32>
    %45 = vector.broadcast %44 : vector<4x8x1xf32> to vector<4x8x8xf32>
    %46 = arith.mulf %41, %45 : vector<4x8x8xf32>
    %47 = arith.truncf %46 : vector<4x8x8xf32> to vector<4x8x8xbf16>
    %48 = vector.extract_strided_slice %47 {offsets = [0, 0, 0], sizes = [1, 8, 8], strides = [1, 1, 1]} : vector<4x8x8xbf16> to vector<1x8x8xbf16>
    %49 = vector.shape_cast %48 : vector<1x8x8xbf16> to vector<8x8xbf16>
    %50 = vector.extract_strided_slice %19 {offsets = [0, 0], sizes = [8, 8], strides = [1, 1]} : vector<8x32xbf16> to vector<8x8xbf16>
    %cst_20 = arith.constant dense<0.000000e+00> : vector<8x8xf32>
    %51 = tpu.matmul %49, %50, %cst_20 {dimension_numbers = #tpu.dot_dimension_numbers<[1], [0], [0], [1], [0, 0, 1, 1], [], []>} : vector<8x8xbf16>, vector<8x8xbf16>, vector<8x8xf32> -> vector<8x8xf32>
    %52 = vector.extract_strided_slice %47 {offsets = [1, 0, 0], sizes = [1, 8, 8], strides = [1, 1, 1]} : vector<4x8x8xbf16> to vector<1x8x8xbf16>
    %53 = vector.shape_cast %52 : vector<1x8x8xbf16> to vector<8x8xbf16>
    %54 = vector.extract_strided_slice %19 {offsets = [0, 8], sizes = [8, 8], strides = [1, 1]} : vector<8x32xbf16> to vector<8x8xbf16>
    %cst_21 = arith.constant dense<0.000000e+00> : vector<8x8xf32>
    %55 = tpu.matmul %53, %54, %cst_21 {dimension_numbers = #tpu.dot_dimension_numbers<[1], [0], [0], [1], [0, 0, 1, 1], [], []>} : vector<8x8xbf16>, vector<8x8xbf16>, vector<8x8xf32> -> vector<8x8xf32>
    %56 = vector.extract_strided_slice %47 {offsets = [2, 0, 0], sizes = [1, 8, 8], strides = [1, 1, 1]} : vector<4x8x8xbf16> to vector<1x8x8xbf16>
    %57 = vector.shape_cast %56 : vector<1x8x8xbf16> to vector<8x8xbf16>
    %58 = vector.extract_strided_slice %19 {offsets = [0, 16], sizes = [8, 8], strides = [1, 1]} : vector<8x32xbf16> to vector<8x8xbf16>
    %cst_22 = arith.constant dense<0.000000e+00> : vector<8x8xf32>
    %59 = tpu.matmul %57, %58, %cst_22 {dimension_numbers = #tpu.dot_dimension_numbers<[1], [0], [0], [1], [0, 0, 1, 1], [], []>} : vector<8x8xbf16>, vector<8x8xbf16>, vector<8x8xf32> -> vector<8x8xf32>
    %60 = vector.extract_strided_slice %47 {offsets = [3, 0, 0], sizes = [1, 8, 8], strides = [1, 1, 1]} : vector<4x8x8xbf16> to vector<1x8x8xbf16>
    %61 = vector.shape_cast %60 : vector<1x8x8xbf16> to vector<8x8xbf16>
    %62 = vector.extract_strided_slice %19 {offsets = [0, 24], sizes = [8, 8], strides = [1, 1]} : vector<8x32xbf16> to vector<8x8xbf16>
    %cst_23 = arith.constant dense<0.000000e+00> : vector<8x8xf32>
    %63 = tpu.matmul %61, %62, %cst_23 {dimension_numbers = #tpu.dot_dimension_numbers<[1], [0], [0], [1], [0, 0, 1, 1], [], []>} : vector<8x8xbf16>, vector<8x8xbf16>, vector<8x8xf32> -> vector<8x8xf32>
    %64 = tpu.concatenate %51, %55, %59, %63 in 1 : vector<8x8xf32>, vector<8x8xf32>, vector<8x8xf32>, vector<8x8xf32> -> vector<8x32xf32>
    %65 = arith.truncf %64 : vector<8x32xf32> to vector<8x32xbf16>
    %cst_24 = arith.constant dense<0.000000e+00> : vector<8x32xf32>
    %66 = tpu.matmul %65, %13, %cst_24 {dimension_numbers = #tpu.dot_dimension_numbers<[1], [0], [0], [1], [0, 0, 1, 1], [], []>} : vector<8x32xbf16>, vector<32x32xbf16>, vector<8x32xf32> -> vector<8x32xf32>
    %67 = vector.broadcast %14 : vector<1x32xf32> to vector<8x32xf32>
    %68 = arith.addf %66, %67 : vector<8x32xf32>
    %69 = arith.addf %1, %68 : vector<8x32xf32>
    %c0_25 = arith.constant 0 : index
    %c0_26 = arith.constant 0 : index
    %70 = vector.load %arg7[%c0_25, %c0_26] : memref<1x32xf32, #tpu.memory_space<vmem>>, vector<1x32xf32>
    %c0_27 = arith.constant 0 : index
    %c0_28 = arith.constant 0 : index
    %71 = vector.load %arg8[%c0_27, %c0_28] : memref<1x32xf32, #tpu.memory_space<vmem>>, vector<1x32xf32>
    %cst_29 = arith.constant dense<0.000000e+00> : vector<8xf32>
    %72 = vector.multi_reduction <add>, %69, %cst_29 [1] : vector<8x32xf32> to vector<8xf32>
    %73 = vector.shape_cast %72 : vector<8xf32> to vector<8x1xf32>
    %cst_30 = arith.constant 3.200000e+01 : f32
    %74 = vector.broadcast %cst_30 : f32 to vector<8x1xf32>
    %75 = arith.divf %73, %74 : vector<8x1xf32>
    %76 = vector.broadcast %75 : vector<8x1xf32> to vector<8x32xf32>
    %77 = arith.subf %69, %76 : vector<8x32xf32>
    %78 = arith.mulf %77, %77 : vector<8x32xf32>
    %cst_31 = arith.constant dense<0.000000e+00> : vector<8xf32>
    %79 = vector.multi_reduction <add>, %78, %cst_31 [1] : vector<8x32xf32> to vector<8xf32>
    %80 = vector.shape_cast %79 : vector<8xf32> to vector<8x1xf32>
    %cst_32 = arith.constant 3.200000e+01 : f32
    %81 = vector.broadcast %cst_32 : f32 to vector<8x1xf32>
    %82 = arith.divf %80, %81 : vector<8x1xf32>
    %83 = vector.broadcast %75 : vector<8x1xf32> to vector<8x32xf32>
    %84 = arith.subf %69, %83 : vector<8x32xf32>
    %cst_33 = arith.constant 9.99999974E-6 : f32
    %85 = vector.broadcast %cst_33 : f32 to vector<8x1xf32>
    %86 = arith.addf %82, %85 : vector<8x1xf32>
    %87 = math.rsqrt %86 : vector<8x1xf32>
    %88 = vector.broadcast %87 : vector<8x1xf32> to vector<8x32xf32>
    %89 = arith.mulf %84, %88 : vector<8x32xf32>
    %90 = vector.broadcast %70 : vector<1x32xf32> to vector<8x32xf32>
    %91 = arith.mulf %89, %90 : vector<8x32xf32>
    %92 = vector.broadcast %71 : vector<1x32xf32> to vector<8x32xf32>
    %93 = arith.addf %91, %92 : vector<8x32xf32>
    %94 = arith.truncf %93 : vector<8x32xf32> to vector<8x32xbf16>
    %c0_34 = arith.constant 0 : index
    %c0_35 = arith.constant 0 : index
    %95 = vector.load %arg9[%c0_34, %c0_35] : memref<32x32xbf16, #tpu.memory_space<vmem>>, vector<32x32xbf16>
    %cst_36 = arith.constant dense<0.000000e+00> : vector<8x32xf32>
    %96 = tpu.matmul %94, %95, %cst_36 {dimension_numbers = #tpu.dot_dimension_numbers<[1], [0], [0], [1], [0, 0, 1, 1], [], []>} : vector<8x32xbf16>, vector<32x32xbf16>, vector<8x32xf32> -> vector<8x32xf32>
    %c0_37 = arith.constant 0 : index
    %c0_38 = arith.constant 0 : index
    %97 = vector.load %arg10[%c0_37, %c0_38] : memref<1x32xf32, #tpu.memory_space<vmem>>, vector<1x32xf32>
    %98 = vector.broadcast %97 : vector<1x32xf32> to vector<8x32xf32>
    %99 = arith.addf %96, %98 : vector<8x32xf32>
    %100 = arith.truncf %3 : vector<8x32xf32> to vector<8x32xbf16>
    %c0_39 = arith.constant 0 : index
    %c0_40 = arith.constant 0 : index
    %101 = vector.load %arg11[%c0_39, %c0_40] : memref<32x64xbf16, #tpu.memory_space<vmem>>, vector<32x64xbf16>
    %cst_41 = arith.constant dense<0.000000e+00> : vector<8x64xf32>
    %102 = tpu.matmul %100, %101, %cst_41 {dimension_numbers = #tpu.dot_dimension_numbers<[1], [0], [0], [1], [0, 0, 1, 1], [], []>} : vector<8x32xbf16>, vector<32x64xbf16>, vector<8x64xf32> -> vector<8x64xf32>
    %c0_42 = arith.constant 0 : index
    %c0_43 = arith.constant 0 : index
    %103 = vector.load %arg12[%c0_42, %c0_43] : memref<1x64xf32, #tpu.memory_space<vmem>>, vector<1x64xf32>
    %104 = vector.broadcast %103 : vector<1x64xf32> to vector<8x64xf32>
    %105 = arith.addf %102, %104 : vector<8x64xf32>
    %106 = vector.extract_strided_slice %105 {offsets = [0, 0], sizes = [8, 32], strides = [1, 1]} : vector<8x64xf32> to vector<8x32xf32>
    %107 = vector.extract_strided_slice %105 {offsets = [0, 32], sizes = [8, 32], strides = [1, 1]} : vector<8x64xf32> to vector<8x32xf32>
    %c0_44 = arith.constant 0 : index
    %c0_45 = arith.constant 0 : index
    %108 = vector.load %arg13[%c0_44, %c0_45] : memref<32x32xbf16, #tpu.memory_space<vmem>>, vector<32x32xbf16>
    %c0_46 = arith.constant 0 : index
    %c0_47 = arith.constant 0 : index
    %109 = vector.load %arg14[%c0_46, %c0_47] : memref<1x32xf32, #tpu.memory_space<vmem>>, vector<1x32xf32>
    %cst_48 = arith.constant 0.353553385 : f32
    %110 = vector.broadcast %cst_48 : f32 to vector<8x32xf32>
    %111 = arith.mulf %99, %110 : vector<8x32xf32>
    %112 = arith.truncf %111 : vector<8x32xf32> to vector<8x32xbf16>
    %113 = arith.truncf %106 : vector<8x32xf32> to vector<8x32xbf16>
    %114 = arith.truncf %107 : vector<8x32xf32> to vector<8x32xbf16>
    %115 = vector.extract_strided_slice %112 {offsets = [0, 0], sizes = [8, 8], strides = [1, 1]} : vector<8x32xbf16> to vector<8x8xbf16>
    %116 = vector.extract_strided_slice %113 {offsets = [0, 0], sizes = [8, 8], strides = [1, 1]} : vector<8x32xbf16> to vector<8x8xbf16>
    %cst_49 = arith.constant dense<0.000000e+00> : vector<8x8xf32>
    %117 = tpu.matmul %115, %116, %cst_49 {dimension_numbers = #tpu.dot_dimension_numbers<[1], [1], [0], [0], [0, 0, 1, 0], [], []>} : vector<8x8xbf16>, vector<8x8xbf16>, vector<8x8xf32> -> vector<8x8xf32>
    %118 = vector.extract_strided_slice %112 {offsets = [0, 8], sizes = [8, 8], strides = [1, 1]} : vector<8x32xbf16> to vector<8x8xbf16>
    %119 = vector.extract_strided_slice %113 {offsets = [0, 8], sizes = [8, 8], strides = [1, 1]} : vector<8x32xbf16> to vector<8x8xbf16>
    %cst_50 = arith.constant dense<0.000000e+00> : vector<8x8xf32>
    %120 = tpu.matmul %118, %119, %cst_50 {dimension_numbers = #tpu.dot_dimension_numbers<[1], [1], [0], [0], [0, 0, 1, 0], [], []>} : vector<8x8xbf16>, vector<8x8xbf16>, vector<8x8xf32> -> vector<8x8xf32>
    %121 = vector.extract_strided_slice %112 {offsets = [0, 16], sizes = [8, 8], strides = [1, 1]} : vector<8x32xbf16> to vector<8x8xbf16>
    %122 = vector.extract_strided_slice %113 {offsets = [0, 16], sizes = [8, 8], strides = [1, 1]} : vector<8x32xbf16> to vector<8x8xbf16>
    %cst_51 = arith.constant dense<0.000000e+00> : vector<8x8xf32>
    %123 = tpu.matmul %121, %122, %cst_51 {dimension_numbers = #tpu.dot_dimension_numbers<[1], [1], [0], [0], [0, 0, 1, 0], [], []>} : vector<8x8xbf16>, vector<8x8xbf16>, vector<8x8xf32> -> vector<8x8xf32>
    %124 = vector.extract_strided_slice %112 {offsets = [0, 24], sizes = [8, 8], strides = [1, 1]} : vector<8x32xbf16> to vector<8x8xbf16>
    %125 = vector.extract_strided_slice %113 {offsets = [0, 24], sizes = [8, 8], strides = [1, 1]} : vector<8x32xbf16> to vector<8x8xbf16>
    %cst_52 = arith.constant dense<0.000000e+00> : vector<8x8xf32>
    %126 = tpu.matmul %124, %125, %cst_52 {dimension_numbers = #tpu.dot_dimension_numbers<[1], [1], [0], [0], [0, 0, 1, 0], [], []>} : vector<8x8xbf16>, vector<8x8xbf16>, vector<8x8xf32> -> vector<8x8xf32>
    %127 = vector.shape_cast %117 : vector<8x8xf32> to vector<1x8x8xf32>
    %128 = vector.shape_cast %120 : vector<8x8xf32> to vector<1x8x8xf32>
    %129 = vector.shape_cast %123 : vector<8x8xf32> to vector<1x8x8xf32>
    %130 = vector.shape_cast %126 : vector<8x8xf32> to vector<1x8x8xf32>
    %131 = tpu.concatenate %127, %128, %129, %130 in 0 : vector<1x8x8xf32>, vector<1x8x8xf32>, vector<1x8x8xf32>, vector<1x8x8xf32> -> vector<4x8x8xf32>
    %cst_53 = arith.constant dense<0xFF800000> : vector<4x8xf32>
    %132 = vector.multi_reduction <maximumf>, %131, %cst_53 [2] : vector<4x8x8xf32> to vector<4x8xf32>
    %133 = vector.shape_cast %132 : vector<4x8xf32> to vector<4x8x1xf32>
    %134 = vector.broadcast %133 : vector<4x8x1xf32> to vector<4x8x8xf32>
    %135 = arith.subf %131, %134 : vector<4x8x8xf32>
    %136 = math.exp %135 : vector<4x8x8xf32>
    %cst_54 = arith.constant dense<0.000000e+00> : vector<4x8xf32>
    %137 = vector.multi_reduction <add>, %136, %cst_54 [2] : vector<4x8x8xf32> to vector<4x8xf32>
    %138 = vector.shape_cast %137 : vector<4x8xf32> to vector<4x8x1xf32>
    %139 = tpu.reciprocal %138 {approx = true} : vector<4x8x1xf32> -> vector<4x8x1xf32>
    %140 = vector.broadcast %139 : vector<4x8x1xf32> to vector<4x8x8xf32>
    %141 = arith.mulf %136, %140 : vector<4x8x8xf32>
    %142 = arith.truncf %141 : vector<4x8x8xf32> to vector<4x8x8xbf16>
    %143 = vector.extract_strided_slice %142 {offsets = [0, 0, 0], sizes = [1, 8, 8], strides = [1, 1, 1]} : vector<4x8x8xbf16> to vector<1x8x8xbf16>
    %144 = vector.shape_cast %143 : vector<1x8x8xbf16> to vector<8x8xbf16>
    %145 = vector.extract_strided_slice %114 {offsets = [0, 0], sizes = [8, 8], strides = [1, 1]} : vector<8x32xbf16> to vector<8x8xbf16>
    %cst_55 = arith.constant dense<0.000000e+00> : vector<8x8xf32>
    %146 = tpu.matmul %144, %145, %cst_55 {dimension_numbers = #tpu.dot_dimension_numbers<[1], [0], [0], [1], [0, 0, 1, 1], [], []>} : vector<8x8xbf16>, vector<8x8xbf16>, vector<8x8xf32> -> vector<8x8xf32>
    %147 = vector.extract_strided_slice %142 {offsets = [1, 0, 0], sizes = [1, 8, 8], strides = [1, 1, 1]} : vector<4x8x8xbf16> to vector<1x8x8xbf16>
    %148 = vector.shape_cast %147 : vector<1x8x8xbf16> to vector<8x8xbf16>
    %149 = vector.extract_strided_slice %114 {offsets = [0, 8], sizes = [8, 8], strides = [1, 1]} : vector<8x32xbf16> to vector<8x8xbf16>
    %cst_56 = arith.constant dense<0.000000e+00> : vector<8x8xf32>
    %150 = tpu.matmul %148, %149, %cst_56 {dimension_numbers = #tpu.dot_dimension_numbers<[1], [0], [0], [1], [0, 0, 1, 1], [], []>} : vector<8x8xbf16>, vector<8x8xbf16>, vector<8x8xf32> -> vector<8x8xf32>
    %151 = vector.extract_strided_slice %142 {offsets = [2, 0, 0], sizes = [1, 8, 8], strides = [1, 1, 1]} : vector<4x8x8xbf16> to vector<1x8x8xbf16>
    %152 = vector.shape_cast %151 : vector<1x8x8xbf16> to vector<8x8xbf16>
    %153 = vector.extract_strided_slice %114 {offsets = [0, 16], sizes = [8, 8], strides = [1, 1]} : vector<8x32xbf16> to vector<8x8xbf16>
    %cst_57 = arith.constant dense<0.000000e+00> : vector<8x8xf32>
    %154 = tpu.matmul %152, %153, %cst_57 {dimension_numbers = #tpu.dot_dimension_numbers<[1], [0], [0], [1], [0, 0, 1, 1], [], []>} : vector<8x8xbf16>, vector<8x8xbf16>, vector<8x8xf32> -> vector<8x8xf32>
    %155 = vector.extract_strided_slice %142 {offsets = [3, 0, 0], sizes = [1, 8, 8], strides = [1, 1, 1]} : vector<4x8x8xbf16> to vector<1x8x8xbf16>
    %156 = vector.shape_cast %155 : vector<1x8x8xbf16> to vector<8x8xbf16>
    %157 = vector.extract_strided_slice %114 {offsets = [0, 24], sizes = [8, 8], strides = [1, 1]} : vector<8x32xbf16> to vector<8x8xbf16>
    %cst_58 = arith.constant dense<0.000000e+00> : vector<8x8xf32>
    %158 = tpu.matmul %156, %157, %cst_58 {dimension_numbers = #tpu.dot_dimension_numbers<[1], [0], [0], [1], [0, 0, 1, 1], [], []>} : vector<8x8xbf16>, vector<8x8xbf16>, vector<8x8xf32> -> vector<8x8xf32>
    %159 = tpu.concatenate %146, %150, %154, %158 in 1 : vector<8x8xf32>, vector<8x8xf32>, vector<8x8xf32>, vector<8x8xf32> -> vector<8x32xf32>
    %160 = arith.truncf %159 : vector<8x32xf32> to vector<8x32xbf16>
    %cst_59 = arith.constant dense<0.000000e+00> : vector<8x32xf32>
    %161 = tpu.matmul %160, %108, %cst_59 {dimension_numbers = #tpu.dot_dimension_numbers<[1], [0], [0], [1], [0, 0, 1, 1], [], []>} : vector<8x32xbf16>, vector<32x32xbf16>, vector<8x32xf32> -> vector<8x32xf32>
    %162 = vector.broadcast %109 : vector<1x32xf32> to vector<8x32xf32>
    %163 = arith.addf %161, %162 : vector<8x32xf32>
    %164 = arith.addf %93, %163 : vector<8x32xf32>
    %c0_60 = arith.constant 0 : index
    %c0_61 = arith.constant 0 : index
    %165 = vector.load %arg15[%c0_60, %c0_61] : memref<1x32xf32, #tpu.memory_space<vmem>>, vector<1x32xf32>
    %c0_62 = arith.constant 0 : index
    %c0_63 = arith.constant 0 : index
    %166 = vector.load %arg16[%c0_62, %c0_63] : memref<1x32xf32, #tpu.memory_space<vmem>>, vector<1x32xf32>
    %cst_64 = arith.constant dense<0.000000e+00> : vector<8xf32>
    %167 = vector.multi_reduction <add>, %164, %cst_64 [1] : vector<8x32xf32> to vector<8xf32>
    %168 = vector.shape_cast %167 : vector<8xf32> to vector<8x1xf32>
    %cst_65 = arith.constant 3.200000e+01 : f32
    %169 = vector.broadcast %cst_65 : f32 to vector<8x1xf32>
    %170 = arith.divf %168, %169 : vector<8x1xf32>
    %171 = vector.broadcast %170 : vector<8x1xf32> to vector<8x32xf32>
    %172 = arith.subf %164, %171 : vector<8x32xf32>
    %173 = arith.mulf %172, %172 : vector<8x32xf32>
    %cst_66 = arith.constant dense<0.000000e+00> : vector<8xf32>
    %174 = vector.multi_reduction <add>, %173, %cst_66 [1] : vector<8x32xf32> to vector<8xf32>
    %175 = vector.shape_cast %174 : vector<8xf32> to vector<8x1xf32>
    %cst_67 = arith.constant 3.200000e+01 : f32
    %176 = vector.broadcast %cst_67 : f32 to vector<8x1xf32>
    %177 = arith.divf %175, %176 : vector<8x1xf32>
    %178 = vector.broadcast %170 : vector<8x1xf32> to vector<8x32xf32>
    %179 = arith.subf %164, %178 : vector<8x32xf32>
    %cst_68 = arith.constant 9.99999974E-6 : f32
    %180 = vector.broadcast %cst_68 : f32 to vector<8x1xf32>
    %181 = arith.addf %177, %180 : vector<8x1xf32>
    %182 = math.rsqrt %181 : vector<8x1xf32>
    %183 = vector.broadcast %182 : vector<8x1xf32> to vector<8x32xf32>
    %184 = arith.mulf %179, %183 : vector<8x32xf32>
    %185 = vector.broadcast %165 : vector<1x32xf32> to vector<8x32xf32>
    %186 = arith.mulf %184, %185 : vector<8x32xf32>
    %187 = vector.broadcast %166 : vector<1x32xf32> to vector<8x32xf32>
    %188 = arith.addf %186, %187 : vector<8x32xf32>
    %c0_69 = arith.constant 0 : index
    %c0_70 = arith.constant 0 : index
    %189 = vector.load %arg17[%c0_69, %c0_70] : memref<32x64xbf16, #tpu.memory_space<vmem>>, vector<32x64xbf16>
    %c0_71 = arith.constant 0 : index
    %c0_72 = arith.constant 0 : index
    %190 = vector.load %arg18[%c0_71, %c0_72] : memref<1x64xf32, #tpu.memory_space<vmem>>, vector<1x64xf32>
    %c0_73 = arith.constant 0 : index
    %c0_74 = arith.constant 0 : index
    %191 = vector.load %arg19[%c0_73, %c0_74] : memref<64x32xbf16, #tpu.memory_space<vmem>>, vector<64x32xbf16>
    %c0_75 = arith.constant 0 : index
    %c0_76 = arith.constant 0 : index
    %192 = vector.load %arg20[%c0_75, %c0_76] : memref<1x32xf32, #tpu.memory_space<vmem>>, vector<1x32xf32>
    %193 = arith.truncf %188 : vector<8x32xf32> to vector<8x32xbf16>
    %cst_77 = arith.constant dense<0.000000e+00> : vector<8x64xf32>
    %194 = tpu.matmul %193, %189, %cst_77 {dimension_numbers = #tpu.dot_dimension_numbers<[1], [0], [0], [1], [0, 0, 1, 1], [], []>} : vector<8x32xbf16>, vector<32x64xbf16>, vector<8x64xf32> -> vector<8x64xf32>
    %195 = vector.broadcast %190 : vector<1x64xf32> to vector<8x64xf32>
    %196 = arith.addf %194, %195 : vector<8x64xf32>
    %cst_78 = arith.constant 0.000000e+00 : f32
    %197 = vector.broadcast %cst_78 : f32 to vector<8x64xf32>
    %198 = arith.maximumf %196, %197 : vector<8x64xf32>
    %199 = arith.truncf %198 : vector<8x64xf32> to vector<8x64xbf16>
    %cst_79 = arith.constant dense<0.000000e+00> : vector<8x32xf32>
    %200 = tpu.matmul %199, %191, %cst_79 {dimension_numbers = #tpu.dot_dimension_numbers<[1], [0], [0], [1], [0, 0, 1, 1], [], []>} : vector<8x64xbf16>, vector<64x32xbf16>, vector<8x32xf32> -> vector<8x32xf32>
    %201 = vector.broadcast %192 : vector<1x32xf32> to vector<8x32xf32>
    %202 = arith.addf %200, %201 : vector<8x32xf32>
    %203 = arith.addf %188, %202 : vector<8x32xf32>
    %c0_80 = arith.constant 0 : index
    %c0_81 = arith.constant 0 : index
    %204 = vector.load %arg21[%c0_80, %c0_81] : memref<1x32xf32, #tpu.memory_space<vmem>>, vector<1x32xf32>
    %c0_82 = arith.constant 0 : index
    %c0_83 = arith.constant 0 : index
    %205 = vector.load %arg22[%c0_82, %c0_83] : memref<1x32xf32, #tpu.memory_space<vmem>>, vector<1x32xf32>
    %cst_84 = arith.constant dense<0.000000e+00> : vector<8xf32>
    %206 = vector.multi_reduction <add>, %203, %cst_84 [1] : vector<8x32xf32> to vector<8xf32>
    %207 = vector.shape_cast %206 : vector<8xf32> to vector<8x1xf32>
    %cst_85 = arith.constant 3.200000e+01 : f32
    %208 = vector.broadcast %cst_85 : f32 to vector<8x1xf32>
    %209 = arith.divf %207, %208 : vector<8x1xf32>
    %210 = vector.broadcast %209 : vector<8x1xf32> to vector<8x32xf32>
    %211 = arith.subf %203, %210 : vector<8x32xf32>
    %212 = arith.mulf %211, %211 : vector<8x32xf32>
    %cst_86 = arith.constant dense<0.000000e+00> : vector<8xf32>
    %213 = vector.multi_reduction <add>, %212, %cst_86 [1] : vector<8x32xf32> to vector<8xf32>
    %214 = vector.shape_cast %213 : vector<8xf32> to vector<8x1xf32>
    %cst_87 = arith.constant 3.200000e+01 : f32
    %215 = vector.broadcast %cst_87 : f32 to vector<8x1xf32>
    %216 = arith.divf %214, %215 : vector<8x1xf32>
    %217 = vector.broadcast %209 : vector<8x1xf32> to vector<8x32xf32>
    %218 = arith.subf %203, %217 : vector<8x32xf32>
    %cst_88 = arith.constant 9.99999974E-6 : f32
    %219 = vector.broadcast %cst_88 : f32 to vector<8x1xf32>
    %220 = arith.addf %216, %219 : vector<8x1xf32>
    %221 = math.rsqrt %220 : vector<8x1xf32>
    %222 = vector.broadcast %221 : vector<8x1xf32> to vector<8x32xf32>
    %223 = arith.mulf %218, %222 : vector<8x32xf32>
    %224 = vector.broadcast %204 : vector<1x32xf32> to vector<8x32xf32>
    %225 = arith.mulf %223, %224 : vector<8x32xf32>
    %226 = vector.broadcast %205 : vector<1x32xf32> to vector<8x32xf32>
    %227 = arith.addf %225, %226 : vector<8x32xf32>
    %c0_89 = arith.constant 0 : index
    %c0_90 = arith.constant 0 : index
    %c0_91 = arith.constant 0 : index
    %228 = vector.load %arg23[%c0_89, %c0_90, %c0_91] : memref<1x8x32xf32, #tpu.memory_space<vmem>>, vector<1x8x32xf32>
    %229 = vector.shape_cast %228 : vector<1x8x32xf32> to vector<8x32xf32>
    %230 = vector.shape_cast %227 : vector<8x32xf32> to vector<1x8x32xf32>
    tpu.vector_store %arg23[%c0_89, %c0_90, %c0_91], %230 {strides = array<i32>} : memref<1x8x32xf32, #tpu.memory_space<vmem>>, vector<1x8x32xf32>,
    return
  }
  func.func @transform_0(%arg0: i32) -> (i32, i32, i32) {
    %c0_i32 = arith.constant 0 : i32
    %c0_i32_0 = arith.constant 0 : i32
    %c0_i32_1 = arith.constant 0 : i32
    return %arg0, %c0_i32, %c0_i32_0 : i32, i32, i32
  }
  func.func @transform_1(%arg0: i32) -> (i32, i32, i32) {
    %c0_i32 = arith.constant 0 : i32
    %c0_i32_0 = arith.constant 0 : i32
    %c0_i32_1 = arith.constant 0 : i32
    return %arg0, %c0_i32, %c0_i32_0 : i32, i32, i32
  }
  func.func @transform_2(%arg0: i32) -> (i32, i32) {
    %c0_i32 = arith.constant 0 : i32
    %c0_i32_0 = arith.constant 0 : i32
    %c0_i32_1 = arith.constant 0 : i32
    return %c0_i32, %c0_i32_0 : i32, i32
  }
  func.func @transform_3(%arg0: i32) -> (i32, i32) {
    %c0_i32 = arith.constant 0 : i32
    %c0_i32_0 = arith.constant 0 : i32
    %c0_i32_1 = arith.constant 0 : i32
    return %c0_i32, %c0_i32_0 : i32, i32
  }
  func.func @transform_4(%arg0: i32) -> (i32, i32) {
    %c0_i32 = arith.constant 0 : i32
    %c0_i32_0 = arith.constant 0 : i32
    %c0_i32_1 = arith.constant 0 : i32
    return %c0_i32, %c0_i32_0 : i32, i32
  }
  func.func @transform_5(%arg0: i32) -> (i32, i32) {
    %c0_i32 = arith.constant 0 : i32
    %c0_i32_0 = arith.constant 0 : i32
    %c0_i32_1 = arith.constant 0 : i32
    return %c0_i32, %c0_i32_0 : i32, i32
  }
  func.func @transform_6(%arg0: i32) -> (i32, i32) {
    %c0_i32 = arith.constant 0 : i32
    %c0_i32_0 = arith.constant 0 : i32
    %c0_i32_1 = arith.constant 0 : i32
    return %c0_i32, %c0_i32_0 : i32, i32
  }
  func.func @transform_7(%arg0: i32) -> (i32, i32) {
    %c0_i32 = arith.constant 0 : i32
    %c0_i32_0 = arith.constant 0 : i32
    %c0_i32_1 = arith.constant 0 : i32
    return %c0_i32, %c0_i32_0 : i32, i32
  }
  func.func @transform_8(%arg0: i32) -> (i32, i32) {
    %c0_i32 = arith.constant 0 : i32
    %c0_i32_0 = arith.constant 0 : i32
    %c0_i32_1 = arith.constant 0 : i32
    return %c0_i32, %c0_i32_0 : i32, i32
  }
  func.func @transform_9(%arg0: i32) -> (i32, i32) {
    %c0_i32 = arith.constant 0 : i32
    %c0_i32_0 = arith.constant 0 : i32
    %c0_i32_1 = arith.constant 0 : i32
    return %c0_i32, %c0_i32_0 : i32, i32
  }
  func.func @transform_10(%arg0: i32) -> (i32, i32) {
    %c0_i32 = arith.constant 0 : i32
    %c0_i32_0 = arith.constant 0 : i32
    %c0_i32_1 = arith.constant 0 : i32
    return %c0_i32, %c0_i32_0 : i32, i32
  }
  func.func @transform_11(%arg0: i32) -> (i32, i32) {
    %c0_i32 = arith.constant 0 : i32
    %c0_i32_0 = arith.constant 0 : i32
    %c0_i32_1 = arith.constant 0 : i32
    return %c0_i32, %c0_i32_0 : i32, i32
  }
  func.func @transform_12(%arg0: i32) -> (i32, i32) {
    %c0_i32 = arith.constant 0 : i32
    %c0_i32_0 = arith.constant 0 : i32
    %c0_i32_1 = arith.constant 0 : i32
    return %c0_i32, %c0_i32_0 : i32, i32
  }
  func.func @transform_13(%arg0: i32) -> (i32, i32) {
    %c0_i32 = arith.constant 0 : i32
    %c0_i32_0 = arith.constant 0 : i32
    %c0_i32_1 = arith.constant 0 : i32
    return %c0_i32, %c0_i32_0 : i32, i32
  }
  func.func @transform_14(%arg0: i32) -> (i32, i32) {
    %c0_i32 = arith.constant 0 : i32
    %c0_i32_0 = arith.constant 0 : i32
    %c0_i32_1 = arith.constant 0 : i32
    return %c0_i32, %c0_i32_0 : i32, i32
  }
  func.func @transform_15(%arg0: i32) -> (i32, i32) {
    %c0_i32 = arith.constant 0 : i32
    %c0_i32_0 = arith.constant 0 : i32
    %c0_i32_1 = arith.constant 0 : i32
    return %c0_i32, %c0_i32_0 : i32, i32
  }
  func.func @transform_16(%arg0: i32) -> (i32, i32) {
    %c0_i32 = arith.constant 0 : i32
    %c0_i32_0 = arith.constant 0 : i32
    %c0_i32_1 = arith.constant 0 : i32
    return %c0_i32, %c0_i32_0 : i32, i32
  }
  func.func @transform_17(%arg0: i32) -> (i32, i32) {
    %c0_i32 = arith.constant 0 : i32
    %c0_i32_0 = arith.constant 0 : i32
    %c0_i32_1 = arith.constant 0 : i32
    return %c0_i32, %c0_i32_0 : i32, i32
  }
  func.func @transform_18(%arg0: i32) -> (i32, i32) {
    %c0_i32 = arith.constant 0 : i32
    %c0_i32_0 = arith.constant 0 : i32
    %c0_i32_1 = arith.constant 0 : i32
    return %c0_i32, %c0_i32_0 : i32, i32
  }
  func.func @transform_19(%arg0: i32) -> (i32, i32) {
    %c0_i32 = arith.constant 0 : i32
    %c0_i32_0 = arith.constant 0 : i32
    %c0_i32_1 = arith.constant 0 : i32
    return %c0_i32, %c0_i32_0 : i32, i32
  }
  func.func @transform_20(%arg0: i32) -> (i32, i32) {
    %c0_i32 = arith.constant 0 : i32
    %c0_i32_0 = arith.constant 0 : i32
    %c0_i32_1 = arith.constant 0 : i32
    return %c0_i32, %c0_i32_0 : i32, i32
  }
  func.func @transform_21(%arg0: i32) -> (i32, i32) {
    %c0_i32 = arith.constant 0 : i32
    %c0_i32_0 = arith.constant 0 : i32
    %c0_i32_1 = arith.constant 0 : i32
    return %c0_i32, %c0_i32_0 : i32, i32
  }
  func.func @transform_22(%arg0: i32) -> (i32, i32, i32) {
    %c0_i32 = arith.constant 0 : i32
    %c0_i32_0 = arith.constant 0 : i32
    %c0_i32_1 = arith.constant 0 : i32
    return %arg0, %c0_i32, %c0_i32_0 : i32, i32, i32
  }
}

module attributes {stable_mosaic.version = 11 : i64} {
  func.func @_decoder_block_kernel(%arg0: i32, %arg1: memref<1x8x32xf32, #tpu.memory_space<vmem>>, %arg2: memref<1x8x32xf32, #tpu.memory_space<vmem>>, %arg3: memref<32x96xbf16, #tpu.memory_space<vmem>>, %arg4: memref<1x96xf32, #tpu.memory_space<vmem>>, %arg5: memref<32x32xbf16, #tpu.memory_space<vmem>>, %arg6: memref<1x32xf32, #tpu.memory_space<vmem>>, %arg7: memref<1x32xf32, #tpu.memory_space<vmem>>, %arg8: memref<1x32xf32, #tpu.memory_space<vmem>>, %arg9: memref<32x32xbf16, #tpu.memory_space<vmem>>, %arg10: memref<1x32xf32, #tpu.memory_space<vmem>>, %arg11: memref<32x64xbf16, #tpu.memory_space<vmem>>, %arg12: memref<1x64xf32, #tpu.memory_space<vmem>>, %arg13: memref<32x32xbf16, #tpu.memory_space<vmem>>, %arg14: memref<1x32xf32, #tpu.memory_space<vmem>>, %arg15: memref<1x32xf32, #tpu.memory_space<vmem>>, %arg16: memref<1x32xf32, #tpu.memory_space<vmem>>, %arg17: memref<32x64xbf16, #tpu.memory_space<vmem>>, %arg18: memref<1x64xf32, #tpu.memory_space<vmem>>, %arg19: memref<64x32xbf16, #tpu.memory_space<vmem>>, %arg20: memref<1x32xf32, #tpu.memory_space<vmem>>, %arg21: memref<1x32xf32, #tpu.memory_space<vmem>>, %arg22: memref<1x32xf32, #tpu.memory_space<vmem>>, %arg23: memref<1x8x32xf32, #tpu.memory_space<vmem>>) attributes {dimension_semantics = [#tpu.dimension_semantics<parallel>], iteration_bounds = array<i64: 2>, scalar_prefetch = 0 : i64, scratch_operands = 0 : i64, tpu.core_type = #tpu.core_type<tc>, window_params = [{transform_indices = @transform_0, window_bounds = array<i64: 1, 8, 32>}, {transform_indices = @transform_1, window_bounds = array<i64: 1, 8, 32>}, {pipeline_mode = #tpu.pipeline_mode<synchronous>, transform_indices = @transform_2, window_bounds = array<i64: 32, 96>}, {pipeline_mode = #tpu.pipeline_mode<synchronous>, transform_indices = @transform_3, window_bounds = array<i64: 1, 96>}, {pipeline_mode = #tpu.pipeline_mode<synchronous>, transform_indices = @transform_4, window_bounds = array<i64: 32, 32>}, {pipeline_mode = #tpu.pipeline_mode<synchronous>, transform_indices = @transform_5, window_bounds = array<i64: 1, 32>}, {pipeline_mode = #tpu.pipeline_mode<synchronous>, transform_indices = @transform_6, window_bounds = array<i64: 1, 32>}, {pipeline_mode = #tpu.pipeline_mode<synchronous>, transform_indices = @transform_7, window_bounds = array<i64: 1, 32>}, {pipeline_mode = #tpu.pipeline_mode<synchronous>, transform_indices = @transform_8, window_bounds = array<i64: 32, 32>}, {pipeline_mode = #tpu.pipeline_mode<synchronous>, transform_indices = @transform_9, window_bounds = array<i64: 1, 32>}, {pipeline_mode = #tpu.pipeline_mode<synchronous>, transform_indices = @transform_10, window_bounds = array<i64: 32, 64>}, {pipeline_mode = #tpu.pipeline_mode<synchronous>, transform_indices = @transform_11, window_bounds = array<i64: 1, 64>}, {pipeline_mode = #tpu.pipeline_mode<synchronous>, transform_indices = @transform_12, window_bounds = array<i64: 32, 32>}, {pipeline_mode = #tpu.pipeline_mode<synchronous>, transform_indices = @transform_13, window_bounds = array<i64: 1, 32>}, {pipeline_mode = #tpu.pipeline_mode<synchronous>, transform_indices = @transform_14, window_bounds = array<i64: 1, 32>}, {pipeline_mode = #tpu.pipeline_mode<synchronous>, transform_indices = @transform_15, window_bounds = array<i64: 1, 32>}, {pipeline_mode = #tpu.pipeline_mode<synchronous>, transform_indices = @transform_16, window_bounds = array<i64: 32, 64>}, {pipeline_mode = #tpu.pipeline_mode<synchronous>, transform_indices = @transform_17, window_bounds = array<i64: 1, 64>}, {pipeline_mode = #tpu.pipeline_mode<synchronous>, transform_indices = @transform_18, window_bounds = array<i64: 64, 32>}, {pipeline_mode = #tpu.pipeline_mode<synchronous>, transform_indices = @transform_19, window_bounds = array<i64: 1, 32>}, {pipeline_mode = #tpu.pipeline_mode<synchronous>, transform_indices = @transform_20, window_bounds = array<i64: 1, 32>}, {pipeline_mode = #tpu.pipeline_mode<synchronous>, transform_indices = @transform_21, window_bounds = array<i64: 1, 32>}, {transform_indices = @transform_22, window_bounds = array<i64: 1, 8, 32>}]} {
    %c0 = arith.constant 0 : index
    %c0_0 = arith.constant 0 : index
    %c0_1 = arith.constant 0 : index
    %0 = vector.load %arg1[%c0, %c0_0, %c0_1] : memref<1x8x32xf32, #tpu.memory_space<vmem>>, vector<1x8x32xf32>
    %1 = vector.shape_cast %0 : vector<1x8x32xf32> to vector<8x32xf32>
    %c0_2 = arith.constant 0 : index
    %c0_3 = arith.constant 0 : index
    %c0_4 = arith.constant 0 : index
    %2 = vector.load %arg2[%c0_2, %c0_3, %c0_4] : memref<1x8x32xf32, #tpu.memory_space<vmem>>, vector<1x8x32xf32>
    %3 = vector.shape_cast %2 : vector<1x8x32xf32> to vector<8x32xf32>
    %4 = arith.truncf %1 : vector<8x32xf32> to vector<8x32xbf16>
    %c0_5 = arith.constant 0 : index
    %c0_6 = arith.constant 0 : index
    %5 = vector.load %arg3[%c0_5, %c0_6] : memref<32x96xbf16, #tpu.memory_space<vmem>>, vector<32x96xbf16>
    %cst = arith.constant dense<0.000000e+00> : vector<8x96xf32>
    %6 = tpu.matmul %4, %5, %cst {dimension_numbers = #tpu.dot_dimension_numbers<[1], [0], [0], [1], [0, 0, 1, 1], [], []>} : vector<8x32xbf16>, vector<32x96xbf16>, vector<8x96xf32> -> vector<8x96xf32>
    %c0_7 = arith.constant 0 : index
    %c0_8 = arith.constant 0 : index
    %7 = vector.load %arg4[%c0_7, %c0_8] : memref<1x96xf32, #tpu.memory_space<vmem>>, vector<1x96xf32>
    %8 = vector.broadcast %7 : vector<1x96xf32> to vector<8x96xf32>
    %9 = arith.addf %6, %8 : vector<8x96xf32>
    %10 = vector.extract_strided_slice %9 {offsets = [0, 0], sizes = [8, 32], strides = [1, 1]} : vector<8x96xf32> to vector<8x32xf32>
    %11 = vector.extract_strided_slice %9 {offsets = [0, 32], sizes = [8, 32], strides = [1, 1]} : vector<8x96xf32> to vector<8x32xf32>
    %12 = vector.extract_strided_slice %9 {offsets = [0, 64], sizes = [8, 32], strides = [1, 1]} : vector<8x96xf32> to vector<8x32xf32>
    %c0_9 = arith.constant 0 : index
    %c0_10 = arith.constant 0 : index
    %13 = vector.load %arg5[%c0_9, %c0_10] : memref<32x32xbf16, #tpu.memory_space<vmem>>, vector<32x32xbf16>
    %c0_11 = arith.constant 0 : index
    %c0_12 = arith.constant 0 : index
    %14 = vector.load %arg6[%c0_11, %c0_12] : memref<1x32xf32, #tpu.memory_space<vmem>>, vector<1x32xf32>
    %cst_13 = arith.constant 0.353553385 : f32
    %15 = vector.broadcast %cst_13 : f32 to vector<8x32xf32>
    %16 = arith.mulf %10, %15 : vector<8x32xf32>
    %17 = arith.truncf %16 : vector<8x32xf32> to vector<8x32xbf16>
    %18 = arith.truncf %11 : vector<8x32xf32> to vector<8x32xbf16>
    %19 = arith.truncf %12 : vector<8x32xf32> to vector<8x32xbf16>
    %20 = vector.extract_strided_slice %17 {offsets = [0, 0], sizes = [8, 8], strides = [1, 1]} : vector<8x32xbf16> to vector<8x8xbf16>
    %21 = vector.extract_strided_slice %18 {offsets = [0, 0], sizes = [8, 8], strides = [1, 1]} : vector<8x32xbf16> to vector<8x8xbf16>
    %cst_14 = arith.constant dense<0.000000e+00> : vector<8x8xf32>
    %22 = tpu.matmul %20, %21, %cst_14 {dimension_numbers = #tpu.dot_dimension_numbers<[1], [1], [0], [0], [0, 0, 1, 0], [], []>} : vector<8x8xbf16>, vector<8x8xbf16>, vector<8x8xf32> -> vector<8x8xf32>
    %23 = vector.extract_strided_slice %17 {offsets = [0, 8], sizes = [8, 8], strides = [1, 1]} : vector<8x32xbf16> to vector<8x8xbf16>
    %24 = vector.extract_strided_slice %18 {offsets = [0, 8], sizes = [8, 8], strides = [1, 1]} : vector<8x32xbf16> to vector<8x8xbf16>
    %cst_15 = arith.constant dense<0.000000e+00> : vector<8x8xf32>
    %25 = tpu.matmul %23, %24, %cst_15 {dimension_numbers = #tpu.dot_dimension_numbers<[1], [1], [0], [0], [0, 0, 1, 0], [], []>} : vector<8x8xbf16>, vector<8x8xbf16>, vector<8x8xf32> -> vector<8x8xf32>
    %26 = vector.extract_strided_slice %17 {offsets = [0, 16], sizes = [8, 8], strides = [1, 1]} : vector<8x32xbf16> to vector<8x8xbf16>
    %27 = vector.extract_strided_slice %18 {offsets = [0, 16], sizes = [8, 8], strides = [1, 1]} : vector<8x32xbf16> to vector<8x8xbf16>
    %cst_16 = arith.constant dense<0.000000e+00> : vector<8x8xf32>
    %28 = tpu.matmul %26, %27, %cst_16 {dimension_numbers = #tpu.dot_dimension_numbers<[1], [1], [0], [0], [0, 0, 1, 0], [], []>} : vector<8x8xbf16>, vector<8x8xbf16>, vector<8x8xf32> -> vector<8x8xf32>
    %29 = vector.extract_strided_slice %17 {offsets = [0, 24], sizes = [8, 8], strides = [1, 1]} : vector<8x32xbf16> to vector<8x8xbf16>
    %30 = vector.extract_strided_slice %18 {offsets = [0, 24], sizes = [8, 8], strides = [1, 1]} : vector<8x32xbf16> to vector<8x8xbf16>
    %cst_17 = arith.constant dense<0.000000e+00> : vector<8x8xf32>
    %31 = tpu.matmul %29, %30, %cst_17 {dimension_numbers = #tpu.dot_dimension_numbers<[1], [1], [0], [0], [0, 0, 1, 0], [], []>} : vector<8x8xbf16>, vector<8x8xbf16>, vector<8x8xf32> -> vector<8x8xf32>
    %32 = vector.shape_cast %22 : vector<8x8xf32> to vector<1x8x8xf32>
    %33 = vector.shape_cast %25 : vector<8x8xf32> to vector<1x8x8xf32>
    %34 = vector.shape_cast %28 : vector<8x8xf32> to vector<1x8x8xf32>
    %35 = vector.shape_cast %31 : vector<8x8xf32> to vector<1x8x8xf32>
    %36 = tpu.concatenate %32, %33, %34, %35 in 0 : vector<1x8x8xf32>, vector<1x8x8xf32>, vector<1x8x8xf32>, vector<1x8x8xf32> -> vector<4x8x8xf32>
    %cst_18 = arith.constant dense<0xFF800000> : vector<4x8xf32>
    %37 = vector.multi_reduction <maximumf>, %36, %cst_18 [2] : vector<4x8x8xf32> to vector<4x8xf32>
    %38 = vector.shape_cast %37 : vector<4x8xf32> to vector<4x8x1xf32>
    %39 = vector.broadcast %38 : vector<4x8x1xf32> to vector<4x8x8xf32>
    %40 = arith.subf %36, %39 : vector<4x8x8xf32>
    %41 = math.exp %40 : vector<4x8x8xf32>
    %cst_19 = arith.constant dense<0.000000e+00> : vector<4x8xf32>
    %42 = vector.multi_reduction <add>, %41, %cst_19 [2] : vector<4x8x8xf32> to vector<4x8xf32>
    %43 = vector.shape_cast %42 : vector<4x8xf32> to vector<4x8x1xf32>
    %44 = tpu.reciprocal %43 {approx = true} : vector<4x8x1xf32> -> vector<4x8x1xf32>
    %45 = vector.broadcast %44 : vector<4x8x1xf32> to vector<4x8x8xf32>
    %46 = arith.mulf %41, %45 : vector<4x8x8xf32>
    %47 = arith.truncf %46 : vector<4x8x8xf32> to vector<4x8x8xbf16>
    %48 = vector.extract_strided_slice %47 {offsets = [0, 0, 0], sizes = [1, 8, 8], strides = [1, 1, 1]} : vector<4x8x8xbf16> to vector<1x8x8xbf16>
    %49 = vector.shape_cast %48 : vector<1x8x8xbf16> to vector<8x8xbf16>
    %50 = vector.extract_strided_slice %19 {offsets = [0, 0], sizes = [8, 8], strides = [1, 1]} : vector<8x32xbf16> to vector<8x8xbf16>
    %cst_20 = arith.constant dense<0.000000e+00> : vector<8x8xf32>
    %51 = tpu.matmul %49, %50, %cst_20 {dimension_numbers = #tpu.dot_dimension_numbers<[1], [0], [0], [1], [0, 0, 1, 1], [], []>} : vector<8x8xbf16>, vector<8x8xbf16>, vector<8x8xf32> -> vector<8x8xf32>
    %52 = vector.extract_strided_slice %47 {offsets = [1, 0, 0], sizes = [1, 8, 8], strides = [1, 1, 1]} : vector<4x8x8xbf16> to vector<1x8x8xbf16>
    %53 = vector.shape_cast %52 : vector<1x8x8xbf16> to vector<8x8xbf16>
    %54 = vector.extract_strided_slice %19 {offsets = [0, 8], sizes = [8, 8], strides = [1, 1]} : vector<8x32xbf16> to vector<8x8xbf16>
    %cst_21 = arith.constant dense<0.000000e+00> : vector<8x8xf32>
    %55 = tpu.matmul %53, %54, %cst_21 {dimension_numbers = #tpu.dot_dimension_numbers<[1], [0], [0], [1], [0, 0, 1, 1], [], []>} : vector<8x8xbf16>, vector<8x8xbf16>, vector<8x8xf32> -> vector<8x8xf32>
    %56 = vector.extract_strided_slice %47 {offsets = [2, 0, 0], sizes = [1, 8, 8], strides = [1, 1, 1]} : vector<4x8x8xbf16> to vector<1x8x8xbf16>
    %57 = vector.shape_cast %56 : vector<1x8x8xbf16> to vector<8x8xbf16>
    %58 = vector.extract_strided_slice %19 {offsets = [0, 16], sizes = [8, 8], strides = [1, 1]} : vector<8x32xbf16> to vector<8x8xbf16>
    %cst_22 = arith.constant dense<0.000000e+00> : vector<8x8xf32>
    %59 = tpu.matmul %57, %58, %cst_22 {dimension_numbers = #tpu.dot_dimension_numbers<[1], [0], [0], [1], [0, 0, 1, 1], [], []>} : vector<8x8xbf16>, vector<8x8xbf16>, vector<8x8xf32> -> vector<8x8xf32>
    %60 = vector.extract_strided_slice %47 {offsets = [3, 0, 0], sizes = [1, 8, 8], strides = [1, 1, 1]} : vector<4x8x8xbf16> to vector<1x8x8xbf16>
    %61 = vector.shape_cast %60 : vector<1x8x8xbf16> to vector<8x8xbf16>
    %62 = vector.extract_strided_slice %19 {offsets = [0, 24], sizes = [8, 8], strides = [1, 1]} : vector<8x32xbf16> to vector<8x8xbf16>
    %cst_23 = arith.constant dense<0.000000e+00> : vector<8x8xf32>
    %63 = tpu.matmul %61, %62, %cst_23 {dimension_numbers = #tpu.dot_dimension_numbers<[1], [0], [0], [1], [0, 0, 1, 1], [], []>} : vector<8x8xbf16>, vector<8x8xbf16>, vector<8x8xf32> -> vector<8x8xf32>
    %64 = tpu.concatenate %51, %55, %59, %63 in 1 : vector<8x8xf32>, vector<8x8xf32>, vector<8x8xf32>, vector<8x8xf32> -> vector<8x32xf32>
    %65 = arith.truncf %64 : vector<8x32xf32> to vector<8x32xbf16>
    %cst_24 = arith.constant dense<0.000000e+00> : vector<8x32xf32>
    %66 = tpu.matmul %65, %13, %cst_24 {dimension_numbers = #tpu.dot_dimension_numbers<[1], [0], [0], [1], [0, 0, 1, 1], [], []>} : vector<8x32xbf16>, vector<32x32xbf16>, vector<8x32xf32> -> vector<8x32xf32>
    %67 = vector.broadcast %14 : vector<1x32xf32> to vector<8x32xf32>
    %68 = arith.addf %66, %67 : vector<8x32xf32>
    %69 = arith.addf %1, %68 : vector<8x32xf32>
    %c0_25 = arith.constant 0 : index
    %c0_26 = arith.constant 0 : index
    %70 = vector.load %arg7[%c0_25, %c0_26] : memref<1x32xf32, #tpu.memory_space<vmem>>, vector<1x32xf32>
    %c0_27 = arith.constant 0 : index
    %c0_28 = arith.constant 0 : index
    %71 = vector.load %arg8[%c0_27, %c0_28] : memref<1x32xf32, #tpu.memory_space<vmem>>, vector<1x32xf32>
    %cst_29 = arith.constant dense<0.000000e+00> : vector<8xf32>
    %72 = vector.multi_reduction <add>, %69, %cst_29 [1] : vector<8x32xf32> to vector<8xf32>
    %73 = vector.shape_cast %72 : vector<8xf32> to vector<8x1xf32>
    %cst_30 = arith.constant 3.200000e+01 : f32
    %74 = vector.broadcast %cst_30 : f32 to vector<8x1xf32>
    %75 = arith.divf %73, %74 : vector<8x1xf32>
    %76 = vector.broadcast %75 : vector<8x1xf32> to vector<8x32xf32>
    %77 = arith.subf %69, %76 : vector<8x32xf32>
    %78 = arith.mulf %77, %77 : vector<8x32xf32>
    %cst_31 = arith.constant dense<0.000000e+00> : vector<8xf32>
    %79 = vector.multi_reduction <add>, %78, %cst_31 [1] : vector<8x32xf32> to vector<8xf32>
    %80 = vector.shape_cast %79 : vector<8xf32> to vector<8x1xf32>
    %cst_32 = arith.constant 3.200000e+01 : f32
    %81 = vector.broadcast %cst_32 : f32 to vector<8x1xf32>
    %82 = arith.divf %80, %81 : vector<8x1xf32>
    %83 = vector.broadcast %75 : vector<8x1xf32> to vector<8x32xf32>
    %84 = arith.subf %69, %83 : vector<8x32xf32>
    %cst_33 = arith.constant 9.99999974E-6 : f32
    %85 = vector.broadcast %cst_33 : f32 to vector<8x1xf32>
    %86 = arith.addf %82, %85 : vector<8x1xf32>
    %87 = math.rsqrt %86 : vector<8x1xf32>
    %88 = vector.broadcast %87 : vector<8x1xf32> to vector<8x32xf32>
    %89 = arith.mulf %84, %88 : vector<8x32xf32>
    %90 = vector.broadcast %70 : vector<1x32xf32> to vector<8x32xf32>
    %91 = arith.mulf %89, %90 : vector<8x32xf32>
    %92 = vector.broadcast %71 : vector<1x32xf32> to vector<8x32xf32>
    %93 = arith.addf %91, %92 : vector<8x32xf32>
    %94 = arith.truncf %93 : vector<8x32xf32> to vector<8x32xbf16>
    %c0_34 = arith.constant 0 : index
    %c0_35 = arith.constant 0 : index
    %95 = vector.load %arg9[%c0_34, %c0_35] : memref<32x32xbf16, #tpu.memory_space<vmem>>, vector<32x32xbf16>
    %cst_36 = arith.constant dense<0.000000e+00> : vector<8x32xf32>
    %96 = tpu.matmul %94, %95, %cst_36 {dimension_numbers = #tpu.dot_dimension_numbers<[1], [0], [0], [1], [0, 0, 1, 1], [], []>} : vector<8x32xbf16>, vector<32x32xbf16>, vector<8x32xf32> -> vector<8x32xf32>
    %c0_37 = arith.constant 0 : index
    %c0_38 = arith.constant 0 : index
    %97 = vector.load %arg10[%c0_37, %c0_38] : memref<1x32xf32, #tpu.memory_space<vmem>>, vector<1x32xf32>
    %98 = vector.broadcast %97 : vector<1x32xf32> to vector<8x32xf32>
    %99 = arith.addf %96, %98 : vector<8x32xf32>
    %100 = arith.truncf %3 : vector<8x32xf32> to vector<8x32xbf16>
    %c0_39 = arith.constant 0 : index
    %c0_40 = arith.constant 0 : index
    %101 = vector.load %arg11[%c0_39, %c0_40] : memref<32x64xbf16, #tpu.memory_space<vmem>>, vector<32x64xbf16>
    %cst_41 = arith.constant dense<0.000000e+00> : vector<8x64xf32>
    %102 = tpu.matmul %100, %101, %cst_41 {dimension_numbers = #tpu.dot_dimension_numbers<[1], [0], [0], [1], [0, 0, 1, 1], [], []>} : vector<8x32xbf16>, vector<32x64xbf16>, vector<8x64xf32> -> vector<8x64xf32>
    %c0_42 = arith.constant 0 : index
    %c0_43 = arith.constant 0 : index
    %103 = vector.load %arg12[%c0_42, %c0_43] : memref<1x64xf32, #tpu.memory_space<vmem>>, vector<1x64xf32>
    %104 = vector.broadcast %103 : vector<1x64xf32> to vector<8x64xf32>
    %105 = arith.addf %102, %104 : vector<8x64xf32>
    %106 = vector.extract_strided_slice %105 {offsets = [0, 0], sizes = [8, 32], strides = [1, 1]} : vector<8x64xf32> to vector<8x32xf32>
    %107 = vector.extract_strided_slice %105 {offsets = [0, 32], sizes = [8, 32], strides = [1, 1]} : vector<8x64xf32> to vector<8x32xf32>
    %c0_44 = arith.constant 0 : index
    %c0_45 = arith.constant 0 : index
    %108 = vector.load %arg13[%c0_44, %c0_45] : memref<32x32xbf16, #tpu.memory_space<vmem>>, vector<32x32xbf16>
    %c0_46 = arith.constant 0 : index
    %c0_47 = arith.constant 0 : index
    %109 = vector.load %arg14[%c0_46, %c0_47] : memref<1x32xf32, #tpu.memory_space<vmem>>, vector<1x32xf32>
    %cst_48 = arith.constant 0.353553385 : f32
    %110 = vector.broadcast %cst_48 : f32 to vector<8x32xf32>
    %111 = arith.mulf %99, %110 : vector<8x32xf32>
    %112 = arith.truncf %111 : vector<8x32xf32> to vector<8x32xbf16>
    %113 = arith.truncf %106 : vector<8x32xf32> to vector<8x32xbf16>
    %114 = arith.truncf %107 : vector<8x32xf32> to vector<8x32xbf16>
    %115 = vector.extract_strided_slice %112 {offsets = [0, 0], sizes = [8, 8], strides = [1, 1]} : vector<8x32xbf16> to vector<8x8xbf16>
    %116 = vector.extract_strided_slice %113 {offsets = [0, 0], sizes = [8, 8], strides = [1, 1]} : vector<8x32xbf16> to vector<8x8xbf16>
    %cst_49 = arith.constant dense<0.000000e+00> : vector<8x8xf32>
    %117 = tpu.matmul %115, %116, %cst_49 {dimension_numbers = #tpu.dot_dimension_numbers<[1], [1], [0], [0], [0, 0, 1, 0], [], []>} : vector<8x8xbf16>, vector<8x8xbf16>, vector<8x8xf32> -> vector<8x8xf32>
    %118 = vector.extract_strided_slice %112 {offsets = [0, 8], sizes = [8, 8], strides = [1, 1]} : vector<8x32xbf16> to vector<8x8xbf16>
    %119 = vector.extract_strided_slice %113 {offsets = [0, 8], sizes = [8, 8], strides = [1, 1]} : vector<8x32xbf16> to vector<8x8xbf16>
    %cst_50 = arith.constant dense<0.000000e+00> : vector<8x8xf32>
    %120 = tpu.matmul %118, %119, %cst_50 {dimension_numbers = #tpu.dot_dimension_numbers<[1], [1], [0], [0], [0, 0, 1, 0], [], []>} : vector<8x8xbf16>, vector<8x8xbf16>, vector<8x8xf32> -> vector<8x8xf32>
    %121 = vector.extract_strided_slice %112 {offsets = [0, 16], sizes = [8, 8], strides = [1, 1]} : vector<8x32xbf16> to vector<8x8xbf16>
    %122 = vector.extract_strided_slice %113 {offsets = [0, 16], sizes = [8, 8], strides = [1, 1]} : vector<8x32xbf16> to vector<8x8xbf16>
    %cst_51 = arith.constant dense<0.000000e+00> : vector<8x8xf32>
    %123 = tpu.matmul %121, %122, %cst_51 {dimension_numbers = #tpu.dot_dimension_numbers<[1], [1], [0], [0], [0, 0, 1, 0], [], []>} : vector<8x8xbf16>, vector<8x8xbf16>, vector<8x8xf32> -> vector<8x8xf32>
    %124 = vector.extract_strided_slice %112 {offsets = [0, 24], sizes = [8, 8], strides = [1, 1]} : vector<8x32xbf16> to vector<8x8xbf16>
    %125 = vector.extract_strided_slice %113 {offsets = [0, 24], sizes = [8, 8], strides = [1, 1]} : vector<8x32xbf16> to vector<8x8xbf16>
    %cst_52 = arith.constant dense<0.000000e+00> : vector<8x8xf32>
    %126 = tpu.matmul %124, %125, %cst_52 {dimension_numbers = #tpu.dot_dimension_numbers<[1], [1], [0], [0], [0, 0, 1, 0], [], []>} : vector<8x8xbf16>, vector<8x8xbf16>, vector<8x8xf32> -> vector<8x8xf32>
    %127 = vector.shape_cast %117 : vector<8x8xf32> to vector<1x8x8xf32>
    %128 = vector.shape_cast %120 : vector<8x8xf32> to vector<1x8x8xf32>
    %129 = vector.shape_cast %123 : vector<8x8xf32> to vector<1x8x8xf32>
    %130 = vector.shape_cast %126 : vector<8x8xf32> to vector<1x8x8xf32>
    %131 = tpu.concatenate %127, %128, %129, %130 in 0 : vector<1x8x8xf32>, vector<1x8x8xf32>, vector<1x8x8xf32>, vector<1x8x8xf32> -> vector<4x8x8xf32>
    %cst_53 = arith.constant dense<0xFF800000> : vector<4x8xf32>
    %132 = vector.multi_reduction <maximumf>, %131, %cst_53 [2] : vector<4x8x8xf32> to vector<4x8xf32>
    %133 = vector.shape_cast %132 : vector<4x8xf32> to vector<4x8x1xf32>
    %134 = vector.broadcast %133 : vector<4x8x1xf32> to vector<4x8x8xf32>
    %135 = arith.subf %131, %134 : vector<4x8x8xf32>
    %136 = math.exp %135 : vector<4x8x8xf32>
    %cst_54 = arith.constant dense<0.000000e+00> : vector<4x8xf32>
    %137 = vector.multi_reduction <add>, %136, %cst_54 [2] : vector<4x8x8xf32> to vector<4x8xf32>
    %138 = vector.shape_cast %137 : vector<4x8xf32> to vector<4x8x1xf32>
    %139 = tpu.reciprocal %138 {approx = true} : vector<4x8x1xf32> -> vector<4x8x1xf32>
    %140 = vector.broadcast %139 : vector<4x8x1xf32> to vector<4x8x8xf32>
    %141 = arith.mulf %136, %140 : vector<4x8x8xf32>
    %142 = arith.truncf %141 : vector<4x8x8xf32> to vector<4x8x8xbf16>
    %143 = vector.extract_strided_slice %142 {offsets = [0, 0, 0], sizes = [1, 8, 8], strides = [1, 1, 1]} : vector<4x8x8xbf16> to vector<1x8x8xbf16>
    %144 = vector.shape_cast %143 : vector<1x8x8xbf16> to vector<8x8xbf16>
    %145 = vector.extract_strided_slice %114 {offsets = [0, 0], sizes = [8, 8], strides = [1, 1]} : vector<8x32xbf16> to vector<8x8xbf16>
    %cst_55 = arith.constant dense<0.000000e+00> : vector<8x8xf32>
    %146 = tpu.matmul %144, %145, %cst_55 {dimension_numbers = #tpu.dot_dimension_numbers<[1], [0], [0], [1], [0, 0, 1, 1], [], []>} : vector<8x8xbf16>, vector<8x8xbf16>, vector<8x8xf32> -> vector<8x8xf32>
    %147 = vector.extract_strided_slice %142 {offsets = [1, 0, 0], sizes = [1, 8, 8], strides = [1, 1, 1]} : vector<4x8x8xbf16> to vector<1x8x8xbf16>
    %148 = vector.shape_cast %147 : vector<1x8x8xbf16> to vector<8x8xbf16>
    %149 = vector.extract_strided_slice %114 {offsets = [0, 8], sizes = [8, 8], strides = [1, 1]} : vector<8x32xbf16> to vector<8x8xbf16>
    %cst_56 = arith.constant dense<0.000000e+00> : vector<8x8xf32>
    %150 = tpu.matmul %148, %149, %cst_56 {dimension_numbers = #tpu.dot_dimension_numbers<[1], [0], [0], [1], [0, 0, 1, 1], [], []>} : vector<8x8xbf16>, vector<8x8xbf16>, vector<8x8xf32> -> vector<8x8xf32>
    %151 = vector.extract_strided_slice %142 {offsets = [2, 0, 0], sizes = [1, 8, 8], strides = [1, 1, 1]} : vector<4x8x8xbf16> to vector<1x8x8xbf16>
    %152 = vector.shape_cast %151 : vector<1x8x8xbf16> to vector<8x8xbf16>
    %153 = vector.extract_strided_slice %114 {offsets = [0, 16], sizes = [8, 8], strides = [1, 1]} : vector<8x32xbf16> to vector<8x8xbf16>
    %cst_57 = arith.constant dense<0.000000e+00> : vector<8x8xf32>
    %154 = tpu.matmul %152, %153, %cst_57 {dimension_numbers = #tpu.dot_dimension_numbers<[1], [0], [0], [1], [0, 0, 1, 1], [], []>} : vector<8x8xbf16>, vector<8x8xbf16>, vector<8x8xf32> -> vector<8x8xf32>
    %155 = vector.extract_strided_slice %142 {offsets = [3, 0, 0], sizes = [1, 8, 8], strides = [1, 1, 1]} : vector<4x8x8xbf16> to vector<1x8x8xbf16>
    %156 = vector.shape_cast %155 : vector<1x8x8xbf16> to vector<8x8xbf16>
    %157 = vector.extract_strided_slice %114 {offsets = [0, 24], sizes = [8, 8], strides = [1, 1]} : vector<8x32xbf16> to vector<8x8xbf16>
    %cst_58 = arith.constant dense<0.000000e+00> : vector<8x8xf32>
    %158 = tpu.matmul %156, %157, %cst_58 {dimension_numbers = #tpu.dot_dimension_numbers<[1], [0], [0], [1], [0, 0, 1, 1], [], []>} : vector<8x8xbf16>, vector<8x8xbf16>, vector<8x8xf32> -> vector<8x8xf32>
    %159 = tpu.concatenate %146, %150, %154, %158 in 1 : vector<8x8xf32>, vector<8x8xf32>, vector<8x8xf32>, vector<8x8xf32> -> vector<8x32xf32>
    %160 = arith.truncf %159 : vector<8x32xf32> to vector<8x32xbf16>
    %cst_59 = arith.constant dense<0.000000e+00> : vector<8x32xf32>
    %161 = tpu.matmul %160, %108, %cst_59 {dimension_numbers = #tpu.dot_dimension_numbers<[1], [0], [0], [1], [0, 0, 1, 1], [], []>} : vector<8x32xbf16>, vector<32x32xbf16>, vector<8x32xf32> -> vector<8x32xf32>
    %162 = vector.broadcast %109 : vector<1x32xf32> to vector<8x32xf32>
    %163 = arith.addf %161, %162 : vector<8x32xf32>
    %164 = arith.addf %93, %163 : vector<8x32xf32>
    %c0_60 = arith.constant 0 : index
    %c0_61 = arith.constant 0 : index
    %165 = vector.load %arg15[%c0_60, %c0_61] : memref<1x32xf32, #tpu.memory_space<vmem>>, vector<1x32xf32>
    %c0_62 = arith.constant 0 : index
    %c0_63 = arith.constant 0 : index
    %166 = vector.load %arg16[%c0_62, %c0_63] : memref<1x32xf32, #tpu.memory_space<vmem>>, vector<1x32xf32>
    %cst_64 = arith.constant dense<0.000000e+00> : vector<8xf32>
    %167 = vector.multi_reduction <add>, %164, %cst_64 [1] : vector<8x32xf32> to vector<8xf32>
    %168 = vector.shape_cast %167 : vector<8xf32> to vector<8x1xf32>
    %cst_65 = arith.constant 3.200000e+01 : f32
    %169 = vector.broadcast %cst_65 : f32 to vector<8x1xf32>
    %170 = arith.divf %168, %169 : vector<8x1xf32>
    %171 = vector.broadcast %170 : vector<8x1xf32> to vector<8x32xf32>
    %172 = arith.subf %164, %171 : vector<8x32xf32>
    %173 = arith.mulf %172, %172 : vector<8x32xf32>
    %cst_66 = arith.constant dense<0.000000e+00> : vector<8xf32>
    %174 = vector.multi_reduction <add>, %173, %cst_66 [1] : vector<8x32xf32> to vector<8xf32>
    %175 = vector.shape_cast %174 : vector<8xf32> to vector<8x1xf32>
    %cst_67 = arith.constant 3.200000e+01 : f32
    %176 = vector.broadcast %cst_67 : f32 to vector<8x1xf32>
    %177 = arith.divf %175, %176 : vector<8x1xf32>
    %178 = vector.broadcast %170 : vector<8x1xf32> to vector<8x32xf32>
    %179 = arith.subf %164, %178 : vector<8x32xf32>
    %cst_68 = arith.constant 9.99999974E-6 : f32
    %180 = vector.broadcast %cst_68 : f32 to vector<8x1xf32>
    %181 = arith.addf %177, %180 : vector<8x1xf32>
    %182 = math.rsqrt %181 : vector<8x1xf32>
    %183 = vector.broadcast %182 : vector<8x1xf32> to vector<8x32xf32>
    %184 = arith.mulf %179, %183 : vector<8x32xf32>
    %185 = vector.broadcast %165 : vector<1x32xf32> to vector<8x32xf32>
    %186 = arith.mulf %184, %185 : vector<8x32xf32>
    %187 = vector.broadcast %166 : vector<1x32xf32> to vector<8x32xf32>
    %188 = arith.addf %186, %187 : vector<8x32xf32>
    %c0_69 = arith.constant 0 : index
    %c0_70 = arith.constant 0 : index
    %189 = vector.load %arg17[%c0_69, %c0_70] : memref<32x64xbf16, #tpu.memory_space<vmem>>, vector<32x64xbf16>
    %c0_71 = arith.constant 0 : index
    %c0_72 = arith.constant 0 : index
    %190 = vector.load %arg18[%c0_71, %c0_72] : memref<1x64xf32, #tpu.memory_space<vmem>>, vector<1x64xf32>
    %c0_73 = arith.constant 0 : index
    %c0_74 = arith.constant 0 : index
    %191 = vector.load %arg19[%c0_73, %c0_74] : memref<64x32xbf16, #tpu.memory_space<vmem>>, vector<64x32xbf16>
    %c0_75 = arith.constant 0 : index
    %c0_76 = arith.constant 0 : index
    %192 = vector.load %arg20[%c0_75, %c0_76] : memref<1x32xf32, #tpu.memory_space<vmem>>, vector<1x32xf32>
    %193 = arith.truncf %188 : vector<8x32xf32> to vector<8x32xbf16>
    %cst_77 = arith.constant dense<0.000000e+00> : vector<8x64xf32>
    %194 = tpu.matmul %193, %189, %cst_77 {dimension_numbers = #tpu.dot_dimension_numbers<[1], [0], [0], [1], [0, 0, 1, 1], [], []>} : vector<8x32xbf16>, vector<32x64xbf16>, vector<8x64xf32> -> vector<8x64xf32>
    %195 = vector.broadcast %190 : vector<1x64xf32> to vector<8x64xf32>
    %196 = arith.addf %194, %195 : vector<8x64xf32>
    %cst_78 = arith.constant 0.000000e+00 : f32
    %197 = vector.broadcast %cst_78 : f32 to vector<8x64xf32>
    %198 = arith.maximumf %196, %197 : vector<8x64xf32>
    %199 = arith.truncf %198 : vector<8x64xf32> to vector<8x64xbf16>
    %cst_79 = arith.constant dense<0.000000e+00> : vector<8x32xf32>
    %200 = tpu.matmul %199, %191, %cst_79 {dimension_numbers = #tpu.dot_dimension_numbers<[1], [0], [0], [1], [0, 0, 1, 1], [], []>} : vector<8x64xbf16>, vector<64x32xbf16>, vector<8x32xf32> -> vector<8x32xf32>
    %201 = vector.broadcast %192 : vector<1x32xf32> to vector<8x32xf32>
    %202 = arith.addf %200, %201 : vector<8x32xf32>
    %203 = arith.addf %188, %202 : vector<8x32xf32>
    %c0_80 = arith.constant 0 : index
    %c0_81 = arith.constant 0 : index
    %204 = vector.load %arg21[%c0_80, %c0_81] : memref<1x32xf32, #tpu.memory_space<vmem>>, vector<1x32xf32>
    %c0_82 = arith.constant 0 : index
    %c0_83 = arith.constant 0 : index
    %205 = vector.load %arg22[%c0_82, %c0_83] : memref<1x32xf32, #tpu.memory_space<vmem>>, vector<1x32xf32>
    %cst_84 = arith.constant dense<0.000000e+00> : vector<8xf32>
    %206 = vector.multi_reduction <add>, %203, %cst_84 [1] : vector<8x32xf32> to vector<8xf32>
    %207 = vector.shape_cast %206 : vector<8xf32> to vector<8x1xf32>
    %cst_85 = arith.constant 3.200000e+01 : f32
    %208 = vector.broadcast %cst_85 : f32 to vector<8x1xf32>
    %209 = arith.divf %207, %208 : vector<8x1xf32>
    %210 = vector.broadcast %209 : vector<8x1xf32> to vector<8x32xf32>
    %211 = arith.subf %203, %210 : vector<8x32xf32>
    %212 = arith.mulf %211, %211 : vector<8x32xf32>
    %cst_86 = arith.constant dense<0.000000e+00> : vector<8xf32>
    %213 = vector.multi_reduction <add>, %212, %cst_86 [1] : vector<8x32xf32> to vector<8xf32>
    %214 = vector.shape_cast %213 : vector<8xf32> to vector<8x1xf32>
    %cst_87 = arith.constant 3.200000e+01 : f32
    %215 = vector.broadcast %cst_87 : f32 to vector<8x1xf32>
    %216 = arith.divf %214, %215 : vector<8x1xf32>
    %217 = vector.broadcast %209 : vector<8x1xf32> to vector<8x32xf32>
    %218 = arith.subf %203, %217 : vector<8x32xf32>
    %cst_88 = arith.constant 9.99999974E-6 : f32
    %219 = vector.broadcast %cst_88 : f32 to vector<8x1xf32>
    %220 = arith.addf %216, %219 : vector<8x1xf32>
    %221 = math.rsqrt %220 : vector<8x1xf32>
    %222 = vector.broadcast %221 : vector<8x1xf32> to vector<8x32xf32>
    %223 = arith.mulf %218, %222 : vector<8x32xf32>
    %224 = vector.broadcast %204 : vector<1x32xf32> to vector<8x32xf32>
    %225 = arith.mulf %223, %224 : vector<8x32xf32>
    %226 = vector.broadcast %205 : vector<1x32xf32> to vector<8x32xf32>
    %227 = arith.addf %225, %226 : vector<8x32xf32>
    %c0_89 = arith.constant 0 : index
    %c0_90 = arith.constant 0 : index
    %c0_91 = arith.constant 0 : index
    %228 = vector.load %arg23[%c0_89, %c0_90, %c0_91] : memref<1x8x32xf32, #tpu.memory_space<vmem>>, vector<1x8x32xf32>
    %229 = vector.shape_cast %228 : vector<1x8x32xf32> to vector<8x32xf32>
    %230 = vector.shape_cast %227 : vector<8x32xf32> to vector<1x8x32xf32>
    tpu.vector_store %arg23[%c0_89, %c0_90, %c0_91], %230 {strides = array<i32>} : memref<1x8x32xf32, #tpu.memory_space<vmem>>, vector<1x8x32xf32>,
    return
  }
  func.func @transform_0(%arg0: i32) -> (i32, i32, i32) {
    %c0_i32 = arith.constant 0 : i32
    %c0_i32_0 = arith.constant 0 : i32
    %c0_i32_1 = arith.constant 0 : i32
    return %arg0, %c0_i32, %c0_i32_0 : i32, i32, i32
  }
  func.func @transform_1(%arg0: i32) -> (i32, i32, i32) {
    %c0_i32 = arith.constant 0 : i32
    %c0_i32_0 = arith.constant 0 : i32
    %c0_i32_1 = arith.constant 0 : i32
    return %arg0, %c0_i32, %c0_i32_0 : i32, i32, i32
  }
  func.func @transform_2(%arg0: i32) -> (i32, i32) {
    %c0_i32 = arith.constant 0 : i32
    %c0_i32_0 = arith.constant 0 : i32
    %c0_i32_1 = arith.constant 0 : i32
    return %c0_i32, %c0_i32_0 : i32, i32
  }
  func.func @transform_3(%arg0: i32) -> (i32, i32) {
    %c0_i32 = arith.constant 0 : i32
    %c0_i32_0 = arith.constant 0 : i32
    %c0_i32_1 = arith.constant 0 : i32
    return %c0_i32, %c0_i32_0 : i32, i32
  }
  func.func @transform_4(%arg0: i32) -> (i32, i32) {
    %c0_i32 = arith.constant 0 : i32
    %c0_i32_0 = arith.constant 0 : i32
    %c0_i32_1 = arith.constant 0 : i32
    return %c0_i32, %c0_i32_0 : i32, i32
  }
  func.func @transform_5(%arg0: i32) -> (i32, i32) {
    %c0_i32 = arith.constant 0 : i32
    %c0_i32_0 = arith.constant 0 : i32
    %c0_i32_1 = arith.constant 0 : i32
    return %c0_i32, %c0_i32_0 : i32, i32
  }
  func.func @transform_6(%arg0: i32) -> (i32, i32) {
    %c0_i32 = arith.constant 0 : i32
    %c0_i32_0 = arith.constant 0 : i32
    %c0_i32_1 = arith.constant 0 : i32
    return %c0_i32, %c0_i32_0 : i32, i32
  }
  func.func @transform_7(%arg0: i32) -> (i32, i32) {
    %c0_i32 = arith.constant 0 : i32
    %c0_i32_0 = arith.constant 0 : i32
    %c0_i32_1 = arith.constant 0 : i32
    return %c0_i32, %c0_i32_0 : i32, i32
  }
  func.func @transform_8(%arg0: i32) -> (i32, i32) {
    %c0_i32 = arith.constant 0 : i32
    %c0_i32_0 = arith.constant 0 : i32
    %c0_i32_1 = arith.constant 0 : i32
    return %c0_i32, %c0_i32_0 : i32, i32
  }
  func.func @transform_9(%arg0: i32) -> (i32, i32) {
    %c0_i32 = arith.constant 0 : i32
    %c0_i32_0 = arith.constant 0 : i32
    %c0_i32_1 = arith.constant 0 : i32
    return %c0_i32, %c0_i32_0 : i32, i32
  }
  func.func @transform_10(%arg0: i32) -> (i32, i32) {
    %c0_i32 = arith.constant 0 : i32
    %c0_i32_0 = arith.constant 0 : i32
    %c0_i32_1 = arith.constant 0 : i32
    return %c0_i32, %c0_i32_0 : i32, i32
  }
  func.func @transform_11(%arg0: i32) -> (i32, i32) {
    %c0_i32 = arith.constant 0 : i32
    %c0_i32_0 = arith.constant 0 : i32
    %c0_i32_1 = arith.constant 0 : i32
    return %c0_i32, %c0_i32_0 : i32, i32
  }
  func.func @transform_12(%arg0: i32) -> (i32, i32) {
    %c0_i32 = arith.constant 0 : i32
    %c0_i32_0 = arith.constant 0 : i32
    %c0_i32_1 = arith.constant 0 : i32
    return %c0_i32, %c0_i32_0 : i32, i32
  }
  func.func @transform_13(%arg0: i32) -> (i32, i32) {
    %c0_i32 = arith.constant 0 : i32
    %c0_i32_0 = arith.constant 0 : i32
    %c0_i32_1 = arith.constant 0 : i32
    return %c0_i32, %c0_i32_0 : i32, i32
  }
  func.func @transform_14(%arg0: i32) -> (i32, i32) {
    %c0_i32 = arith.constant 0 : i32
    %c0_i32_0 = arith.constant 0 : i32
    %c0_i32_1 = arith.constant 0 : i32
    return %c0_i32, %c0_i32_0 : i32, i32
  }
  func.func @transform_15(%arg0: i32) -> (i32, i32) {
    %c0_i32 = arith.constant 0 : i32
    %c0_i32_0 = arith.constant 0 : i32
    %c0_i32_1 = arith.constant 0 : i32
    return %c0_i32, %c0_i32_0 : i32, i32
  }
  func.func @transform_16(%arg0: i32) -> (i32, i32) {
    %c0_i32 = arith.constant 0 : i32
    %c0_i32_0 = arith.constant 0 : i32
    %c0_i32_1 = arith.constant 0 : i32
    return %c0_i32, %c0_i32_0 : i32, i32
  }
  func.func @transform_17(%arg0: i32) -> (i32, i32) {
    %c0_i32 = arith.constant 0 : i32
    %c0_i32_0 = arith.constant 0 : i32
    %c0_i32_1 = arith.constant 0 : i32
    return %c0_i32, %c0_i32_0 : i32, i32
  }
  func.func @transform_18(%arg0: i32) -> (i32, i32) {
    %c0_i32 = arith.constant 0 : i32
    %c0_i32_0 = arith.constant 0 : i32
    %c0_i32_1 = arith.constant 0 : i32
    return %c0_i32, %c0_i32_0 : i32, i32
  }
  func.func @transform_19(%arg0: i32) -> (i32, i32) {
    %c0_i32 = arith.constant 0 : i32
    %c0_i32_0 = arith.constant 0 : i32
    %c0_i32_1 = arith.constant 0 : i32
    return %c0_i32, %c0_i32_0 : i32, i32
  }
  func.func @transform_20(%arg0: i32) -> (i32, i32) {
    %c0_i32 = arith.constant 0 : i32
    %c0_i32_0 = arith.constant 0 : i32
    %c0_i32_1 = arith.constant 0 : i32
    return %c0_i32, %c0_i32_0 : i32, i32
  }
  func.func @transform_21(%arg0: i32) -> (i32, i32) {
    %c0_i32 = arith.constant 0 : i32
    %c0_i32_0 = arith.constant 0 : i32
    %c0_i32_1 = arith.constant 0 : i32
    return %c0_i32, %c0_i32_0 : i32, i32
  }
  func.func @transform_22(%arg0: i32) -> (i32, i32, i32) {
    %c0_i32 = arith.constant 0 : i32
    %c0_i32_0 = arith.constant 0 : i32
    %c0_i32_1 = arith.constant 0 : i32
    return %arg0, %c0_i32, %c0_i32_0 : i32, i32, i32
  }
}

</mosaic_0001>

<llo_original>
// kernel: transformer_forward.9
$region0: #{transformer_forward.9}
  #allocation0 [shape = 'u32[]', space=smem, size = 0x4, offset = 0x4, fixed_abs, tag = 'smem constant byte address 0x4 - core index']
  #allocation1 [shape = 'u32[144,128]{1,0:T(1,128)}', space=vmem, size = 0x12000, scoped, tag = 'internal scratch']
  %s0 = inlined_call_operand.vmem [shape: f32[16,32], index: 0, kind: input, shape index: {}]
  %s1 = inlined_call_operand.vmem [shape: bf16[32,128], index: 1, kind: input, shape index: {}]
  %s2 = inlined_call_operand.vmem [shape: f32[1,128], index: 2, kind: input, shape index: {}]
  %s3 = inlined_call_operand.vmem [shape: f32[16,128], index: 3, kind: output, shape index: {}]
  %s4 = sld [smem:[#allocation0]]
  $region22: #{transformer_forward.9} parent=0
    _
  %s6 = ssub.s32 1, %s4
  %s7 = scalar_select 0, %s6, %s4
  // Predicated region
  $region2: #{transformer_forward.9} parent=0 // pred_check
    _
  $region3: #{transformer_forward.9} parent=0 // pred_check_branch
    %9 = sbr.rel (0) target = $region5
  $region4: #{transformer_forward.9} parent=0 // pred_region
    _
  $region5: #{transformer_forward.9} parent=0 // pred_fallthru
    _
  // Predicated region
  $region6: #{transformer_forward.9} parent=0 // pred_check
    _
  $region7: #{transformer_forward.9} parent=0 // pred_check_branch
    %11 = sbr.rel (0) target = $region9
  $region8: #{transformer_forward.9} parent=0 // pred_region
    _
  $region9: #{transformer_forward.9} parent=0 // pred_fallthru
    _
  // Predicated region
  $region10: #{transformer_forward.9} parent=0 // pred_check
    _
  $region11: #{transformer_forward.9} parent=0 // pred_check_branch
    %13 = sbr.rel (0) target = $region13
  $region12: #{transformer_forward.9} parent=0 // pred_region
    _
  $region13: #{transformer_forward.9} parent=0 // pred_fallthru
    _
  %v15 = vld [vmem:[%s0] sm:$0xff]
  %v16 = vld [vmem:[%s0 + $0x8] sm:$0xff]
  %v17 = vpack.c.bf16 %v16, %v15
  %v18 = vld [vmem:[%s1] sm:$0xf]
  %v19 = vld [vmem:[%s1 + $0x4] sm:$0xf]
  %v20 = vld [vmem:[%s1 + $0x8] sm:$0xf]
  %v21 = vld [vmem:[%s1 + $0xc] sm:$0xf]
  %v22 = vld [vmem:[%s2] sm:$0x1]
  %v24 = vlaneseq
  %v25 = vshrl.u32 %v24, 7
  %v26 = vsub.s32 0, %v25
  %v27 = vrot.slane %v22, %v26
  %v33 = vunpack.c.l.b16 %v18
  %v34 = vunpack.c.l.b16 %v19
  %v35 = vunpack.c.l.b16 %v20
  %v36 = vunpack.c.l.b16 %v21
  %v37 = vpack.c.b16 %v34, %v33
  %v38 = vpack.c.b16 %v36, %v35
  %vm41 = vcmask 261120
  %v43 = vsel %vm41, %v17, 0
  %45 = vmatprep.subr.bf16.mxu0 0
  %46 = vmatpush1.bf16.msra.mxu0 %v37
  %47 = vmatprep.subr.bf16.mxu0 0
  %48 = vmatpush1.bf16.msra.mxu0 %v38
  %49 = vmatprep.subr.bf16.mxu0 0
  %50 = vmatpush1.bf16.msra.mxu0 0
  %51 = vmatprep.subr.bf16.mxu0 0
  %52 = vmatpush1.bf16.msra.mxu0 0
  %53 = vmatprep.subr.bf16.mxu0 0
  %54 = vmatpush1.bf16.msra.mxu0 0
  %55 = vmatprep.subr.bf16.mxu0 0
  %56 = vmatpush1.bf16.msra.mxu0 0
  %57 = vmatprep.subr.bf16.mxu0 0
  %58 = vmatpush1.bf16.msra.mxu0 0
  %59 = vmatprep.subr.bf16.mxu0 0
  %60 = vmatpush1.bf16.msra.mxu0 0
  %61 = vmatprep.subr.bf16.mxu0 0
  %62 = vmatpush1.bf16.msra.mxu0 0
  %63 = vmatprep.subr.bf16.mxu0 0
  %64 = vmatpush1.bf16.msra.mxu0 0
  %65 = vmatprep.subr.bf16.mxu0 0
  %66 = vmatpush1.bf16.msra.mxu0 0
  %67 = vmatprep.subr.bf16.mxu0 0
  %68 = vmatpush1.bf16.msra.mxu0 0
  %69 = vmatprep.subr.bf16.mxu0 0
  %70 = vmatpush1.bf16.msra.mxu0 0
  %71 = vmatprep.subr.bf16.mxu0 0
  %72 = vmatpush1.bf16.msra.mxu0 0
  %73 = vmatprep.subr.bf16.mxu0 0
  %74 = vmatpush1.bf16.msra.mxu0 0
  %75 = vmatprep.subr.bf16.mxu0 0
  %76 = vmatpush1.bf16.msra.mxu0 0
  %77 = vmatprep.mubr.bf16.mxu0 0
  %78 = vmatmul.mubr.bf16.gmra.mrb[0].mxu0 %v43
  %v79 = vpop.f32.mrb[0].mxu0
  %v80 = vadd.f32 %v27, %v79
  %v81 = vpop.f32.mrb[0].mxu0
  %v82 = vpop.f32.mrb[0].mxu0
  %v83 = vadd.f32 %v27, %v82
  %v84 = vpop.f32.mrb[0].mxu0
  %85 = vdwg.mxu0
  %86 = vst [vmem:[%s3] sm:$0xff] %v80
  %87 = vst [vmem:[%s3 + $0x8] sm:$0xff] %v83
  // Predicated region
  $region14: #{transformer_forward.9} parent=0 // pred_check
    _
  $region15: #{transformer_forward.9} parent=0 // pred_check_branch
    %89 = sbr.rel (0) target = $region17
  $region16: #{transformer_forward.9} parent=0 // pred_region
    _
  $region17: #{transformer_forward.9} parent=0 // pred_fallthru
    _
  // Predicated region
  $region18: #{transformer_forward.9} parent=0 // pred_check
    _
  $region19: #{transformer_forward.9} parent=0 // pred_check_branch
    %91 = sbr.rel (0) target = $region21
  $region20: #{transformer_forward.9} parent=0 // pred_region
    _
  $region21: #{transformer_forward.9} parent=0 // pred_fallthru
    _

// kernel: transformer_forward.5
$region0: #{transformer_forward.5}
  #allocation0 [shape = 'u32[]', space=smem, size = 0x4, offset = 0x4, fixed_abs, tag = 'smem constant byte address 0x4 - core index']
  #allocation1 [shape = 'u32[144,128]{1,0:T(1,128)}', space=vmem, size = 0x12000, scoped, tag = 'internal scratch']
  %s0 = inlined_call_operand.vmem [shape: f32[2,8,32], index: 0, kind: input, shape index: {}]
  %s1 = inlined_call_operand.vmem [shape: bf16[32,96], index: 1, kind: input, shape index: {}]
  %s2 = inlined_call_operand.vmem [shape: f32[1,96], index: 2, kind: input, shape index: {}]
  %s3 = inlined_call_operand.vmem [shape: bf16[32,32], index: 3, kind: input, shape index: {}]
  %s4 = inlined_call_operand.vmem [shape: f32[1,32], index: 4, kind: input, shape index: {}]
  %s5 = inlined_call_operand.vmem [shape: f32[1,32], index: 5, kind: input, shape index: {}]
  %s6 = inlined_call_operand.vmem [shape: f32[1,32], index: 6, kind: input, shape index: {}]
  %s7 = inlined_call_operand.vmem [shape: bf16[32,64], index: 7, kind: input, shape index: {}]
  %s8 = inlined_call_operand.vmem [shape: f32[1,64], index: 8, kind: input, shape index: {}]
  %s9 = inlined_call_operand.vmem [shape: bf16[64,32], index: 9, kind: input, shape index: {}]
  %s10 = inlined_call_operand.vmem [shape: f32[1,32], index: 10, kind: input, shape index: {}]
  %s11 = inlined_call_operand.vmem [shape: f32[1,32], index: 11, kind: input, shape index: {}]
  %s12 = inlined_call_operand.vmem [shape: f32[1,32], index: 12, kind: input, shape index: {}]
  %s13 = inlined_call_operand.vmem [shape: f32[2,8,32], index: 13, kind: output, shape index: {}]
  %s14 = sld [smem:[#allocation0]]
  $region85: #{transformer_forward.5} parent=0
    _
  %s16 = ssub.s32 1, %s14
  %s17 = scalar_select 0, %s16, %s14
  loop: start=0, step=1, limit=4
  $region2: #{transformer_forward.5} parent=0 // loop_pre_header
    _
  $region3: #{transformer_forward.5} parent=0 // loop_header
    %s19 = sphi 0, %s23
    %p20 = scmp.ge.s32.totalorder %s19, 4
    %s29 = sphi 0, %s31
    %s32 = sphi 0, %s29
    %s33 = sphi 0, %s32
    %s49 = sphi 0, %s33
    %s53 = sphi 0, %s53
    %s55 = sphi 0, %s53
    %s56 = sphi 0, %s55
    %s70 = sphi 0, %s56
    %s74 = sphi 0, %s74
    %s76 = sphi 0, %s74
    %s77 = sphi 0, %s76
    %s91 = sphi 0, %s77
    %s95 = sphi 0, %s95
    %s97 = sphi 0, %s95
    %s98 = sphi 0, %s97
    %s112 = sphi 0, %s98
    %s116 = sphi 0, %s116
    %s118 = sphi 0, %s116
    %s119 = sphi 0, %s118
    %s133 = sphi 0, %s119
    %s137 = sphi 0, %s137
    %s139 = sphi 0, %s137
    %s140 = sphi 0, %s139
    %s154 = sphi 0, %s140
    %s158 = sphi 0, %s158
    %s160 = sphi 0, %s158
    %s161 = sphi 0, %s160
    %s175 = sphi 0, %s161
    %s179 = sphi 0, %s179
    %s181 = sphi 0, %s179
    %s182 = sphi 0, %s181
    %s196 = sphi 0, %s182
    %s200 = sphi 0, %s200
    %s202 = sphi 0, %s200
    %s203 = sphi 0, %s202
    %s217 = sphi 0, %s203
    %s221 = sphi 0, %s221
    %s223 = sphi 0, %s221
    %s224 = sphi 0, %s223
    %s238 = sphi 0, %s224
    %s242 = sphi 0, %s242
    %s244 = sphi 0, %s242
    %s245 = sphi 0, %s244
    %s259 = sphi 0, %s245
    %s263 = sphi 0, %s263
    %s265 = sphi 0, %s263
    %s266 = sphi 0, %s265
    %s280 = sphi 0, %s266
    %s284 = sphi 0, %s284
    %s286 = sphi 0, %s284
    %s287 = sphi 0, %s286
    %s301 = sphi 0, %s287
    %s307 = sphi 0, %s309
    %s310 = sphi 0, %s307
    %s311 = sphi 0, %s310
    %s327 = sphi 0, %s311
  $region4: #{transformer_forward.5} parent=0 // loop_header_branch
    %22 = sbr.rel (%p20) target = $region8
  $region5: #{transformer_forward.5} parent=0 // loop_body
    %s24 = ssub.s32 %s19, 1
    %s25 = ssub.s32 %s19, 2
    %s26 = sadd.s32 %s19, 1
    %s27 = ssub.s32 %s19, %s26
    %p28 = scmp.eq.s32.totalorder %s27, 0
    %s30 = sadd.s32 %s29, 1
    %s31 = scalar_select %p28, %s29, %s30
    %p34 = pneg %p28
    %p35 = scmp.eq.s32.totalorder %s19, 1
    %p36 = por %p34, %p35
    %p37 = scmp.ne.s32.totalorder %s29, %s32
    %p38 = scmp.eq.s32.totalorder %s19, 0
    %p39 = por %p37, %p38
    %p40 = scmp.ne.s32.totalorder %s29, %s32
    %p41 = scmp.eq.s32.totalorder %s24, 1
    %p42 = por %p40, %p41
    %p43 = scmp.ne.s32.totalorder %s32, %s33
    %p44 = scmp.eq.s32.totalorder %s24, 0
    %p45 = por %p43, %p44
    %p46 = scmp.ne.s32.totalorder %s32, %s33
    %p47 = scmp.eq.s32.totalorder %s25, 1
    %p48 = por %p46, %p47
    %p50 = scmp.ne.s32.totalorder %s33, %s49
    %p51 = scmp.eq.s32.totalorder %s25, 0
    %p52 = por %p50, %p51
    %s54 = sadd.s32 %s53, 1
    %p57 = scmp.eq.s32.totalorder %s19, 1
    %p58 = scmp.ne.s32.totalorder %s53, %s55
    %p59 = scmp.eq.s32.totalorder %s19, 0
    %p60 = por %p58, %p59
    %p61 = scmp.ne.s32.totalorder %s53, %s55
    %p62 = scmp.eq.s32.totalorder %s24, 1
    %p63 = por %p61, %p62
    %p64 = scmp.ne.s32.totalorder %s55, %s56
    %p65 = scmp.eq.s32.totalorder %s24, 0
    %p66 = por %p64, %p65
    %p67 = scmp.ne.s32.totalorder %s55, %s56
    %p68 = scmp.eq.s32.totalorder %s25, 1
    %p69 = por %p67, %p68
    %p71 = scmp.ne.s32.totalorder %s56, %s70
    %p72 = scmp.eq.s32.totalorder %s25, 0
    %p73 = por %p71, %p72
    %s75 = sadd.s32 %s74, 1
    %p78 = scmp.eq.s32.totalorder %s19, 1
    %p79 = scmp.ne.s32.totalorder %s74, %s76
    %p80 = scmp.eq.s32.totalorder %s19, 0
    %p81 = por %p79, %p80
    %p82 = scmp.ne.s32.totalorder %s74, %s76
    %p83 = scmp.eq.s32.totalorder %s24, 1
    %p84 = por %p82, %p83
    %p85 = scmp.ne.s32.totalorder %s76, %s77
    %p86 = scmp.eq.s32.totalorder %s24, 0
    %p87 = por %p85, %p86
    %p88 = scmp.ne.s32.totalorder %s76, %s77
    %p89 = scmp.eq.s32.totalorder %s25, 1
    %p90 = por %p88, %p89
    %p92 = scmp.ne.s32.totalorder %s77, %s91
    %p93 = scmp.eq.s32.totalorder %s25, 0
    %p94 = por %p92, %p93
    %s96 = sadd.s32 %s95, 1
    %p99 = scmp.eq.s32.totalorder %s19, 1
    %p100 = scmp.ne.s32.totalorder %s95, %s97
    %p101 = scmp.eq.s32.totalorder %s19, 0
    %p102 = por %p100, %p101
    %p103 = scmp.ne.s32.totalorder %s95, %s97
    %p104 = scmp.eq.s32.totalorder %s24, 1
    %p105 = por %p103, %p104
    %p106 = scmp.ne.s32.totalorder %s97, %s98
    %p107 = scmp.eq.s32.totalorder %s24, 0
    %p108 = por %p106, %p107
    %p109 = scmp.ne.s32.totalorder %s97, %s98
    %p110 = scmp.eq.s32.totalorder %s25, 1
    %p111 = por %p109, %p110
    %p113 = scmp.ne.s32.totalorder %s98, %s112
    %p114 = scmp.eq.s32.totalorder %s25, 0
    %p115 = por %p113, %p114
    %s117 = sadd.s32 %s116, 1
    %p120 = scmp.eq.s32.totalorder %s19, 1
    %p121 = scmp.ne.s32.totalorder %s116, %s118
    %p122 = scmp.eq.s32.totalorder %s19, 0
    %p123 = por %p121, %p122
    %p124 = scmp.ne.s32.totalorder %s116, %s118
    %p125 = scmp.eq.s32.totalorder %s24, 1
    %p126 = por %p124, %p125
    %p127 = scmp.ne.s32.totalorder %s118, %s119
    %p128 = scmp.eq.s32.totalorder %s24, 0
    %p129 = por %p127, %p128
    %p130 = scmp.ne.s32.totalorder %s118, %s119
    %p131 = scmp.eq.s32.totalorder %s25, 1
    %p132 = por %p130, %p131
    %p134 = scmp.ne.s32.totalorder %s119, %s133
    %p135 = scmp.eq.s32.totalorder %s25, 0
    %p136 = por %p134, %p135
    %s138 = sadd.s32 %s137, 1
    %p141 = scmp.eq.s32.totalorder %s19, 1
    %p142 = scmp.ne.s32.totalorder %s137, %s139
    %p143 = scmp.eq.s32.totalorder %s19, 0
    %p144 = por %p142, %p143
    %p145 = scmp.ne.s32.totalorder %s137, %s139
    %p146 = scmp.eq.s32.totalorder %s24, 1
    %p147 = por %p145, %p146
    %p148 = scmp.ne.s32.totalorder %s139, %s140
    %p149 = scmp.eq.s32.totalorder %s24, 0
    %p150 = por %p148, %p149
    %p151 = scmp.ne.s32.totalorder %s139, %s140
    %p152 = scmp.eq.s32.totalorder %s25, 1
    %p153 = por %p151, %p152
    %p155 = scmp.ne.s32.totalorder %s140, %s154
    %p156 = scmp.eq.s32.totalorder %s25, 0
    %p157 = por %p155, %p156
    %s159 = sadd.s32 %s158, 1
    %p162 = scmp.eq.s32.totalorder %s19, 1
    %p163 = scmp.ne.s32.totalorder %s158, %s160
    %p164 = scmp.eq.s32.totalorder %s19, 0
    %p165 = por %p163, %p164
    %p166 = scmp.ne.s32.totalorder %s158, %s160
    %p167 = scmp.eq.s32.totalorder %s24, 1
    %p168 = por %p166, %p167
    %p169 = scmp.ne.s32.totalorder %s160, %s161
    %p170 = scmp.eq.s32.totalorder %s24, 0
    %p171 = por %p169, %p170
    %p172 = scmp.ne.s32.totalorder %s160, %s161
    %p173 = scmp.eq.s32.totalorder %s25, 1
    %p174 = por %p172, %p173
    %p176 = scmp.ne.s32.totalorder %s161, %s175
    %p177 = scmp.eq.s32.totalorder %s25, 0
    %p178 = por %p176, %p177
    %s180 = sadd.s32 %s179, 1
    %p183 = scmp.eq.s32.totalorder %s19, 1
    %p184 = scmp.ne.s32.totalorder %s179, %s181
    %p185 = scmp.eq.s32.totalorder %s19, 0
    %p186 = por %p184, %p185
    %p187 = scmp.ne.s32.totalorder %s179, %s181
    %p188 = scmp.eq.s32.totalorder %s24, 1
    %p189 = por %p187, %p188
    %p190 = scmp.ne.s32.totalorder %s181, %s182
    %p191 = scmp.eq.s32.totalorder %s24, 0
    %p192 = por %p190, %p191
    %p193 = scmp.ne.s32.totalorder %s181, %s182
    %p194 = scmp.eq.s32.totalorder %s25, 1
    %p195 = por %p193, %p194
    %p197 = scmp.ne.s32.totalorder %s182, %s196
    %p198 = scmp.eq.s32.totalorder %s25, 0
    %p199 = por %p197, %p198
    %s201 = sadd.s32 %s200, 1
    %p204 = scmp.eq.s32.totalorder %s19, 1
    %p205 = scmp.ne.s32.totalorder %s200, %s202
    %p206 = scmp.eq.s32.totalorder %s19, 0
    %p207 = por %p205, %p206
    %p208 = scmp.ne.s32.totalorder %s200, %s202
    %p209 = scmp.eq.s32.totalorder %s24, 1
    %p210 = por %p208, %p209
    %p211 = scmp.ne.s32.totalorder %s202, %s203
    %p212 = scmp.eq.s32.totalorder %s24, 0
    %p213 = por %p211, %p212
    %p214 = scmp.ne.s32.totalorder %s202, %s203
    %p215 = scmp.eq.s32.totalorder %s25, 1
    %p216 = por %p214, %p215
    %p218 = scmp.ne.s32.totalorder %s203, %s217
    %p219 = scmp.eq.s32.totalorder %s25, 0
    %p220 = por %p218, %p219
    %s222 = sadd.s32 %s221, 1
    %p225 = scmp.eq.s32.totalorder %s19, 1
    %p226 = scmp.ne.s32.totalorder %s221, %s223
    %p227 = scmp.eq.s32.totalorder %s19, 0
    %p228 = por %p226, %p227
    %p229 = scmp.ne.s32.totalorder %s221, %s223
    %p230 = scmp.eq.s32.totalorder %s24, 1
    %p231 = por %p229, %p230
    %p232 = scmp.ne.s32.totalorder %s223, %s224
    %p233 = scmp.eq.s32.totalorder %s24, 0
    %p234 = por %p232, %p233
    %p235 = scmp.ne.s32.totalorder %s223, %s224
    %p236 = scmp.eq.s32.totalorder %s25, 1
    %p237 = por %p235, %p236
    %p239 = scmp.ne.s32.totalorder %s224, %s238
    %p240 = scmp.eq.s32.totalorder %s25, 0
    %p241 = por %p239, %p240
    %s243 = sadd.s32 %s242, 1
    %p246 = scmp.eq.s32.totalorder %s19, 1
    %p247 = scmp.ne.s32.totalorder %s242, %s244
    %p248 = scmp.eq.s32.totalorder %s19, 0
    %p249 = por %p247, %p248
    %p250 = scmp.ne.s32.totalorder %s242, %s244
    %p251 = scmp.eq.s32.totalorder %s24, 1
    %p252 = por %p250, %p251
    %p253 = scmp.ne.s32.totalorder %s244, %s245
    %p254 = scmp.eq.s32.totalorder %s24, 0
    %p255 = por %p253, %p254
    %p256 = scmp.ne.s32.totalorder %s244, %s245
    %p257 = scmp.eq.s32.totalorder %s25, 1
    %p258 = por %p256, %p257
    %p260 = scmp.ne.s32.totalorder %s245, %s259
    %p261 = scmp.eq.s32.totalorder %s25, 0
    %p262 = por %p260, %p261
    %s264 = sadd.s32 %s263, 1
    %p267 = scmp.eq.s32.totalorder %s19, 1
    %p268 = scmp.ne.s32.totalorder %s263, %s265
    %p269 = scmp.eq.s32.totalorder %s19, 0
    %p270 = por %p268, %p269
    %p271 = scmp.ne.s32.totalorder %s263, %s265
    %p272 = scmp.eq.s32.totalorder %s24, 1
    %p273 = por %p271, %p272
    %p274 = scmp.ne.s32.totalorder %s265, %s266
    %p275 = scmp.eq.s32.totalorder %s24, 0
    %p276 = por %p274, %p275
    %p277 = scmp.ne.s32.totalorder %s265, %s266
    %p278 = scmp.eq.s32.totalorder %s25, 1
    %p279 = por %p277, %p278
    %p281 = scmp.ne.s32.totalorder %s266, %s280
    %p282 = scmp.eq.s32.totalorder %s25, 0
    %p283 = por %p281, %p282
    %s285 = sadd.s32 %s284, 1
    %p288 = scmp.eq.s32.totalorder %s19, 1
    %p289 = scmp.ne.s32.totalorder %s284, %s286
    %p290 = scmp.eq.s32.totalorder %s19, 0
    %p291 = por %p289, %p290
    %p292 = scmp.ne.s32.totalorder %s284, %s286
    %p293 = scmp.eq.s32.totalorder %s24, 1
    %p294 = por %p292, %p293
    %p295 = scmp.ne.s32.totalorder %s286, %s287
    %p296 = scmp.eq.s32.totalorder %s24, 0
    %p297 = por %p295, %p296
    %p298 = scmp.ne.s32.totalorder %s286, %s287
    %p299 = scmp.eq.s32.totalorder %s25, 1
    %p300 = por %p298, %p299
    %p302 = scmp.ne.s32.totalorder %s287, %s301
    %p303 = scmp.eq.s32.totalorder %s25, 0
    %p304 = por %p302, %p303
    %s305 = ssub.s32 %s19, %s26
    %p306 = scmp.eq.s32.totalorder %s305, 0
    %s308 = sadd.s32 %s307, 1
    %s309 = scalar_select %p306, %s307, %s308
    %p312 = pneg %p306
    %p313 = scmp.eq.s32.totalorder %s19, 1
    %p314 = por %p312, %p313
    %p315 = scmp.ne.s32.totalorder %s307, %s310
    %p316 = scmp.eq.s32.totalorder %s19, 0
    %p317 = por %p315, %p316
    %p318 = scmp.ne.s32.totalorder %s307, %s310
    %p319 = scmp.eq.s32.totalorder %s24, 1
    %p320 = por %p318, %p319
    %p321 = scmp.ne.s32.totalorder %s310, %s311
    %p322 = scmp.eq.s32.totalorder %s24, 0
    %p323 = por %p321, %p322
    %p324 = scmp.ne.s32.totalorder %s310, %s311
    %p325 = scmp.eq.s32.totalorder %s25, 1
    %p326 = por %p324, %p325
    %p328 = scmp.ne.s32.totalorder %s311, %s327
    %p329 = scmp.eq.s32.totalorder %s25, 0
    %p330 = por %p328, %p329
    %p331 = scmp.le.s32.totalorder 1, %s19
    %p332 = scmp.lt.s32.totalorder %s19, 3
    %p333 = pnand %p331, %p332
    %p334 = pneg %p333
    // Predicated region
    $region9: #{transformer_forward.5} parent=5 // pred_check
      _
    $region10: #{transformer_forward.5} parent=5 // pred_check_branch
      %336 = sbr.rel (%p333) target = $region12
    $region11: #{transformer_forward.5} parent=5 // pred_region
      %s337 = ssub.s32 %s19, 1
      // Predicated region
      $region13: #{transformer_forward.5} parent=11 // pred_check
        %p338 = pneg %p66
      $region14: #{transformer_forward.5} parent=11 // pred_check_branch
        %340 = sbr.rel (%p338) target = $region16
      $region15: #{transformer_forward.5} parent=11 // pred_region
        _
      $region16: #{transformer_forward.5} parent=11 // pred_fallthru
        _
      // Predicated region
      $region17: #{transformer_forward.5} parent=11 // pred_check
        %p341 = pneg %p87
      $region18: #{transformer_forward.5} parent=11 // pred_check_branch
        %343 = sbr.rel (%p341) target = $region20
      $region19: #{transformer_forward.5} parent=11 // pred_region
        _
      $region20: #{transformer_forward.5} parent=11 // pred_fallthru
        _
      // Predicated region
      $region21: #{transformer_forward.5} parent=11 // pred_check
        %p344 = pneg %p108
      $region22: #{transformer_forward.5} parent=11 // pred_check_branch
        %346 = sbr.rel (%p344) target = $region24
      $region23: #{transformer_forward.5} parent=11 // pred_region
        _
      $region24: #{transformer_forward.5} parent=11 // pred_fallthru
        _
      // Predicated region
      $region25: #{transformer_forward.5} parent=11 // pred_check
        %p347 = pneg %p129
      $region26: #{transformer_forward.5} parent=11 // pred_check_branch
        %349 = sbr.rel (%p347) target = $region28
      $region27: #{transformer_forward.5} parent=11 // pred_region
        _
      $region28: #{transformer_forward.5} parent=11 // pred_fallthru
        _
      // Predicated region
      $region29: #{transformer_forward.5} parent=11 // pred_check
        %p350 = pneg %p150
      $region30: #{transformer_forward.5} parent=11 // pred_check_branch
        %352 = sbr.rel (%p350) target = $region32
      $region31: #{transformer_forward.5} parent=11 // pred_region
        _
      $region32: #{transformer_forward.5} parent=11 // pred_fallthru
        _
      // Predicated region
      $region33: #{transformer_forward.5} parent=11 // pred_check
        %p353 = pneg %p171
      $region34: #{transformer_forward.5} parent=11 // pred_check_branch
        %355 = sbr.rel (%p353) target = $region36
      $region35: #{transformer_forward.5} parent=11 // pred_region
        _
      $region36: #{transformer_forward.5} parent=11 // pred_fallthru
        _
      // Predicated region
      $region37: #{transformer_forward.5} parent=11 // pred_check
        %p356 = pneg %p192
      $region38: #{transformer_forward.5} parent=11 // pred_check_branch
        %358 = sbr.rel (%p356) target = $region40
      $region39: #{transformer_forward.5} parent=11 // pred_region
        _
      $region40: #{transformer_forward.5} parent=11 // pred_fallthru
        _
      // Predicated region
      $region41: #{transformer_forward.5} parent=11 // pred_check
        %p359 = pneg %p213
      $region42: #{transformer_forward.5} parent=11 // pred_check_branch
        %361 = sbr.rel (%p359) target = $region44
      $region43: #{transformer_forward.5} parent=11 // pred_region
        _
      $region44: #{transformer_forward.5} parent=11 // pred_fallthru
        _
      // Predicated region
      $region45: #{transformer_forward.5} parent=11 // pred_check
        %p362 = pneg %p234
      $region46: #{transformer_forward.5} parent=11 // pred_check_branch
        %364 = sbr.rel (%p362) target = $region48
      $region47: #{transformer_forward.5} parent=11 // pred_region
        _
      $region48: #{transformer_forward.5} parent=11 // pred_fallthru
        _
      // Predicated region
      $region49: #{transformer_forward.5} parent=11 // pred_check
        %p365 = pneg %p255
      $region50: #{transformer_forward.5} parent=11 // pred_check_branch
        %367 = sbr.rel (%p365) target = $region52
      $region51: #{transformer_forward.5} parent=11 // pred_region
        _
      $region52: #{transformer_forward.5} parent=11 // pred_fallthru
        _
      // Predicated region
      $region53: #{transformer_forward.5} parent=11 // pred_check
        %p368 = pneg %p276
      $region54: #{transformer_forward.5} parent=11 // pred_check_branch
        %370 = sbr.rel (%p368) target = $region56
      $region55: #{transformer_forward.5} parent=11 // pred_region
        _
      $region56: #{transformer_forward.5} parent=11 // pred_fallthru
        _
      // Predicated region
      $region57: #{transformer_forward.5} parent=11 // pred_check
        %p371 = pneg %p297
      $region58: #{transformer_forward.5} parent=11 // pred_check_branch
        %373 = sbr.rel (%p371) target = $region60
      $region59: #{transformer_forward.5} parent=11 // pred_region
        _
      $region60: #{transformer_forward.5} parent=11 // pred_fallthru
        _
    $region12: #{transformer_forward.5} parent=5 // pred_fallthru
      _
    %p374 = scmp.lt.s32.totalorder %s19, 2
    // Predicated region
    $region61: #{transformer_forward.5} parent=5 // pred_check
      %p375 = pneg %p374
    $region62: #{transformer_forward.5} parent=5 // pred_check_branch
      %377 = sbr.rel (%p375) target = $region64
    $region63: #{transformer_forward.5} parent=5 // pred_region
      // Predicated region
      $region65: #{transformer_forward.5} parent=63 // pred_check
        %p378 = pneg %p39
      $region66: #{transformer_forward.5} parent=63 // pred_check_branch
        %380 = sbr.rel (%p378) target = $region68
      $region67: #{transformer_forward.5} parent=63 // pred_region
        %p381 = scmp.lt.s32.totalorder %s19, 1
        %s382 = scalar_select %p381, %s19, 1
        %s383 = smul.addr %s382, 8
        %s384 = scalar_lea.vmem %s0, %s383
      $region68: #{transformer_forward.5} parent=63 // pred_fallthru
        _
    $region64: #{transformer_forward.5} parent=5 // pred_fallthru
      _
    %p385 = scmp.le.s32.totalorder 1, %s19
    %p386 = scmp.lt.s32.totalorder %s19, 3
    %p387 = pnand %p385, %p386
    %p388 = pneg %p387
    // Predicated region
    $region69: #{transformer_forward.5} parent=5 // pred_check
      _
    $region70: #{transformer_forward.5} parent=5 // pred_check_branch
      %390 = sbr.rel (%p387) target = $region72
    $region71: #{transformer_forward.5} parent=5 // pred_region
      %s391 = ssub.s32 %s19, 1
      %p392 = scmp.lt.s32.totalorder %s24, 1
      %s393 = scalar_select %p392, %s24, 1
      %s394 = smul.addr %s393, 8
      %s395 = scalar_lea.vmem %s0, %s394
      %p396 = pneg %p45
      %p397 = pneg %p42
      %p398 = pneg %p66
      %p399 = pneg %p63
      %p400 = pneg %p87
      %p401 = pneg %p84
      %p402 = pneg %p108
      %p403 = pneg %p105
      %p404 = pneg %p129
      %p405 = pneg %p126
      %p406 = pneg %p150
      %p407 = pneg %p147
      %p408 = pneg %p171
      %p409 = pneg %p168
      %p410 = pneg %p192
      %p411 = pneg %p189
      %p412 = pneg %p213
      %p413 = pneg %p210
      %p414 = pneg %p234
      %p415 = pneg %p231
      %p416 = pneg %p255
      %p417 = pneg %p252
      %p418 = pneg %p276
      %p419 = pneg %p273
      %p420 = pneg %p297
      %p421 = pneg %p294
      %p422 = pneg %p323
      %p423 = pneg %p320
      %p424 = scmp.lt.s32.totalorder %s24, 1
      %s425 = scalar_select %p424, %s24, 1
      %s426 = smul.addr %s425, 8
      %s427 = scalar_lea.vmem %s13, %s426
      %p428 = scmp.lt.s32.totalorder %s24, 1
      %s429 = scalar_select %p428, %s24, 1
      %s430 = smul.addr %s429, 8
      %s431 = scalar_lea.vmem %s0, %s430
      %p432 = scmp.lt.s32.totalorder %s24, 1
      %s433 = scalar_select %p432, %s24, 1
      %s434 = smul.addr %s433, 8
      %s435 = scalar_lea.vmem %s13, %s434
      %v437 = vld [vmem:[%s431] sm:$0xff]
      %v438 = vpack.c.bf16 %v437, %v437
      %v439 = vld [vmem:[%s1] sm:$0xf]
      %v440 = vld [vmem:[%s1 + $0x4] sm:$0xf]
      %v441 = vld [vmem:[%s1 + $0x8] sm:$0xf]
      %v442 = vld [vmem:[%s1 + $0xc] sm:$0xf]
      %v443 = vld [vmem:[%s2] sm:$0x1]
      %v445 = vlaneseq
      %v446 = vshrl.u32 %v445, 7
      %v447 = vsub.s32 0, %v446
      %v448 = vrot.slane %v443, %v447
      %v454 = vunpack.c.l.b16 %v439
      %v455 = vunpack.c.l.b16 %v440
      %v456 = vunpack.c.l.b16 %v441
      %v457 = vunpack.c.l.b16 %v442
      %v458 = vpack.c.b16 %v455, %v454
      %v459 = vpack.c.b16 %v457, %v456
      %vm462 = vcmask 261120
      %v464 = vsel %vm462, %v438, 0
      %466 = vmatprep.subr.bf16.mxu0 0
      %467 = vmatpush1.bf16.msra.mxu0 %v458
      %468 = vmatprep.subr.bf16.mxu0 0
      %469 = vmatpush1.bf16.msra.mxu0 %v459
      %470 = vmatprep.subr.bf16.mxu0 0
      %471 = vmatpush1.bf16.msra.mxu0 0
      %472 = vmatprep.subr.bf16.mxu0 0
      %473 = vmatpush1.bf16.msra.mxu0 0
      %474 = vmatprep.subr.bf16.mxu0 0
      %475 = vmatpush1.bf16.msra.mxu0 0
      %476 = vmatprep.subr.bf16.mxu0 0
      %477 = vmatpush1.bf16.msra.mxu0 0
      %478 = vmatprep.subr.bf16.mxu0 0
      %479 = vmatpush1.bf16.msra.mxu0 0
      %480 = vmatprep.subr.bf16.mxu0 0
      %481 = vmatpush1.bf16.msra.mxu0 0
      %482 = vmatprep.subr.bf16.mxu0 0
      %483 = vmatpush1.bf16.msra.mxu0 0
      %484 = vmatprep.subr.bf16.mxu0 0
      %485 = vmatpush1.bf16.msra.mxu0 0
      %486 = vmatprep.subr.bf16.mxu0 0
      %487 = vmatpush1.bf16.msra.mxu0 0
      %488 = vmatprep.subr.bf16.mxu0 0
      %489 = vmatpush1.bf16.msra.mxu0 0
      %490 = vmatprep.subr.bf16.mxu0 0
      %491 = vmatpush1.bf16.msra.mxu0 0
      %492 = vmatprep.subr.bf16.mxu0 0
      %493 = vmatpush1.bf16.msra.mxu0 0
      %494 = vmatprep.subr.bf16.mxu0 0
      %495 = vmatpush1.bf16.msra.mxu0 0
      %496 = vmatprep.subr.bf16.mxu0 0
      %497 = vmatpush1.bf16.msra.mxu0 0
      %498 = vmatprep.mubr.bf16.mxu0 0
      %499 = vmatmul.mubr.bf16.gmra.mrb[0].mxu0 %v464
      %v500 = vpop.f32.mrb[0].mxu0
      %v501 = vadd.f32 %v448, %v500
      %v502 = vpop.f32.mrb[0].mxu0
      %v503 = vpop.f32.mrb[0].mxu0
      %v504 = vpop.f32.mrb[0].mxu0
      %505 = vdwg.mxu0
      %v506 = vld [vmem:[%s3] sm:$0xf]
      %v507 = vld [vmem:[%s3 + $0x4] sm:$0xf]
      %v508 = vld [vmem:[%s3 + $0x8] sm:$0xf]
      %v509 = vld [vmem:[%s3 + $0xc] sm:$0xf]
      %v510 = vld [vmem:[%s4] sm:$0x1]
      %v511 = vmul.f32 %v501, 0.35355338
      %v512 = vpack.c.bf16 %v511, %v511
      %v513 = vpack.c.bf16 %v501, %v501
      %515 = vrot.lane.b32.xlu0 %v513, 96
      %v516 = vpop.permute.xlu0 %515
      %vm517 = vcmask 64512
      %v519 = vsel %vm517, %v512, 0
      %v522 = vsel %vm517, %v516, 0
      %524 = vmatprep.subr.bf16.mxu0 0
      %525 = vmatpush1.bf16.xpose.msra.mxu0 %v522
      %526 = vmatprep.subr.bf16.mxu0 0
      %527 = vmatpush1.bf16.xpose.msra.mxu0 0
      %528 = vmatprep.subr.bf16.mxu0 0
      %529 = vmatpush1.bf16.xpose.msra.mxu0 0
      %530 = vmatprep.subr.bf16.mxu0 0
      %531 = vmatpush1.bf16.xpose.msra.mxu0 0
      %532 = vmatprep.subr.bf16.mxu0 0
      %533 = vmatpush1.bf16.xpose.msra.mxu0 0
      %534 = vmatprep.subr.bf16.mxu0 0
      %535 = vmatpush1.bf16.xpose.msra.mxu0 0
      %536 = vmatprep.subr.bf16.mxu0 0
      %537 = vmatpush1.bf16.xpose.msra.mxu0 0
      %538 = vmatprep.subr.bf16.mxu0 0
      %539 = vmatpush1.bf16.xpose.msra.mxu0 0
      %540 = vmatprep.subr.bf16.mxu0 0
      %541 = vmatpush1.bf16.xpose.msra.mxu0 0
      %542 = vmatprep.subr.bf16.mxu0 0
      %543 = vmatpush1.bf16.xpose.msra.mxu0 0
      %544 = vmatprep.subr.bf16.mxu0 0
      %545 = vmatpush1.bf16.xpose.msra.mxu0 0
      %546 = vmatprep.subr.bf16.mxu0 0
      %547 = vmatpush1.bf16.xpose.msra.mxu0 0
      %548 = vmatprep.subr.bf16.mxu0 0
      %549 = vmatpush1.bf16.xpose.msra.mxu0 0
      %550 = vmatprep.subr.bf16.mxu0 0
      %551 = vmatpush1.bf16.xpose.msra.mxu0 0
      %552 = vmatprep.subr.bf16.mxu0 0
      %553 = vmatpush1.bf16.xpose.msra.mxu0 0
      %554 = vmatprep.subr.bf16.mxu0 0
      %555 = vmatpush1.bf16.xpose.msra.mxu0 0
      %556 = vmatprep.mubr.bf16.mxu0 0
      %557 = vmatmul.mubr.bf16.gmra.mrb[0].mxu0 %v519
      %v558 = vpop.f32.mrb[0].mxu0
      %v559 = vadd.f32 0.0, %v558
      %v560 = vpop.f32.mrb[0].mxu0
      %v561 = vpop.f32.mrb[0].mxu0
      %v562 = vpop.f32.mrb[0].mxu0
      %563 = vdwg.mxu0
      %565 = vrot.lane.b32.xlu0 %v512, 120
      %v566 = vpop.permute.xlu0 %565
      %567 = vrot.lane.b32.xlu0 %v513, 88
      %v568 = vpop.permute.xlu0 %567
      %v570 = vsel %vm517, %v566, 0
      %v573 = vsel %vm517, %v568, 0
      %575 = vmatprep.subr.bf16.mxu0 0
      %576 = vmatpush1.bf16.xpose.msra.mxu0 %v573
      %577 = vmatprep.subr.bf16.mxu0 0
      %578 = vmatpush1.bf16.xpose.msra.mxu0 0
      %579 = vmatprep.subr.bf16.mxu0 0
      %580 = vmatpush1.bf16.xpose.msra.mxu0 0
      %581 = vmatprep.subr.bf16.mxu0 0
      %582 = vmatpush1.bf16.xpose.msra.mxu0 0
      %583 = vmatprep.subr.bf16.mxu0 0
      %584 = vmatpush1.bf16.xpose.msra.mxu0 0
      %585 = vmatprep.subr.bf16.mxu0 0
      %586 = vmatpush1.bf16.xpose.msra.mxu0 0
      %587 = vmatprep.subr.bf16.mxu0 0
      %588 = vmatpush1.bf16.xpose.msra.mxu0 0
      %589 = vmatprep.subr.bf16.mxu0 0
      %590 = vmatpush1.bf16.xpose.msra.mxu0 0
      %591 = vmatprep.subr.bf16.mxu0 0
      %592 = vmatpush1.bf16.xpose.msra.mxu0 0
      %593 = vmatprep.subr.bf16.mxu0 0
      %594 = vmatpush1.bf16.xpose.msra.mxu0 0
      %595 = vmatprep.subr.bf16.mxu0 0
      %596 = vmatpush1.bf16.xpose.msra.mxu0 0
      %597 = vmatprep.subr.bf16.mxu0 0
      %598 = vmatpush1.bf16.xpose.msra.mxu0 0
      %599 = vmatprep.subr.bf16.mxu0 0
      %600 = vmatpush1.bf16.xpose.msra.mxu0 0
      %601 = vmatprep.subr.bf16.mxu0 0
      %602 = vmatpush1.bf16.xpose.msra.mxu0 0
      %603 = vmatprep.subr.bf16.mxu0 0
      %604 = vmatpush1.bf16.xpose.msra.mxu0 0
      %605 = vmatprep.subr.bf16.mxu0 0
      %606 = vmatpush1.bf16.xpose.msra.mxu0 0
      %607 = vmatprep.mubr.bf16.mxu0 0
      %608 = vmatmul.mubr.bf16.gmra.mrb[0].mxu0 %v570
      %v609 = vpop.f32.mrb[0].mxu0
      %v610 = vadd.f32 0.0, %v609
      %v611 = vpop.f32.mrb[0].mxu0
      %v612 = vpop.f32.mrb[0].mxu0
      %v613 = vpop.f32.mrb[0].mxu0
      %614 = vdwg.mxu0
      %615 = vrot.lane.b32.xlu0 %v512, 112
      %v616 = vpop.permute.xlu0 %615
      %617 = vrot.lane.b32.xlu0 %v513, 80
      %v618 = vpop.permute.xlu0 %617
      %v620 = vsel %vm517, %v616, 0
      %v623 = vsel %vm517, %v618, 0
      %625 = vmatprep.subr.bf16.mxu0 0
      %626 = vmatpush1.bf16.xpose.msra.mxu0 %v623
      %627 = vmatprep.subr.bf16.mxu0 0
      %628 = vmatpush1.bf16.xpose.msra.mxu0 0
      %629 = vmatprep.subr.bf16.mxu0 0
      %630 = vmatpush1.bf16.xpose.msra.mxu0 0
      %631 = vmatprep.subr.bf16.mxu0 0
      %632 = vmatpush1.bf16.xpose.msra.mxu0 0
      %633 = vmatprep.subr.bf16.mxu0 0
      %634 = vmatpush1.bf16.xpose.msra.mxu0 0
      %635 = vmatprep.subr.bf16.mxu0 0
      %636 = vmatpush1.bf16.xpose.msra.mxu0 0
      %637 = vmatprep.subr.bf16.mxu0 0
      %638 = vmatpush1.bf16.xpose.msra.mxu0 0
      %639 = vmatprep.subr.bf16.mxu0 0
      %640 = vmatpush1.bf16.xpose.msra.mxu0 0
      %641 = vmatprep.subr.bf16.mxu0 0
      %642 = vmatpush1.bf16.xpose.msra.mxu0 0
      %643 = vmatprep.subr.bf16.mxu0 0
      %644 = vmatpush1.bf16.xpose.msra.mxu0 0
      %645 = vmatprep.subr.bf16.mxu0 0
      %646 = vmatpush1.bf16.xpose.msra.mxu0 0
      %647 = vmatprep.subr.bf16.mxu0 0
      %648 = vmatpush1.bf16.xpose.msra.mxu0 0
      %649 = vmatprep.subr.bf16.mxu0 0
      %650 = vmatpush1.bf16.xpose.msra.mxu0 0
      %651 = vmatprep.subr.bf16.mxu0 0
      %652 = vmatpush1.bf16.xpose.msra.mxu0 0
      %653 = vmatprep.subr.bf16.mxu0 0
      %654 = vmatpush1.bf16.xpose.msra.mxu0 0
      %655 = vmatprep.subr.bf16.mxu0 0
      %656 = vmatpush1.bf16.xpose.msra.mxu0 0
      %657 = vmatprep.mubr.bf16.mxu0 0
      %658 = vmatmul.mubr.bf16.gmra.mrb[0].mxu0 %v620
      %v659 = vpop.f32.mrb[0].mxu0
      %v660 = vadd.f32 0.0, %v659
      %v661 = vpop.f32.mrb[0].mxu0
      %v662 = vpop.f32.mrb[0].mxu0
      %v663 = vpop.f32.mrb[0].mxu0
      %664 = vdwg.mxu0
      %665 = vrot.lane.b32.xlu0 %v512, 104
      %v666 = vpop.permute.xlu0 %665
      %667 = vrot.lane.b32.xlu0 %v513, 72
      %v668 = vpop.permute.xlu0 %667
      %v670 = vsel %vm517, %v666, 0
      %v673 = vsel %vm517, %v668, 0
      %675 = vmatprep.subr.bf16.mxu0 0
      %676 = vmatpush1.bf16.xpose.msra.mxu0 %v673
      %677 = vmatprep.subr.bf16.mxu0 0
      %678 = vmatpush1.bf16.xpose.msra.mxu0 0
      %679 = vmatprep.subr.bf16.mxu0 0
      %680 = vmatpush1.bf16.xpose.msra.mxu0 0
      %681 = vmatprep.subr.bf16.mxu0 0
      %682 = vmatpush1.bf16.xpose.msra.mxu0 0
      %683 = vmatprep.subr.bf16.mxu0 0
      %684 = vmatpush1.bf16.xpose.msra.mxu0 0
      %685 = vmatprep.subr.bf16.mxu0 0
      %686 = vmatpush1.bf16.xpose.msra.mxu0 0
      %687 = vmatprep.subr.bf16.mxu0 0
      %688 = vmatpush1.bf16.xpose.msra.mxu0 0
      %689 = vmatprep.subr.bf16.mxu0 0
      %690 = vmatpush1.bf16.xpose.msra.mxu0 0
      %691 = vmatprep.subr.bf16.mxu0 0
      %692 = vmatpush1.bf16.xpose.msra.mxu0 0
      %693 = vmatprep.subr.bf16.mxu0 0
      %694 = vmatpush1.bf16.xpose.msra.mxu0 0
      %695 = vmatprep.subr.bf16.mxu0 0
      %696 = vmatpush1.bf16.xpose.msra.mxu0 0
      %697 = vmatprep.subr.bf16.mxu0 0
      %698 = vmatpush1.bf16.xpose.msra.mxu0 0
      %699 = vmatprep.subr.bf16.mxu0 0
      %700 = vmatpush1.bf16.xpose.msra.mxu0 0
      %701 = vmatprep.subr.bf16.mxu0 0
      %702 = vmatpush1.bf16.xpose.msra.mxu0 0
      %703 = vmatprep.subr.bf16.mxu0 0
      %704 = vmatpush1.bf16.xpose.msra.mxu0 0
      %705 = vmatprep.subr.bf16.mxu0 0
      %706 = vmatpush1.bf16.xpose.msra.mxu0 0
      %707 = vmatprep.mubr.bf16.mxu0 0
      %708 = vmatmul.mubr.bf16.gmra.mrb[0].mxu0 %v670
      %v709 = vpop.f32.mrb[0].mxu0
      %v710 = vadd.f32 0.0, %v709
      %v711 = vpop.f32.mrb[0].mxu0
      %v712 = vpop.f32.mrb[0].mxu0
      %v713 = vpop.f32.mrb[0].mxu0
      %714 = vdwg.mxu0
      %v715 = vsel %vm517, %v559, -inf
      %716 = vmax.xlane.f32.xlu0 %v715
      %v717 = vpop.xlane.xlu0 %716
      %v718 = vsel %vm517, %v610, -inf
      %719 = vmax.xlane.f32.xlu0 %v718
      %v720 = vpop.xlane.xlu0 %719
      %v721 = vsel %vm517, %v660, -inf
      %722 = vmax.xlane.f32.xlu0 %v721
      %v723 = vpop.xlane.xlu0 %722
      %v724 = vsel %vm517, %v710, -inf
      %725 = vmax.xlane.f32.xlu0 %v724
      %v726 = vpop.xlane.xlu0 %725
      %v727 = vsub.f32 %v559, %v717
      %v728 = vsub.f32 %v610, %v720
      %v729 = vsub.f32 %v660, %v723
      %v730 = vsub.f32 %v710, %v726
      %v731 = vmul.f32 %v727, 1.442695
      %v732 = vpow.pop %v731
      %v733 = vmul.f32 %v728, 1.442695
      %v734 = vpow.pop %v733
      %v735 = vmul.f32 %v729, 1.442695
      %v736 = vpow.pop %v735
      %v737 = vmul.f32 %v730, 1.442695
      %v738 = vpow.pop %v737
      %v739 = vsel %vm517, %v732, 0.0
      %740 = vadd.xlane.f32.xlu0 %v739
      %v741 = vpop.xlane.xlu0 %740
      %v742 = vsel %vm517, %v734, 0.0
      %743 = vadd.xlane.f32.xlu0 %v742
      %v744 = vpop.xlane.xlu0 %743
      %v745 = vsel %vm517, %v736, 0.0
      %746 = vadd.xlane.f32.xlu0 %v745
      %v747 = vpop.xlane.xlu0 %746
      %v748 = vsel %vm517, %v738, 0.0
      %749 = vadd.xlane.f32.xlu0 %v748
      %v750 = vpop.xlane.xlu0 %749
      %v751 = vrcp.pop %v741
      %v752 = vrcp.pop %v744
      %v753 = vrcp.pop %v747
      %v754 = vrcp.pop %v750
      %v755 = vmul.f32 %v732, %v751
      %v756 = vmul.f32 %v734, %v752
      %v757 = vmul.f32 %v736, %v753
      %v758 = vmul.f32 %v738, %v754
      %v759 = vpack.c.bf16 %v755, %v755
      %v760 = vpack.c.bf16 %v756, %v756
      %v761 = vpack.c.bf16 %v757, %v757
      %v762 = vpack.c.bf16 %v758, %v758
      %763 = vrot.lane.b32.xlu0 %v513, 64
      %v764 = vpop.permute.xlu0 %763
      %v766 = vsel %vm517, %v759, 0
      %vm768 = vcmask 1043456
      %v770 = vsel %vm768, %v764, 0
      %772 = vmatprep.subr.bf16.mxu0 0
      %773 = vmatpush1.bf16.msra.mxu0 %v770
      %774 = vmatprep.subr.bf16.mxu0 0
      %775 = vmatpush1.bf16.msra.mxu0 0
      %776 = vmatprep.subr.bf16.mxu0 0
      %777 = vmatpush1.bf16.msra.mxu0 0
      %778 = vmatprep.subr.bf16.mxu0 0
      %779 = vmatpush1.bf16.msra.mxu0 0
      %780 = vmatprep.subr.bf16.mxu0 0
      %781 = vmatpush1.bf16.msra.mxu0 0
      %782 = vmatprep.subr.bf16.mxu0 0
      %783 = vmatpush1.bf16.msra.mxu0 0
      %784 = vmatprep.subr.bf16.mxu0 0
      %785 = vmatpush1.bf16.msra.mxu0 0
      %786 = vmatprep.subr.bf16.mxu0 0
      %787 = vmatpush1.bf16.msra.mxu0 0
      %788 = vmatprep.subr.bf16.mxu0 0
      %789 = vmatpush1.bf16.msra.mxu0 0
      %790 = vmatprep.subr.bf16.mxu0 0
      %791 = vmatpush1.bf16.msra.mxu0 0
      %792 = vmatprep.subr.bf16.mxu0 0
      %793 = vmatpush1.bf16.msra.mxu0 0
      %794 = vmatprep.subr.bf16.mxu0 0
      %795 = vmatpush1.bf16.msra.mxu0 0
      %796 = vmatprep.subr.bf16.mxu0 0
      %797 = vmatpush1.bf16.msra.mxu0 0
      %798 = vmatprep.subr.bf16.mxu0 0
      %799 = vmatpush1.bf16.msra.mxu0 0
      %800 = vmatprep.subr.bf16.mxu0 0
      %801 = vmatpush1.bf16.msra.mxu0 0
      %802 = vmatprep.subr.bf16.mxu0 0
      %803 = vmatpush1.bf16.msra.mxu0 0
      %804 = vmatprep.mubr.bf16.mxu0 0
      %805 = vmatmul.mubr.bf16.gmra.mrb[0].mxu0 %v766
      %v806 = vpop.f32.mrb[0].mxu0
      %v807 = vadd.f32 0.0, %v806
      %v808 = vpop.f32.mrb[0].mxu0
      %v809 = vpop.f32.mrb[0].mxu0
      %v810 = vpop.f32.mrb[0].mxu0
      %811 = vdwg.mxu0
      %812 = vrot.lane.b32.xlu0 %v513, 56
      %v813 = vpop.permute.xlu0 %812
      %v815 = vsel %vm517, %v760, 0
      %v818 = vsel %vm768, %v813, 0
      %820 = vmatprep.subr.bf16.mxu0 0
      %821 = vmatpush1.bf16.msra.mxu0 %v818
      %822 = vmatprep.subr.bf16.mxu0 0
      %823 = vmatpush1.bf16.msra.mxu0 0
      %824 = vmatprep.subr.bf16.mxu0 0
      %825 = vmatpush1.bf16.msra.mxu0 0
      %826 = vmatprep.subr.bf16.mxu0 0
      %827 = vmatpush1.bf16.msra.mxu0 0
      %828 = vmatprep.subr.bf16.mxu0 0
      %829 = vmatpush1.bf16.msra.mxu0 0
      %830 = vmatprep.subr.bf16.mxu0 0
      %831 = vmatpush1.bf16.msra.mxu0 0
      %832 = vmatprep.subr.bf16.mxu0 0
      %833 = vmatpush1.bf16.msra.mxu0 0
      %834 = vmatprep.subr.bf16.mxu0 0
      %835 = vmatpush1.bf16.msra.mxu0 0
      %836 = vmatprep.subr.bf16.mxu0 0
      %837 = vmatpush1.bf16.msra.mxu0 0
      %838 = vmatprep.subr.bf16.mxu0 0
      %839 = vmatpush1.bf16.msra.mxu0 0
      %840 = vmatprep.subr.bf16.mxu0 0
      %841 = vmatpush1.bf16.msra.mxu0 0
      %842 = vmatprep.subr.bf16.mxu0 0
      %843 = vmatpush1.bf16.msra.mxu0 0
      %844 = vmatprep.subr.bf16.mxu0 0
      %845 = vmatpush1.bf16.msra.mxu0 0
      %846 = vmatprep.subr.bf16.mxu0 0
      %847 = vmatpush1.bf16.msra.mxu0 0
      %848 = vmatprep.subr.bf16.mxu0 0
      %849 = vmatpush1.bf16.msra.mxu0 0
      %850 = vmatprep.subr.bf16.mxu0 0
      %851 = vmatpush1.bf16.msra.mxu0 0
      %852 = vmatprep.mubr.bf16.mxu0 0
      %853 = vmatmul.mubr.bf16.gmra.mrb[0].mxu0 %v815
      %v854 = vpop.f32.mrb[0].mxu0
      %v855 = vadd.f32 0.0, %v854
      %v856 = vpop.f32.mrb[0].mxu0
      %v857 = vpop.f32.mrb[0].mxu0
      %v858 = vpop.f32.mrb[0].mxu0
      %859 = vdwg.mxu0
      %860 = vrot.lane.b32.xlu0 %v513, 48
      %v861 = vpop.permute.xlu0 %860
      %v863 = vsel %vm517, %v761, 0
      %v866 = vsel %vm768, %v861, 0
      %868 = vmatprep.subr.bf16.mxu0 0
      %869 = vmatpush1.bf16.msra.mxu0 %v866
      %870 = vmatprep.subr.bf16.mxu0 0
      %871 = vmatpush1.bf16.msra.mxu0 0
      %872 = vmatprep.subr.bf16.mxu0 0
      %873 = vmatpush1.bf16.msra.mxu0 0
      %874 = vmatprep.subr.bf16.mxu0 0
      %875 = vmatpush1.bf16.msra.mxu0 0
      %876 = vmatprep.subr.bf16.mxu0 0
      %877 = vmatpush1.bf16.msra.mxu0 0
      %878 = vmatprep.subr.bf16.mxu0 0
      %879 = vmatpush1.bf16.msra.mxu0 0
      %880 = vmatprep.subr.bf16.mxu0 0
      %881 = vmatpush1.bf16.msra.mxu0 0
      %882 = vmatprep.subr.bf16.mxu0 0
      %883 = vmatpush1.bf16.msra.mxu0 0
      %884 = vmatprep.subr.bf16.mxu0 0
      %885 = vmatpush1.bf16.msra.mxu0 0
      %886 = vmatprep.subr.bf16.mxu0 0
      %887 = vmatpush1.bf16.msra.mxu0 0
      %888 = vmatprep.subr.bf16.mxu0 0
      %889 = vmatpush1.bf16.msra.mxu0 0
      %890 = vmatprep.subr.bf16.mxu0 0
      %891 = vmatpush1.bf16.msra.mxu0 0
      %892 = vmatprep.subr.bf16.mxu0 0
      %893 = vmatpush1.bf16.msra.mxu0 0
      %894 = vmatprep.subr.bf16.mxu0 0
      %895 = vmatpush1.bf16.msra.mxu0 0
      %896 = vmatprep.subr.bf16.mxu0 0
      %897 = vmatpush1.bf16.msra.mxu0 0
      %898 = vmatprep.subr.bf16.mxu0 0
      %899 = vmatpush1.bf16.msra.mxu0 0
      %900 = vmatprep.mubr.bf16.mxu0 0
      %901 = vmatmul.mubr.bf16.gmra.mrb[0].mxu0 %v863
      %v902 = vpop.f32.mrb[0].mxu0
      %v903 = vadd.f32 0.0, %v902
      %v904 = vpop.f32.mrb[0].mxu0
      %v905 = vpop.f32.mrb[0].mxu0
      %v906 = vpop.f32.mrb[0].mxu0
      %907 = vdwg.mxu0
      %908 = vrot.lane.b32.xlu0 %v513, 40
      %v909 = vpop.permute.xlu0 %908
      %v911 = vsel %vm517, %v762, 0
      %v914 = vsel %vm768, %v909, 0
      %916 = vmatprep.subr.bf16.mxu0 0
      %917 = vmatpush1.bf16.msra.mxu0 %v914
      %918 = vmatprep.subr.bf16.mxu0 0
      %919 = vmatpush1.bf16.msra.mxu0 0
      %920 = vmatprep.subr.bf16.mxu0 0
      %921 = vmatpush1.bf16.msra.mxu0 0
      %922 = vmatprep.subr.bf16.mxu0 0
      %923 = vmatpush1.bf16.msra.mxu0 0
      %924 = vmatprep.subr.bf16.mxu0 0
      %925 = vmatpush1.bf16.msra.mxu0 0
      %926 = vmatprep.subr.bf16.mxu0 0
      %927 = vmatpush1.bf16.msra.mxu0 0
      %928 = vmatprep.subr.bf16.mxu0 0
      %929 = vmatpush1.bf16.msra.mxu0 0
      %930 = vmatprep.subr.bf16.mxu0 0
      %931 = vmatpush1.bf16.msra.mxu0 0
      %932 = vmatprep.subr.bf16.mxu0 0
      %933 = vmatpush1.bf16.msra.mxu0 0
      %934 = vmatprep.subr.bf16.mxu0 0
      %935 = vmatpush1.bf16.msra.mxu0 0
      %936 = vmatprep.subr.bf16.mxu0 0
      %937 = vmatpush1.bf16.msra.mxu0 0
      %938 = vmatprep.subr.bf16.mxu0 0
      %939 = vmatpush1.bf16.msra.mxu0 0
      %940 = vmatprep.subr.bf16.mxu0 0
      %941 = vmatpush1.bf16.msra.mxu0 0
      %942 = vmatprep.subr.bf16.mxu0 0
      %943 = vmatpush1.bf16.msra.mxu0 0
      %944 = vmatprep.subr.bf16.mxu0 0
      %945 = vmatpush1.bf16.msra.mxu0 0
      %946 = vmatprep.subr.bf16.mxu0 0
      %947 = vmatpush1.bf16.msra.mxu0 0
      %948 = vmatprep.mubr.bf16.mxu0 0
      %949 = vmatmul.mubr.bf16.gmra.mrb[0].mxu0 %v911
      %v950 = vpop.f32.mrb[0].mxu0
      %v951 = vadd.f32 0.0, %v950
      %v952 = vpop.f32.mrb[0].mxu0
      %v953 = vpop.f32.mrb[0].mxu0
      %v954 = vpop.f32.mrb[0].mxu0
      %955 = vdwg.mxu0
      %957 = vrot.lane.b32.xlu0 %v855, 8
      %v958 = vpop.permute.xlu0 %957
      %961 = vrot.lane.b32.xlu0 %v903, 16
      %v962 = vpop.permute.xlu0 %961
      %965 = vrot.lane.b32.xlu0 %v951, 24
      %v966 = vpop.permute.xlu0 %965
      %v968 = vsel %vm517, %v807, %v958
      %vm969 = vcmask 130048
      %v970 = vsel %vm969, %v968, %v962
      %vm971 = vcmask 195584
      %v972 = vsel %vm971, %v970, %v966
      %v973 = vpack.c.bf16 %v972, %v972
      %v975 = vlaneseq
      %v976 = vshrl.u32 %v975, 7
      %v977 = vsub.s32 0, %v976
      %v978 = vrot.slane %v510, %v977
      %v984 = vunpack.c.l.b16 %v506
      %v985 = vunpack.c.l.b16 %v507
      %v986 = vunpack.c.l.b16 %v508
      %v987 = vunpack.c.l.b16 %v509
      %v988 = vpack.c.b16 %v985, %v984
      %v989 = vpack.c.b16 %v987, %v986
      %v993 = vsel %vm462, %v973, 0
      %995 = vmatprep.subr.bf16.mxu0 0
      %996 = vmatpush1.bf16.msra.mxu0 %v988
      %997 = vmatprep.subr.bf16.mxu0 0
      %998 = vmatpush1.bf16.msra.mxu0 %v989
      %999 = vmatprep.subr.bf16.mxu0 0
      %1000 = vmatpush1.bf16.msra.mxu0 0
      %1001 = vmatprep.subr.bf16.mxu0 0
      %1002 = vmatpush1.bf16.msra.mxu0 0
      %1003 = vmatprep.subr.bf16.mxu0 0
      %1004 = vmatpush1.bf16.msra.mxu0 0
      %1005 = vmatprep.subr.bf16.mxu0 0
      %1006 = vmatpush1.bf16.msra.mxu0 0
      %1007 = vmatprep.subr.bf16.mxu0 0
      %1008 = vmatpush1.bf16.msra.mxu0 0
      %1009 = vmatprep.subr.bf16.mxu0 0
      %1010 = vmatpush1.bf16.msra.mxu0 0
      %1011 = vmatprep.subr.bf16.mxu0 0
      %1012 = vmatpush1.bf16.msra.mxu0 0
      %1013 = vmatprep.subr.bf16.mxu0 0
      %1014 = vmatpush1.bf16.msra.mxu0 0
      %1015 = vmatprep.subr.bf16.mxu0 0
      %1016 = vmatpush1.bf16.msra.mxu0 0
      %1017 = vmatprep.subr.bf16.mxu0 0
      %1018 = vmatpush1.bf16.msra.mxu0 0
      %1019 = vmatprep.subr.bf16.mxu0 0
      %1020 = vmatpush1.bf16.msra.mxu0 0
      %1021 = vmatprep.subr.bf16.mxu0 0
      %1022 = vmatpush1.bf16.msra.mxu0 0
      %1023 = vmatprep.subr.bf16.mxu0 0
      %1024 = vmatpush1.bf16.msra.mxu0 0
      %1025 = vmatprep.subr.bf16.mxu0 0
      %1026 = vmatpush1.bf16.msra.mxu0 0
      %1027 = vmatprep.mubr.bf16.mxu0 0
      %1028 = vmatmul.mubr.bf16.gmra.mrb[0].mxu0 %v993
      %v1029 = vpop.f32.mrb[0].mxu0
      %v1030 = vadd.f32 %v978, %v1029
      %v1031 = vpop.f32.mrb[0].mxu0
      %v1032 = vpop.f32.mrb[0].mxu0
      %v1033 = vpop.f32.mrb[0].mxu0
      %1034 = vdwg.mxu0
      %v1035 = vadd.f32 %v437, %v1030
      %v1036 = vld [vmem:[%s5] sm:$0x1]
      %v1037 = vld [vmem:[%s6] sm:$0x1]
      %v1038 = vsel %vm462, %v1035, 0.0
      %1039 = vadd.xlane.f32.xlu0 %v1038
      %v1040 = vpop.xlane.xlu0 %1039
      %v1041 = vrcp.pop 32.0
      %v1042 = vmul.f32 %v1040, %v1041
      %v1043 = vsub.f32 %v1035, %v1042
      %v1044 = vmul.f32 %v1043, %v1043
      %v1045 = vsel %vm462, %v1044, 0.0
      %1046 = vadd.xlane.f32.xlu0 %v1045
      %v1047 = vpop.xlane.xlu0 %1046
      %v1048 = vmul.f32 %v1047, %v1041
      %v1049 = vadd.f32 %v1048, 1e-05
      %v1050 = vrsqrt.pop %v1049
      %v1051 = vmul.f32 %v1043, %v1050
      %v1053 = vlaneseq
      %v1054 = vshrl.u32 %v1053, 7
      %v1055 = vsub.s32 0, %v1054
      %v1056 = vrot.slane %v1036, %v1055
      %v1058 = vmul.f32 %v1051, %v1056
      %v1060 = vlaneseq
      %v1061 = vshrl.u32 %v1060, 7
      %v1062 = vsub.s32 0, %v1061
      %v1063 = vrot.slane %v1037, %v1062
      %v1065 = vadd.f32 %v1058, %v1063
      %v1066 = vld [vmem:[%s7] sm:$0xf]
      %v1067 = vld [vmem:[%s7 + $0x4] sm:$0xf]
      %v1068 = vld [vmem:[%s7 + $0x8] sm:$0xf]
      %v1069 = vld [vmem:[%s7 + $0xc] sm:$0xf]
      %v1070 = vld [vmem:[%s8] sm:$0x1]
      %v1071 = vld [vmem:[%s9] sm:$0xf]
      %v1072 = vld [vmem:[%s9 + $0x4] sm:$0xf]
      %v1073 = vld [vmem:[%s9 + $0x8] sm:$0xf]
      %v1074 = vld [vmem:[%s9 + $0xc] sm:$0xf]
      %v1075 = vld [vmem:[%s9 + $0x10] sm:$0xf]
      %v1076 = vld [vmem:[%s9 + $0x14] sm:$0xf]
      %v1077 = vld [vmem:[%s9 + $0x18] sm:$0xf]
      %v1078 = vld [vmem:[%s9 + $0x1c] sm:$0xf]
      %v1079 = vld [vmem:[%s10] sm:$0x1]
      %v1080 = vpack.c.bf16 %v1065, %v1065
      %v1082 = vlaneseq
      %v1083 = vshrl.u32 %v1082, 7
      %v1084 = vsub.s32 0, %v1083
      %v1085 = vrot.slane %v1070, %v1084
      %v1091 = vunpack.c.l.b16 %v1066
      %v1092 = vunpack.c.l.b16 %v1067
      %v1093 = vunpack.c.l.b16 %v1068
      %v1094 = vunpack.c.l.b16 %v1069
      %v1095 = vpack.c.b16 %v1092, %v1091
      %v1096 = vpack.c.b16 %v1094, %v1093
      %v1100 = vsel %vm462, %v1080, 0
      %1102 = vmatprep.subr.bf16.mxu0 0
      %1103 = vmatpush1.bf16.msra.mxu0 %v1095
      %1104 = vmatprep.subr.bf16.mxu0 0
      %1105 = vmatpush1.bf16.msra.mxu0 %v1096
      %1106 = vmatprep.subr.bf16.mxu0 0
      %1107 = vmatpush1.bf16.msra.mxu0 0
      %1108 = vmatprep.subr.bf16.mxu0 0
      %1109 = vmatpush1.bf16.msra.mxu0 0
      %1110 = vmatprep.subr.bf16.mxu0 0
      %1111 = vmatpush1.bf16.msra.mxu0 0
      %1112 = vmatprep.subr.bf16.mxu0 0
      %1113 = vmatpush1.bf16.msra.mxu0 0
      %1114 = vmatprep.subr.bf16.mxu0 0
      %1115 = vmatpush1.bf16.msra.mxu0 0
      %1116 = vmatprep.subr.bf16.mxu0 0
      %1117 = vmatpush1.bf16.msra.mxu0 0
      %1118 = vmatprep.subr.bf16.mxu0 0
      %1119 = vmatpush1.bf16.msra.mxu0 0
      %1120 = vmatprep.subr.bf16.mxu0 0
      %1121 = vmatpush1.bf16.msra.mxu0 0
      %1122 = vmatprep.subr.bf16.mxu0 0
      %1123 = vmatpush1.bf16.msra.mxu0 0
      %1124 = vmatprep.subr.bf16.mxu0 0
      %1125 = vmatpush1.bf16.msra.mxu0 0
      %1126 = vmatprep.subr.bf16.mxu0 0
      %1127 = vmatpush1.bf16.msra.mxu0 0
      %1128 = vmatprep.subr.bf16.mxu0 0
      %1129 = vmatpush1.bf16.msra.mxu0 0
      %1130 = vmatprep.subr.bf16.mxu0 0
      %1131 = vmatpush1.bf16.msra.mxu0 0
      %1132 = vmatprep.subr.bf16.mxu0 0
      %1133 = vmatpush1.bf16.msra.mxu0 0
      %1134 = vmatprep.mubr.bf16.mxu0 0
      %1135 = vmatmul.mubr.bf16.gmra.mrb[0].mxu0 %v1100
      %v1136 = vpop.f32.mrb[0].mxu0
      %v1137 = vadd.f32 %v1085, %v1136
      %v1138 = vpop.f32.mrb[0].mxu0
      %v1139 = vpop.f32.mrb[0].mxu0
      %v1140 = vpop.f32.mrb[0].mxu0
      %1141 = vdwg.mxu0
      %v1142 = vmax.f32 %v1137, 0.0
      %v1143 = vpack.c.bf16 %v1142, %v1142
      %v1145 = vlaneseq
      %v1146 = vshrl.u32 %v1145, 7
      %v1147 = vsub.s32 0, %v1146
      %v1148 = vrot.slane %v1079, %v1147
      %v1158 = vunpack.c.l.b16 %v1071
      %v1159 = vunpack.c.l.b16 %v1072
      %v1160 = vunpack.c.l.b16 %v1073
      %v1161 = vunpack.c.l.b16 %v1074
      %v1162 = vunpack.c.l.b16 %v1075
      %v1163 = vunpack.c.l.b16 %v1076
      %v1164 = vunpack.c.l.b16 %v1077
      %v1165 = vunpack.c.l.b16 %v1078
      %v1166 = vpack.c.b16 %v1159, %v1158
      %v1167 = vpack.c.b16 %v1161, %v1160
      %v1168 = vpack.c.b16 %v1163, %v1162
      %v1169 = vpack.c.b16 %v1165, %v1164
      %vm1174 = vcmask 523264
      %v1176 = vsel %vm1174, %v1143, 0
      %1178 = vmatprep.subr.bf16.mxu0 0
      %1179 = vmatpush1.bf16.msra.mxu0 %v1166
      %1180 = vmatprep.subr.bf16.mxu0 0
      %1181 = vmatpush1.bf16.msra.mxu0 %v1167
      %1182 = vmatprep.subr.bf16.mxu0 0
      %1183 = vmatpush1.bf16.msra.mxu0 %v1168
      %1184 = vmatprep.subr.bf16.mxu0 0
      %1185 = vmatpush1.bf16.msra.mxu0 %v1169
      %1186 = vmatprep.subr.bf16.mxu0 0
      %1187 = vmatpush1.bf16.msra.mxu0 0
      %1188 = vmatprep.subr.bf16.mxu0 0
      %1189 = vmatpush1.bf16.msra.mxu0 0
      %1190 = vmatprep.subr.bf16.mxu0 0
      %1191 = vmatpush1.bf16.msra.mxu0 0
      %1192 = vmatprep.subr.bf16.mxu0 0
      %1193 = vmatpush1.bf16.msra.mxu0 0
      %1194 = vmatprep.subr.bf16.mxu0 0
      %1195 = vmatpush1.bf16.msra.mxu0 0
      %1196 = vmatprep.subr.bf16.mxu0 0
      %1197 = vmatpush1.bf16.msra.mxu0 0
      %1198 = vmatprep.subr.bf16.mxu0 0
      %1199 = vmatpush1.bf16.msra.mxu0 0
      %1200 = vmatprep.subr.bf16.mxu0 0
      %1201 = vmatpush1.bf16.msra.mxu0 0
      %1202 = vmatprep.subr.bf16.mxu0 0
      %1203 = vmatpush1.bf16.msra.mxu0 0
      %1204 = vmatprep.subr.bf16.mxu0 0
      %1205 = vmatpush1.bf16.msra.mxu0 0
      %1206 = vmatprep.subr.bf16.mxu0 0
      %1207 = vmatpush1.bf16.msra.mxu0 0
      %1208 = vmatprep.subr.bf16.mxu0 0
      %1209 = vmatpush1.bf16.msra.mxu0 0
      %1210 = vmatprep.mubr.bf16.mxu0 0
      %1211 = vmatmul.mubr.bf16.gmra.mrb[0].mxu0 %v1176
      %v1212 = vpop.f32.mrb[0].mxu0
      %v1213 = vadd.f32 %v1148, %v1212
      %v1214 = vpop.f32.mrb[0].mxu0
      %v1215 = vpop.f32.mrb[0].mxu0
      %v1216 = vpop.f32.mrb[0].mxu0
      %1217 = vdwg.mxu0
      %v1218 = vadd.f32 %v1065, %v1213
      %v1219 = vld [vmem:[%s11] sm:$0x1]
      %v1220 = vld [vmem:[%s12] sm:$0x1]
      %v1221 = vsel %vm462, %v1218, 0.0
      %1222 = vadd.xlane.f32.xlu0 %v1221
      %v1223 = vpop.xlane.xlu0 %1222
      %v1224 = vmul.f32 %v1223, %v1041
      %v1225 = vsub.f32 %v1218, %v1224
      %v1226 = vmul.f32 %v1225, %v1225
      %v1227 = vsel %vm462, %v1226, 0.0
      %1228 = vadd.xlane.f32.xlu0 %v1227
      %v1229 = vpop.xlane.xlu0 %1228
      %v1230 = vmul.f32 %v1229, %v1041
      %v1231 = vadd.f32 %v1230, 1e-05
      %v1232 = vrsqrt.pop %v1231
      %v1233 = vmul.f32 %v1225, %v1232
      %v1235 = vlaneseq
      %v1236 = vshrl.u32 %v1235, 7
      %v1237 = vsub.s32 0, %v1236
      %v1238 = vrot.slane %v1219, %v1237
      %v1240 = vmul.f32 %v1233, %v1238
      %v1242 = vlaneseq
      %v1243 = vshrl.u32 %v1242, 7
      %v1244 = vsub.s32 0, %v1243
      %v1245 = vrot.slane %v1220, %v1244
      %v1247 = vadd.f32 %v1240, %v1245
      %1248 = vst.msk [vmem:[%s435] sm:$0xff] %vm462, %v1247
      %p1249 = scmp.lt.s32.totalorder %s24, 1
      %s1250 = scalar_select %p1249, %s24, 1
      %s1251 = smul.addr %s1250, 8
      %s1252 = scalar_lea.vmem %s13, %s1251
      // Predicated region
      $region73: #{transformer_forward.5} parent=71 // pred_check
        %p1253 = pneg %p320
      $region74: #{transformer_forward.5} parent=71 // pred_check_branch
        %1255 = sbr.rel (%p1253) target = $region76
      $region75: #{transformer_forward.5} parent=71 // pred_region
        _
      $region76: #{transformer_forward.5} parent=71 // pred_fallthru
        _
    $region72: #{transformer_forward.5} parent=5 // pred_fallthru
      _
    %p1256 = scmp.le.s32.totalorder 2, %s19
    // Predicated region
    $region77: #{transformer_forward.5} parent=5 // pred_check
      %p1257 = pneg %p1256
    $region78: #{transformer_forward.5} parent=5 // pred_check_branch
      %1259 = sbr.rel (%p1257) target = $region80
    $region79: #{transformer_forward.5} parent=5 // pred_region
      %s1260 = ssub.s32 %s19, 2
      // Predicated region
      $region81: #{transformer_forward.5} parent=79 // pred_check
        %p1261 = pneg %p326
      $region82: #{transformer_forward.5} parent=79 // pred_check_branch
        %1263 = sbr.rel (%p1261) target = $region84
      $region83: #{transformer_forward.5} parent=79 // pred_region
        %p1264 = scmp.lt.s32.totalorder %s25, 1
        %s1265 = scalar_select %p1264, %s25, 1
        %s1266 = smul.addr %s1265, 8
        %s1267 = scalar_lea.vmem %s13, %s1266
      $region84: #{transformer_forward.5} parent=79 // pred_fallthru
        _
    $region80: #{transformer_forward.5} parent=5 // pred_fallthru
      _
  $region6: #{transformer_forward.5} parent=0 // loop_footer
    %s23 = sadd.s32 1, %s19
  $region7: #{transformer_forward.5} parent=0 // loop_footer_branch
    %18 = sbr.rel target = $region3
  $region8: #{transformer_forward.5} parent=0 // loop_exit
    _

// kernel: transformer_forward.8
$region0: #{transformer_forward.8}
  #allocation0 [shape = 'u32[]', space=smem, size = 0x4, offset = 0x4, fixed_abs, tag = 'smem constant byte address 0x4 - core index']
  #allocation1 [shape = 'u32[144,128]{1,0:T(1,128)}', space=vmem, size = 0x12000, scoped, tag = 'internal scratch']
  %s0 = inlined_call_operand.vmem [shape: f32[2,8,32], index: 0, kind: input, shape index: {}]
  %s1 = inlined_call_operand.vmem [shape: f32[2,8,32], index: 1, kind: input, shape index: {}]
  %s2 = inlined_call_operand.vmem [shape: bf16[32,96], index: 2, kind: input, shape index: {}]
  %s3 = inlined_call_operand.vmem [shape: f32[1,96], index: 3, kind: input, shape index: {}]
  %s4 = inlined_call_operand.vmem [shape: bf16[32,32], index: 4, kind: input, shape index: {}]
  %s5 = inlined_call_operand.vmem [shape: f32[1,32], index: 5, kind: input, shape index: {}]
  %s6 = inlined_call_operand.vmem [shape: f32[1,32], index: 6, kind: input, shape index: {}]
  %s7 = inlined_call_operand.vmem [shape: f32[1,32], index: 7, kind: input, shape index: {}]
  %s8 = inlined_call_operand.vmem [shape: bf16[32,32], index: 8, kind: input, shape index: {}]
  %s9 = inlined_call_operand.vmem [shape: f32[1,32], index: 9, kind: input, shape index: {}]
  %s10 = inlined_call_operand.vmem [shape: bf16[32,64], index: 10, kind: input, shape index: {}]
  %s11 = inlined_call_operand.vmem [shape: f32[1,64], index: 11, kind: input, shape index: {}]
  %s12 = inlined_call_operand.vmem [shape: bf16[32,32], index: 12, kind: input, shape index: {}]
  %s13 = inlined_call_operand.vmem [shape: f32[1,32], index: 13, kind: input, shape index: {}]
  %s14 = inlined_call_operand.vmem [shape: f32[1,32], index: 14, kind: input, shape index: {}]
  %s15 = inlined_call_operand.vmem [shape: f32[1,32], index: 15, kind: input, shape index: {}]
  %s16 = inlined_call_operand.vmem [shape: bf16[32,64], index: 16, kind: input, shape index: {}]
  %s17 = inlined_call_operand.vmem [shape: f32[1,64], index: 17, kind: input, shape index: {}]
  %s18 = inlined_call_operand.vmem [shape: bf16[64,32], index: 18, kind: input, shape index: {}]
  %s19 = inlined_call_operand.vmem [shape: f32[1,32], index: 19, kind: input, shape index: {}]
  %s20 = inlined_call_operand.vmem [shape: f32[1,32], index: 20, kind: input, shape index: {}]
  %s21 = inlined_call_operand.hbm [shape: f32[1,32], index: 21, kind: input, shape index: {}]
  %s22 = inlined_call_operand.vmem [shape: f32[2,8,32], index: 22, kind: output, shape index: {}]
  %s23 = sld [smem:[#allocation0]]
  $region125: #{transformer_forward.8} parent=0
    _
  %s25 = ssub.s32 1, %s23
  %s26 = scalar_select 0, %s25, %s23
  $region1: #{transformer_forward.8} parent=0
    #allocation2 [shape = 'u8[512]{0}', space=vmem, size = 0x400, scoped, tag = 'input window, operand 21, single buffered']
    #allocation3 [shape = 's32[2]{0}', space=sflag, size = 0x8, scoped, tag = 'scoped memory for transformer_forward.8']
    %27 = vsyncpa [#allocation3], 0
    loop: start=0, step=1, limit=4
    $region2: #{transformer_forward.8} parent=1 // loop_pre_header
      _
    $region3: #{transformer_forward.8} parent=1 // loop_header
      %s29 = sphi 0, %s33
      %p30 = scmp.ge.s32.totalorder %s29, 4
      %s39 = sphi 0, %s41
      %s42 = sphi 0, %s39
      %s43 = sphi 0, %s42
      %s59 = sphi 0, %s43
      %s65 = sphi 0, %s67
      %s68 = sphi 0, %s65
      %s69 = sphi 0, %s68
      %s85 = sphi 0, %s69
      %s89 = sphi 0, %s89
      %s91 = sphi 0, %s89
      %s92 = sphi 0, %s91
      %s106 = sphi 0, %s92
      %s110 = sphi 0, %s110
      %s112 = sphi 0, %s110
      %s113 = sphi 0, %s112
      %s127 = sphi 0, %s113
      %s131 = sphi 0, %s131
      %s133 = sphi 0, %s131
      %s134 = sphi 0, %s133
      %s148 = sphi 0, %s134
      %s152 = sphi 0, %s152
      %s154 = sphi 0, %s152
      %s155 = sphi 0, %s154
      %s169 = sphi 0, %s155
      %s173 = sphi 0, %s173
      %s175 = sphi 0, %s173
      %s176 = sphi 0, %s175
      %s190 = sphi 0, %s176
      %s194 = sphi 0, %s194
      %s196 = sphi 0, %s194
      %s197 = sphi 0, %s196
      %s211 = sphi 0, %s197
      %s215 = sphi 0, %s215
      %s217 = sphi 0, %s215
      %s218 = sphi 0, %s217
      %s232 = sphi 0, %s218
      %s236 = sphi 0, %s236
      %s238 = sphi 0, %s236
      %s239 = sphi 0, %s238
      %s253 = sphi 0, %s239
      %s257 = sphi 0, %s257
      %s259 = sphi 0, %s257
      %s260 = sphi 0, %s259
      %s274 = sphi 0, %s260
      %s278 = sphi 0, %s278
      %s280 = sphi 0, %s278
      %s281 = sphi 0, %s280
      %s295 = sphi 0, %s281
      %s299 = sphi 0, %s299
      %s301 = sphi 0, %s299
      %s302 = sphi 0, %s301
      %s316 = sphi 0, %s302
      %s320 = sphi 0, %s320
      %s322 = sphi 0, %s320
      %s323 = sphi 0, %s322
      %s337 = sphi 0, %s323
      %s341 = sphi 0, %s341
      %s343 = sphi 0, %s341
      %s344 = sphi 0, %s343
      %s358 = sphi 0, %s344
      %s362 = sphi 0, %s362
      %s364 = sphi 0, %s362
      %s365 = sphi 0, %s364
      %s379 = sphi 0, %s365
      %s383 = sphi 0, %s383
      %s385 = sphi 0, %s383
      %s386 = sphi 0, %s385
      %s400 = sphi 0, %s386
      %s404 = sphi 0, %s404
      %s406 = sphi 0, %s404
      %s407 = sphi 0, %s406
      %s421 = sphi 0, %s407
      %s425 = sphi 0, %s425
      %s427 = sphi 0, %s425
      %s428 = sphi 0, %s427
      %s442 = sphi 0, %s428
      %s446 = sphi 0, %s446
      %s448 = sphi 0, %s446
      %s449 = sphi 0, %s448
      %s463 = sphi 0, %s449
      %s467 = sphi 0, %s467
      %s469 = sphi 0, %s467
      %s470 = sphi 0, %s469
      %s484 = sphi 0, %s470
      %s488 = sphi 0, %s488
      %s490 = sphi 0, %s488
      %s491 = sphi 0, %s490
      %s505 = sphi 0, %s491
      %s511 = sphi 0, %s513
      %s514 = sphi 0, %s511
      %s515 = sphi 0, %s514
      %s531 = sphi 0, %s515
    $region4: #{transformer_forward.8} parent=1 // loop_header_branch
      %32 = sbr.rel (%p30) target = $region8
    $region5: #{transformer_forward.8} parent=1 // loop_body
      %s34 = ssub.s32 %s29, 1
      %s35 = ssub.s32 %s29, 2
      %s36 = sadd.s32 %s29, 1
      %s37 = ssub.s32 %s29, %s36
      %p38 = scmp.eq.s32.totalorder %s37, 0
      %s40 = sadd.s32 %s39, 1
      %s41 = scalar_select %p38, %s39, %s40
      %p44 = pneg %p38
      %p45 = scmp.eq.s32.totalorder %s29, 1
      %p46 = por %p44, %p45
      %p47 = scmp.ne.s32.totalorder %s39, %s42
      %p48 = scmp.eq.s32.totalorder %s29, 0
      %p49 = por %p47, %p48
      %p50 = scmp.ne.s32.totalorder %s39, %s42
      %p51 = scmp.eq.s32.totalorder %s34, 1
      %p52 = por %p50, %p51
      %p53 = scmp.ne.s32.totalorder %s42, %s43
      %p54 = scmp.eq.s32.totalorder %s34, 0
      %p55 = por %p53, %p54
      %p56 = scmp.ne.s32.totalorder %s42, %s43
      %p57 = scmp.eq.s32.totalorder %s35, 1
      %p58 = por %p56, %p57
      %p60 = scmp.ne.s32.totalorder %s43, %s59
      %p61 = scmp.eq.s32.totalorder %s35, 0
      %p62 = por %p60, %p61
      %s63 = ssub.s32 %s29, %s36
      %p64 = scmp.eq.s32.totalorder %s63, 0
      %s66 = sadd.s32 %s65, 1
      %s67 = scalar_select %p64, %s65, %s66
      %p70 = pneg %p64
      %p71 = scmp.eq.s32.totalorder %s29, 1
      %p72 = por %p70, %p71
      %p73 = scmp.ne.s32.totalorder %s65, %s68
      %p74 = scmp.eq.s32.totalorder %s29, 0
      %p75 = por %p73, %p74
      %p76 = scmp.ne.s32.totalorder %s65, %s68
      %p77 = scmp.eq.s32.totalorder %s34, 1
      %p78 = por %p76, %p77
      %p79 = scmp.ne.s32.totalorder %s68, %s69
      %p80 = scmp.eq.s32.totalorder %s34, 0
      %p81 = por %p79, %p80
      %p82 = scmp.ne.s32.totalorder %s68, %s69
      %p83 = scmp.eq.s32.totalorder %s35, 1
      %p84 = por %p82, %p83
      %p86 = scmp.ne.s32.totalorder %s69, %s85
      %p87 = scmp.eq.s32.totalorder %s35, 0
      %p88 = por %p86, %p87
      %s90 = sadd.s32 %s89, 1
      %p93 = scmp.eq.s32.totalorder %s29, 1
      %p94 = scmp.ne.s32.totalorder %s89, %s91
      %p95 = scmp.eq.s32.totalorder %s29, 0
      %p96 = por %p94, %p95
      %p97 = scmp.ne.s32.totalorder %s89, %s91
      %p98 = scmp.eq.s32.totalorder %s34, 1
      %p99 = por %p97, %p98
      %p100 = scmp.ne.s32.totalorder %s91, %s92
      %p101 = scmp.eq.s32.totalorder %s34, 0
      %p102 = por %p100, %p101
      %p103 = scmp.ne.s32.totalorder %s91, %s92
      %p104 = scmp.eq.s32.totalorder %s35, 1
      %p105 = por %p103, %p104
      %p107 = scmp.ne.s32.totalorder %s92, %s106
      %p108 = scmp.eq.s32.totalorder %s35, 0
      %p109 = por %p107, %p108
      %s111 = sadd.s32 %s110, 1
      %p114 = scmp.eq.s32.totalorder %s29, 1
      %p115 = scmp.ne.s32.totalorder %s110, %s112
      %p116 = scmp.eq.s32.totalorder %s29, 0
      %p117 = por %p115, %p116
      %p118 = scmp.ne.s32.totalorder %s110, %s112
      %p119 = scmp.eq.s32.totalorder %s34, 1
      %p120 = por %p118, %p119
      %p121 = scmp.ne.s32.totalorder %s112, %s113
      %p122 = scmp.eq.s32.totalorder %s34, 0
      %p123 = por %p121, %p122
      %p124 = scmp.ne.s32.totalorder %s112, %s113
      %p125 = scmp.eq.s32.totalorder %s35, 1
      %p126 = por %p124, %p125
      %p128 = scmp.ne.s32.totalorder %s113, %s127
      %p129 = scmp.eq.s32.totalorder %s35, 0
      %p130 = por %p128, %p129
      %s132 = sadd.s32 %s131, 1
      %p135 = scmp.eq.s32.totalorder %s29, 1
      %p136 = scmp.ne.s32.totalorder %s131, %s133
      %p137 = scmp.eq.s32.totalorder %s29, 0
      %p138 = por %p136, %p137
      %p139 = scmp.ne.s32.totalorder %s131, %s133
      %p140 = scmp.eq.s32.totalorder %s34, 1
      %p141 = por %p139, %p140
      %p142 = scmp.ne.s32.totalorder %s133, %s134
      %p143 = scmp.eq.s32.totalorder %s34, 0
      %p144 = por %p142, %p143
      %p145 = scmp.ne.s32.totalorder %s133, %s134
      %p146 = scmp.eq.s32.totalorder %s35, 1
      %p147 = por %p145, %p146
      %p149 = scmp.ne.s32.totalorder %s134, %s148
      %p150 = scmp.eq.s32.totalorder %s35, 0
      %p151 = por %p149, %p150
      %s153 = sadd.s32 %s152, 1
      %p156 = scmp.eq.s32.totalorder %s29, 1
      %p157 = scmp.ne.s32.totalorder %s152, %s154
      %p158 = scmp.eq.s32.totalorder %s29, 0
      %p159 = por %p157, %p158
      %p160 = scmp.ne.s32.totalorder %s152, %s154
      %p161 = scmp.eq.s32.totalorder %s34, 1
      %p162 = por %p160, %p161
      %p163 = scmp.ne.s32.totalorder %s154, %s155
      %p164 = scmp.eq.s32.totalorder %s34, 0
      %p165 = por %p163, %p164
      %p166 = scmp.ne.s32.totalorder %s154, %s155
      %p167 = scmp.eq.s32.totalorder %s35, 1
      %p168 = por %p166, %p167
      %p170 = scmp.ne.s32.totalorder %s155, %s169
      %p171 = scmp.eq.s32.totalorder %s35, 0
      %p172 = por %p170, %p171
      %s174 = sadd.s32 %s173, 1
      %p177 = scmp.eq.s32.totalorder %s29, 1
      %p178 = scmp.ne.s32.totalorder %s173, %s175
      %p179 = scmp.eq.s32.totalorder %s29, 0
      %p180 = por %p178, %p179
      %p181 = scmp.ne.s32.totalorder %s173, %s175
      %p182 = scmp.eq.s32.totalorder %s34, 1
      %p183 = por %p181, %p182
      %p184 = scmp.ne.s32.totalorder %s175, %s176
      %p185 = scmp.eq.s32.totalorder %s34, 0
      %p186 = por %p184, %p185
      %p187 = scmp.ne.s32.totalorder %s175, %s176
      %p188 = scmp.eq.s32.totalorder %s35, 1
      %p189 = por %p187, %p188
      %p191 = scmp.ne.s32.totalorder %s176, %s190
      %p192 = scmp.eq.s32.totalorder %s35, 0
      %p193 = por %p191, %p192
      %s195 = sadd.s32 %s194, 1
      %p198 = scmp.eq.s32.totalorder %s29, 1
      %p199 = scmp.ne.s32.totalorder %s194, %s196
      %p200 = scmp.eq.s32.totalorder %s29, 0
      %p201 = por %p199, %p200
      %p202 = scmp.ne.s32.totalorder %s194, %s196
      %p203 = scmp.eq.s32.totalorder %s34, 1
      %p204 = por %p202, %p203
      %p205 = scmp.ne.s32.totalorder %s196, %s197
      %p206 = scmp.eq.s32.totalorder %s34, 0
      %p207 = por %p205, %p206
      %p208 = scmp.ne.s32.totalorder %s196, %s197
      %p209 = scmp.eq.s32.totalorder %s35, 1
      %p210 = por %p208, %p209
      %p212 = scmp.ne.s32.totalorder %s197, %s211
      %p213 = scmp.eq.s32.totalorder %s35, 0
      %p214 = por %p212, %p213
      %s216 = sadd.s32 %s215, 1
      %p219 = scmp.eq.s32.totalorder %s29, 1
      %p220 = scmp.ne.s32.totalorder %s215, %s217
      %p221 = scmp.eq.s32.totalorder %s29, 0
      %p222 = por %p220, %p221
      %p223 = scmp.ne.s32.totalorder %s215, %s217
      %p224 = scmp.eq.s32.totalorder %s34, 1
      %p225 = por %p223, %p224
      %p226 = scmp.ne.s32.totalorder %s217, %s218
      %p227 = scmp.eq.s32.totalorder %s34, 0
      %p228 = por %p226, %p227
      %p229 = scmp.ne.s32.totalorder %s217, %s218
      %p230 = scmp.eq.s32.totalorder %s35, 1
      %p231 = por %p229, %p230
      %p233 = scmp.ne.s32.totalorder %s218, %s232
      %p234 = scmp.eq.s32.totalorder %s35, 0
      %p235 = por %p233, %p234
      %s237 = sadd.s32 %s236, 1
      %p240 = scmp.eq.s32.totalorder %s29, 1
      %p241 = scmp.ne.s32.totalorder %s236, %s238
      %p242 = scmp.eq.s32.totalorder %s29, 0
      %p243 = por %p241, %p242
      %p244 = scmp.ne.s32.totalorder %s236, %s238
      %p245 = scmp.eq.s32.totalorder %s34, 1
      %p246 = por %p244, %p245
      %p247 = scmp.ne.s32.totalorder %s238, %s239
      %p248 = scmp.eq.s32.totalorder %s34, 0
      %p249 = por %p247, %p248
      %p250 = scmp.ne.s32.totalorder %s238, %s239
      %p251 = scmp.eq.s32.totalorder %s35, 1
      %p252 = por %p250, %p251
      %p254 = scmp.ne.s32.totalorder %s239, %s253
      %p255 = scmp.eq.s32.totalorder %s35, 0
      %p256 = por %p254, %p255
      %s258 = sadd.s32 %s257, 1
      %p261 = scmp.eq.s32.totalorder %s29, 1
      %p262 = scmp.ne.s32.totalorder %s257, %s259
      %p263 = scmp.eq.s32.totalorder %s29, 0
      %p264 = por %p262, %p263
      %p265 = scmp.ne.s32.totalorder %s257, %s259
      %p266 = scmp.eq.s32.totalorder %s34, 1
      %p267 = por %p265, %p266
      %p268 = scmp.ne.s32.totalorder %s259, %s260
      %p269 = scmp.eq.s32.totalorder %s34, 0
      %p270 = por %p268, %p269
      %p271 = scmp.ne.s32.totalorder %s259, %s260
      %p272 = scmp.eq.s32.totalorder %s35, 1
      %p273 = por %p271, %p272
      %p275 = scmp.ne.s32.totalorder %s260, %s274
      %p276 = scmp.eq.s32.totalorder %s35, 0
      %p277 = por %p275, %p276
      %s279 = sadd.s32 %s278, 1
      %p282 = scmp.eq.s32.totalorder %s29, 1
      %p283 = scmp.ne.s32.totalorder %s278, %s280
      %p284 = scmp.eq.s32.totalorder %s29, 0
      %p285 = por %p283, %p284
      %p286 = scmp.ne.s32.totalorder %s278, %s280
      %p287 = scmp.eq.s32.totalorder %s34, 1
      %p288 = por %p286, %p287
      %p289 = scmp.ne.s32.totalorder %s280, %s281
      %p290 = scmp.eq.s32.totalorder %s34, 0
      %p291 = por %p289, %p290
      %p292 = scmp.ne.s32.totalorder %s280, %s281
      %p293 = scmp.eq.s32.totalorder %s35, 1
      %p294 = por %p292, %p293
      %p296 = scmp.ne.s32.totalorder %s281, %s295
      %p297 = scmp.eq.s32.totalorder %s35, 0
      %p298 = por %p296, %p297
      %s300 = sadd.s32 %s299, 1
      %p303 = scmp.eq.s32.totalorder %s29, 1
      %p304 = scmp.ne.s32.totalorder %s299, %s301
      %p305 = scmp.eq.s32.totalorder %s29, 0
      %p306 = por %p304, %p305
      %p307 = scmp.ne.s32.totalorder %s299, %s301
      %p308 = scmp.eq.s32.totalorder %s34, 1
      %p309 = por %p307, %p308
      %p310 = scmp.ne.s32.totalorder %s301, %s302
      %p311 = scmp.eq.s32.totalorder %s34, 0
      %p312 = por %p310, %p311
      %p313 = scmp.ne.s32.totalorder %s301, %s302
      %p314 = scmp.eq.s32.totalorder %s35, 1
      %p315 = por %p313, %p314
      %p317 = scmp.ne.s32.totalorder %s302, %s316
      %p318 = scmp.eq.s32.totalorder %s35, 0
      %p319 = por %p317, %p318
      %s321 = sadd.s32 %s320, 1
      %p324 = scmp.eq.s32.totalorder %s29, 1
      %p325 = scmp.ne.s32.totalorder %s320, %s322
      %p326 = scmp.eq.s32.totalorder %s29, 0
      %p327 = por %p325, %p326
      %p328 = scmp.ne.s32.totalorder %s320, %s322
      %p329 = scmp.eq.s32.totalorder %s34, 1
      %p330 = por %p328, %p329
      %p331 = scmp.ne.s32.totalorder %s322, %s323
      %p332 = scmp.eq.s32.totalorder %s34, 0
      %p333 = por %p331, %p332
      %p334 = scmp.ne.s32.totalorder %s322, %s323
      %p335 = scmp.eq.s32.totalorder %s35, 1
      %p336 = por %p334, %p335
      %p338 = scmp.ne.s32.totalorder %s323, %s337
      %p339 = scmp.eq.s32.totalorder %s35, 0
      %p340 = por %p338, %p339
      %s342 = sadd.s32 %s341, 1
      %p345 = scmp.eq.s32.totalorder %s29, 1
      %p346 = scmp.ne.s32.totalorder %s341, %s343
      %p347 = scmp.eq.s32.totalorder %s29, 0
      %p348 = por %p346, %p347
      %p349 = scmp.ne.s32.totalorder %s341, %s343
      %p350 = scmp.eq.s32.totalorder %s34, 1
      %p351 = por %p349, %p350
      %p352 = scmp.ne.s32.totalorder %s343, %s344
      %p353 = scmp.eq.s32.totalorder %s34, 0
      %p354 = por %p352, %p353
      %p355 = scmp.ne.s32.totalorder %s343, %s344
      %p356 = scmp.eq.s32.totalorder %s35, 1
      %p357 = por %p355, %p356
      %p359 = scmp.ne.s32.totalorder %s344, %s358
      %p360 = scmp.eq.s32.totalorder %s35, 0
      %p361 = por %p359, %p360
      %s363 = sadd.s32 %s362, 1
      %p366 = scmp.eq.s32.totalorder %s29, 1
      %p367 = scmp.ne.s32.totalorder %s362, %s364
      %p368 = scmp.eq.s32.totalorder %s29, 0
      %p369 = por %p367, %p368
      %p370 = scmp.ne.s32.totalorder %s362, %s364
      %p371 = scmp.eq.s32.totalorder %s34, 1
      %p372 = por %p370, %p371
      %p373 = scmp.ne.s32.totalorder %s364, %s365
      %p374 = scmp.eq.s32.totalorder %s34, 0
      %p375 = por %p373, %p374
      %p376 = scmp.ne.s32.totalorder %s364, %s365
      %p377 = scmp.eq.s32.totalorder %s35, 1
      %p378 = por %p376, %p377
      %p380 = scmp.ne.s32.totalorder %s365, %s379
      %p381 = scmp.eq.s32.totalorder %s35, 0
      %p382 = por %p380, %p381
      %s384 = sadd.s32 %s383, 1
      %p387 = scmp.eq.s32.totalorder %s29, 1
      %p388 = scmp.ne.s32.totalorder %s383, %s385
      %p389 = scmp.eq.s32.totalorder %s29, 0
      %p390 = por %p388, %p389
      %p391 = scmp.ne.s32.totalorder %s383, %s385
      %p392 = scmp.eq.s32.totalorder %s34, 1
      %p393 = por %p391, %p392
      %p394 = scmp.ne.s32.totalorder %s385, %s386
      %p395 = scmp.eq.s32.totalorder %s34, 0
      %p396 = por %p394, %p395
      %p397 = scmp.ne.s32.totalorder %s385, %s386
      %p398 = scmp.eq.s32.totalorder %s35, 1
      %p399 = por %p397, %p398
      %p401 = scmp.ne.s32.totalorder %s386, %s400
      %p402 = scmp.eq.s32.totalorder %s35, 0
      %p403 = por %p401, %p402
      %s405 = sadd.s32 %s404, 1
      %p408 = scmp.eq.s32.totalorder %s29, 1
      %p409 = scmp.ne.s32.totalorder %s404, %s406
      %p410 = scmp.eq.s32.totalorder %s29, 0
      %p411 = por %p409, %p410
      %p412 = scmp.ne.s32.totalorder %s404, %s406
      %p413 = scmp.eq.s32.totalorder %s34, 1
      %p414 = por %p412, %p413
      %p415 = scmp.ne.s32.totalorder %s406, %s407
      %p416 = scmp.eq.s32.totalorder %s34, 0
      %p417 = por %p415, %p416
      %p418 = scmp.ne.s32.totalorder %s406, %s407
      %p419 = scmp.eq.s32.totalorder %s35, 1
      %p420 = por %p418, %p419
      %p422 = scmp.ne.s32.totalorder %s407, %s421
      %p423 = scmp.eq.s32.totalorder %s35, 0
      %p424 = por %p422, %p423
      %s426 = sadd.s32 %s425, 1
      %p429 = scmp.eq.s32.totalorder %s29, 1
      %p430 = scmp.ne.s32.totalorder %s425, %s427
      %p431 = scmp.eq.s32.totalorder %s29, 0
      %p432 = por %p430, %p431
      %p433 = scmp.ne.s32.totalorder %s425, %s427
      %p434 = scmp.eq.s32.totalorder %s34, 1
      %p435 = por %p433, %p434
      %p436 = scmp.ne.s32.totalorder %s427, %s428
      %p437 = scmp.eq.s32.totalorder %s34, 0
      %p438 = por %p436, %p437
      %p439 = scmp.ne.s32.totalorder %s427, %s428
      %p440 = scmp.eq.s32.totalorder %s35, 1
      %p441 = por %p439, %p440
      %p443 = scmp.ne.s32.totalorder %s428, %s442
      %p444 = scmp.eq.s32.totalorder %s35, 0
      %p445 = por %p443, %p444
      %s447 = sadd.s32 %s446, 1
      %p450 = scmp.eq.s32.totalorder %s29, 1
      %p451 = scmp.ne.s32.totalorder %s446, %s448
      %p452 = scmp.eq.s32.totalorder %s29, 0
      %p453 = por %p451, %p452
      %p454 = scmp.ne.s32.totalorder %s446, %s448
      %p455 = scmp.eq.s32.totalorder %s34, 1
      %p456 = por %p454, %p455
      %p457 = scmp.ne.s32.totalorder %s448, %s449
      %p458 = scmp.eq.s32.totalorder %s34, 0
      %p459 = por %p457, %p458
      %p460 = scmp.ne.s32.totalorder %s448, %s449
      %p461 = scmp.eq.s32.totalorder %s35, 1
      %p462 = por %p460, %p461
      %p464 = scmp.ne.s32.totalorder %s449, %s463
      %p465 = scmp.eq.s32.totalorder %s35, 0
      %p466 = por %p464, %p465
      %s468 = sadd.s32 %s467, 1
      %p471 = scmp.eq.s32.totalorder %s29, 1
      %p472 = scmp.ne.s32.totalorder %s467, %s469
      %p473 = scmp.eq.s32.totalorder %s29, 0
      %p474 = por %p472, %p473
      %p475 = scmp.ne.s32.totalorder %s467, %s469
      %p476 = scmp.eq.s32.totalorder %s34, 1
      %p477 = por %p475, %p476
      %p478 = scmp.ne.s32.totalorder %s469, %s470
      %p479 = scmp.eq.s32.totalorder %s34, 0
      %p480 = por %p478, %p479
      %p481 = scmp.ne.s32.totalorder %s469, %s470
      %p482 = scmp.eq.s32.totalorder %s35, 1
      %p483 = por %p481, %p482
      %p485 = scmp.ne.s32.totalorder %s470, %s484
      %p486 = scmp.eq.s32.totalorder %s35, 0
      %p487 = por %p485, %p486
      %s489 = sadd.s32 %s488, 1
      %p492 = scmp.eq.s32.totalorder %s29, 1
      %p493 = scmp.ne.s32.totalorder %s488, %s490
      %p494 = scmp.eq.s32.totalorder %s29, 0
      %p495 = por %p493, %p494
      %p496 = scmp.ne.s32.totalorder %s488, %s490
      %p497 = scmp.eq.s32.totalorder %s34, 1
      %p498 = por %p496, %p497
      %p499 = scmp.ne.s32.totalorder %s490, %s491
      %p500 = scmp.eq.s32.totalorder %s34, 0
      %p501 = por %p499, %p500
      %p502 = scmp.ne.s32.totalorder %s490, %s491
      %p503 = scmp.eq.s32.totalorder %s35, 1
      %p504 = por %p502, %p503
      %p506 = scmp.ne.s32.totalorder %s491, %s505
      %p507 = scmp.eq.s32.totalorder %s35, 0
      %p508 = por %p506, %p507
      %s509 = ssub.s32 %s29, %s36
      %p510 = scmp.eq.s32.totalorder %s509, 0
      %s512 = sadd.s32 %s511, 1
      %s513 = scalar_select %p510, %s511, %s512
      %p516 = pneg %p510
      %p517 = scmp.eq.s32.totalorder %s29, 1
      %p518 = por %p516, %p517
      %p519 = scmp.ne.s32.totalorder %s511, %s514
      %p520 = scmp.eq.s32.totalorder %s29, 0
      %p521 = por %p519, %p520
      %p522 = scmp.ne.s32.totalorder %s511, %s514
      %p523 = scmp.eq.s32.totalorder %s34, 1
      %p524 = por %p522, %p523
      %p525 = scmp.ne.s32.totalorder %s514, %s515
      %p526 = scmp.eq.s32.totalorder %s34, 0
      %p527 = por %p525, %p526
      %p528 = scmp.ne.s32.totalorder %s514, %s515
      %p529 = scmp.eq.s32.totalorder %s35, 1
      %p530 = por %p528, %p529
      %p532 = scmp.ne.s32.totalorder %s515, %s531
      %p533 = scmp.eq.s32.totalorder %s35, 0
      %p534 = por %p532, %p533
      %p535 = scmp.le.s32.totalorder 1, %s29
      %p536 = scmp.lt.s32.totalorder %s29, 3
      %p537 = pnand %p535, %p536
      %p538 = pneg %p537
      // Predicated region
      $region9: #{transformer_forward.8} parent=5 // pred_check
        _
      $region10: #{transformer_forward.8} parent=5 // pred_check_branch
        %540 = sbr.rel (%p537) target = $region12
      $region11: #{transformer_forward.8} parent=5 // pred_region
        %s541 = ssub.s32 %s29, 1
        // Predicated region
        $region13: #{transformer_forward.8} parent=11 // pred_check
          %p542 = pneg %p102
        $region14: #{transformer_forward.8} parent=11 // pred_check_branch
          %544 = sbr.rel (%p542) target = $region16
        $region15: #{transformer_forward.8} parent=11 // pred_region
          _
        $region16: #{transformer_forward.8} parent=11 // pred_fallthru
          _
        // Predicated region
        $region17: #{transformer_forward.8} parent=11 // pred_check
          %p545 = pneg %p123
        $region18: #{transformer_forward.8} parent=11 // pred_check_branch
          %547 = sbr.rel (%p545) target = $region20
        $region19: #{transformer_forward.8} parent=11 // pred_region
          _
        $region20: #{transformer_forward.8} parent=11 // pred_fallthru
          _
        // Predicated region
        $region21: #{transformer_forward.8} parent=11 // pred_check
          %p548 = pneg %p144
        $region22: #{transformer_forward.8} parent=11 // pred_check_branch
          %550 = sbr.rel (%p548) target = $region24
        $region23: #{transformer_forward.8} parent=11 // pred_region
          _
        $region24: #{transformer_forward.8} parent=11 // pred_fallthru
          _
        // Predicated region
        $region25: #{transformer_forward.8} parent=11 // pred_check
          %p551 = pneg %p165
        $region26: #{transformer_forward.8} parent=11 // pred_check_branch
          %553 = sbr.rel (%p551) target = $region28
        $region27: #{transformer_forward.8} parent=11 // pred_region
          _
        $region28: #{transformer_forward.8} parent=11 // pred_fallthru
          _
        // Predicated region
        $region29: #{transformer_forward.8} parent=11 // pred_check
          %p554 = pneg %p186
        $region30: #{transformer_forward.8} parent=11 // pred_check_branch
          %556 = sbr.rel (%p554) target = $region32
        $region31: #{transformer_forward.8} parent=11 // pred_region
          _
        $region32: #{transformer_forward.8} parent=11 // pred_fallthru
          _
        // Predicated region
        $region33: #{transformer_forward.8} parent=11 // pred_check
          %p557 = pneg %p207
        $region34: #{transformer_forward.8} parent=11 // pred_check_branch
          %559 = sbr.rel (%p557) target = $region36
        $region35: #{transformer_forward.8} parent=11 // pred_region
          _
        $region36: #{transformer_forward.8} parent=11 // pred_fallthru
          _
        // Predicated region
        $region37: #{transformer_forward.8} parent=11 // pred_check
          %p560 = pneg %p228
        $region38: #{transformer_forward.8} parent=11 // pred_check_branch
          %562 = sbr.rel (%p560) target = $region40
        $region39: #{transformer_forward.8} parent=11 // pred_region
          _
        $region40: #{transformer_forward.8} parent=11 // pred_fallthru
          _
        // Predicated region
        $region41: #{transformer_forward.8} parent=11 // pred_check
          %p563 = pneg %p249
        $region42: #{transformer_forward.8} parent=11 // pred_check_branch
          %565 = sbr.rel (%p563) target = $region44
        $region43: #{transformer_forward.8} parent=11 // pred_region
          _
        $region44: #{transformer_forward.8} parent=11 // pred_fallthru
          _
        // Predicated region
        $region45: #{transformer_forward.8} parent=11 // pred_check
          %p566 = pneg %p270
        $region46: #{transformer_forward.8} parent=11 // pred_check_branch
          %568 = sbr.rel (%p566) target = $region48
        $region47: #{transformer_forward.8} parent=11 // pred_region
          _
        $region48: #{transformer_forward.8} parent=11 // pred_fallthru
          _
        // Predicated region
        $region49: #{transformer_forward.8} parent=11 // pred_check
          %p569 = pneg %p291
        $region50: #{transformer_forward.8} parent=11 // pred_check_branch
          %571 = sbr.rel (%p569) target = $region52
        $region51: #{transformer_forward.8} parent=11 // pred_region
          _
        $region52: #{transformer_forward.8} parent=11 // pred_fallthru
          _
        // Predicated region
        $region53: #{transformer_forward.8} parent=11 // pred_check
          %p572 = pneg %p312
        $region54: #{transformer_forward.8} parent=11 // pred_check_branch
          %574 = sbr.rel (%p572) target = $region56
        $region55: #{transformer_forward.8} parent=11 // pred_region
          _
        $region56: #{transformer_forward.8} parent=11 // pred_fallthru
          _
        // Predicated region
        $region57: #{transformer_forward.8} parent=11 // pred_check
          %p575 = pneg %p333
        $region58: #{transformer_forward.8} parent=11 // pred_check_branch
          %577 = sbr.rel (%p575) target = $region60
        $region59: #{transformer_forward.8} parent=11 // pred_region
          _
        $region60: #{transformer_forward.8} parent=11 // pred_fallthru
          _
        // Predicated region
        $region61: #{transformer_forward.8} parent=11 // pred_check
          %p578 = pneg %p354
        $region62: #{transformer_forward.8} parent=11 // pred_check_branch
          %580 = sbr.rel (%p578) target = $region64
        $region63: #{transformer_forward.8} parent=11 // pred_region
          _
        $region64: #{transformer_forward.8} parent=11 // pred_fallthru
          _
        // Predicated region
        $region65: #{transformer_forward.8} parent=11 // pred_check
          %p581 = pneg %p375
        $region66: #{transformer_forward.8} parent=11 // pred_check_branch
          %583 = sbr.rel (%p581) target = $region68
        $region67: #{transformer_forward.8} parent=11 // pred_region
          _
        $region68: #{transformer_forward.8} parent=11 // pred_fallthru
          _
        // Predicated region
        $region69: #{transformer_forward.8} parent=11 // pred_check
          %p584 = pneg %p396
        $region70: #{transformer_forward.8} parent=11 // pred_check_branch
          %586 = sbr.rel (%p584) target = $region72
        $region71: #{transformer_forward.8} parent=11 // pred_region
          _
        $region72: #{transformer_forward.8} parent=11 // pred_fallthru
          _
        // Predicated region
        $region73: #{transformer_forward.8} parent=11 // pred_check
          %p587 = pneg %p417
        $region74: #{transformer_forward.8} parent=11 // pred_check_branch
          %589 = sbr.rel (%p587) target = $region76
        $region75: #{transformer_forward.8} parent=11 // pred_region
          _
        $region76: #{transformer_forward.8} parent=11 // pred_fallthru
          _
        // Predicated region
        $region77: #{transformer_forward.8} parent=11 // pred_check
          %p590 = pneg %p438
        $region78: #{transformer_forward.8} parent=11 // pred_check_branch
          %592 = sbr.rel (%p590) target = $region80
        $region79: #{transformer_forward.8} parent=11 // pred_region
          _
        $region80: #{transformer_forward.8} parent=11 // pred_fallthru
          _
        // Predicated region
        $region81: #{transformer_forward.8} parent=11 // pred_check
          %p593 = pneg %p459
        $region82: #{transformer_forward.8} parent=11 // pred_check_branch
          %595 = sbr.rel (%p593) target = $region84
        $region83: #{transformer_forward.8} parent=11 // pred_region
          _
        $region84: #{transformer_forward.8} parent=11 // pred_fallthru
          _
        // Predicated region
        $region85: #{transformer_forward.8} parent=11 // pred_check
          %p596 = pneg %p480
        $region86: #{transformer_forward.8} parent=11 // pred_check_branch
          %598 = sbr.rel (%p596) target = $region88
        $region87: #{transformer_forward.8} parent=11 // pred_region
          _
        $region88: #{transformer_forward.8} parent=11 // pred_fallthru
          _
        // Predicated region
        $region89: #{transformer_forward.8} parent=11 // pred_check
          %p599 = pneg %p501
        $region90: #{transformer_forward.8} parent=11 // pred_check_branch
          %601 = sbr.rel (%p599) target = $region92
        $region91: #{transformer_forward.8} parent=11 // pred_region
          %s603 = ssub.s32 16, 16
          %604 = vsyncadd [#allocation3], %s603
          %s606 = sshll.u32 [#allocation2], 4
          %s607 = int_to_ptr.vmem [resolvable:$true] %s606
          %609 = dma.hbm_to_vmem [thread:$0]  %s21, 16, %s607, [#allocation3]
        $region92: #{transformer_forward.8} parent=11 // pred_fallthru
          _
      $region12: #{transformer_forward.8} parent=5 // pred_fallthru
        _
      %p610 = scmp.lt.s32.totalorder %s29, 2
      // Predicated region
      $region93: #{transformer_forward.8} parent=5 // pred_check
        %p611 = pneg %p610
      $region94: #{transformer_forward.8} parent=5 // pred_check_branch
        %613 = sbr.rel (%p611) target = $region96
      $region95: #{transformer_forward.8} parent=5 // pred_region
        // Predicated region
        $region97: #{transformer_forward.8} parent=95 // pred_check
          %p614 = pneg %p49
        $region98: #{transformer_forward.8} parent=95 // pred_check_branch
          %616 = sbr.rel (%p614) target = $region100
        $region99: #{transformer_forward.8} parent=95 // pred_region
          %p617 = scmp.lt.s32.totalorder %s29, 1
          %s618 = scalar_select %p617, %s29, 1
          %s619 = smul.addr %s618, 8
          %s620 = scalar_lea.vmem %s0, %s619
        $region100: #{transformer_forward.8} parent=95 // pred_fallthru
          _
        // Predicated region
        $region101: #{transformer_forward.8} parent=95 // pred_check
          %p621 = pneg %p75
        $region102: #{transformer_forward.8} parent=95 // pred_check_branch
          %623 = sbr.rel (%p621) target = $region104
        $region103: #{transformer_forward.8} parent=95 // pred_region
          %p624 = scmp.lt.s32.totalorder %s29, 1
          %s625 = scalar_select %p624, %s29, 1
          %s626 = smul.addr %s625, 8
          %s627 = scalar_lea.vmem %s1, %s626
        $region104: #{transformer_forward.8} parent=95 // pred_fallthru
          _
      $region96: #{transformer_forward.8} parent=5 // pred_fallthru
        _
      %p628 = scmp.le.s32.totalorder 1, %s29
      %p629 = scmp.lt.s32.totalorder %s29, 3
      %p630 = pnand %p628, %p629
      %p631 = pneg %p630
      // Predicated region
      $region105: #{transformer_forward.8} parent=5 // pred_check
        _
      $region106: #{transformer_forward.8} parent=5 // pred_check_branch
        %633 = sbr.rel (%p630) target = $region108
      $region107: #{transformer_forward.8} parent=5 // pred_region
        %s634 = ssub.s32 %s29, 1
        // Predicated region
        $region109: #{transformer_forward.8} parent=107 // pred_check
          %p635 = pneg %p501
        $region110: #{transformer_forward.8} parent=107 // pred_check_branch
          %637 = sbr.rel (%p635) target = $region112
        $region111: #{transformer_forward.8} parent=107 // pred_region
          %638 = dma.done [#allocation3], 16
        $region112: #{transformer_forward.8} parent=107 // pred_fallthru
          _
        %p639 = scmp.lt.s32.totalorder %s34, 1
        %s640 = scalar_select %p639, %s34, 1
        %s641 = smul.addr %s640, 8
        %s642 = scalar_lea.vmem %s0, %s641
        %p643 = pneg %p55
        %p644 = pneg %p52
        %p645 = scmp.lt.s32.totalorder %s34, 1
        %s646 = scalar_select %p645, %s34, 1
        %s647 = smul.addr %s646, 8
        %s648 = scalar_lea.vmem %s1, %s647
        %p649 = pneg %p81
        %p650 = pneg %p78
        %p651 = pneg %p102
        %p652 = pneg %p99
        %p653 = pneg %p123
        %p654 = pneg %p120
        %p655 = pneg %p144
        %p656 = pneg %p141
        %p657 = pneg %p165
        %p658 = pneg %p162
        %p659 = pneg %p186
        %p660 = pneg %p183
        %p661 = pneg %p207
        %p662 = pneg %p204
        %p663 = pneg %p228
        %p664 = pneg %p225
        %p665 = pneg %p249
        %p666 = pneg %p246
        %p667 = pneg %p270
        %p668 = pneg %p267
        %p669 = pneg %p291
        %p670 = pneg %p288
        %p671 = pneg %p312
        %p672 = pneg %p309
        %p673 = pneg %p333
        %p674 = pneg %p330
        %p675 = pneg %p354
        %p676 = pneg %p351
        %p677 = pneg %p375
        %p678 = pneg %p372
        %p679 = pneg %p396
        %p680 = pneg %p393
        %p681 = pneg %p417
        %p682 = pneg %p414
        %p683 = pneg %p438
        %p684 = pneg %p435
        %p685 = pneg %p459
        %p686 = pneg %p456
        %p687 = pneg %p480
        %p688 = pneg %p477
        %p689 = pneg %p501
        %p690 = pneg %p498
        %p691 = pneg %p527
        %p692 = pneg %p524
        %p693 = scmp.lt.s32.totalorder %s34, 1
        %s694 = scalar_select %p693, %s34, 1
        %s695 = smul.addr %s694, 8
        %s696 = scalar_lea.vmem %s22, %s695
        %p697 = scmp.lt.s32.totalorder %s34, 1
        %s698 = scalar_select %p697, %s34, 1
        %s699 = smul.addr %s698, 8
        %s700 = scalar_lea.vmem %s0, %s699
        %p701 = scmp.lt.s32.totalorder %s34, 1
        %s702 = scalar_select %p701, %s34, 1
        %s703 = smul.addr %s702, 8
        %s704 = scalar_lea.vmem %s1, %s703
        %p705 = scmp.lt.s32.totalorder %s34, 1
        %s706 = scalar_select %p705, %s34, 1
        %s707 = smul.addr %s706, 8
        %s708 = scalar_lea.vmem %s22, %s707
        %v710 = vld [vmem:[%s700] sm:$0xff]
        %v711 = vld [vmem:[%s704] sm:$0xff]
        %v712 = vpack.c.bf16 %v710, %v710
        %v713 = vld [vmem:[%s2] sm:$0xf]
        %v714 = vld [vmem:[%s2 + $0x4] sm:$0xf]
        %v715 = vld [vmem:[%s2 + $0x8] sm:$0xf]
        %v716 = vld [vmem:[%s2 + $0xc] sm:$0xf]
        %v717 = vld [vmem:[%s3] sm:$0x1]
        %v719 = vlaneseq
        %v720 = vshrl.u32 %v719, 7
        %v721 = vsub.s32 0, %v720
        %v722 = vrot.slane %v717, %v721
        %v728 = vunpack.c.l.b16 %v713
        %v729 = vunpack.c.l.b16 %v714
        %v730 = vunpack.c.l.b16 %v715
        %v731 = vunpack.c.l.b16 %v716
        %v732 = vpack.c.b16 %v729, %v728
        %v733 = vpack.c.b16 %v731, %v730
        %vm736 = vcmask 261120
        %v738 = vsel %vm736, %v712, 0
        %740 = vmatprep.subr.bf16.mxu0 0
        %741 = vmatpush1.bf16.msra.mxu0 %v732
        %742 = vmatprep.subr.bf16.mxu0 0
        %743 = vmatpush1.bf16.msra.mxu0 %v733
        %744 = vmatprep.subr.bf16.mxu0 0
        %745 = vmatpush1.bf16.msra.mxu0 0
        %746 = vmatprep.subr.bf16.mxu0 0
        %747 = vmatpush1.bf16.msra.mxu0 0
        %748 = vmatprep.subr.bf16.mxu0 0
        %749 = vmatpush1.bf16.msra.mxu0 0
        %750 = vmatprep.subr.bf16.mxu0 0
        %751 = vmatpush1.bf16.msra.mxu0 0
        %752 = vmatprep.subr.bf16.mxu0 0
        %753 = vmatpush1.bf16.msra.mxu0 0
        %754 = vmatprep.subr.bf16.mxu0 0
        %755 = vmatpush1.bf16.msra.mxu0 0
        %756 = vmatprep.subr.bf16.mxu0 0
        %757 = vmatpush1.bf16.msra.mxu0 0
        %758 = vmatprep.subr.bf16.mxu0 0
        %759 = vmatpush1.bf16.msra.mxu0 0
        %760 = vmatprep.subr.bf16.mxu0 0
        %761 = vmatpush1.bf16.msra.mxu0 0
        %762 = vmatprep.subr.bf16.mxu0 0
        %763 = vmatpush1.bf16.msra.mxu0 0
        %764 = vmatprep.subr.bf16.mxu0 0
        %765 = vmatpush1.bf16.msra.mxu0 0
        %766 = vmatprep.subr.bf16.mxu0 0
        %767 = vmatpush1.bf16.msra.mxu0 0
        %768 = vmatprep.subr.bf16.mxu0 0
        %769 = vmatpush1.bf16.msra.mxu0 0
        %770 = vmatprep.subr.bf16.mxu0 0
        %771 = vmatpush1.bf16.msra.mxu0 0
        %772 = vmatprep.mubr.bf16.mxu0 0
        %773 = vmatmul.mubr.bf16.gmra.mrb[0].mxu0 %v738
        %v774 = vpop.f32.mrb[0].mxu0
        %v775 = vadd.f32 %v722, %v774
        %v776 = vpop.f32.mrb[0].mxu0
        %v777 = vpop.f32.mrb[0].mxu0
        %v778 = vpop.f32.mrb[0].mxu0
        %779 = vdwg.mxu0
        %v780 = vld [vmem:[%s4] sm:$0xf]
        %v781 = vld [vmem:[%s4 + $0x4] sm:$0xf]
        %v782 = vld [vmem:[%s4 + $0x8] sm:$0xf]
        %v783 = vld [vmem:[%s4 + $0xc] sm:$0xf]
        %v784 = vld [vmem:[%s5] sm:$0x1]
        %v785 = vmul.f32 %v775, 0.35355338
        %v786 = vpack.c.bf16 %v785, %v785
        %v787 = vpack.c.bf16 %v775, %v775
        %789 = vrot.lane.b32.xlu0 %v787, 96
        %v790 = vpop.permute.xlu0 %789
        %vm791 = vcmask 64512
        %v793 = vsel %vm791, %v786, 0
        %v796 = vsel %vm791, %v790, 0
        %798 = vmatprep.subr.bf16.mxu0 0
        %799 = vmatpush1.bf16.xpose.msra.mxu0 %v796
        %800 = vmatprep.subr.bf16.mxu0 0
        %801 = vmatpush1.bf16.xpose.msra.mxu0 0
        %802 = vmatprep.subr.bf16.mxu0 0
        %803 = vmatpush1.bf16.xpose.msra.mxu0 0
        %804 = vmatprep.subr.bf16.mxu0 0
        %805 = vmatpush1.bf16.xpose.msra.mxu0 0
        %806 = vmatprep.subr.bf16.mxu0 0
        %807 = vmatpush1.bf16.xpose.msra.mxu0 0
        %808 = vmatprep.subr.bf16.mxu0 0
        %809 = vmatpush1.bf16.xpose.msra.mxu0 0
        %810 = vmatprep.subr.bf16.mxu0 0
        %811 = vmatpush1.bf16.xpose.msra.mxu0 0
        %812 = vmatprep.subr.bf16.mxu0 0
        %813 = vmatpush1.bf16.xpose.msra.mxu0 0
        %814 = vmatprep.subr.bf16.mxu0 0
        %815 = vmatpush1.bf16.xpose.msra.mxu0 0
        %816 = vmatprep.subr.bf16.mxu0 0
        %817 = vmatpush1.bf16.xpose.msra.mxu0 0
        %818 = vmatprep.subr.bf16.mxu0 0
        %819 = vmatpush1.bf16.xpose.msra.mxu0 0
        %820 = vmatprep.subr.bf16.mxu0 0
        %821 = vmatpush1.bf16.xpose.msra.mxu0 0
        %822 = vmatprep.subr.bf16.mxu0 0
        %823 = vmatpush1.bf16.xpose.msra.mxu0 0
        %824 = vmatprep.subr.bf16.mxu0 0
        %825 = vmatpush1.bf16.xpose.msra.mxu0 0
        %826 = vmatprep.subr.bf16.mxu0 0
        %827 = vmatpush1.bf16.xpose.msra.mxu0 0
        %828 = vmatprep.subr.bf16.mxu0 0
        %829 = vmatpush1.bf16.xpose.msra.mxu0 0
        %830 = vmatprep.mubr.bf16.mxu0 0
        %831 = vmatmul.mubr.bf16.gmra.mrb[0].mxu0 %v793
        %v832 = vpop.f32.mrb[0].mxu0
        %v833 = vadd.f32 0.0, %v832
        %v834 = vpop.f32.mrb[0].mxu0
        %v835 = vpop.f32.mrb[0].mxu0
        %v836 = vpop.f32.mrb[0].mxu0
        %837 = vdwg.mxu0
        %839 = vrot.lane.b32.xlu0 %v786, 120
        %v840 = vpop.permute.xlu0 %839
        %841 = vrot.lane.b32.xlu0 %v787, 88
        %v842 = vpop.permute.xlu0 %841
        %v844 = vsel %vm791, %v840, 0
        %v847 = vsel %vm791, %v842, 0
        %849 = vmatprep.subr.bf16.mxu0 0
        %850 = vmatpush1.bf16.xpose.msra.mxu0 %v847
        %851 = vmatprep.subr.bf16.mxu0 0
        %852 = vmatpush1.bf16.xpose.msra.mxu0 0
        %853 = vmatprep.subr.bf16.mxu0 0
        %854 = vmatpush1.bf16.xpose.msra.mxu0 0
        %855 = vmatprep.subr.bf16.mxu0 0
        %856 = vmatpush1.bf16.xpose.msra.mxu0 0
        %857 = vmatprep.subr.bf16.mxu0 0
        %858 = vmatpush1.bf16.xpose.msra.mxu0 0
        %859 = vmatprep.subr.bf16.mxu0 0
        %860 = vmatpush1.bf16.xpose.msra.mxu0 0
        %861 = vmatprep.subr.bf16.mxu0 0
        %862 = vmatpush1.bf16.xpose.msra.mxu0 0
        %863 = vmatprep.subr.bf16.mxu0 0
        %864 = vmatpush1.bf16.xpose.msra.mxu0 0
        %865 = vmatprep.subr.bf16.mxu0 0
        %866 = vmatpush1.bf16.xpose.msra.mxu0 0
        %867 = vmatprep.subr.bf16.mxu0 0
        %868 = vmatpush1.bf16.xpose.msra.mxu0 0
        %869 = vmatprep.subr.bf16.mxu0 0
        %870 = vmatpush1.bf16.xpose.msra.mxu0 0
        %871 = vmatprep.subr.bf16.mxu0 0
        %872 = vmatpush1.bf16.xpose.msra.mxu0 0
        %873 = vmatprep.subr.bf16.mxu0 0
        %874 = vmatpush1.bf16.xpose.msra.mxu0 0
        %875 = vmatprep.subr.bf16.mxu0 0
        %876 = vmatpush1.bf16.xpose.msra.mxu0 0
        %877 = vmatprep.subr.bf16.mxu0 0
        %878 = vmatpush1.bf16.xpose.msra.mxu0 0
        %879 = vmatprep.subr.bf16.mxu0 0
        %880 = vmatpush1.bf16.xpose.msra.mxu0 0
        %881 = vmatprep.mubr.bf16.mxu0 0
        %882 = vmatmul.mubr.bf16.gmra.mrb[0].mxu0 %v844
        %v883 = vpop.f32.mrb[0].mxu0
        %v884 = vadd.f32 0.0, %v883
        %v885 = vpop.f32.mrb[0].mxu0
        %v886 = vpop.f32.mrb[0].mxu0
        %v887 = vpop.f32.mrb[0].mxu0
        %888 = vdwg.mxu0
        %889 = vrot.lane.b32.xlu0 %v786, 112
        %v890 = vpop.permute.xlu0 %889
        %891 = vrot.lane.b32.xlu0 %v787, 80
        %v892 = vpop.permute.xlu0 %891
        %v894 = vsel %vm791, %v890, 0
        %v897 = vsel %vm791, %v892, 0
        %899 = vmatprep.subr.bf16.mxu0 0
        %900 = vmatpush1.bf16.xpose.msra.mxu0 %v897
        %901 = vmatprep.subr.bf16.mxu0 0
        %902 = vmatpush1.bf16.xpose.msra.mxu0 0
        %903 = vmatprep.subr.bf16.mxu0 0
        %904 = vmatpush1.bf16.xpose.msra.mxu0 0
        %905 = vmatprep.subr.bf16.mxu0 0
        %906 = vmatpush1.bf16.xpose.msra.mxu0 0
        %907 = vmatprep.subr.bf16.mxu0 0
        %908 = vmatpush1.bf16.xpose.msra.mxu0 0
        %909 = vmatprep.subr.bf16.mxu0 0
        %910 = vmatpush1.bf16.xpose.msra.mxu0 0
        %911 = vmatprep.subr.bf16.mxu0 0
        %912 = vmatpush1.bf16.xpose.msra.mxu0 0
        %913 = vmatprep.subr.bf16.mxu0 0
        %914 = vmatpush1.bf16.xpose.msra.mxu0 0
        %915 = vmatprep.subr.bf16.mxu0 0
        %916 = vmatpush1.bf16.xpose.msra.mxu0 0
        %917 = vmatprep.subr.bf16.mxu0 0
        %918 = vmatpush1.bf16.xpose.msra.mxu0 0
        %919 = vmatprep.subr.bf16.mxu0 0
        %920 = vmatpush1.bf16.xpose.msra.mxu0 0
        %921 = vmatprep.subr.bf16.mxu0 0
        %922 = vmatpush1.bf16.xpose.msra.mxu0 0
        %923 = vmatprep.subr.bf16.mxu0 0
        %924 = vmatpush1.bf16.xpose.msra.mxu0 0
        %925 = vmatprep.subr.bf16.mxu0 0
        %926 = vmatpush1.bf16.xpose.msra.mxu0 0
        %927 = vmatprep.subr.bf16.mxu0 0
        %928 = vmatpush1.bf16.xpose.msra.mxu0 0
        %929 = vmatprep.subr.bf16.mxu0 0
        %930 = vmatpush1.bf16.xpose.msra.mxu0 0
        %931 = vmatprep.mubr.bf16.mxu0 0
        %932 = vmatmul.mubr.bf16.gmra.mrb[0].mxu0 %v894
        %v933 = vpop.f32.mrb[0].mxu0
        %v934 = vadd.f32 0.0, %v933
        %v935 = vpop.f32.mrb[0].mxu0
        %v936 = vpop.f32.mrb[0].mxu0
        %v937 = vpop.f32.mrb[0].mxu0
        %938 = vdwg.mxu0
        %939 = vrot.lane.b32.xlu0 %v786, 104
        %v940 = vpop.permute.xlu0 %939
        %941 = vrot.lane.b32.xlu0 %v787, 72
        %v942 = vpop.permute.xlu0 %941
        %v944 = vsel %vm791, %v940, 0
        %v947 = vsel %vm791, %v942, 0
        %949 = vmatprep.subr.bf16.mxu0 0
        %950 = vmatpush1.bf16.xpose.msra.mxu0 %v947
        %951 = vmatprep.subr.bf16.mxu0 0
        %952 = vmatpush1.bf16.xpose.msra.mxu0 0
        %953 = vmatprep.subr.bf16.mxu0 0
        %954 = vmatpush1.bf16.xpose.msra.mxu0 0
        %955 = vmatprep.subr.bf16.mxu0 0
        %956 = vmatpush1.bf16.xpose.msra.mxu0 0
        %957 = vmatprep.subr.bf16.mxu0 0
        %958 = vmatpush1.bf16.xpose.msra.mxu0 0
        %959 = vmatprep.subr.bf16.mxu0 0
        %960 = vmatpush1.bf16.xpose.msra.mxu0 0
        %961 = vmatprep.subr.bf16.mxu0 0
        %962 = vmatpush1.bf16.xpose.msra.mxu0 0
        %963 = vmatprep.subr.bf16.mxu0 0
        %964 = vmatpush1.bf16.xpose.msra.mxu0 0
        %965 = vmatprep.subr.bf16.mxu0 0
        %966 = vmatpush1.bf16.xpose.msra.mxu0 0
        %967 = vmatprep.subr.bf16.mxu0 0
        %968 = vmatpush1.bf16.xpose.msra.mxu0 0
        %969 = vmatprep.subr.bf16.mxu0 0
        %970 = vmatpush1.bf16.xpose.msra.mxu0 0
        %971 = vmatprep.subr.bf16.mxu0 0
        %972 = vmatpush1.bf16.xpose.msra.mxu0 0
        %973 = vmatprep.subr.bf16.mxu0 0
        %974 = vmatpush1.bf16.xpose.msra.mxu0 0
        %975 = vmatprep.subr.bf16.mxu0 0
        %976 = vmatpush1.bf16.xpose.msra.mxu0 0
        %977 = vmatprep.subr.bf16.mxu0 0
        %978 = vmatpush1.bf16.xpose.msra.mxu0 0
        %979 = vmatprep.subr.bf16.mxu0 0
        %980 = vmatpush1.bf16.xpose.msra.mxu0 0
        %981 = vmatprep.mubr.bf16.mxu0 0
        %982 = vmatmul.mubr.bf16.gmra.mrb[0].mxu0 %v944
        %v983 = vpop.f32.mrb[0].mxu0
        %v984 = vadd.f32 0.0, %v983
        %v985 = vpop.f32.mrb[0].mxu0
        %v986 = vpop.f32.mrb[0].mxu0
        %v987 = vpop.f32.mrb[0].mxu0
        %988 = vdwg.mxu0
        %v989 = vsel %vm791, %v833, -inf
        %990 = vmax.xlane.f32.xlu0 %v989
        %v991 = vpop.xlane.xlu0 %990
        %v992 = vsel %vm791, %v884, -inf
        %993 = vmax.xlane.f32.xlu0 %v992
        %v994 = vpop.xlane.xlu0 %993
        %v995 = vsel %vm791, %v934, -inf
        %996 = vmax.xlane.f32.xlu0 %v995
        %v997 = vpop.xlane.xlu0 %996
        %v998 = vsel %vm791, %v984, -inf
        %999 = vmax.xlane.f32.xlu0 %v998
        %v1000 = vpop.xlane.xlu0 %999
        %v1001 = vsub.f32 %v833, %v991
        %v1002 = vsub.f32 %v884, %v994
        %v1003 = vsub.f32 %v934, %v997
        %v1004 = vsub.f32 %v984, %v1000
        %v1005 = vmul.f32 %v1001, 1.442695
        %v1006 = vpow.pop %v1005
        %v1007 = vmul.f32 %v1002, 1.442695
        %v1008 = vpow.pop %v1007
        %v1009 = vmul.f32 %v1003, 1.442695
        %v1010 = vpow.pop %v1009
        %v1011 = vmul.f32 %v1004, 1.442695
        %v1012 = vpow.pop %v1011
        %v1013 = vsel %vm791, %v1006, 0.0
        %1014 = vadd.xlane.f32.xlu0 %v1013
        %v1015 = vpop.xlane.xlu0 %1014
        %v1016 = vsel %vm791, %v1008, 0.0
        %1017 = vadd.xlane.f32.xlu0 %v1016
        %v1018 = vpop.xlane.xlu0 %1017
        %v1019 = vsel %vm791, %v1010, 0.0
        %1020 = vadd.xlane.f32.xlu0 %v1019
        %v1021 = vpop.xlane.xlu0 %1020
        %v1022 = vsel %vm791, %v1012, 0.0
        %1023 = vadd.xlane.f32.xlu0 %v1022
        %v1024 = vpop.xlane.xlu0 %1023
        %v1025 = vrcp.pop %v1015
        %v1026 = vrcp.pop %v1018
        %v1027 = vrcp.pop %v1021
        %v1028 = vrcp.pop %v1024
        %v1029 = vmul.f32 %v1006, %v1025
        %v1030 = vmul.f32 %v1008, %v1026
        %v1031 = vmul.f32 %v1010, %v1027
        %v1032 = vmul.f32 %v1012, %v1028
        %v1033 = vpack.c.bf16 %v1029, %v1029
        %v1034 = vpack.c.bf16 %v1030, %v1030
        %v1035 = vpack.c.bf16 %v1031, %v1031
        %v1036 = vpack.c.bf16 %v1032, %v1032
        %1037 = vrot.lane.b32.xlu0 %v787, 64
        %v1038 = vpop.permute.xlu0 %1037
        %v1040 = vsel %vm791, %v1033, 0
        %vm1042 = vcmask 1043456
        %v1044 = vsel %vm1042, %v1038, 0
        %1046 = vmatprep.subr.bf16.mxu0 0
        %1047 = vmatpush1.bf16.msra.mxu0 %v1044
        %1048 = vmatprep.subr.bf16.mxu0 0
        %1049 = vmatpush1.bf16.msra.mxu0 0
        %1050 = vmatprep.subr.bf16.mxu0 0
        %1051 = vmatpush1.bf16.msra.mxu0 0
        %1052 = vmatprep.subr.bf16.mxu0 0
        %1053 = vmatpush1.bf16.msra.mxu0 0
        %1054 = vmatprep.subr.bf16.mxu0 0
        %1055 = vmatpush1.bf16.msra.mxu0 0
        %1056 = vmatprep.subr.bf16.mxu0 0
        %1057 = vmatpush1.bf16.msra.mxu0 0
        %1058 = vmatprep.subr.bf16.mxu0 0
        %1059 = vmatpush1.bf16.msra.mxu0 0
        %1060 = vmatprep.subr.bf16.mxu0 0
        %1061 = vmatpush1.bf16.msra.mxu0 0
        %1062 = vmatprep.subr.bf16.mxu0 0
        %1063 = vmatpush1.bf16.msra.mxu0 0
        %1064 = vmatprep.subr.bf16.mxu0 0
        %1065 = vmatpush1.bf16.msra.mxu0 0
        %1066 = vmatprep.subr.bf16.mxu0 0
        %1067 = vmatpush1.bf16.msra.mxu0 0
        %1068 = vmatprep.subr.bf16.mxu0 0
        %1069 = vmatpush1.bf16.msra.mxu0 0
        %1070 = vmatprep.subr.bf16.mxu0 0
        %1071 = vmatpush1.bf16.msra.mxu0 0
        %1072 = vmatprep.subr.bf16.mxu0 0
        %1073 = vmatpush1.bf16.msra.mxu0 0
        %1074 = vmatprep.subr.bf16.mxu0 0
        %1075 = vmatpush1.bf16.msra.mxu0 0
        %1076 = vmatprep.subr.bf16.mxu0 0
        %1077 = vmatpush1.bf16.msra.mxu0 0
        %1078 = vmatprep.mubr.bf16.mxu0 0
        %1079 = vmatmul.mubr.bf16.gmra.mrb[0].mxu0 %v1040
        %v1080 = vpop.f32.mrb[0].mxu0
        %v1081 = vadd.f32 0.0, %v1080
        %v1082 = vpop.f32.mrb[0].mxu0
        %v1083 = vpop.f32.mrb[0].mxu0
        %v1084 = vpop.f32.mrb[0].mxu0
        %1085 = vdwg.mxu0
        %1086 = vrot.lane.b32.xlu0 %v787, 56
        %v1087 = vpop.permute.xlu0 %1086
        %v1089 = vsel %vm791, %v1034, 0
        %v1092 = vsel %vm1042, %v1087, 0
        %1094 = vmatprep.subr.bf16.mxu0 0
        %1095 = vmatpush1.bf16.msra.mxu0 %v1092
        %1096 = vmatprep.subr.bf16.mxu0 0
        %1097 = vmatpush1.bf16.msra.mxu0 0
        %1098 = vmatprep.subr.bf16.mxu0 0
        %1099 = vmatpush1.bf16.msra.mxu0 0
        %1100 = vmatprep.subr.bf16.mxu0 0
        %1101 = vmatpush1.bf16.msra.mxu0 0
        %1102 = vmatprep.subr.bf16.mxu0 0
        %1103 = vmatpush1.bf16.msra.mxu0 0
        %1104 = vmatprep.subr.bf16.mxu0 0
        %1105 = vmatpush1.bf16.msra.mxu0 0
        %1106 = vmatprep.subr.bf16.mxu0 0
        %1107 = vmatpush1.bf16.msra.mxu0 0
        %1108 = vmatprep.subr.bf16.mxu0 0
        %1109 = vmatpush1.bf16.msra.mxu0 0
        %1110 = vmatprep.subr.bf16.mxu0 0
        %1111 = vmatpush1.bf16.msra.mxu0 0
        %1112 = vmatprep.subr.bf16.mxu0 0
        %1113 = vmatpush1.bf16.msra.mxu0 0
        %1114 = vmatprep.subr.bf16.mxu0 0
        %1115 = vmatpush1.bf16.msra.mxu0 0
        %1116 = vmatprep.subr.bf16.mxu0 0
        %1117 = vmatpush1.bf16.msra.mxu0 0
        %1118 = vmatprep.subr.bf16.mxu0 0
        %1119 = vmatpush1.bf16.msra.mxu0 0
        %1120 = vmatprep.subr.bf16.mxu0 0
        %1121 = vmatpush1.bf16.msra.mxu0 0
        %1122 = vmatprep.subr.bf16.mxu0 0
        %1123 = vmatpush1.bf16.msra.mxu0 0
        %1124 = vmatprep.subr.bf16.mxu0 0
        %1125 = vmatpush1.bf16.msra.mxu0 0
        %1126 = vmatprep.mubr.bf16.mxu0 0
        %1127 = vmatmul.mubr.bf16.gmra.mrb[0].mxu0 %v1089
        %v1128 = vpop.f32.mrb[0].mxu0
        %v1129 = vadd.f32 0.0, %v1128
        %v1130 = vpop.f32.mrb[0].mxu0
        %v1131 = vpop.f32.mrb[0].mxu0
        %v1132 = vpop.f32.mrb[0].mxu0
        %1133 = vdwg.mxu0
        %1134 = vrot.lane.b32.xlu0 %v787, 48
        %v1135 = vpop.permute.xlu0 %1134
        %v1137 = vsel %vm791, %v1035, 0
        %v1140 = vsel %vm1042, %v1135, 0
        %1142 = vmatprep.subr.bf16.mxu0 0
        %1143 = vmatpush1.bf16.msra.mxu0 %v1140
        %1144 = vmatprep.subr.bf16.mxu0 0
        %1145 = vmatpush1.bf16.msra.mxu0 0
        %1146 = vmatprep.subr.bf16.mxu0 0
        %1147 = vmatpush1.bf16.msra.mxu0 0
        %1148 = vmatprep.subr.bf16.mxu0 0
        %1149 = vmatpush1.bf16.msra.mxu0 0
        %1150 = vmatprep.subr.bf16.mxu0 0
        %1151 = vmatpush1.bf16.msra.mxu0 0
        %1152 = vmatprep.subr.bf16.mxu0 0
        %1153 = vmatpush1.bf16.msra.mxu0 0
        %1154 = vmatprep.subr.bf16.mxu0 0
        %1155 = vmatpush1.bf16.msra.mxu0 0
        %1156 = vmatprep.subr.bf16.mxu0 0
        %1157 = vmatpush1.bf16.msra.mxu0 0
        %1158 = vmatprep.subr.bf16.mxu0 0
        %1159 = vmatpush1.bf16.msra.mxu0 0
        %1160 = vmatprep.subr.bf16.mxu0 0
        %1161 = vmatpush1.bf16.msra.mxu0 0
        %1162 = vmatprep.subr.bf16.mxu0 0
        %1163 = vmatpush1.bf16.msra.mxu0 0
        %1164 = vmatprep.subr.bf16.mxu0 0
        %1165 = vmatpush1.bf16.msra.mxu0 0
        %1166 = vmatprep.subr.bf16.mxu0 0
        %1167 = vmatpush1.bf16.msra.mxu0 0
        %1168 = vmatprep.subr.bf16.mxu0 0
        %1169 = vmatpush1.bf16.msra.mxu0 0
        %1170 = vmatprep.subr.bf16.mxu0 0
        %1171 = vmatpush1.bf16.msra.mxu0 0
        %1172 = vmatprep.subr.bf16.mxu0 0
        %1173 = vmatpush1.bf16.msra.mxu0 0
        %1174 = vmatprep.mubr.bf16.mxu0 0
        %1175 = vmatmul.mubr.bf16.gmra.mrb[0].mxu0 %v1137
        %v1176 = vpop.f32.mrb[0].mxu0
        %v1177 = vadd.f32 0.0, %v1176
        %v1178 = vpop.f32.mrb[0].mxu0
        %v1179 = vpop.f32.mrb[0].mxu0
        %v1180 = vpop.f32.mrb[0].mxu0
        %1181 = vdwg.mxu0
        %1182 = vrot.lane.b32.xlu0 %v787, 40
        %v1183 = vpop.permute.xlu0 %1182
        %v1185 = vsel %vm791, %v1036, 0
        %v1188 = vsel %vm1042, %v1183, 0
        %1190 = vmatprep.subr.bf16.mxu0 0
        %1191 = vmatpush1.bf16.msra.mxu0 %v1188
        %1192 = vmatprep.subr.bf16.mxu0 0
        %1193 = vmatpush1.bf16.msra.mxu0 0
        %1194 = vmatprep.subr.bf16.mxu0 0
        %1195 = vmatpush1.bf16.msra.mxu0 0
        %1196 = vmatprep.subr.bf16.mxu0 0
        %1197 = vmatpush1.bf16.msra.mxu0 0
        %1198 = vmatprep.subr.bf16.mxu0 0
        %1199 = vmatpush1.bf16.msra.mxu0 0
        %1200 = vmatprep.subr.bf16.mxu0 0
        %1201 = vmatpush1.bf16.msra.mxu0 0
        %1202 = vmatprep.subr.bf16.mxu0 0
        %1203 = vmatpush1.bf16.msra.mxu0 0
        %1204 = vmatprep.subr.bf16.mxu0 0
        %1205 = vmatpush1.bf16.msra.mxu0 0
        %1206 = vmatprep.subr.bf16.mxu0 0
        %1207 = vmatpush1.bf16.msra.mxu0 0
        %1208 = vmatprep.subr.bf16.mxu0 0
        %1209 = vmatpush1.bf16.msra.mxu0 0
        %1210 = vmatprep.subr.bf16.mxu0 0
        %1211 = vmatpush1.bf16.msra.mxu0 0
        %1212 = vmatprep.subr.bf16.mxu0 0
        %1213 = vmatpush1.bf16.msra.mxu0 0
        %1214 = vmatprep.subr.bf16.mxu0 0
        %1215 = vmatpush1.bf16.msra.mxu0 0
        %1216 = vmatprep.subr.bf16.mxu0 0
        %1217 = vmatpush1.bf16.msra.mxu0 0
        %1218 = vmatprep.subr.bf16.mxu0 0
        %1219 = vmatpush1.bf16.msra.mxu0 0
        %1220 = vmatprep.subr.bf16.mxu0 0
        %1221 = vmatpush1.bf16.msra.mxu0 0
        %1222 = vmatprep.mubr.bf16.mxu0 0
        %1223 = vmatmul.mubr.bf16.gmra.mrb[0].mxu0 %v1185
        %v1224 = vpop.f32.mrb[0].mxu0
        %v1225 = vadd.f32 0.0, %v1224
        %v1226 = vpop.f32.mrb[0].mxu0
        %v1227 = vpop.f32.mrb[0].mxu0
        %v1228 = vpop.f32.mrb[0].mxu0
        %1229 = vdwg.mxu0
        %1231 = vrot.lane.b32.xlu0 %v1129, 8
        %v1232 = vpop.permute.xlu0 %1231
        %1235 = vrot.lane.b32.xlu0 %v1177, 16
        %v1236 = vpop.permute.xlu0 %1235
        %1239 = vrot.lane.b32.xlu0 %v1225, 24
        %v1240 = vpop.permute.xlu0 %1239
        %v1242 = vsel %vm791, %v1081, %v1232
        %vm1243 = vcmask 130048
        %v1244 = vsel %vm1243, %v1242, %v1236
        %vm1245 = vcmask 195584
        %v1246 = vsel %vm1245, %v1244, %v1240
        %v1247 = vpack.c.bf16 %v1246, %v1246
        %v1249 = vlaneseq
        %v1250 = vshrl.u32 %v1249, 7
        %v1251 = vsub.s32 0, %v1250
        %v1252 = vrot.slane %v784, %v1251
        %v1258 = vunpack.c.l.b16 %v780
        %v1259 = vunpack.c.l.b16 %v781
        %v1260 = vunpack.c.l.b16 %v782
        %v1261 = vunpack.c.l.b16 %v783
        %v1262 = vpack.c.b16 %v1259, %v1258
        %v1263 = vpack.c.b16 %v1261, %v1260
        %v1267 = vsel %vm736, %v1247, 0
        %1269 = vmatprep.subr.bf16.mxu0 0
        %1270 = vmatpush1.bf16.msra.mxu0 %v1262
        %1271 = vmatprep.subr.bf16.mxu0 0
        %1272 = vmatpush1.bf16.msra.mxu0 %v1263
        %1273 = vmatprep.subr.bf16.mxu0 0
        %1274 = vmatpush1.bf16.msra.mxu0 0
        %1275 = vmatprep.subr.bf16.mxu0 0
        %1276 = vmatpush1.bf16.msra.mxu0 0
        %1277 = vmatprep.subr.bf16.mxu0 0
        %1278 = vmatpush1.bf16.msra.mxu0 0
        %1279 = vmatprep.subr.bf16.mxu0 0
        %1280 = vmatpush1.bf16.msra.mxu0 0
        %1281 = vmatprep.subr.bf16.mxu0 0
        %1282 = vmatpush1.bf16.msra.mxu0 0
        %1283 = vmatprep.subr.bf16.mxu0 0
        %1284 = vmatpush1.bf16.msra.mxu0 0
        %1285 = vmatprep.subr.bf16.mxu0 0
        %1286 = vmatpush1.bf16.msra.mxu0 0
        %1287 = vmatprep.subr.bf16.mxu0 0
        %1288 = vmatpush1.bf16.msra.mxu0 0
        %1289 = vmatprep.subr.bf16.mxu0 0
        %1290 = vmatpush1.bf16.msra.mxu0 0
        %1291 = vmatprep.subr.bf16.mxu0 0
        %1292 = vmatpush1.bf16.msra.mxu0 0
        %1293 = vmatprep.subr.bf16.mxu0 0
        %1294 = vmatpush1.bf16.msra.mxu0 0
        %1295 = vmatprep.subr.bf16.mxu0 0
        %1296 = vmatpush1.bf16.msra.mxu0 0
        %1297 = vmatprep.subr.bf16.mxu0 0
        %1298 = vmatpush1.bf16.msra.mxu0 0
        %1299 = vmatprep.subr.bf16.mxu0 0
        %1300 = vmatpush1.bf16.msra.mxu0 0
        %1301 = vmatprep.mubr.bf16.mxu0 0
        %1302 = vmatmul.mubr.bf16.gmra.mrb[0].mxu0 %v1267
        %v1303 = vpop.f32.mrb[0].mxu0
        %v1304 = vadd.f32 %v1252, %v1303
        %v1305 = vpop.f32.mrb[0].mxu0
        %v1306 = vpop.f32.mrb[0].mxu0
        %v1307 = vpop.f32.mrb[0].mxu0
        %1308 = vdwg.mxu0
        %v1309 = vadd.f32 %v710, %v1304
        %v1310 = vld [vmem:[%s6] sm:$0x1]
        %v1311 = vld [vmem:[%s7] sm:$0x1]
        %v1312 = vsel %vm736, %v1309, 0.0
        %1313 = vadd.xlane.f32.xlu0 %v1312
        %v1314 = vpop.xlane.xlu0 %1313
        %v1315 = vrcp.pop 32.0
        %v1316 = vmul.f32 %v1314, %v1315
        %v1317 = vsub.f32 %v1309, %v1316
        %v1318 = vmul.f32 %v1317, %v1317
        %v1319 = vsel %vm736, %v1318, 0.0
        %1320 = vadd.xlane.f32.xlu0 %v1319
        %v1321 = vpop.xlane.xlu0 %1320
        %v1322 = vmul.f32 %v1321, %v1315
        %v1323 = vadd.f32 %v1322, 1e-05
        %v1324 = vrsqrt.pop %v1323
        %v1325 = vmul.f32 %v1317, %v1324
        %v1327 = vlaneseq
        %v1328 = vshrl.u32 %v1327, 7
        %v1329 = vsub.s32 0, %v1328
        %v1330 = vrot.slane %v1310, %v1329
        %v1332 = vmul.f32 %v1325, %v1330
        %v1334 = vlaneseq
        %v1335 = vshrl.u32 %v1334, 7
        %v1336 = vsub.s32 0, %v1335
        %v1337 = vrot.slane %v1311, %v1336
        %v1339 = vadd.f32 %v1332, %v1337
        %v1340 = vpack.c.bf16 %v1339, %v1339
        %v1341 = vld [vmem:[%s8] sm:$0xf]
        %v1342 = vld [vmem:[%s8 + $0x4] sm:$0xf]
        %v1343 = vld [vmem:[%s8 + $0x8] sm:$0xf]
        %v1344 = vld [vmem:[%s8 + $0xc] sm:$0xf]
        %v1345 = vld [vmem:[%s9] sm:$0x1]
        %v1347 = vlaneseq
        %v1348 = vshrl.u32 %v1347, 7
        %v1349 = vsub.s32 0, %v1348
        %v1350 = vrot.slane %v1345, %v1349
        %v1356 = vunpack.c.l.b16 %v1341
        %v1357 = vunpack.c.l.b16 %v1342
        %v1358 = vunpack.c.l.b16 %v1343
        %v1359 = vunpack.c.l.b16 %v1344
        %v1360 = vpack.c.b16 %v1357, %v1356
        %v1361 = vpack.c.b16 %v1359, %v1358
        %v1365 = vsel %vm736, %v1340, 0
        %1367 = vmatprep.subr.bf16.mxu0 0
        %1368 = vmatpush1.bf16.msra.mxu0 %v1360
        %1369 = vmatprep.subr.bf16.mxu0 0
        %1370 = vmatpush1.bf16.msra.mxu0 %v1361
        %1371 = vmatprep.subr.bf16.mxu0 0
        %1372 = vmatpush1.bf16.msra.mxu0 0
        %1373 = vmatprep.subr.bf16.mxu0 0
        %1374 = vmatpush1.bf16.msra.mxu0 0
        %1375 = vmatprep.subr.bf16.mxu0 0
        %1376 = vmatpush1.bf16.msra.mxu0 0
        %1377 = vmatprep.subr.bf16.mxu0 0
        %1378 = vmatpush1.bf16.msra.mxu0 0
        %1379 = vmatprep.subr.bf16.mxu0 0
        %1380 = vmatpush1.bf16.msra.mxu0 0
        %1381 = vmatprep.subr.bf16.mxu0 0
        %1382 = vmatpush1.bf16.msra.mxu0 0
        %1383 = vmatprep.subr.bf16.mxu0 0
        %1384 = vmatpush1.bf16.msra.mxu0 0
        %1385 = vmatprep.subr.bf16.mxu0 0
        %1386 = vmatpush1.bf16.msra.mxu0 0
        %1387 = vmatprep.subr.bf16.mxu0 0
        %1388 = vmatpush1.bf16.msra.mxu0 0
        %1389 = vmatprep.subr.bf16.mxu0 0
        %1390 = vmatpush1.bf16.msra.mxu0 0
        %1391 = vmatprep.subr.bf16.mxu0 0
        %1392 = vmatpush1.bf16.msra.mxu0 0
        %1393 = vmatprep.subr.bf16.mxu0 0
        %1394 = vmatpush1.bf16.msra.mxu0 0
        %1395 = vmatprep.subr.bf16.mxu0 0
        %1396 = vmatpush1.bf16.msra.mxu0 0
        %1397 = vmatprep.subr.bf16.mxu0 0
        %1398 = vmatpush1.bf16.msra.mxu0 0
        %1399 = vmatprep.mubr.bf16.mxu0 0
        %1400 = vmatmul.mubr.bf16.gmra.mrb[0].mxu0 %v1365
        %v1401 = vpop.f32.mrb[0].mxu0
        %v1402 = vadd.f32 %v1350, %v1401
        %v1403 = vpop.f32.mrb[0].mxu0
        %v1404 = vpop.f32.mrb[0].mxu0
        %v1405 = vpop.f32.mrb[0].mxu0
        %1406 = vdwg.mxu0
        %v1407 = vpack.c.bf16 %v711, %v711
        %v1408 = vld [vmem:[%s10] sm:$0xf]
        %v1409 = vld [vmem:[%s10 + $0x4] sm:$0xf]
        %v1410 = vld [vmem:[%s10 + $0x8] sm:$0xf]
        %v1411 = vld [vmem:[%s10 + $0xc] sm:$0xf]
        %v1412 = vld [vmem:[%s11] sm:$0x1]
        %v1414 = vlaneseq
        %v1415 = vshrl.u32 %v1414, 7
        %v1416 = vsub.s32 0, %v1415
        %v1417 = vrot.slane %v1412, %v1416
        %v1423 = vunpack.c.l.b16 %v1408
        %v1424 = vunpack.c.l.b16 %v1409
        %v1425 = vunpack.c.l.b16 %v1410
        %v1426 = vunpack.c.l.b16 %v1411
        %v1427 = vpack.c.b16 %v1424, %v1423
        %v1428 = vpack.c.b16 %v1426, %v1425
        %v1432 = vsel %vm736, %v1407, 0
        %1434 = vmatprep.subr.bf16.mxu0 0
        %1435 = vmatpush1.bf16.msra.mxu0 %v1427
        %1436 = vmatprep.subr.bf16.mxu0 0
        %1437 = vmatpush1.bf16.msra.mxu0 %v1428
        %1438 = vmatprep.subr.bf16.mxu0 0
        %1439 = vmatpush1.bf16.msra.mxu0 0
        %1440 = vmatprep.subr.bf16.mxu0 0
        %1441 = vmatpush1.bf16.msra.mxu0 0
        %1442 = vmatprep.subr.bf16.mxu0 0
        %1443 = vmatpush1.bf16.msra.mxu0 0
        %1444 = vmatprep.subr.bf16.mxu0 0
        %1445 = vmatpush1.bf16.msra.mxu0 0
        %1446 = vmatprep.subr.bf16.mxu0 0
        %1447 = vmatpush1.bf16.msra.mxu0 0
        %1448 = vmatprep.subr.bf16.mxu0 0
        %1449 = vmatpush1.bf16.msra.mxu0 0
        %1450 = vmatprep.subr.bf16.mxu0 0
        %1451 = vmatpush1.bf16.msra.mxu0 0
        %1452 = vmatprep.subr.bf16.mxu0 0
        %1453 = vmatpush1.bf16.msra.mxu0 0
        %1454 = vmatprep.subr.bf16.mxu0 0
        %1455 = vmatpush1.bf16.msra.mxu0 0
        %1456 = vmatprep.subr.bf16.mxu0 0
        %1457 = vmatpush1.bf16.msra.mxu0 0
        %1458 = vmatprep.subr.bf16.mxu0 0
        %1459 = vmatpush1.bf16.msra.mxu0 0
        %1460 = vmatprep.subr.bf16.mxu0 0
        %1461 = vmatpush1.bf16.msra.mxu0 0
        %1462 = vmatprep.subr.bf16.mxu0 0
        %1463 = vmatpush1.bf16.msra.mxu0 0
        %1464 = vmatprep.subr.bf16.mxu0 0
        %1465 = vmatpush1.bf16.msra.mxu0 0
        %1466 = vmatprep.mubr.bf16.mxu0 0
        %1467 = vmatmul.mubr.bf16.gmra.mrb[0].mxu0 %v1432
        %v1468 = vpop.f32.mrb[0].mxu0
        %v1469 = vadd.f32 %v1417, %v1468
        %v1470 = vpop.f32.mrb[0].mxu0
        %v1471 = vpop.f32.mrb[0].mxu0
        %v1472 = vpop.f32.mrb[0].mxu0
        %1473 = vdwg.mxu0
        %v1474 = vld [vmem:[%s12] sm:$0xf]
        %v1475 = vld [vmem:[%s12 + $0x4] sm:$0xf]
        %v1476 = vld [vmem:[%s12 + $0x8] sm:$0xf]
        %v1477 = vld [vmem:[%s12 + $0xc] sm:$0xf]
        %v1478 = vld [vmem:[%s13] sm:$0x1]
        %v1479 = vmul.f32 %v1402, 0.35355338
        %v1480 = vpack.c.bf16 %v1479, %v1479
        %v1481 = vpack.c.bf16 %v1469, %v1469
        %v1483 = vsel %vm791, %v1480, 0
        %v1486 = vsel %vm791, %v1481, 0
        %1488 = vmatprep.subr.bf16.mxu0 0
        %1489 = vmatpush1.bf16.xpose.msra.mxu0 %v1486
        %1490 = vmatprep.subr.bf16.mxu0 0
        %1491 = vmatpush1.bf16.xpose.msra.mxu0 0
        %1492 = vmatprep.subr.bf16.mxu0 0
        %1493 = vmatpush1.bf16.xpose.msra.mxu0 0
        %1494 = vmatprep.subr.bf16.mxu0 0
        %1495 = vmatpush1.bf16.xpose.msra.mxu0 0
        %1496 = vmatprep.subr.bf16.mxu0 0
        %1497 = vmatpush1.bf16.xpose.msra.mxu0 0
        %1498 = vmatprep.subr.bf16.mxu0 0
        %1499 = vmatpush1.bf16.xpose.msra.mxu0 0
        %1500 = vmatprep.subr.bf16.mxu0 0
        %1501 = vmatpush1.bf16.xpose.msra.mxu0 0
        %1502 = vmatprep.subr.bf16.mxu0 0
        %1503 = vmatpush1.bf16.xpose.msra.mxu0 0
        %1504 = vmatprep.subr.bf16.mxu0 0
        %1505 = vmatpush1.bf16.xpose.msra.mxu0 0
        %1506 = vmatprep.subr.bf16.mxu0 0
        %1507 = vmatpush1.bf16.xpose.msra.mxu0 0
        %1508 = vmatprep.subr.bf16.mxu0 0
        %1509 = vmatpush1.bf16.xpose.msra.mxu0 0
        %1510 = vmatprep.subr.bf16.mxu0 0
        %1511 = vmatpush1.bf16.xpose.msra.mxu0 0
        %1512 = vmatprep.subr.bf16.mxu0 0
        %1513 = vmatpush1.bf16.xpose.msra.mxu0 0
        %1514 = vmatprep.subr.bf16.mxu0 0
        %1515 = vmatpush1.bf16.xpose.msra.mxu0 0
        %1516 = vmatprep.subr.bf16.mxu0 0
        %1517 = vmatpush1.bf16.xpose.msra.mxu0 0
        %1518 = vmatprep.subr.bf16.mxu0 0
        %1519 = vmatpush1.bf16.xpose.msra.mxu0 0
        %1520 = vmatprep.mubr.bf16.mxu0 0
        %1521 = vmatmul.mubr.bf16.gmra.mrb[0].mxu0 %v1483
        %v1522 = vpop.f32.mrb[0].mxu0
        %v1523 = vadd.f32 0.0, %v1522
        %v1524 = vpop.f32.mrb[0].mxu0
        %v1525 = vpop.f32.mrb[0].mxu0
        %v1526 = vpop.f32.mrb[0].mxu0
        %1527 = vdwg.mxu0
        %1529 = vrot.lane.b32.xlu0 %v1480, 120
        %v1530 = vpop.permute.xlu0 %1529
        %1532 = vrot.lane.b32.xlu0 %v1481, 120
        %v1533 = vpop.permute.xlu0 %1532
        %v1535 = vsel %vm791, %v1530, 0
        %v1538 = vsel %vm791, %v1533, 0
        %1540 = vmatprep.subr.bf16.mxu0 0
        %1541 = vmatpush1.bf16.xpose.msra.mxu0 %v1538
        %1542 = vmatprep.subr.bf16.mxu0 0
        %1543 = vmatpush1.bf16.xpose.msra.mxu0 0
        %1544 = vmatprep.subr.bf16.mxu0 0
        %1545 = vmatpush1.bf16.xpose.msra.mxu0 0
        %1546 = vmatprep.subr.bf16.mxu0 0
        %1547 = vmatpush1.bf16.xpose.msra.mxu0 0
        %1548 = vmatprep.subr.bf16.mxu0 0
        %1549 = vmatpush1.bf16.xpose.msra.mxu0 0
        %1550 = vmatprep.subr.bf16.mxu0 0
        %1551 = vmatpush1.bf16.xpose.msra.mxu0 0
        %1552 = vmatprep.subr.bf16.mxu0 0
        %1553 = vmatpush1.bf16.xpose.msra.mxu0 0
        %1554 = vmatprep.subr.bf16.mxu0 0
        %1555 = vmatpush1.bf16.xpose.msra.mxu0 0
        %1556 = vmatprep.subr.bf16.mxu0 0
        %1557 = vmatpush1.bf16.xpose.msra.mxu0 0
        %1558 = vmatprep.subr.bf16.mxu0 0
        %1559 = vmatpush1.bf16.xpose.msra.mxu0 0
        %1560 = vmatprep.subr.bf16.mxu0 0
        %1561 = vmatpush1.bf16.xpose.msra.mxu0 0
        %1562 = vmatprep.subr.bf16.mxu0 0
        %1563 = vmatpush1.bf16.xpose.msra.mxu0 0
        %1564 = vmatprep.subr.bf16.mxu0 0
        %1565 = vmatpush1.bf16.xpose.msra.mxu0 0
        %1566 = vmatprep.subr.bf16.mxu0 0
        %1567 = vmatpush1.bf16.xpose.msra.mxu0 0
        %1568 = vmatprep.subr.bf16.mxu0 0
        %1569 = vmatpush1.bf16.xpose.msra.mxu0 0
        %1570 = vmatprep.subr.bf16.mxu0 0
        %1571 = vmatpush1.bf16.xpose.msra.mxu0 0
        %1572 = vmatprep.mubr.bf16.mxu0 0
        %1573 = vmatmul.mubr.bf16.gmra.mrb[0].mxu0 %v1535
        %v1574 = vpop.f32.mrb[0].mxu0
        %v1575 = vadd.f32 0.0, %v1574
        %v1576 = vpop.f32.mrb[0].mxu0
        %v1577 = vpop.f32.mrb[0].mxu0
        %v1578 = vpop.f32.mrb[0].mxu0
        %1579 = vdwg.mxu0
        %1580 = vrot.lane.b32.xlu0 %v1480, 112
        %v1581 = vpop.permute.xlu0 %1580
        %1582 = vrot.lane.b32.xlu0 %v1481, 112
        %v1583 = vpop.permute.xlu0 %1582
        %v1585 = vsel %vm791, %v1581, 0
        %v1588 = vsel %vm791, %v1583, 0
        %1590 = vmatprep.subr.bf16.mxu0 0
        %1591 = vmatpush1.bf16.xpose.msra.mxu0 %v1588
        %1592 = vmatprep.subr.bf16.mxu0 0
        %1593 = vmatpush1.bf16.xpose.msra.mxu0 0
        %1594 = vmatprep.subr.bf16.mxu0 0
        %1595 = vmatpush1.bf16.xpose.msra.mxu0 0
        %1596 = vmatprep.subr.bf16.mxu0 0
        %1597 = vmatpush1.bf16.xpose.msra.mxu0 0
        %1598 = vmatprep.subr.bf16.mxu0 0
        %1599 = vmatpush1.bf16.xpose.msra.mxu0 0
        %1600 = vmatprep.subr.bf16.mxu0 0
        %1601 = vmatpush1.bf16.xpose.msra.mxu0 0
        %1602 = vmatprep.subr.bf16.mxu0 0
        %1603 = vmatpush1.bf16.xpose.msra.mxu0 0
        %1604 = vmatprep.subr.bf16.mxu0 0
        %1605 = vmatpush1.bf16.xpose.msra.mxu0 0
        %1606 = vmatprep.subr.bf16.mxu0 0
        %1607 = vmatpush1.bf16.xpose.msra.mxu0 0
        %1608 = vmatprep.subr.bf16.mxu0 0
        %1609 = vmatpush1.bf16.xpose.msra.mxu0 0
        %1610 = vmatprep.subr.bf16.mxu0 0
        %1611 = vmatpush1.bf16.xpose.msra.mxu0 0
        %1612 = vmatprep.subr.bf16.mxu0 0
        %1613 = vmatpush1.bf16.xpose.msra.mxu0 0
        %1614 = vmatprep.subr.bf16.mxu0 0
        %1615 = vmatpush1.bf16.xpose.msra.mxu0 0
        %1616 = vmatprep.subr.bf16.mxu0 0
        %1617 = vmatpush1.bf16.xpose.msra.mxu0 0
        %1618 = vmatprep.subr.bf16.mxu0 0
        %1619 = vmatpush1.bf16.xpose.msra.mxu0 0
        %1620 = vmatprep.subr.bf16.mxu0 0
        %1621 = vmatpush1.bf16.xpose.msra.mxu0 0
        %1622 = vmatprep.mubr.bf16.mxu0 0
        %1623 = vmatmul.mubr.bf16.gmra.mrb[0].mxu0 %v1585
        %v1624 = vpop.f32.mrb[0].mxu0
        %v1625 = vadd.f32 0.0, %v1624
        %v1626 = vpop.f32.mrb[0].mxu0
        %v1627 = vpop.f32.mrb[0].mxu0
        %v1628 = vpop.f32.mrb[0].mxu0
        %1629 = vdwg.mxu0
        %1630 = vrot.lane.b32.xlu0 %v1480, 104
        %v1631 = vpop.permute.xlu0 %1630
        %1632 = vrot.lane.b32.xlu0 %v1481, 104
        %v1633 = vpop.permute.xlu0 %1632
        %v1635 = vsel %vm791, %v1631, 0
        %v1638 = vsel %vm791, %v1633, 0
        %1640 = vmatprep.subr.bf16.mxu0 0
        %1641 = vmatpush1.bf16.xpose.msra.mxu0 %v1638
        %1642 = vmatprep.subr.bf16.mxu0 0
        %1643 = vmatpush1.bf16.xpose.msra.mxu0 0
        %1644 = vmatprep.subr.bf16.mxu0 0
        %1645 = vmatpush1.bf16.xpose.msra.mxu0 0
        %1646 = vmatprep.subr.bf16.mxu0 0
        %1647 = vmatpush1.bf16.xpose.msra.mxu0 0
        %1648 = vmatprep.subr.bf16.mxu0 0
        %1649 = vmatpush1.bf16.xpose.msra.mxu0 0
        %1650 = vmatprep.subr.bf16.mxu0 0
        %1651 = vmatpush1.bf16.xpose.msra.mxu0 0
        %1652 = vmatprep.subr.bf16.mxu0 0
        %1653 = vmatpush1.bf16.xpose.msra.mxu0 0
        %1654 = vmatprep.subr.bf16.mxu0 0
        %1655 = vmatpush1.bf16.xpose.msra.mxu0 0
        %1656 = vmatprep.subr.bf16.mxu0 0
        %1657 = vmatpush1.bf16.xpose.msra.mxu0 0
        %1658 = vmatprep.subr.bf16.mxu0 0
        %1659 = vmatpush1.bf16.xpose.msra.mxu0 0
        %1660 = vmatprep.subr.bf16.mxu0 0
        %1661 = vmatpush1.bf16.xpose.msra.mxu0 0
        %1662 = vmatprep.subr.bf16.mxu0 0
        %1663 = vmatpush1.bf16.xpose.msra.mxu0 0
        %1664 = vmatprep.subr.bf16.mxu0 0
        %1665 = vmatpush1.bf16.xpose.msra.mxu0 0
        %1666 = vmatprep.subr.bf16.mxu0 0
        %1667 = vmatpush1.bf16.xpose.msra.mxu0 0
        %1668 = vmatprep.subr.bf16.mxu0 0
        %1669 = vmatpush1.bf16.xpose.msra.mxu0 0
        %1670 = vmatprep.subr.bf16.mxu0 0
        %1671 = vmatpush1.bf16.xpose.msra.mxu0 0
        %1672 = vmatprep.mubr.bf16.mxu0 0
        %1673 = vmatmul.mubr.bf16.gmra.mrb[0].mxu0 %v1635
        %v1674 = vpop.f32.mrb[0].mxu0
        %v1675 = vadd.f32 0.0, %v1674
        %v1676 = vpop.f32.mrb[0].mxu0
        %v1677 = vpop.f32.mrb[0].mxu0
        %v1678 = vpop.f32.mrb[0].mxu0
        %1679 = vdwg.mxu0
        %v1680 = vsel %vm791, %v1523, -inf
        %1681 = vmax.xlane.f32.xlu0 %v1680
        %v1682 = vpop.xlane.xlu0 %1681
        %v1683 = vsel %vm791, %v1575, -inf
        %1684 = vmax.xlane.f32.xlu0 %v1683
        %v1685 = vpop.xlane.xlu0 %1684
        %v1686 = vsel %vm791, %v1625, -inf
        %1687 = vmax.xlane.f32.xlu0 %v1686
        %v1688 = vpop.xlane.xlu0 %1687
        %v1689 = vsel %vm791, %v1675, -inf
        %1690 = vmax.xlane.f32.xlu0 %v1689
        %v1691 = vpop.xlane.xlu0 %1690
        %v1692 = vsub.f32 %v1523, %v1682
        %v1693 = vsub.f32 %v1575, %v1685
        %v1694 = vsub.f32 %v1625, %v1688
        %v1695 = vsub.f32 %v1675, %v1691
        %v1696 = vmul.f32 %v1692, 1.442695
        %v1697 = vpow.pop %v1696
        %v1698 = vmul.f32 %v1693, 1.442695
        %v1699 = vpow.pop %v1698
        %v1700 = vmul.f32 %v1694, 1.442695
        %v1701 = vpow.pop %v1700
        %v1702 = vmul.f32 %v1695, 1.442695
        %v1703 = vpow.pop %v1702
        %v1704 = vsel %vm791, %v1697, 0.0
        %1705 = vadd.xlane.f32.xlu0 %v1704
        %v1706 = vpop.xlane.xlu0 %1705
        %v1707 = vsel %vm791, %v1699, 0.0
        %1708 = vadd.xlane.f32.xlu0 %v1707
        %v1709 = vpop.xlane.xlu0 %1708
        %v1710 = vsel %vm791, %v1701, 0.0
        %1711 = vadd.xlane.f32.xlu0 %v1710
        %v1712 = vpop.xlane.xlu0 %1711
        %v1713 = vsel %vm791, %v1703, 0.0
        %1714 = vadd.xlane.f32.xlu0 %v1713
        %v1715 = vpop.xlane.xlu0 %1714
        %v1716 = vrcp.pop %v1706
        %v1717 = vrcp.pop %v1709
        %v1718 = vrcp.pop %v1712
        %v1719 = vrcp.pop %v1715
        %v1720 = vmul.f32 %v1697, %v1716
        %v1721 = vmul.f32 %v1699, %v1717
        %v1722 = vmul.f32 %v1701, %v1718
        %v1723 = vmul.f32 %v1703, %v1719
        %v1724 = vpack.c.bf16 %v1720, %v1720
        %v1725 = vpack.c.bf16 %v1721, %v1721
        %v1726 = vpack.c.bf16 %v1722, %v1722
        %v1727 = vpack.c.bf16 %v1723, %v1723
        %1728 = vrot.lane.b32.xlu0 %v1481, 96
        %v1729 = vpop.permute.xlu0 %1728
        %v1731 = vsel %vm791, %v1724, 0
        %v1734 = vsel %vm1042, %v1729, 0
        %1736 = vmatprep.subr.bf16.mxu0 0
        %1737 = vmatpush1.bf16.msra.mxu0 %v1734
        %1738 = vmatprep.subr.bf16.mxu0 0
        %1739 = vmatpush1.bf16.msra.mxu0 0
        %1740 = vmatprep.subr.bf16.mxu0 0
        %1741 = vmatpush1.bf16.msra.mxu0 0
        %1742 = vmatprep.subr.bf16.mxu0 0
        %1743 = vmatpush1.bf16.msra.mxu0 0
        %1744 = vmatprep.subr.bf16.mxu0 0
        %1745 = vmatpush1.bf16.msra.mxu0 0
        %1746 = vmatprep.subr.bf16.mxu0 0
        %1747 = vmatpush1.bf16.msra.mxu0 0
        %1748 = vmatprep.subr.bf16.mxu0 0
        %1749 = vmatpush1.bf16.msra.mxu0 0
        %1750 = vmatprep.subr.bf16.mxu0 0
        %1751 = vmatpush1.bf16.msra.mxu0 0
        %1752 = vmatprep.subr.bf16.mxu0 0
        %1753 = vmatpush1.bf16.msra.mxu0 0
        %1754 = vmatprep.subr.bf16.mxu0 0
        %1755 = vmatpush1.bf16.msra.mxu0 0
        %1756 = vmatprep.subr.bf16.mxu0 0
        %1757 = vmatpush1.bf16.msra.mxu0 0
        %1758 = vmatprep.subr.bf16.mxu0 0
        %1759 = vmatpush1.bf16.msra.mxu0 0
        %1760 = vmatprep.subr.bf16.mxu0 0
        %1761 = vmatpush1.bf16.msra.mxu0 0
        %1762 = vmatprep.subr.bf16.mxu0 0
        %1763 = vmatpush1.bf16.msra.mxu0 0
        %1764 = vmatprep.subr.bf16.mxu0 0
        %1765 = vmatpush1.bf16.msra.mxu0 0
        %1766 = vmatprep.subr.bf16.mxu0 0
        %1767 = vmatpush1.bf16.msra.mxu0 0
        %1768 = vmatprep.mubr.bf16.mxu0 0
        %1769 = vmatmul.mubr.bf16.gmra.mrb[0].mxu0 %v1731
        %v1770 = vpop.f32.mrb[0].mxu0
        %v1771 = vadd.f32 0.0, %v1770
        %v1772 = vpop.f32.mrb[0].mxu0
        %v1773 = vpop.f32.mrb[0].mxu0
        %v1774 = vpop.f32.mrb[0].mxu0
        %1775 = vdwg.mxu0
        %1776 = vrot.lane.b32.xlu0 %v1481, 88
        %v1777 = vpop.permute.xlu0 %1776
        %v1779 = vsel %vm791, %v1725, 0
        %v1782 = vsel %vm1042, %v1777, 0
        %1784 = vmatprep.subr.bf16.mxu0 0
        %1785 = vmatpush1.bf16.msra.mxu0 %v1782
        %1786 = vmatprep.subr.bf16.mxu0 0
        %1787 = vmatpush1.bf16.msra.mxu0 0
        %1788 = vmatprep.subr.bf16.mxu0 0
        %1789 = vmatpush1.bf16.msra.mxu0 0
        %1790 = vmatprep.subr.bf16.mxu0 0
        %1791 = vmatpush1.bf16.msra.mxu0 0
        %1792 = vmatprep.subr.bf16.mxu0 0
        %1793 = vmatpush1.bf16.msra.mxu0 0
        %1794 = vmatprep.subr.bf16.mxu0 0
        %1795 = vmatpush1.bf16.msra.mxu0 0
        %1796 = vmatprep.subr.bf16.mxu0 0
        %1797 = vmatpush1.bf16.msra.mxu0 0
        %1798 = vmatprep.subr.bf16.mxu0 0
        %1799 = vmatpush1.bf16.msra.mxu0 0
        %1800 = vmatprep.subr.bf16.mxu0 0
        %1801 = vmatpush1.bf16.msra.mxu0 0
        %1802 = vmatprep.subr.bf16.mxu0 0
        %1803 = vmatpush1.bf16.msra.mxu0 0
        %1804 = vmatprep.subr.bf16.mxu0 0
        %1805 = vmatpush1.bf16.msra.mxu0 0
        %1806 = vmatprep.subr.bf16.mxu0 0
        %1807 = vmatpush1.bf16.msra.mxu0 0
        %1808 = vmatprep.subr.bf16.mxu0 0
        %1809 = vmatpush1.bf16.msra.mxu0 0
        %1810 = vmatprep.subr.bf16.mxu0 0
        %1811 = vmatpush1.bf16.msra.mxu0 0
        %1812 = vmatprep.subr.bf16.mxu0 0
        %1813 = vmatpush1.bf16.msra.mxu0 0
        %1814 = vmatprep.subr.bf16.mxu0 0
        %1815 = vmatpush1.bf16.msra.mxu0 0
        %1816 = vmatprep.mubr.bf16.mxu0 0
        %1817 = vmatmul.mubr.bf16.gmra.mrb[0].mxu0 %v1779
        %v1818 = vpop.f32.mrb[0].mxu0
        %v1819 = vadd.f32 0.0, %v1818
        %v1820 = vpop.f32.mrb[0].mxu0
        %v1821 = vpop.f32.mrb[0].mxu0
        %v1822 = vpop.f32.mrb[0].mxu0
        %1823 = vdwg.mxu0
        %1824 = vrot.lane.b32.xlu0 %v1481, 80
        %v1825 = vpop.permute.xlu0 %1824
        %v1827 = vsel %vm791, %v1726, 0
        %v1830 = vsel %vm1042, %v1825, 0
        %1832 = vmatprep.subr.bf16.mxu0 0
        %1833 = vmatpush1.bf16.msra.mxu0 %v1830
        %1834 = vmatprep.subr.bf16.mxu0 0
        %1835 = vmatpush1.bf16.msra.mxu0 0
        %1836 = vmatprep.subr.bf16.mxu0 0
        %1837 = vmatpush1.bf16.msra.mxu0 0
        %1838 = vmatprep.subr.bf16.mxu0 0
        %1839 = vmatpush1.bf16.msra.mxu0 0
        %1840 = vmatprep.subr.bf16.mxu0 0
        %1841 = vmatpush1.bf16.msra.mxu0 0
        %1842 = vmatprep.subr.bf16.mxu0 0
        %1843 = vmatpush1.bf16.msra.mxu0 0
        %1844 = vmatprep.subr.bf16.mxu0 0
        %1845 = vmatpush1.bf16.msra.mxu0 0
        %1846 = vmatprep.subr.bf16.mxu0 0
        %1847 = vmatpush1.bf16.msra.mxu0 0
        %1848 = vmatprep.subr.bf16.mxu0 0
        %1849 = vmatpush1.bf16.msra.mxu0 0
        %1850 = vmatprep.subr.bf16.mxu0 0
        %1851 = vmatpush1.bf16.msra.mxu0 0
        %1852 = vmatprep.subr.bf16.mxu0 0
        %1853 = vmatpush1.bf16.msra.mxu0 0
        %1854 = vmatprep.subr.bf16.mxu0 0
        %1855 = vmatpush1.bf16.msra.mxu0 0
        %1856 = vmatprep.subr.bf16.mxu0 0
        %1857 = vmatpush1.bf16.msra.mxu0 0
        %1858 = vmatprep.subr.bf16.mxu0 0
        %1859 = vmatpush1.bf16.msra.mxu0 0
        %1860 = vmatprep.subr.bf16.mxu0 0
        %1861 = vmatpush1.bf16.msra.mxu0 0
        %1862 = vmatprep.subr.bf16.mxu0 0
        %1863 = vmatpush1.bf16.msra.mxu0 0
        %1864 = vmatprep.mubr.bf16.mxu0 0
        %1865 = vmatmul.mubr.bf16.gmra.mrb[0].mxu0 %v1827
        %v1866 = vpop.f32.mrb[0].mxu0
        %v1867 = vadd.f32 0.0, %v1866
        %v1868 = vpop.f32.mrb[0].mxu0
        %v1869 = vpop.f32.mrb[0].mxu0
        %v1870 = vpop.f32.mrb[0].mxu0
        %1871 = vdwg.mxu0
        %1872 = vrot.lane.b32.xlu0 %v1481, 72
        %v1873 = vpop.permute.xlu0 %1872
        %v1875 = vsel %vm791, %v1727, 0
        %v1878 = vsel %vm1042, %v1873, 0
        %1880 = vmatprep.subr.bf16.mxu0 0
        %1881 = vmatpush1.bf16.msra.mxu0 %v1878
        %1882 = vmatprep.subr.bf16.mxu0 0
        %1883 = vmatpush1.bf16.msra.mxu0 0
        %1884 = vmatprep.subr.bf16.mxu0 0
        %1885 = vmatpush1.bf16.msra.mxu0 0
        %1886 = vmatprep.subr.bf16.mxu0 0
        %1887 = vmatpush1.bf16.msra.mxu0 0
        %1888 = vmatprep.subr.bf16.mxu0 0
        %1889 = vmatpush1.bf16.msra.mxu0 0
        %1890 = vmatprep.subr.bf16.mxu0 0
        %1891 = vmatpush1.bf16.msra.mxu0 0
        %1892 = vmatprep.subr.bf16.mxu0 0
        %1893 = vmatpush1.bf16.msra.mxu0 0
        %1894 = vmatprep.subr.bf16.mxu0 0
        %1895 = vmatpush1.bf16.msra.mxu0 0
        %1896 = vmatprep.subr.bf16.mxu0 0
        %1897 = vmatpush1.bf16.msra.mxu0 0
        %1898 = vmatprep.subr.bf16.mxu0 0
        %1899 = vmatpush1.bf16.msra.mxu0 0
        %1900 = vmatprep.subr.bf16.mxu0 0
        %1901 = vmatpush1.bf16.msra.mxu0 0
        %1902 = vmatprep.subr.bf16.mxu0 0
        %1903 = vmatpush1.bf16.msra.mxu0 0
        %1904 = vmatprep.subr.bf16.mxu0 0
        %1905 = vmatpush1.bf16.msra.mxu0 0
        %1906 = vmatprep.subr.bf16.mxu0 0
        %1907 = vmatpush1.bf16.msra.mxu0 0
        %1908 = vmatprep.subr.bf16.mxu0 0
        %1909 = vmatpush1.bf16.msra.mxu0 0
        %1910 = vmatprep.subr.bf16.mxu0 0
        %1911 = vmatpush1.bf16.msra.mxu0 0
        %1912 = vmatprep.mubr.bf16.mxu0 0
        %1913 = vmatmul.mubr.bf16.gmra.mrb[0].mxu0 %v1875
        %v1914 = vpop.f32.mrb[0].mxu0
        %v1915 = vadd.f32 0.0, %v1914
        %v1916 = vpop.f32.mrb[0].mxu0
        %v1917 = vpop.f32.mrb[0].mxu0
        %v1918 = vpop.f32.mrb[0].mxu0
        %1919 = vdwg.mxu0
        %1921 = vrot.lane.b32.xlu0 %v1819, 8
        %v1922 = vpop.permute.xlu0 %1921
        %1925 = vrot.lane.b32.xlu0 %v1867, 16
        %v1926 = vpop.permute.xlu0 %1925
        %1929 = vrot.lane.b32.xlu0 %v1915, 24
        %v1930 = vpop.permute.xlu0 %1929
        %v1932 = vsel %vm791, %v1771, %v1922
        %v1933 = vsel %vm1243, %v1932, %v1926
        %v1934 = vsel %vm1245, %v1933, %v1930
        %v1935 = vpack.c.bf16 %v1934, %v1934
        %v1937 = vlaneseq
        %v1938 = vshrl.u32 %v1937, 7
        %v1939 = vsub.s32 0, %v1938
        %v1940 = vrot.slane %v1478, %v1939
        %v1946 = vunpack.c.l.b16 %v1474
        %v1947 = vunpack.c.l.b16 %v1475
        %v1948 = vunpack.c.l.b16 %v1476
        %v1949 = vunpack.c.l.b16 %v1477
        %v1950 = vpack.c.b16 %v1947, %v1946
        %v1951 = vpack.c.b16 %v1949, %v1948
        %v1955 = vsel %vm736, %v1935, 0
        %1957 = vmatprep.subr.bf16.mxu0 0
        %1958 = vmatpush1.bf16.msra.mxu0 %v1950
        %1959 = vmatprep.subr.bf16.mxu0 0
        %1960 = vmatpush1.bf16.msra.mxu0 %v1951
        %1961 = vmatprep.subr.bf16.mxu0 0
        %1962 = vmatpush1.bf16.msra.mxu0 0
        %1963 = vmatprep.subr.bf16.mxu0 0
        %1964 = vmatpush1.bf16.msra.mxu0 0
        %1965 = vmatprep.subr.bf16.mxu0 0
        %1966 = vmatpush1.bf16.msra.mxu0 0
        %1967 = vmatprep.subr.bf16.mxu0 0
        %1968 = vmatpush1.bf16.msra.mxu0 0
        %1969 = vmatprep.subr.bf16.mxu0 0
        %1970 = vmatpush1.bf16.msra.mxu0 0
        %1971 = vmatprep.subr.bf16.mxu0 0
        %1972 = vmatpush1.bf16.msra.mxu0 0
        %1973 = vmatprep.subr.bf16.mxu0 0
        %1974 = vmatpush1.bf16.msra.mxu0 0
        %1975 = vmatprep.subr.bf16.mxu0 0
        %1976 = vmatpush1.bf16.msra.mxu0 0
        %1977 = vmatprep.subr.bf16.mxu0 0
        %1978 = vmatpush1.bf16.msra.mxu0 0
        %1979 = vmatprep.subr.bf16.mxu0 0
        %1980 = vmatpush1.bf16.msra.mxu0 0
        %1981 = vmatprep.subr.bf16.mxu0 0
        %1982 = vmatpush1.bf16.msra.mxu0 0
        %1983 = vmatprep.subr.bf16.mxu0 0
        %1984 = vmatpush1.bf16.msra.mxu0 0
        %1985 = vmatprep.subr.bf16.mxu0 0
        %1986 = vmatpush1.bf16.msra.mxu0 0
        %1987 = vmatprep.subr.bf16.mxu0 0
        %1988 = vmatpush1.bf16.msra.mxu0 0
        %1989 = vmatprep.mubr.bf16.mxu0 0
        %1990 = vmatmul.mubr.bf16.gmra.mrb[0].mxu0 %v1955
        %v1991 = vpop.f32.mrb[0].mxu0
        %v1992 = vadd.f32 %v1940, %v1991
        %v1993 = vpop.f32.mrb[0].mxu0
        %v1994 = vpop.f32.mrb[0].mxu0
        %v1995 = vpop.f32.mrb[0].mxu0
        %1996 = vdwg.mxu0
        %v1997 = vadd.f32 %v1339, %v1992
        %v1998 = vld [vmem:[%s14] sm:$0x1]
        %v1999 = vld [vmem:[%s15] sm:$0x1]
        %v2000 = vsel %vm736, %v1997, 0.0
        %2001 = vadd.xlane.f32.xlu0 %v2000
        %v2002 = vpop.xlane.xlu0 %2001
        %v2003 = vmul.f32 %v2002, %v1315
        %v2004 = vsub.f32 %v1997, %v2003
        %v2005 = vmul.f32 %v2004, %v2004
        %v2006 = vsel %vm736, %v2005, 0.0
        %2007 = vadd.xlane.f32.xlu0 %v2006
        %v2008 = vpop.xlane.xlu0 %2007
        %v2009 = vmul.f32 %v2008, %v1315
        %v2010 = vadd.f32 %v2009, 1e-05
        %v2011 = vrsqrt.pop %v2010
        %v2012 = vmul.f32 %v2004, %v2011
        %v2014 = vlaneseq
        %v2015 = vshrl.u32 %v2014, 7
        %v2016 = vsub.s32 0, %v2015
        %v2017 = vrot.slane %v1998, %v2016
        %v2019 = vmul.f32 %v2012, %v2017
        %v2021 = vlaneseq
        %v2022 = vshrl.u32 %v2021, 7
        %v2023 = vsub.s32 0, %v2022
        %v2024 = vrot.slane %v1999, %v2023
        %v2026 = vadd.f32 %v2019, %v2024
        %v2027 = vld [vmem:[%s16] sm:$0xf]
        %v2028 = vld [vmem:[%s16 + $0x4] sm:$0xf]
        %v2029 = vld [vmem:[%s16 + $0x8] sm:$0xf]
        %v2030 = vld [vmem:[%s16 + $0xc] sm:$0xf]
        %v2031 = vld [vmem:[%s17] sm:$0x1]
        %v2032 = vld [vmem:[%s18] sm:$0xf]
        %v2033 = vld [vmem:[%s18 + $0x4] sm:$0xf]
        %v2034 = vld [vmem:[%s18 + $0x8] sm:$0xf]
        %v2035 = vld [vmem:[%s18 + $0xc] sm:$0xf]
        %v2036 = vld [vmem:[%s18 + $0x10] sm:$0xf]
        %v2037 = vld [vmem:[%s18 + $0x14] sm:$0xf]
        %v2038 = vld [vmem:[%s18 + $0x18] sm:$0xf]
        %v2039 = vld [vmem:[%s18 + $0x1c] sm:$0xf]
        %v2040 = vld [vmem:[%s19] sm:$0x1]
        %v2041 = vpack.c.bf16 %v2026, %v2026
        %v2043 = vlaneseq
        %v2044 = vshrl.u32 %v2043, 7
        %v2045 = vsub.s32 0, %v2044
        %v2046 = vrot.slane %v2031, %v2045
        %v2052 = vunpack.c.l.b16 %v2027
        %v2053 = vunpack.c.l.b16 %v2028
        %v2054 = vunpack.c.l.b16 %v2029
        %v2055 = vunpack.c.l.b16 %v2030
        %v2056 = vpack.c.b16 %v2053, %v2052
        %v2057 = vpack.c.b16 %v2055, %v2054
        %v2061 = vsel %vm736, %v2041, 0
        %2063 = vmatprep.subr.bf16.mxu0 0
        %2064 = vmatpush1.bf16.msra.mxu0 %v2056
        %2065 = vmatprep.subr.bf16.mxu0 0
        %2066 = vmatpush1.bf16.msra.mxu0 %v2057
        %2067 = vmatprep.subr.bf16.mxu0 0
        %2068 = vmatpush1.bf16.msra.mxu0 0
        %2069 = vmatprep.subr.bf16.mxu0 0
        %2070 = vmatpush1.bf16.msra.mxu0 0
        %2071 = vmatprep.subr.bf16.mxu0 0
        %2072 = vmatpush1.bf16.msra.mxu0 0
        %2073 = vmatprep.subr.bf16.mxu0 0
        %2074 = vmatpush1.bf16.msra.mxu0 0
        %2075 = vmatprep.subr.bf16.mxu0 0
        %2076 = vmatpush1.bf16.msra.mxu0 0
        %2077 = vmatprep.subr.bf16.mxu0 0
        %2078 = vmatpush1.bf16.msra.mxu0 0
        %2079 = vmatprep.subr.bf16.mxu0 0
        %2080 = vmatpush1.bf16.msra.mxu0 0
        %2081 = vmatprep.subr.bf16.mxu0 0
        %2082 = vmatpush1.bf16.msra.mxu0 0
        %2083 = vmatprep.subr.bf16.mxu0 0
        %2084 = vmatpush1.bf16.msra.mxu0 0
        %2085 = vmatprep.subr.bf16.mxu0 0
        %2086 = vmatpush1.bf16.msra.mxu0 0
        %2087 = vmatprep.subr.bf16.mxu0 0
        %2088 = vmatpush1.bf16.msra.mxu0 0
        %2089 = vmatprep.subr.bf16.mxu0 0
        %2090 = vmatpush1.bf16.msra.mxu0 0
        %2091 = vmatprep.subr.bf16.mxu0 0
        %2092 = vmatpush1.bf16.msra.mxu0 0
        %2093 = vmatprep.subr.bf16.mxu0 0
        %2094 = vmatpush1.bf16.msra.mxu0 0
        %2095 = vmatprep.mubr.bf16.mxu0 0
        %2096 = vmatmul.mubr.bf16.gmra.mrb[0].mxu0 %v2061
        %v2097 = vpop.f32.mrb[0].mxu0
        %v2098 = vadd.f32 %v2046, %v2097
        %v2099 = vpop.f32.mrb[0].mxu0
        %v2100 = vpop.f32.mrb[0].mxu0
        %v2101 = vpop.f32.mrb[0].mxu0
        %2102 = vdwg.mxu0
        %v2103 = vmax.f32 %v2098, 0.0
        %v2104 = vpack.c.bf16 %v2103, %v2103
        %v2106 = vlaneseq
        %v2107 = vshrl.u32 %v2106, 7
        %v2108 = vsub.s32 0, %v2107
        %v2109 = vrot.slane %v2040, %v2108
        %v2119 = vunpack.c.l.b16 %v2032
        %v2120 = vunpack.c.l.b16 %v2033
        %v2121 = vunpack.c.l.b16 %v2034
        %v2122 = vunpack.c.l.b16 %v2035
        %v2123 = vunpack.c.l.b16 %v2036
        %v2124 = vunpack.c.l.b16 %v2037
        %v2125 = vunpack.c.l.b16 %v2038
        %v2126 = vunpack.c.l.b16 %v2039
        %v2127 = vpack.c.b16 %v2120, %v2119
        %v2128 = vpack.c.b16 %v2122, %v2121
        %v2129 = vpack.c.b16 %v2124, %v2123
        %v2130 = vpack.c.b16 %v2126, %v2125
        %vm2135 = vcmask 523264
        %v2137 = vsel %vm2135, %v2104, 0
        %2139 = vmatprep.subr.bf16.mxu0 0
        %2140 = vmatpush1.bf16.msra.mxu0 %v2127
        %2141 = vmatprep.subr.bf16.mxu0 0
        %2142 = vmatpush1.bf16.msra.mxu0 %v2128
        %2143 = vmatprep.subr.bf16.mxu0 0
        %2144 = vmatpush1.bf16.msra.mxu0 %v2129
        %2145 = vmatprep.subr.bf16.mxu0 0
        %2146 = vmatpush1.bf16.msra.mxu0 %v2130
        %2147 = vmatprep.subr.bf16.mxu0 0
        %2148 = vmatpush1.bf16.msra.mxu0 0
        %2149 = vmatprep.subr.bf16.mxu0 0
        %2150 = vmatpush1.bf16.msra.mxu0 0
        %2151 = vmatprep.subr.bf16.mxu0 0
        %2152 = vmatpush1.bf16.msra.mxu0 0
        %2153 = vmatprep.subr.bf16.mxu0 0
        %2154 = vmatpush1.bf16.msra.mxu0 0
        %2155 = vmatprep.subr.bf16.mxu0 0
        %2156 = vmatpush1.bf16.msra.mxu0 0
        %2157 = vmatprep.subr.bf16.mxu0 0
        %2158 = vmatpush1.bf16.msra.mxu0 0
        %2159 = vmatprep.subr.bf16.mxu0 0
        %2160 = vmatpush1.bf16.msra.mxu0 0
        %2161 = vmatprep.subr.bf16.mxu0 0
        %2162 = vmatpush1.bf16.msra.mxu0 0
        %2163 = vmatprep.subr.bf16.mxu0 0
        %2164 = vmatpush1.bf16.msra.mxu0 0
        %2165 = vmatprep.subr.bf16.mxu0 0
        %2166 = vmatpush1.bf16.msra.mxu0 0
        %2167 = vmatprep.subr.bf16.mxu0 0
        %2168 = vmatpush1.bf16.msra.mxu0 0
        %2169 = vmatprep.subr.bf16.mxu0 0
        %2170 = vmatpush1.bf16.msra.mxu0 0
        %2171 = vmatprep.mubr.bf16.mxu0 0
        %2172 = vmatmul.mubr.bf16.gmra.mrb[0].mxu0 %v2137
        %v2173 = vpop.f32.mrb[0].mxu0
        %v2174 = vadd.f32 %v2109, %v2173
        %v2175 = vpop.f32.mrb[0].mxu0
        %v2176 = vpop.f32.mrb[0].mxu0
        %v2177 = vpop.f32.mrb[0].mxu0
        %2178 = vdwg.mxu0
        %v2179 = vadd.f32 %v2026, %v2174
        %v2180 = vld [vmem:[%s20] sm:$0x1]
        %v2181 = vld [vmem:[#allocation2] sm:$0x1]
        %v2182 = vsel %vm736, %v2179, 0.0
        %2183 = vadd.xlane.f32.xlu0 %v2182
        %v2184 = vpop.xlane.xlu0 %2183
        %v2185 = vmul.f32 %v2184, %v1315
        %v2186 = vsub.f32 %v2179, %v2185
        %v2187 = vmul.f32 %v2186, %v2186
        %v2188 = vsel %vm736, %v2187, 0.0
        %2189 = vadd.xlane.f32.xlu0 %v2188
        %v2190 = vpop.xlane.xlu0 %2189
        %v2191 = vmul.f32 %v2190, %v1315
        %v2192 = vadd.f32 %v2191, 1e-05
        %v2193 = vrsqrt.pop %v2192
        %v2194 = vmul.f32 %v2186, %v2193
        %v2196 = vlaneseq
        %v2197 = vshrl.u32 %v2196, 7
        %v2198 = vsub.s32 0, %v2197
        %v2199 = vrot.slane %v2180, %v2198
        %v2201 = vmul.f32 %v2194, %v2199
        %v2203 = vlaneseq
        %v2204 = vshrl.u32 %v2203, 7
        %v2205 = vsub.s32 0, %v2204
        %v2206 = vrot.slane %v2181, %v2205
        %v2208 = vadd.f32 %v2201, %v2206
        %2209 = vst.msk [vmem:[%s708] sm:$0xff] %vm736, %v2208
        %p2210 = scmp.lt.s32.totalorder %s34, 1
        %s2211 = scalar_select %p2210, %s34, 1
        %s2212 = smul.addr %s2211, 8
        %s2213 = scalar_lea.vmem %s22, %s2212
        // Predicated region
        $region113: #{transformer_forward.8} parent=107 // pred_check
          %p2214 = pneg %p524
        $region114: #{transformer_forward.8} parent=107 // pred_check_branch
          %2216 = sbr.rel (%p2214) target = $region116
        $region115: #{transformer_forward.8} parent=107 // pred_region
          _
        $region116: #{transformer_forward.8} parent=107 // pred_fallthru
          _
      $region108: #{transformer_forward.8} parent=5 // pred_fallthru
        _
      %p2217 = scmp.le.s32.totalorder 2, %s29
      // Predicated region
      $region117: #{transformer_forward.8} parent=5 // pred_check
        %p2218 = pneg %p2217
      $region118: #{transformer_forward.8} parent=5 // pred_check_branch
        %2220 = sbr.rel (%p2218) target = $region120
      $region119: #{transformer_forward.8} parent=5 // pred_region
        %s2221 = ssub.s32 %s29, 2
        // Predicated region
        $region121: #{transformer_forward.8} parent=119 // pred_check
          %p2222 = pneg %p530
        $region122: #{transformer_forward.8} parent=119 // pred_check_branch
          %2224 = sbr.rel (%p2222) target = $region124
        $region123: #{transformer_forward.8} parent=119 // pred_region
          %p2225 = scmp.lt.s32.totalorder %s35, 1
          %s2226 = scalar_select %p2225, %s35, 1
          %s2227 = smul.addr %s2226, 8
          %s2228 = scalar_lea.vmem %s22, %s2227
        $region124: #{transformer_forward.8} parent=119 // pred_fallthru
          _
      $region120: #{transformer_forward.8} parent=5 // pred_fallthru
        _
    $region6: #{transformer_forward.8} parent=1 // loop_footer
      %s33 = sadd.s32 1, %s29
    $region7: #{transformer_forward.8} parent=1 // loop_footer_branch
      %28 = sbr.rel target = $region3
    $region8: #{transformer_forward.8} parent=1 // loop_exit
      _
    %2229 = vsyncpa [#allocation3], 1
    %s2230 = scalar_lea.sflag [#allocation3], 1
    %2231 = vsyncpa %s2230, 1

// kernel: transformer_forward.7
$region0: #{transformer_forward.7}
  #allocation0 [shape = 'u32[]', space=smem, size = 0x4, offset = 0x4, fixed_abs, tag = 'smem constant byte address 0x4 - core index']
  #allocation1 [shape = 'u32[144,128]{1,0:T(1,128)}', space=vmem, size = 0x12000, scoped, tag = 'internal scratch']
  %s0 = inlined_call_operand.vmem [shape: f32[2,8,32], index: 0, kind: input, shape index: {}]
  %s1 = inlined_call_operand.vmem [shape: f32[2,8,32], index: 1, kind: input, shape index: {}]
  %s2 = inlined_call_operand.vmem [shape: bf16[32,96], index: 2, kind: input, shape index: {}]
  %s3 = inlined_call_operand.vmem [shape: f32[1,96], index: 3, kind: input, shape index: {}]
  %s4 = inlined_call_operand.vmem [shape: bf16[32,32], index: 4, kind: input, shape index: {}]
  %s5 = inlined_call_operand.vmem [shape: f32[1,32], index: 5, kind: input, shape index: {}]
  %s6 = inlined_call_operand.vmem [shape: f32[1,32], index: 6, kind: input, shape index: {}]
  %s7 = inlined_call_operand.vmem [shape: f32[1,32], index: 7, kind: input, shape index: {}]
  %s8 = inlined_call_operand.vmem [shape: bf16[32,32], index: 8, kind: input, shape index: {}]
  %s9 = inlined_call_operand.vmem [shape: f32[1,32], index: 9, kind: input, shape index: {}]
  %s10 = inlined_call_operand.vmem [shape: bf16[32,64], index: 10, kind: input, shape index: {}]
  %s11 = inlined_call_operand.vmem [shape: f32[1,64], index: 11, kind: input, shape index: {}]
  %s12 = inlined_call_operand.vmem [shape: bf16[32,32], index: 12, kind: input, shape index: {}]
  %s13 = inlined_call_operand.vmem [shape: f32[1,32], index: 13, kind: input, shape index: {}]
  %s14 = inlined_call_operand.vmem [shape: f32[1,32], index: 14, kind: input, shape index: {}]
  %s15 = inlined_call_operand.vmem [shape: f32[1,32], index: 15, kind: input, shape index: {}]
  %s16 = inlined_call_operand.vmem [shape: bf16[32,64], index: 16, kind: input, shape index: {}]
  %s17 = inlined_call_operand.vmem [shape: f32[1,64], index: 17, kind: input, shape index: {}]
  %s18 = inlined_call_operand.vmem [shape: bf16[64,32], index: 18, kind: input, shape index: {}]
  %s19 = inlined_call_operand.vmem [shape: f32[1,32], index: 19, kind: input, shape index: {}]
  %s20 = inlined_call_operand.vmem [shape: f32[1,32], index: 20, kind: input, shape index: {}]
  %s21 = inlined_call_operand.vmem [shape: f32[1,32], index: 21, kind: input, shape index: {}]
  %s22 = inlined_call_operand.vmem [shape: f32[2,8,32], index: 22, kind: output, shape index: {}]
  %s23 = sld [smem:[#allocation0]]
  $region121: #{transformer_forward.7} parent=0
    _
  %s25 = ssub.s32 1, %s23
  %s26 = scalar_select 0, %s25, %s23
  loop: start=0, step=1, limit=4
  $region2: #{transformer_forward.7} parent=0 // loop_pre_header
    _
  $region3: #{transformer_forward.7} parent=0 // loop_header
    %s28 = sphi 0, %s32
    %p29 = scmp.ge.s32.totalorder %s28, 4
    %s38 = sphi 0, %s40
    %s41 = sphi 0, %s38
    %s42 = sphi 0, %s41
    %s58 = sphi 0, %s42
    %s64 = sphi 0, %s66
    %s67 = sphi 0, %s64
    %s68 = sphi 0, %s67
    %s84 = sphi 0, %s68
    %s88 = sphi 0, %s88
    %s90 = sphi 0, %s88
    %s91 = sphi 0, %s90
    %s105 = sphi 0, %s91
    %s109 = sphi 0, %s109
    %s111 = sphi 0, %s109
    %s112 = sphi 0, %s111
    %s126 = sphi 0, %s112
    %s130 = sphi 0, %s130
    %s132 = sphi 0, %s130
    %s133 = sphi 0, %s132
    %s147 = sphi 0, %s133
    %s151 = sphi 0, %s151
    %s153 = sphi 0, %s151
    %s154 = sphi 0, %s153
    %s168 = sphi 0, %s154
    %s172 = sphi 0, %s172
    %s174 = sphi 0, %s172
    %s175 = sphi 0, %s174
    %s189 = sphi 0, %s175
    %s193 = sphi 0, %s193
    %s195 = sphi 0, %s193
    %s196 = sphi 0, %s195
    %s210 = sphi 0, %s196
    %s214 = sphi 0, %s214
    %s216 = sphi 0, %s214
    %s217 = sphi 0, %s216
    %s231 = sphi 0, %s217
    %s235 = sphi 0, %s235
    %s237 = sphi 0, %s235
    %s238 = sphi 0, %s237
    %s252 = sphi 0, %s238
    %s256 = sphi 0, %s256
    %s258 = sphi 0, %s256
    %s259 = sphi 0, %s258
    %s273 = sphi 0, %s259
    %s277 = sphi 0, %s277
    %s279 = sphi 0, %s277
    %s280 = sphi 0, %s279
    %s294 = sphi 0, %s280
    %s298 = sphi 0, %s298
    %s300 = sphi 0, %s298
    %s301 = sphi 0, %s300
    %s315 = sphi 0, %s301
    %s319 = sphi 0, %s319
    %s321 = sphi 0, %s319
    %s322 = sphi 0, %s321
    %s336 = sphi 0, %s322
    %s340 = sphi 0, %s340
    %s342 = sphi 0, %s340
    %s343 = sphi 0, %s342
    %s357 = sphi 0, %s343
    %s361 = sphi 0, %s361
    %s363 = sphi 0, %s361
    %s364 = sphi 0, %s363
    %s378 = sphi 0, %s364
    %s382 = sphi 0, %s382
    %s384 = sphi 0, %s382
    %s385 = sphi 0, %s384
    %s399 = sphi 0, %s385
    %s403 = sphi 0, %s403
    %s405 = sphi 0, %s403
    %s406 = sphi 0, %s405
    %s420 = sphi 0, %s406
    %s424 = sphi 0, %s424
    %s426 = sphi 0, %s424
    %s427 = sphi 0, %s426
    %s441 = sphi 0, %s427
    %s445 = sphi 0, %s445
    %s447 = sphi 0, %s445
    %s448 = sphi 0, %s447
    %s462 = sphi 0, %s448
    %s466 = sphi 0, %s466
    %s468 = sphi 0, %s466
    %s469 = sphi 0, %s468
    %s483 = sphi 0, %s469
    %s487 = sphi 0, %s487
    %s489 = sphi 0, %s487
    %s490 = sphi 0, %s489
    %s504 = sphi 0, %s490
    %s510 = sphi 0, %s512
    %s513 = sphi 0, %s510
    %s514 = sphi 0, %s513
    %s530 = sphi 0, %s514
  $region4: #{transformer_forward.7} parent=0 // loop_header_branch
    %31 = sbr.rel (%p29) target = $region8
  $region5: #{transformer_forward.7} parent=0 // loop_body
    %s33 = ssub.s32 %s28, 1
    %s34 = ssub.s32 %s28, 2
    %s35 = sadd.s32 %s28, 1
    %s36 = ssub.s32 %s28, %s35
    %p37 = scmp.eq.s32.totalorder %s36, 0
    %s39 = sadd.s32 %s38, 1
    %s40 = scalar_select %p37, %s38, %s39
    %p43 = pneg %p37
    %p44 = scmp.eq.s32.totalorder %s28, 1
    %p45 = por %p43, %p44
    %p46 = scmp.ne.s32.totalorder %s38, %s41
    %p47 = scmp.eq.s32.totalorder %s28, 0
    %p48 = por %p46, %p47
    %p49 = scmp.ne.s32.totalorder %s38, %s41
    %p50 = scmp.eq.s32.totalorder %s33, 1
    %p51 = por %p49, %p50
    %p52 = scmp.ne.s32.totalorder %s41, %s42
    %p53 = scmp.eq.s32.totalorder %s33, 0
    %p54 = por %p52, %p53
    %p55 = scmp.ne.s32.totalorder %s41, %s42
    %p56 = scmp.eq.s32.totalorder %s34, 1
    %p57 = por %p55, %p56
    %p59 = scmp.ne.s32.totalorder %s42, %s58
    %p60 = scmp.eq.s32.totalorder %s34, 0
    %p61 = por %p59, %p60
    %s62 = ssub.s32 %s28, %s35
    %p63 = scmp.eq.s32.totalorder %s62, 0
    %s65 = sadd.s32 %s64, 1
    %s66 = scalar_select %p63, %s64, %s65
    %p69 = pneg %p63
    %p70 = scmp.eq.s32.totalorder %s28, 1
    %p71 = por %p69, %p70
    %p72 = scmp.ne.s32.totalorder %s64, %s67
    %p73 = scmp.eq.s32.totalorder %s28, 0
    %p74 = por %p72, %p73
    %p75 = scmp.ne.s32.totalorder %s64, %s67
    %p76 = scmp.eq.s32.totalorder %s33, 1
    %p77 = por %p75, %p76
    %p78 = scmp.ne.s32.totalorder %s67, %s68
    %p79 = scmp.eq.s32.totalorder %s33, 0
    %p80 = por %p78, %p79
    %p81 = scmp.ne.s32.totalorder %s67, %s68
    %p82 = scmp.eq.s32.totalorder %s34, 1
    %p83 = por %p81, %p82
    %p85 = scmp.ne.s32.totalorder %s68, %s84
    %p86 = scmp.eq.s32.totalorder %s34, 0
    %p87 = por %p85, %p86
    %s89 = sadd.s32 %s88, 1
    %p92 = scmp.eq.s32.totalorder %s28, 1
    %p93 = scmp.ne.s32.totalorder %s88, %s90
    %p94 = scmp.eq.s32.totalorder %s28, 0
    %p95 = por %p93, %p94
    %p96 = scmp.ne.s32.totalorder %s88, %s90
    %p97 = scmp.eq.s32.totalorder %s33, 1
    %p98 = por %p96, %p97
    %p99 = scmp.ne.s32.totalorder %s90, %s91
    %p100 = scmp.eq.s32.totalorder %s33, 0
    %p101 = por %p99, %p100
    %p102 = scmp.ne.s32.totalorder %s90, %s91
    %p103 = scmp.eq.s32.totalorder %s34, 1
    %p104 = por %p102, %p103
    %p106 = scmp.ne.s32.totalorder %s91, %s105
    %p107 = scmp.eq.s32.totalorder %s34, 0
    %p108 = por %p106, %p107
    %s110 = sadd.s32 %s109, 1
    %p113 = scmp.eq.s32.totalorder %s28, 1
    %p114 = scmp.ne.s32.totalorder %s109, %s111
    %p115 = scmp.eq.s32.totalorder %s28, 0
    %p116 = por %p114, %p115
    %p117 = scmp.ne.s32.totalorder %s109, %s111
    %p118 = scmp.eq.s32.totalorder %s33, 1
    %p119 = por %p117, %p118
    %p120 = scmp.ne.s32.totalorder %s111, %s112
    %p121 = scmp.eq.s32.totalorder %s33, 0
    %p122 = por %p120, %p121
    %p123 = scmp.ne.s32.totalorder %s111, %s112
    %p124 = scmp.eq.s32.totalorder %s34, 1
    %p125 = por %p123, %p124
    %p127 = scmp.ne.s32.totalorder %s112, %s126
    %p128 = scmp.eq.s32.totalorder %s34, 0
    %p129 = por %p127, %p128
    %s131 = sadd.s32 %s130, 1
    %p134 = scmp.eq.s32.totalorder %s28, 1
    %p135 = scmp.ne.s32.totalorder %s130, %s132
    %p136 = scmp.eq.s32.totalorder %s28, 0
    %p137 = por %p135, %p136
    %p138 = scmp.ne.s32.totalorder %s130, %s132
    %p139 = scmp.eq.s32.totalorder %s33, 1
    %p140 = por %p138, %p139
    %p141 = scmp.ne.s32.totalorder %s132, %s133
    %p142 = scmp.eq.s32.totalorder %s33, 0
    %p143 = por %p141, %p142
    %p144 = scmp.ne.s32.totalorder %s132, %s133
    %p145 = scmp.eq.s32.totalorder %s34, 1
    %p146 = por %p144, %p145
    %p148 = scmp.ne.s32.totalorder %s133, %s147
    %p149 = scmp.eq.s32.totalorder %s34, 0
    %p150 = por %p148, %p149
    %s152 = sadd.s32 %s151, 1
    %p155 = scmp.eq.s32.totalorder %s28, 1
    %p156 = scmp.ne.s32.totalorder %s151, %s153
    %p157 = scmp.eq.s32.totalorder %s28, 0
    %p158 = por %p156, %p157
    %p159 = scmp.ne.s32.totalorder %s151, %s153
    %p160 = scmp.eq.s32.totalorder %s33, 1
    %p161 = por %p159, %p160
    %p162 = scmp.ne.s32.totalorder %s153, %s154
    %p163 = scmp.eq.s32.totalorder %s33, 0
    %p164 = por %p162, %p163
    %p165 = scmp.ne.s32.totalorder %s153, %s154
    %p166 = scmp.eq.s32.totalorder %s34, 1
    %p167 = por %p165, %p166
    %p169 = scmp.ne.s32.totalorder %s154, %s168
    %p170 = scmp.eq.s32.totalorder %s34, 0
    %p171 = por %p169, %p170
    %s173 = sadd.s32 %s172, 1
    %p176 = scmp.eq.s32.totalorder %s28, 1
    %p177 = scmp.ne.s32.totalorder %s172, %s174
    %p178 = scmp.eq.s32.totalorder %s28, 0
    %p179 = por %p177, %p178
    %p180 = scmp.ne.s32.totalorder %s172, %s174
    %p181 = scmp.eq.s32.totalorder %s33, 1
    %p182 = por %p180, %p181
    %p183 = scmp.ne.s32.totalorder %s174, %s175
    %p184 = scmp.eq.s32.totalorder %s33, 0
    %p185 = por %p183, %p184
    %p186 = scmp.ne.s32.totalorder %s174, %s175
    %p187 = scmp.eq.s32.totalorder %s34, 1
    %p188 = por %p186, %p187
    %p190 = scmp.ne.s32.totalorder %s175, %s189
    %p191 = scmp.eq.s32.totalorder %s34, 0
    %p192 = por %p190, %p191
    %s194 = sadd.s32 %s193, 1
    %p197 = scmp.eq.s32.totalorder %s28, 1
    %p198 = scmp.ne.s32.totalorder %s193, %s195
    %p199 = scmp.eq.s32.totalorder %s28, 0
    %p200 = por %p198, %p199
    %p201 = scmp.ne.s32.totalorder %s193, %s195
    %p202 = scmp.eq.s32.totalorder %s33, 1
    %p203 = por %p201, %p202
    %p204 = scmp.ne.s32.totalorder %s195, %s196
    %p205 = scmp.eq.s32.totalorder %s33, 0
    %p206 = por %p204, %p205
    %p207 = scmp.ne.s32.totalorder %s195, %s196
    %p208 = scmp.eq.s32.totalorder %s34, 1
    %p209 = por %p207, %p208
    %p211 = scmp.ne.s32.totalorder %s196, %s210
    %p212 = scmp.eq.s32.totalorder %s34, 0
    %p213 = por %p211, %p212
    %s215 = sadd.s32 %s214, 1
    %p218 = scmp.eq.s32.totalorder %s28, 1
    %p219 = scmp.ne.s32.totalorder %s214, %s216
    %p220 = scmp.eq.s32.totalorder %s28, 0
    %p221 = por %p219, %p220
    %p222 = scmp.ne.s32.totalorder %s214, %s216
    %p223 = scmp.eq.s32.totalorder %s33, 1
    %p224 = por %p222, %p223
    %p225 = scmp.ne.s32.totalorder %s216, %s217
    %p226 = scmp.eq.s32.totalorder %s33, 0
    %p227 = por %p225, %p226
    %p228 = scmp.ne.s32.totalorder %s216, %s217
    %p229 = scmp.eq.s32.totalorder %s34, 1
    %p230 = por %p228, %p229
    %p232 = scmp.ne.s32.totalorder %s217, %s231
    %p233 = scmp.eq.s32.totalorder %s34, 0
    %p234 = por %p232, %p233
    %s236 = sadd.s32 %s235, 1
    %p239 = scmp.eq.s32.totalorder %s28, 1
    %p240 = scmp.ne.s32.totalorder %s235, %s237
    %p241 = scmp.eq.s32.totalorder %s28, 0
    %p242 = por %p240, %p241
    %p243 = scmp.ne.s32.totalorder %s235, %s237
    %p244 = scmp.eq.s32.totalorder %s33, 1
    %p245 = por %p243, %p244
    %p246 = scmp.ne.s32.totalorder %s237, %s238
    %p247 = scmp.eq.s32.totalorder %s33, 0
    %p248 = por %p246, %p247
    %p249 = scmp.ne.s32.totalorder %s237, %s238
    %p250 = scmp.eq.s32.totalorder %s34, 1
    %p251 = por %p249, %p250
    %p253 = scmp.ne.s32.totalorder %s238, %s252
    %p254 = scmp.eq.s32.totalorder %s34, 0
    %p255 = por %p253, %p254
    %s257 = sadd.s32 %s256, 1
    %p260 = scmp.eq.s32.totalorder %s28, 1
    %p261 = scmp.ne.s32.totalorder %s256, %s258
    %p262 = scmp.eq.s32.totalorder %s28, 0
    %p263 = por %p261, %p262
    %p264 = scmp.ne.s32.totalorder %s256, %s258
    %p265 = scmp.eq.s32.totalorder %s33, 1
    %p266 = por %p264, %p265
    %p267 = scmp.ne.s32.totalorder %s258, %s259
    %p268 = scmp.eq.s32.totalorder %s33, 0
    %p269 = por %p267, %p268
    %p270 = scmp.ne.s32.totalorder %s258, %s259
    %p271 = scmp.eq.s32.totalorder %s34, 1
    %p272 = por %p270, %p271
    %p274 = scmp.ne.s32.totalorder %s259, %s273
    %p275 = scmp.eq.s32.totalorder %s34, 0
    %p276 = por %p274, %p275
    %s278 = sadd.s32 %s277, 1
    %p281 = scmp.eq.s32.totalorder %s28, 1
    %p282 = scmp.ne.s32.totalorder %s277, %s279
    %p283 = scmp.eq.s32.totalorder %s28, 0
    %p284 = por %p282, %p283
    %p285 = scmp.ne.s32.totalorder %s277, %s279
    %p286 = scmp.eq.s32.totalorder %s33, 1
    %p287 = por %p285, %p286
    %p288 = scmp.ne.s32.totalorder %s279, %s280
    %p289 = scmp.eq.s32.totalorder %s33, 0
    %p290 = por %p288, %p289
    %p291 = scmp.ne.s32.totalorder %s279, %s280
    %p292 = scmp.eq.s32.totalorder %s34, 1
    %p293 = por %p291, %p292
    %p295 = scmp.ne.s32.totalorder %s280, %s294
    %p296 = scmp.eq.s32.totalorder %s34, 0
    %p297 = por %p295, %p296
    %s299 = sadd.s32 %s298, 1
    %p302 = scmp.eq.s32.totalorder %s28, 1
    %p303 = scmp.ne.s32.totalorder %s298, %s300
    %p304 = scmp.eq.s32.totalorder %s28, 0
    %p305 = por %p303, %p304
    %p306 = scmp.ne.s32.totalorder %s298, %s300
    %p307 = scmp.eq.s32.totalorder %s33, 1
    %p308 = por %p306, %p307
    %p309 = scmp.ne.s32.totalorder %s300, %s301
    %p310 = scmp.eq.s32.totalorder %s33, 0
    %p311 = por %p309, %p310
    %p312 = scmp.ne.s32.totalorder %s300, %s301
    %p313 = scmp.eq.s32.totalorder %s34, 1
    %p314 = por %p312, %p313
    %p316 = scmp.ne.s32.totalorder %s301, %s315
    %p317 = scmp.eq.s32.totalorder %s34, 0
    %p318 = por %p316, %p317
    %s320 = sadd.s32 %s319, 1
    %p323 = scmp.eq.s32.totalorder %s28, 1
    %p324 = scmp.ne.s32.totalorder %s319, %s321
    %p325 = scmp.eq.s32.totalorder %s28, 0
    %p326 = por %p324, %p325
    %p327 = scmp.ne.s32.totalorder %s319, %s321
    %p328 = scmp.eq.s32.totalorder %s33, 1
    %p329 = por %p327, %p328
    %p330 = scmp.ne.s32.totalorder %s321, %s322
    %p331 = scmp.eq.s32.totalorder %s33, 0
    %p332 = por %p330, %p331
    %p333 = scmp.ne.s32.totalorder %s321, %s322
    %p334 = scmp.eq.s32.totalorder %s34, 1
    %p335 = por %p333, %p334
    %p337 = scmp.ne.s32.totalorder %s322, %s336
    %p338 = scmp.eq.s32.totalorder %s34, 0
    %p339 = por %p337, %p338
    %s341 = sadd.s32 %s340, 1
    %p344 = scmp.eq.s32.totalorder %s28, 1
    %p345 = scmp.ne.s32.totalorder %s340, %s342
    %p346 = scmp.eq.s32.totalorder %s28, 0
    %p347 = por %p345, %p346
    %p348 = scmp.ne.s32.totalorder %s340, %s342
    %p349 = scmp.eq.s32.totalorder %s33, 1
    %p350 = por %p348, %p349
    %p351 = scmp.ne.s32.totalorder %s342, %s343
    %p352 = scmp.eq.s32.totalorder %s33, 0
    %p353 = por %p351, %p352
    %p354 = scmp.ne.s32.totalorder %s342, %s343
    %p355 = scmp.eq.s32.totalorder %s34, 1
    %p356 = por %p354, %p355
    %p358 = scmp.ne.s32.totalorder %s343, %s357
    %p359 = scmp.eq.s32.totalorder %s34, 0
    %p360 = por %p358, %p359
    %s362 = sadd.s32 %s361, 1
    %p365 = scmp.eq.s32.totalorder %s28, 1
    %p366 = scmp.ne.s32.totalorder %s361, %s363
    %p367 = scmp.eq.s32.totalorder %s28, 0
    %p368 = por %p366, %p367
    %p369 = scmp.ne.s32.totalorder %s361, %s363
    %p370 = scmp.eq.s32.totalorder %s33, 1
    %p371 = por %p369, %p370
    %p372 = scmp.ne.s32.totalorder %s363, %s364
    %p373 = scmp.eq.s32.totalorder %s33, 0
    %p374 = por %p372, %p373
    %p375 = scmp.ne.s32.totalorder %s363, %s364
    %p376 = scmp.eq.s32.totalorder %s34, 1
    %p377 = por %p375, %p376
    %p379 = scmp.ne.s32.totalorder %s364, %s378
    %p380 = scmp.eq.s32.totalorder %s34, 0
    %p381 = por %p379, %p380
    %s383 = sadd.s32 %s382, 1
    %p386 = scmp.eq.s32.totalorder %s28, 1
    %p387 = scmp.ne.s32.totalorder %s382, %s384
    %p388 = scmp.eq.s32.totalorder %s28, 0
    %p389 = por %p387, %p388
    %p390 = scmp.ne.s32.totalorder %s382, %s384
    %p391 = scmp.eq.s32.totalorder %s33, 1
    %p392 = por %p390, %p391
    %p393 = scmp.ne.s32.totalorder %s384, %s385
    %p394 = scmp.eq.s32.totalorder %s33, 0
    %p395 = por %p393, %p394
    %p396 = scmp.ne.s32.totalorder %s384, %s385
    %p397 = scmp.eq.s32.totalorder %s34, 1
    %p398 = por %p396, %p397
    %p400 = scmp.ne.s32.totalorder %s385, %s399
    %p401 = scmp.eq.s32.totalorder %s34, 0
    %p402 = por %p400, %p401
    %s404 = sadd.s32 %s403, 1
    %p407 = scmp.eq.s32.totalorder %s28, 1
    %p408 = scmp.ne.s32.totalorder %s403, %s405
    %p409 = scmp.eq.s32.totalorder %s28, 0
    %p410 = por %p408, %p409
    %p411 = scmp.ne.s32.totalorder %s403, %s405
    %p412 = scmp.eq.s32.totalorder %s33, 1
    %p413 = por %p411, %p412
    %p414 = scmp.ne.s32.totalorder %s405, %s406
    %p415 = scmp.eq.s32.totalorder %s33, 0
    %p416 = por %p414, %p415
    %p417 = scmp.ne.s32.totalorder %s405, %s406
    %p418 = scmp.eq.s32.totalorder %s34, 1
    %p419 = por %p417, %p418
    %p421 = scmp.ne.s32.totalorder %s406, %s420
    %p422 = scmp.eq.s32.totalorder %s34, 0
    %p423 = por %p421, %p422
    %s425 = sadd.s32 %s424, 1
    %p428 = scmp.eq.s32.totalorder %s28, 1
    %p429 = scmp.ne.s32.totalorder %s424, %s426
    %p430 = scmp.eq.s32.totalorder %s28, 0
    %p431 = por %p429, %p430
    %p432 = scmp.ne.s32.totalorder %s424, %s426
    %p433 = scmp.eq.s32.totalorder %s33, 1
    %p434 = por %p432, %p433
    %p435 = scmp.ne.s32.totalorder %s426, %s427
    %p436 = scmp.eq.s32.totalorder %s33, 0
    %p437 = por %p435, %p436
    %p438 = scmp.ne.s32.totalorder %s426, %s427
    %p439 = scmp.eq.s32.totalorder %s34, 1
    %p440 = por %p438, %p439
    %p442 = scmp.ne.s32.totalorder %s427, %s441
    %p443 = scmp.eq.s32.totalorder %s34, 0
    %p444 = por %p442, %p443
    %s446 = sadd.s32 %s445, 1
    %p449 = scmp.eq.s32.totalorder %s28, 1
    %p450 = scmp.ne.s32.totalorder %s445, %s447
    %p451 = scmp.eq.s32.totalorder %s28, 0
    %p452 = por %p450, %p451
    %p453 = scmp.ne.s32.totalorder %s445, %s447
    %p454 = scmp.eq.s32.totalorder %s33, 1
    %p455 = por %p453, %p454
    %p456 = scmp.ne.s32.totalorder %s447, %s448
    %p457 = scmp.eq.s32.totalorder %s33, 0
    %p458 = por %p456, %p457
    %p459 = scmp.ne.s32.totalorder %s447, %s448
    %p460 = scmp.eq.s32.totalorder %s34, 1
    %p461 = por %p459, %p460
    %p463 = scmp.ne.s32.totalorder %s448, %s462
    %p464 = scmp.eq.s32.totalorder %s34, 0
    %p465 = por %p463, %p464
    %s467 = sadd.s32 %s466, 1
    %p470 = scmp.eq.s32.totalorder %s28, 1
    %p471 = scmp.ne.s32.totalorder %s466, %s468
    %p472 = scmp.eq.s32.totalorder %s28, 0
    %p473 = por %p471, %p472
    %p474 = scmp.ne.s32.totalorder %s466, %s468
    %p475 = scmp.eq.s32.totalorder %s33, 1
    %p476 = por %p474, %p475
    %p477 = scmp.ne.s32.totalorder %s468, %s469
    %p478 = scmp.eq.s32.totalorder %s33, 0
    %p479 = por %p477, %p478
    %p480 = scmp.ne.s32.totalorder %s468, %s469
    %p481 = scmp.eq.s32.totalorder %s34, 1
    %p482 = por %p480, %p481
    %p484 = scmp.ne.s32.totalorder %s469, %s483
    %p485 = scmp.eq.s32.totalorder %s34, 0
    %p486 = por %p484, %p485
    %s488 = sadd.s32 %s487, 1
    %p491 = scmp.eq.s32.totalorder %s28, 1
    %p492 = scmp.ne.s32.totalorder %s487, %s489
    %p493 = scmp.eq.s32.totalorder %s28, 0
    %p494 = por %p492, %p493
    %p495 = scmp.ne.s32.totalorder %s487, %s489
    %p496 = scmp.eq.s32.totalorder %s33, 1
    %p497 = por %p495, %p496
    %p498 = scmp.ne.s32.totalorder %s489, %s490
    %p499 = scmp.eq.s32.totalorder %s33, 0
    %p500 = por %p498, %p499
    %p501 = scmp.ne.s32.totalorder %s489, %s490
    %p502 = scmp.eq.s32.totalorder %s34, 1
    %p503 = por %p501, %p502
    %p505 = scmp.ne.s32.totalorder %s490, %s504
    %p506 = scmp.eq.s32.totalorder %s34, 0
    %p507 = por %p505, %p506
    %s508 = ssub.s32 %s28, %s35
    %p509 = scmp.eq.s32.totalorder %s508, 0
    %s511 = sadd.s32 %s510, 1
    %s512 = scalar_select %p509, %s510, %s511
    %p515 = pneg %p509
    %p516 = scmp.eq.s32.totalorder %s28, 1
    %p517 = por %p515, %p516
    %p518 = scmp.ne.s32.totalorder %s510, %s513
    %p519 = scmp.eq.s32.totalorder %s28, 0
    %p520 = por %p518, %p519
    %p521 = scmp.ne.s32.totalorder %s510, %s513
    %p522 = scmp.eq.s32.totalorder %s33, 1
    %p523 = por %p521, %p522
    %p524 = scmp.ne.s32.totalorder %s513, %s514
    %p525 = scmp.eq.s32.totalorder %s33, 0
    %p526 = por %p524, %p525
    %p527 = scmp.ne.s32.totalorder %s513, %s514
    %p528 = scmp.eq.s32.totalorder %s34, 1
    %p529 = por %p527, %p528
    %p531 = scmp.ne.s32.totalorder %s514, %s530
    %p532 = scmp.eq.s32.totalorder %s34, 0
    %p533 = por %p531, %p532
    %p534 = scmp.le.s32.totalorder 1, %s28
    %p535 = scmp.lt.s32.totalorder %s28, 3
    %p536 = pnand %p534, %p535
    %p537 = pneg %p536
    // Predicated region
    $region9: #{transformer_forward.7} parent=5 // pred_check
      _
    $region10: #{transformer_forward.7} parent=5 // pred_check_branch
      %539 = sbr.rel (%p536) target = $region12
    $region11: #{transformer_forward.7} parent=5 // pred_region
      %s540 = ssub.s32 %s28, 1
      // Predicated region
      $region13: #{transformer_forward.7} parent=11 // pred_check
        %p541 = pneg %p101
      $region14: #{transformer_forward.7} parent=11 // pred_check_branch
        %543 = sbr.rel (%p541) target = $region16
      $region15: #{transformer_forward.7} parent=11 // pred_region
        _
      $region16: #{transformer_forward.7} parent=11 // pred_fallthru
        _
      // Predicated region
      $region17: #{transformer_forward.7} parent=11 // pred_check
        %p544 = pneg %p122
      $region18: #{transformer_forward.7} parent=11 // pred_check_branch
        %546 = sbr.rel (%p544) target = $region20
      $region19: #{transformer_forward.7} parent=11 // pred_region
        _
      $region20: #{transformer_forward.7} parent=11 // pred_fallthru
        _
      // Predicated region
      $region21: #{transformer_forward.7} parent=11 // pred_check
        %p547 = pneg %p143
      $region22: #{transformer_forward.7} parent=11 // pred_check_branch
        %549 = sbr.rel (%p547) target = $region24
      $region23: #{transformer_forward.7} parent=11 // pred_region
        _
      $region24: #{transformer_forward.7} parent=11 // pred_fallthru
        _
      // Predicated region
      $region25: #{transformer_forward.7} parent=11 // pred_check
        %p550 = pneg %p164
      $region26: #{transformer_forward.7} parent=11 // pred_check_branch
        %552 = sbr.rel (%p550) target = $region28
      $region27: #{transformer_forward.7} parent=11 // pred_region
        _
      $region28: #{transformer_forward.7} parent=11 // pred_fallthru
        _
      // Predicated region
      $region29: #{transformer_forward.7} parent=11 // pred_check
        %p553 = pneg %p185
      $region30: #{transformer_forward.7} parent=11 // pred_check_branch
        %555 = sbr.rel (%p553) target = $region32
      $region31: #{transformer_forward.7} parent=11 // pred_region
        _
      $region32: #{transformer_forward.7} parent=11 // pred_fallthru
        _
      // Predicated region
      $region33: #{transformer_forward.7} parent=11 // pred_check
        %p556 = pneg %p206
      $region34: #{transformer_forward.7} parent=11 // pred_check_branch
        %558 = sbr.rel (%p556) target = $region36
      $region35: #{transformer_forward.7} parent=11 // pred_region
        _
      $region36: #{transformer_forward.7} parent=11 // pred_fallthru
        _
      // Predicated region
      $region37: #{transformer_forward.7} parent=11 // pred_check
        %p559 = pneg %p227
      $region38: #{transformer_forward.7} parent=11 // pred_check_branch
        %561 = sbr.rel (%p559) target = $region40
      $region39: #{transformer_forward.7} parent=11 // pred_region
        _
      $region40: #{transformer_forward.7} parent=11 // pred_fallthru
        _
      // Predicated region
      $region41: #{transformer_forward.7} parent=11 // pred_check
        %p562 = pneg %p248
      $region42: #{transformer_forward.7} parent=11 // pred_check_branch
        %564 = sbr.rel (%p562) target = $region44
      $region43: #{transformer_forward.7} parent=11 // pred_region
        _
      $region44: #{transformer_forward.7} parent=11 // pred_fallthru
        _
      // Predicated region
      $region45: #{transformer_forward.7} parent=11 // pred_check
        %p565 = pneg %p269
      $region46: #{transformer_forward.7} parent=11 // pred_check_branch
        %567 = sbr.rel (%p565) target = $region48
      $region47: #{transformer_forward.7} parent=11 // pred_region
        _
      $region48: #{transformer_forward.7} parent=11 // pred_fallthru
        _
      // Predicated region
      $region49: #{transformer_forward.7} parent=11 // pred_check
        %p568 = pneg %p290
      $region50: #{transformer_forward.7} parent=11 // pred_check_branch
        %570 = sbr.rel (%p568) target = $region52
      $region51: #{transformer_forward.7} parent=11 // pred_region
        _
      $region52: #{transformer_forward.7} parent=11 // pred_fallthru
        _
      // Predicated region
      $region53: #{transformer_forward.7} parent=11 // pred_check
        %p571 = pneg %p311
      $region54: #{transformer_forward.7} parent=11 // pred_check_branch
        %573 = sbr.rel (%p571) target = $region56
      $region55: #{transformer_forward.7} parent=11 // pred_region
        _
      $region56: #{transformer_forward.7} parent=11 // pred_fallthru
        _
      // Predicated region
      $region57: #{transformer_forward.7} parent=11 // pred_check
        %p574 = pneg %p332
      $region58: #{transformer_forward.7} parent=11 // pred_check_branch
        %576 = sbr.rel (%p574) target = $region60
      $region59: #{transformer_forward.7} parent=11 // pred_region
        _
      $region60: #{transformer_forward.7} parent=11 // pred_fallthru
        _
      // Predicated region
      $region61: #{transformer_forward.7} parent=11 // pred_check
        %p577 = pneg %p353
      $region62: #{transformer_forward.7} parent=11 // pred_check_branch
        %579 = sbr.rel (%p577) target = $region64
      $region63: #{transformer_forward.7} parent=11 // pred_region
        _
      $region64: #{transformer_forward.7} parent=11 // pred_fallthru
        _
      // Predicated region
      $region65: #{transformer_forward.7} parent=11 // pred_check
        %p580 = pneg %p374
      $region66: #{transformer_forward.7} parent=11 // pred_check_branch
        %582 = sbr.rel (%p580) target = $region68
      $region67: #{transformer_forward.7} parent=11 // pred_region
        _
      $region68: #{transformer_forward.7} parent=11 // pred_fallthru
        _
      // Predicated region
      $region69: #{transformer_forward.7} parent=11 // pred_check
        %p583 = pneg %p395
      $region70: #{transformer_forward.7} parent=11 // pred_check_branch
        %585 = sbr.rel (%p583) target = $region72
      $region71: #{transformer_forward.7} parent=11 // pred_region
        _
      $region72: #{transformer_forward.7} parent=11 // pred_fallthru
        _
      // Predicated region
      $region73: #{transformer_forward.7} parent=11 // pred_check
        %p586 = pneg %p416
      $region74: #{transformer_forward.7} parent=11 // pred_check_branch
        %588 = sbr.rel (%p586) target = $region76
      $region75: #{transformer_forward.7} parent=11 // pred_region
        _
      $region76: #{transformer_forward.7} parent=11 // pred_fallthru
        _
      // Predicated region
      $region77: #{transformer_forward.7} parent=11 // pred_check
        %p589 = pneg %p437
      $region78: #{transformer_forward.7} parent=11 // pred_check_branch
        %591 = sbr.rel (%p589) target = $region80
      $region79: #{transformer_forward.7} parent=11 // pred_region
        _
      $region80: #{transformer_forward.7} parent=11 // pred_fallthru
        _
      // Predicated region
      $region81: #{transformer_forward.7} parent=11 // pred_check
        %p592 = pneg %p458
      $region82: #{transformer_forward.7} parent=11 // pred_check_branch
        %594 = sbr.rel (%p592) target = $region84
      $region83: #{transformer_forward.7} parent=11 // pred_region
        _
      $region84: #{transformer_forward.7} parent=11 // pred_fallthru
        _
      // Predicated region
      $region85: #{transformer_forward.7} parent=11 // pred_check
        %p595 = pneg %p479
      $region86: #{transformer_forward.7} parent=11 // pred_check_branch
        %597 = sbr.rel (%p595) target = $region88
      $region87: #{transformer_forward.7} parent=11 // pred_region
        _
      $region88: #{transformer_forward.7} parent=11 // pred_fallthru
        _
      // Predicated region
      $region89: #{transformer_forward.7} parent=11 // pred_check
        %p598 = pneg %p500
      $region90: #{transformer_forward.7} parent=11 // pred_check_branch
        %600 = sbr.rel (%p598) target = $region92
      $region91: #{transformer_forward.7} parent=11 // pred_region
        _
      $region92: #{transformer_forward.7} parent=11 // pred_fallthru
        _
    $region12: #{transformer_forward.7} parent=5 // pred_fallthru
      _
    %p601 = scmp.lt.s32.totalorder %s28, 2
    // Predicated region
    $region93: #{transformer_forward.7} parent=5 // pred_check
      %p602 = pneg %p601
    $region94: #{transformer_forward.7} parent=5 // pred_check_branch
      %604 = sbr.rel (%p602) target = $region96
    $region95: #{transformer_forward.7} parent=5 // pred_region
      // Predicated region
      $region97: #{transformer_forward.7} parent=95 // pred_check
        %p605 = pneg %p48
      $region98: #{transformer_forward.7} parent=95 // pred_check_branch
        %607 = sbr.rel (%p605) target = $region100
      $region99: #{transformer_forward.7} parent=95 // pred_region
        %p608 = scmp.lt.s32.totalorder %s28, 1
        %s609 = scalar_select %p608, %s28, 1
        %s610 = smul.addr %s609, 8
        %s611 = scalar_lea.vmem %s0, %s610
      $region100: #{transformer_forward.7} parent=95 // pred_fallthru
        _
      // Predicated region
      $region101: #{transformer_forward.7} parent=95 // pred_check
        %p612 = pneg %p74
      $region102: #{transformer_forward.7} parent=95 // pred_check_branch
        %614 = sbr.rel (%p612) target = $region104
      $region103: #{transformer_forward.7} parent=95 // pred_region
        %p615 = scmp.lt.s32.totalorder %s28, 1
        %s616 = scalar_select %p615, %s28, 1
        %s617 = smul.addr %s616, 8
        %s618 = scalar_lea.vmem %s1, %s617
      $region104: #{transformer_forward.7} parent=95 // pred_fallthru
        _
    $region96: #{transformer_forward.7} parent=5 // pred_fallthru
      _
    %p619 = scmp.le.s32.totalorder 1, %s28
    %p620 = scmp.lt.s32.totalorder %s28, 3
    %p621 = pnand %p619, %p620
    %p622 = pneg %p621
    // Predicated region
    $region105: #{transformer_forward.7} parent=5 // pred_check
      _
    $region106: #{transformer_forward.7} parent=5 // pred_check_branch
      %624 = sbr.rel (%p621) target = $region108
    $region107: #{transformer_forward.7} parent=5 // pred_region
      %s625 = ssub.s32 %s28, 1
      %p626 = scmp.lt.s32.totalorder %s33, 1
      %s627 = scalar_select %p626, %s33, 1
      %s628 = smul.addr %s627, 8
      %s629 = scalar_lea.vmem %s0, %s628
      %p630 = pneg %p54
      %p631 = pneg %p51
      %p632 = scmp.lt.s32.totalorder %s33, 1
      %s633 = scalar_select %p632, %s33, 1
      %s634 = smul.addr %s633, 8
      %s635 = scalar_lea.vmem %s1, %s634
      %p636 = pneg %p80
      %p637 = pneg %p77
      %p638 = pneg %p101
      %p639 = pneg %p98
      %p640 = pneg %p122
      %p641 = pneg %p119
      %p642 = pneg %p143
      %p643 = pneg %p140
      %p644 = pneg %p164
      %p645 = pneg %p161
      %p646 = pneg %p185
      %p647 = pneg %p182
      %p648 = pneg %p206
      %p649 = pneg %p203
      %p650 = pneg %p227
      %p651 = pneg %p224
      %p652 = pneg %p248
      %p653 = pneg %p245
      %p654 = pneg %p269
      %p655 = pneg %p266
      %p656 = pneg %p290
      %p657 = pneg %p287
      %p658 = pneg %p311
      %p659 = pneg %p308
      %p660 = pneg %p332
      %p661 = pneg %p329
      %p662 = pneg %p353
      %p663 = pneg %p350
      %p664 = pneg %p374
      %p665 = pneg %p371
      %p666 = pneg %p395
      %p667 = pneg %p392
      %p668 = pneg %p416
      %p669 = pneg %p413
      %p670 = pneg %p437
      %p671 = pneg %p434
      %p672 = pneg %p458
      %p673 = pneg %p455
      %p674 = pneg %p479
      %p675 = pneg %p476
      %p676 = pneg %p500
      %p677 = pneg %p497
      %p678 = pneg %p526
      %p679 = pneg %p523
      %p680 = scmp.lt.s32.totalorder %s33, 1
      %s681 = scalar_select %p680, %s33, 1
      %s682 = smul.addr %s681, 8
      %s683 = scalar_lea.vmem %s22, %s682
      %p684 = scmp.lt.s32.totalorder %s33, 1
      %s685 = scalar_select %p684, %s33, 1
      %s686 = smul.addr %s685, 8
      %s687 = scalar_lea.vmem %s0, %s686
      %p688 = scmp.lt.s32.totalorder %s33, 1
      %s689 = scalar_select %p688, %s33, 1
      %s690 = smul.addr %s689, 8
      %s691 = scalar_lea.vmem %s1, %s690
      %p692 = scmp.lt.s32.totalorder %s33, 1
      %s693 = scalar_select %p692, %s33, 1
      %s694 = smul.addr %s693, 8
      %s695 = scalar_lea.vmem %s22, %s694
      %v697 = vld [vmem:[%s687] sm:$0xff]
      %v698 = vld [vmem:[%s691] sm:$0xff]
      %v699 = vpack.c.bf16 %v697, %v697
      %v700 = vld [vmem:[%s2] sm:$0xf]
      %v701 = vld [vmem:[%s2 + $0x4] sm:$0xf]
      %v702 = vld [vmem:[%s2 + $0x8] sm:$0xf]
      %v703 = vld [vmem:[%s2 + $0xc] sm:$0xf]
      %v704 = vld [vmem:[%s3] sm:$0x1]
      %v706 = vlaneseq
      %v707 = vshrl.u32 %v706, 7
      %v708 = vsub.s32 0, %v707
      %v709 = vrot.slane %v704, %v708
      %v715 = vunpack.c.l.b16 %v700
      %v716 = vunpack.c.l.b16 %v701
      %v717 = vunpack.c.l.b16 %v702
      %v718 = vunpack.c.l.b16 %v703
      %v719 = vpack.c.b16 %v716, %v715
      %v720 = vpack.c.b16 %v718, %v717
      %vm723 = vcmask 261120
      %v725 = vsel %vm723, %v699, 0
      %727 = vmatprep.subr.bf16.mxu0 0
      %728 = vmatpush1.bf16.msra.mxu0 %v719
      %729 = vmatprep.subr.bf16.mxu0 0
      %730 = vmatpush1.bf16.msra.mxu0 %v720
      %731 = vmatprep.subr.bf16.mxu0 0
      %732 = vmatpush1.bf16.msra.mxu0 0
      %733 = vmatprep.subr.bf16.mxu0 0
      %734 = vmatpush1.bf16.msra.mxu0 0
      %735 = vmatprep.subr.bf16.mxu0 0
      %736 = vmatpush1.bf16.msra.mxu0 0
      %737 = vmatprep.subr.bf16.mxu0 0
      %738 = vmatpush1.bf16.msra.mxu0 0
      %739 = vmatprep.subr.bf16.mxu0 0
      %740 = vmatpush1.bf16.msra.mxu0 0
      %741 = vmatprep.subr.bf16.mxu0 0
      %742 = vmatpush1.bf16.msra.mxu0 0
      %743 = vmatprep.subr.bf16.mxu0 0
      %744 = vmatpush1.bf16.msra.mxu0 0
      %745 = vmatprep.subr.bf16.mxu0 0
      %746 = vmatpush1.bf16.msra.mxu0 0
      %747 = vmatprep.subr.bf16.mxu0 0
      %748 = vmatpush1.bf16.msra.mxu0 0
      %749 = vmatprep.subr.bf16.mxu0 0
      %750 = vmatpush1.bf16.msra.mxu0 0
      %751 = vmatprep.subr.bf16.mxu0 0
      %752 = vmatpush1.bf16.msra.mxu0 0
      %753 = vmatprep.subr.bf16.mxu0 0
      %754 = vmatpush1.bf16.msra.mxu0 0
      %755 = vmatprep.subr.bf16.mxu0 0
      %756 = vmatpush1.bf16.msra.mxu0 0
      %757 = vmatprep.subr.bf16.mxu0 0
      %758 = vmatpush1.bf16.msra.mxu0 0
      %759 = vmatprep.mubr.bf16.mxu0 0
      %760 = vmatmul.mubr.bf16.gmra.mrb[0].mxu0 %v725
      %v761 = vpop.f32.mrb[0].mxu0
      %v762 = vadd.f32 %v709, %v761
      %v763 = vpop.f32.mrb[0].mxu0
      %v764 = vpop.f32.mrb[0].mxu0
      %v765 = vpop.f32.mrb[0].mxu0
      %766 = vdwg.mxu0
      %v767 = vld [vmem:[%s4] sm:$0xf]
      %v768 = vld [vmem:[%s4 + $0x4] sm:$0xf]
      %v769 = vld [vmem:[%s4 + $0x8] sm:$0xf]
      %v770 = vld [vmem:[%s4 + $0xc] sm:$0xf]
      %v771 = vld [vmem:[%s5] sm:$0x1]
      %v772 = vmul.f32 %v762, 0.35355338
      %v773 = vpack.c.bf16 %v772, %v772
      %v774 = vpack.c.bf16 %v762, %v762
      %776 = vrot.lane.b32.xlu0 %v774, 96
      %v777 = vpop.permute.xlu0 %776
      %vm778 = vcmask 64512
      %v780 = vsel %vm778, %v773, 0
      %v783 = vsel %vm778, %v777, 0
      %785 = vmatprep.subr.bf16.mxu0 0
      %786 = vmatpush1.bf16.xpose.msra.mxu0 %v783
      %787 = vmatprep.subr.bf16.mxu0 0
      %788 = vmatpush1.bf16.xpose.msra.mxu0 0
      %789 = vmatprep.subr.bf16.mxu0 0
      %790 = vmatpush1.bf16.xpose.msra.mxu0 0
      %791 = vmatprep.subr.bf16.mxu0 0
      %792 = vmatpush1.bf16.xpose.msra.mxu0 0
      %793 = vmatprep.subr.bf16.mxu0 0
      %794 = vmatpush1.bf16.xpose.msra.mxu0 0
      %795 = vmatprep.subr.bf16.mxu0 0
      %796 = vmatpush1.bf16.xpose.msra.mxu0 0
      %797 = vmatprep.subr.bf16.mxu0 0
      %798 = vmatpush1.bf16.xpose.msra.mxu0 0
      %799 = vmatprep.subr.bf16.mxu0 0
      %800 = vmatpush1.bf16.xpose.msra.mxu0 0
      %801 = vmatprep.subr.bf16.mxu0 0
      %802 = vmatpush1.bf16.xpose.msra.mxu0 0
      %803 = vmatprep.subr.bf16.mxu0 0
      %804 = vmatpush1.bf16.xpose.msra.mxu0 0
      %805 = vmatprep.subr.bf16.mxu0 0
      %806 = vmatpush1.bf16.xpose.msra.mxu0 0
      %807 = vmatprep.subr.bf16.mxu0 0
      %808 = vmatpush1.bf16.xpose.msra.mxu0 0
      %809 = vmatprep.subr.bf16.mxu0 0
      %810 = vmatpush1.bf16.xpose.msra.mxu0 0
      %811 = vmatprep.subr.bf16.mxu0 0
      %812 = vmatpush1.bf16.xpose.msra.mxu0 0
      %813 = vmatprep.subr.bf16.mxu0 0
      %814 = vmatpush1.bf16.xpose.msra.mxu0 0
      %815 = vmatprep.subr.bf16.mxu0 0
      %816 = vmatpush1.bf16.xpose.msra.mxu0 0
      %817 = vmatprep.mubr.bf16.mxu0 0
      %818 = vmatmul.mubr.bf16.gmra.mrb[0].mxu0 %v780
      %v819 = vpop.f32.mrb[0].mxu0
      %v820 = vadd.f32 0.0, %v819
      %v821 = vpop.f32.mrb[0].mxu0
      %v822 = vpop.f32.mrb[0].mxu0
      %v823 = vpop.f32.mrb[0].mxu0
      %824 = vdwg.mxu0
      %826 = vrot.lane.b32.xlu0 %v773, 120
      %v827 = vpop.permute.xlu0 %826
      %828 = vrot.lane.b32.xlu0 %v774, 88
      %v829 = vpop.permute.xlu0 %828
      %v831 = vsel %vm778, %v827, 0
      %v834 = vsel %vm778, %v829, 0
      %836 = vmatprep.subr.bf16.mxu0 0
      %837 = vmatpush1.bf16.xpose.msra.mxu0 %v834
      %838 = vmatprep.subr.bf16.mxu0 0
      %839 = vmatpush1.bf16.xpose.msra.mxu0 0
      %840 = vmatprep.subr.bf16.mxu0 0
      %841 = vmatpush1.bf16.xpose.msra.mxu0 0
      %842 = vmatprep.subr.bf16.mxu0 0
      %843 = vmatpush1.bf16.xpose.msra.mxu0 0
      %844 = vmatprep.subr.bf16.mxu0 0
      %845 = vmatpush1.bf16.xpose.msra.mxu0 0
      %846 = vmatprep.subr.bf16.mxu0 0
      %847 = vmatpush1.bf16.xpose.msra.mxu0 0
      %848 = vmatprep.subr.bf16.mxu0 0
      %849 = vmatpush1.bf16.xpose.msra.mxu0 0
      %850 = vmatprep.subr.bf16.mxu0 0
      %851 = vmatpush1.bf16.xpose.msra.mxu0 0
      %852 = vmatprep.subr.bf16.mxu0 0
      %853 = vmatpush1.bf16.xpose.msra.mxu0 0
      %854 = vmatprep.subr.bf16.mxu0 0
      %855 = vmatpush1.bf16.xpose.msra.mxu0 0
      %856 = vmatprep.subr.bf16.mxu0 0
      %857 = vmatpush1.bf16.xpose.msra.mxu0 0
      %858 = vmatprep.subr.bf16.mxu0 0
      %859 = vmatpush1.bf16.xpose.msra.mxu0 0
      %860 = vmatprep.subr.bf16.mxu0 0
      %861 = vmatpush1.bf16.xpose.msra.mxu0 0
      %862 = vmatprep.subr.bf16.mxu0 0
      %863 = vmatpush1.bf16.xpose.msra.mxu0 0
      %864 = vmatprep.subr.bf16.mxu0 0
      %865 = vmatpush1.bf16.xpose.msra.mxu0 0
      %866 = vmatprep.subr.bf16.mxu0 0
      %867 = vmatpush1.bf16.xpose.msra.mxu0 0
      %868 = vmatprep.mubr.bf16.mxu0 0
      %869 = vmatmul.mubr.bf16.gmra.mrb[0].mxu0 %v831
      %v870 = vpop.f32.mrb[0].mxu0
      %v871 = vadd.f32 0.0, %v870
      %v872 = vpop.f32.mrb[0].mxu0
      %v873 = vpop.f32.mrb[0].mxu0
      %v874 = vpop.f32.mrb[0].mxu0
      %875 = vdwg.mxu0
      %876 = vrot.lane.b32.xlu0 %v773, 112
      %v877 = vpop.permute.xlu0 %876
      %878 = vrot.lane.b32.xlu0 %v774, 80
      %v879 = vpop.permute.xlu0 %878
      %v881 = vsel %vm778, %v877, 0
      %v884 = vsel %vm778, %v879, 0
      %886 = vmatprep.subr.bf16.mxu0 0
      %887 = vmatpush1.bf16.xpose.msra.mxu0 %v884
      %888 = vmatprep.subr.bf16.mxu0 0
      %889 = vmatpush1.bf16.xpose.msra.mxu0 0
      %890 = vmatprep.subr.bf16.mxu0 0
      %891 = vmatpush1.bf16.xpose.msra.mxu0 0
      %892 = vmatprep.subr.bf16.mxu0 0
      %893 = vmatpush1.bf16.xpose.msra.mxu0 0
      %894 = vmatprep.subr.bf16.mxu0 0
      %895 = vmatpush1.bf16.xpose.msra.mxu0 0
      %896 = vmatprep.subr.bf16.mxu0 0
      %897 = vmatpush1.bf16.xpose.msra.mxu0 0
      %898 = vmatprep.subr.bf16.mxu0 0
      %899 = vmatpush1.bf16.xpose.msra.mxu0 0
      %900 = vmatprep.subr.bf16.mxu0 0
      %901 = vmatpush1.bf16.xpose.msra.mxu0 0
      %902 = vmatprep.subr.bf16.mxu0 0
      %903 = vmatpush1.bf16.xpose.msra.mxu0 0
      %904 = vmatprep.subr.bf16.mxu0 0
      %905 = vmatpush1.bf16.xpose.msra.mxu0 0
      %906 = vmatprep.subr.bf16.mxu0 0
      %907 = vmatpush1.bf16.xpose.msra.mxu0 0
      %908 = vmatprep.subr.bf16.mxu0 0
      %909 = vmatpush1.bf16.xpose.msra.mxu0 0
      %910 = vmatprep.subr.bf16.mxu0 0
      %911 = vmatpush1.bf16.xpose.msra.mxu0 0
      %912 = vmatprep.subr.bf16.mxu0 0
      %913 = vmatpush1.bf16.xpose.msra.mxu0 0
      %914 = vmatprep.subr.bf16.mxu0 0
      %915 = vmatpush1.bf16.xpose.msra.mxu0 0
      %916 = vmatprep.subr.bf16.mxu0 0
      %917 = vmatpush1.bf16.xpose.msra.mxu0 0
      %918 = vmatprep.mubr.bf16.mxu0 0
      %919 = vmatmul.mubr.bf16.gmra.mrb[0].mxu0 %v881
      %v920 = vpop.f32.mrb[0].mxu0
      %v921 = vadd.f32 0.0, %v920
      %v922 = vpop.f32.mrb[0].mxu0
      %v923 = vpop.f32.mrb[0].mxu0
      %v924 = vpop.f32.mrb[0].mxu0
      %925 = vdwg.mxu0
      %926 = vrot.lane.b32.xlu0 %v773, 104
      %v927 = vpop.permute.xlu0 %926
      %928 = vrot.lane.b32.xlu0 %v774, 72
      %v929 = vpop.permute.xlu0 %928
      %v931 = vsel %vm778, %v927, 0
      %v934 = vsel %vm778, %v929, 0
      %936 = vmatprep.subr.bf16.mxu0 0
      %937 = vmatpush1.bf16.xpose.msra.mxu0 %v934
      %938 = vmatprep.subr.bf16.mxu0 0
      %939 = vmatpush1.bf16.xpose.msra.mxu0 0
      %940 = vmatprep.subr.bf16.mxu0 0
      %941 = vmatpush1.bf16.xpose.msra.mxu0 0
      %942 = vmatprep.subr.bf16.mxu0 0
      %943 = vmatpush1.bf16.xpose.msra.mxu0 0
      %944 = vmatprep.subr.bf16.mxu0 0
      %945 = vmatpush1.bf16.xpose.msra.mxu0 0
      %946 = vmatprep.subr.bf16.mxu0 0
      %947 = vmatpush1.bf16.xpose.msra.mxu0 0
      %948 = vmatprep.subr.bf16.mxu0 0
      %949 = vmatpush1.bf16.xpose.msra.mxu0 0
      %950 = vmatprep.subr.bf16.mxu0 0
      %951 = vmatpush1.bf16.xpose.msra.mxu0 0
      %952 = vmatprep.subr.bf16.mxu0 0
      %953 = vmatpush1.bf16.xpose.msra.mxu0 0
      %954 = vmatprep.subr.bf16.mxu0 0
      %955 = vmatpush1.bf16.xpose.msra.mxu0 0
      %956 = vmatprep.subr.bf16.mxu0 0
      %957 = vmatpush1.bf16.xpose.msra.mxu0 0
      %958 = vmatprep.subr.bf16.mxu0 0
      %959 = vmatpush1.bf16.xpose.msra.mxu0 0
      %960 = vmatprep.subr.bf16.mxu0 0
      %961 = vmatpush1.bf16.xpose.msra.mxu0 0
      %962 = vmatprep.subr.bf16.mxu0 0
      %963 = vmatpush1.bf16.xpose.msra.mxu0 0
      %964 = vmatprep.subr.bf16.mxu0 0
      %965 = vmatpush1.bf16.xpose.msra.mxu0 0
      %966 = vmatprep.subr.bf16.mxu0 0
      %967 = vmatpush1.bf16.xpose.msra.mxu0 0
      %968 = vmatprep.mubr.bf16.mxu0 0
      %969 = vmatmul.mubr.bf16.gmra.mrb[0].mxu0 %v931
      %v970 = vpop.f32.mrb[0].mxu0
      %v971 = vadd.f32 0.0, %v970
      %v972 = vpop.f32.mrb[0].mxu0
      %v973 = vpop.f32.mrb[0].mxu0
      %v974 = vpop.f32.mrb[0].mxu0
      %975 = vdwg.mxu0
      %v976 = vsel %vm778, %v820, -inf
      %977 = vmax.xlane.f32.xlu0 %v976
      %v978 = vpop.xlane.xlu0 %977
      %v979 = vsel %vm778, %v871, -inf
      %980 = vmax.xlane.f32.xlu0 %v979
      %v981 = vpop.xlane.xlu0 %980
      %v982 = vsel %vm778, %v921, -inf
      %983 = vmax.xlane.f32.xlu0 %v982
      %v984 = vpop.xlane.xlu0 %983
      %v985 = vsel %vm778, %v971, -inf
      %986 = vmax.xlane.f32.xlu0 %v985
      %v987 = vpop.xlane.xlu0 %986
      %v988 = vsub.f32 %v820, %v978
      %v989 = vsub.f32 %v871, %v981
      %v990 = vsub.f32 %v921, %v984
      %v991 = vsub.f32 %v971, %v987
      %v992 = vmul.f32 %v988, 1.442695
      %v993 = vpow.pop %v992
      %v994 = vmul.f32 %v989, 1.442695
      %v995 = vpow.pop %v994
      %v996 = vmul.f32 %v990, 1.442695
      %v997 = vpow.pop %v996
      %v998 = vmul.f32 %v991, 1.442695
      %v999 = vpow.pop %v998
      %v1000 = vsel %vm778, %v993, 0.0
      %1001 = vadd.xlane.f32.xlu0 %v1000
      %v1002 = vpop.xlane.xlu0 %1001
      %v1003 = vsel %vm778, %v995, 0.0
      %1004 = vadd.xlane.f32.xlu0 %v1003
      %v1005 = vpop.xlane.xlu0 %1004
      %v1006 = vsel %vm778, %v997, 0.0
      %1007 = vadd.xlane.f32.xlu0 %v1006
      %v1008 = vpop.xlane.xlu0 %1007
      %v1009 = vsel %vm778, %v999, 0.0
      %1010 = vadd.xlane.f32.xlu0 %v1009
      %v1011 = vpop.xlane.xlu0 %1010
      %v1012 = vrcp.pop %v1002
      %v1013 = vrcp.pop %v1005
      %v1014 = vrcp.pop %v1008
      %v1015 = vrcp.pop %v1011
      %v1016 = vmul.f32 %v993, %v1012
      %v1017 = vmul.f32 %v995, %v1013
      %v1018 = vmul.f32 %v997, %v1014
      %v1019 = vmul.f32 %v999, %v1015
      %v1020 = vpack.c.bf16 %v1016, %v1016
      %v1021 = vpack.c.bf16 %v1017, %v1017
      %v1022 = vpack.c.bf16 %v1018, %v1018
      %v1023 = vpack.c.bf16 %v1019, %v1019
      %1024 = vrot.lane.b32.xlu0 %v774, 64
      %v1025 = vpop.permute.xlu0 %1024
      %v1027 = vsel %vm778, %v1020, 0
      %vm1029 = vcmask 1043456
      %v1031 = vsel %vm1029, %v1025, 0
      %1033 = vmatprep.subr.bf16.mxu0 0
      %1034 = vmatpush1.bf16.msra.mxu0 %v1031
      %1035 = vmatprep.subr.bf16.mxu0 0
      %1036 = vmatpush1.bf16.msra.mxu0 0
      %1037 = vmatprep.subr.bf16.mxu0 0
      %1038 = vmatpush1.bf16.msra.mxu0 0
      %1039 = vmatprep.subr.bf16.mxu0 0
      %1040 = vmatpush1.bf16.msra.mxu0 0
      %1041 = vmatprep.subr.bf16.mxu0 0
      %1042 = vmatpush1.bf16.msra.mxu0 0
      %1043 = vmatprep.subr.bf16.mxu0 0
      %1044 = vmatpush1.bf16.msra.mxu0 0
      %1045 = vmatprep.subr.bf16.mxu0 0
      %1046 = vmatpush1.bf16.msra.mxu0 0
      %1047 = vmatprep.subr.bf16.mxu0 0
      %1048 = vmatpush1.bf16.msra.mxu0 0
      %1049 = vmatprep.subr.bf16.mxu0 0
      %1050 = vmatpush1.bf16.msra.mxu0 0
      %1051 = vmatprep.subr.bf16.mxu0 0
      %1052 = vmatpush1.bf16.msra.mxu0 0
      %1053 = vmatprep.subr.bf16.mxu0 0
      %1054 = vmatpush1.bf16.msra.mxu0 0
      %1055 = vmatprep.subr.bf16.mxu0 0
      %1056 = vmatpush1.bf16.msra.mxu0 0
      %1057 = vmatprep.subr.bf16.mxu0 0
      %1058 = vmatpush1.bf16.msra.mxu0 0
      %1059 = vmatprep.subr.bf16.mxu0 0
      %1060 = vmatpush1.bf16.msra.mxu0 0
      %1061 = vmatprep.subr.bf16.mxu0 0
      %1062 = vmatpush1.bf16.msra.mxu0 0
      %1063 = vmatprep.subr.bf16.mxu0 0
      %1064 = vmatpush1.bf16.msra.mxu0 0
      %1065 = vmatprep.mubr.bf16.mxu0 0
      %1066 = vmatmul.mubr.bf16.gmra.mrb[0].mxu0 %v1027
      %v1067 = vpop.f32.mrb[0].mxu0
      %v1068 = vadd.f32 0.0, %v1067
      %v1069 = vpop.f32.mrb[0].mxu0
      %v1070 = vpop.f32.mrb[0].mxu0
      %v1071 = vpop.f32.mrb[0].mxu0
      %1072 = vdwg.mxu0
      %1073 = vrot.lane.b32.xlu0 %v774, 56
      %v1074 = vpop.permute.xlu0 %1073
      %v1076 = vsel %vm778, %v1021, 0
      %v1079 = vsel %vm1029, %v1074, 0
      %1081 = vmatprep.subr.bf16.mxu0 0
      %1082 = vmatpush1.bf16.msra.mxu0 %v1079
      %1083 = vmatprep.subr.bf16.mxu0 0
      %1084 = vmatpush1.bf16.msra.mxu0 0
      %1085 = vmatprep.subr.bf16.mxu0 0
      %1086 = vmatpush1.bf16.msra.mxu0 0
      %1087 = vmatprep.subr.bf16.mxu0 0
      %1088 = vmatpush1.bf16.msra.mxu0 0
      %1089 = vmatprep.subr.bf16.mxu0 0
      %1090 = vmatpush1.bf16.msra.mxu0 0
      %1091 = vmatprep.subr.bf16.mxu0 0
      %1092 = vmatpush1.bf16.msra.mxu0 0
      %1093 = vmatprep.subr.bf16.mxu0 0
      %1094 = vmatpush1.bf16.msra.mxu0 0
      %1095 = vmatprep.subr.bf16.mxu0 0
      %1096 = vmatpush1.bf16.msra.mxu0 0
      %1097 = vmatprep.subr.bf16.mxu0 0
      %1098 = vmatpush1.bf16.msra.mxu0 0
      %1099 = vmatprep.subr.bf16.mxu0 0
      %1100 = vmatpush1.bf16.msra.mxu0 0
      %1101 = vmatprep.subr.bf16.mxu0 0
      %1102 = vmatpush1.bf16.msra.mxu0 0
      %1103 = vmatprep.subr.bf16.mxu0 0
      %1104 = vmatpush1.bf16.msra.mxu0 0
      %1105 = vmatprep.subr.bf16.mxu0 0
      %1106 = vmatpush1.bf16.msra.mxu0 0
      %1107 = vmatprep.subr.bf16.mxu0 0
      %1108 = vmatpush1.bf16.msra.mxu0 0
      %1109 = vmatprep.subr.bf16.mxu0 0
      %1110 = vmatpush1.bf16.msra.mxu0 0
      %1111 = vmatprep.subr.bf16.mxu0 0
      %1112 = vmatpush1.bf16.msra.mxu0 0
      %1113 = vmatprep.mubr.bf16.mxu0 0
      %1114 = vmatmul.mubr.bf16.gmra.mrb[0].mxu0 %v1076
      %v1115 = vpop.f32.mrb[0].mxu0
      %v1116 = vadd.f32 0.0, %v1115
      %v1117 = vpop.f32.mrb[0].mxu0
      %v1118 = vpop.f32.mrb[0].mxu0
      %v1119 = vpop.f32.mrb[0].mxu0
      %1120 = vdwg.mxu0
      %1121 = vrot.lane.b32.xlu0 %v774, 48
      %v1122 = vpop.permute.xlu0 %1121
      %v1124 = vsel %vm778, %v1022, 0
      %v1127 = vsel %vm1029, %v1122, 0
      %1129 = vmatprep.subr.bf16.mxu0 0
      %1130 = vmatpush1.bf16.msra.mxu0 %v1127
      %1131 = vmatprep.subr.bf16.mxu0 0
      %1132 = vmatpush1.bf16.msra.mxu0 0
      %1133 = vmatprep.subr.bf16.mxu0 0
      %1134 = vmatpush1.bf16.msra.mxu0 0
      %1135 = vmatprep.subr.bf16.mxu0 0
      %1136 = vmatpush1.bf16.msra.mxu0 0
      %1137 = vmatprep.subr.bf16.mxu0 0
      %1138 = vmatpush1.bf16.msra.mxu0 0
      %1139 = vmatprep.subr.bf16.mxu0 0
      %1140 = vmatpush1.bf16.msra.mxu0 0
      %1141 = vmatprep.subr.bf16.mxu0 0
      %1142 = vmatpush1.bf16.msra.mxu0 0
      %1143 = vmatprep.subr.bf16.mxu0 0
      %1144 = vmatpush1.bf16.msra.mxu0 0
      %1145 = vmatprep.subr.bf16.mxu0 0
      %1146 = vmatpush1.bf16.msra.mxu0 0
      %1147 = vmatprep.subr.bf16.mxu0 0
      %1148 = vmatpush1.bf16.msra.mxu0 0
      %1149 = vmatprep.subr.bf16.mxu0 0
      %1150 = vmatpush1.bf16.msra.mxu0 0
      %1151 = vmatprep.subr.bf16.mxu0 0
      %1152 = vmatpush1.bf16.msra.mxu0 0
      %1153 = vmatprep.subr.bf16.mxu0 0
      %1154 = vmatpush1.bf16.msra.mxu0 0
      %1155 = vmatprep.subr.bf16.mxu0 0
      %1156 = vmatpush1.bf16.msra.mxu0 0
      %1157 = vmatprep.subr.bf16.mxu0 0
      %1158 = vmatpush1.bf16.msra.mxu0 0
      %1159 = vmatprep.subr.bf16.mxu0 0
      %1160 = vmatpush1.bf16.msra.mxu0 0
      %1161 = vmatprep.mubr.bf16.mxu0 0
      %1162 = vmatmul.mubr.bf16.gmra.mrb[0].mxu0 %v1124
      %v1163 = vpop.f32.mrb[0].mxu0
      %v1164 = vadd.f32 0.0, %v1163
      %v1165 = vpop.f32.mrb[0].mxu0
      %v1166 = vpop.f32.mrb[0].mxu0
      %v1167 = vpop.f32.mrb[0].mxu0
      %1168 = vdwg.mxu0
      %1169 = vrot.lane.b32.xlu0 %v774, 40
      %v1170 = vpop.permute.xlu0 %1169
      %v1172 = vsel %vm778, %v1023, 0
      %v1175 = vsel %vm1029, %v1170, 0
      %1177 = vmatprep.subr.bf16.mxu0 0
      %1178 = vmatpush1.bf16.msra.mxu0 %v1175
      %1179 = vmatprep.subr.bf16.mxu0 0
      %1180 = vmatpush1.bf16.msra.mxu0 0
      %1181 = vmatprep.subr.bf16.mxu0 0
      %1182 = vmatpush1.bf16.msra.mxu0 0
      %1183 = vmatprep.subr.bf16.mxu0 0
      %1184 = vmatpush1.bf16.msra.mxu0 0
      %1185 = vmatprep.subr.bf16.mxu0 0
      %1186 = vmatpush1.bf16.msra.mxu0 0
      %1187 = vmatprep.subr.bf16.mxu0 0
      %1188 = vmatpush1.bf16.msra.mxu0 0
      %1189 = vmatprep.subr.bf16.mxu0 0
      %1190 = vmatpush1.bf16.msra.mxu0 0
      %1191 = vmatprep.subr.bf16.mxu0 0
      %1192 = vmatpush1.bf16.msra.mxu0 0
      %1193 = vmatprep.subr.bf16.mxu0 0
      %1194 = vmatpush1.bf16.msra.mxu0 0
      %1195 = vmatprep.subr.bf16.mxu0 0
      %1196 = vmatpush1.bf16.msra.mxu0 0
      %1197 = vmatprep.subr.bf16.mxu0 0
      %1198 = vmatpush1.bf16.msra.mxu0 0
      %1199 = vmatprep.subr.bf16.mxu0 0
      %1200 = vmatpush1.bf16.msra.mxu0 0
      %1201 = vmatprep.subr.bf16.mxu0 0
      %1202 = vmatpush1.bf16.msra.mxu0 0
      %1203 = vmatprep.subr.bf16.mxu0 0
      %1204 = vmatpush1.bf16.msra.mxu0 0
      %1205 = vmatprep.subr.bf16.mxu0 0
      %1206 = vmatpush1.bf16.msra.mxu0 0
      %1207 = vmatprep.subr.bf16.mxu0 0
      %1208 = vmatpush1.bf16.msra.mxu0 0
      %1209 = vmatprep.mubr.bf16.mxu0 0
      %1210 = vmatmul.mubr.bf16.gmra.mrb[0].mxu0 %v1172
      %v1211 = vpop.f32.mrb[0].mxu0
      %v1212 = vadd.f32 0.0, %v1211
      %v1213 = vpop.f32.mrb[0].mxu0
      %v1214 = vpop.f32.mrb[0].mxu0
      %v1215 = vpop.f32.mrb[0].mxu0
      %1216 = vdwg.mxu0
      %1218 = vrot.lane.b32.xlu0 %v1116, 8
      %v1219 = vpop.permute.xlu0 %1218
      %1222 = vrot.lane.b32.xlu0 %v1164, 16
      %v1223 = vpop.permute.xlu0 %1222
      %1226 = vrot.lane.b32.xlu0 %v1212, 24
      %v1227 = vpop.permute.xlu0 %1226
      %v1229 = vsel %vm778, %v1068, %v1219
      %vm1230 = vcmask 130048
      %v1231 = vsel %vm1230, %v1229, %v1223
      %vm1232 = vcmask 195584
      %v1233 = vsel %vm1232, %v1231, %v1227
      %v1234 = vpack.c.bf16 %v1233, %v1233
      %v1236 = vlaneseq
      %v1237 = vshrl.u32 %v1236, 7
      %v1238 = vsub.s32 0, %v1237
      %v1239 = vrot.slane %v771, %v1238
      %v1245 = vunpack.c.l.b16 %v767
      %v1246 = vunpack.c.l.b16 %v768
      %v1247 = vunpack.c.l.b16 %v769
      %v1248 = vunpack.c.l.b16 %v770
      %v1249 = vpack.c.b16 %v1246, %v1245
      %v1250 = vpack.c.b16 %v1248, %v1247
      %v1254 = vsel %vm723, %v1234, 0
      %1256 = vmatprep.subr.bf16.mxu0 0
      %1257 = vmatpush1.bf16.msra.mxu0 %v1249
      %1258 = vmatprep.subr.bf16.mxu0 0
      %1259 = vmatpush1.bf16.msra.mxu0 %v1250
      %1260 = vmatprep.subr.bf16.mxu0 0
      %1261 = vmatpush1.bf16.msra.mxu0 0
      %1262 = vmatprep.subr.bf16.mxu0 0
      %1263 = vmatpush1.bf16.msra.mxu0 0
      %1264 = vmatprep.subr.bf16.mxu0 0
      %1265 = vmatpush1.bf16.msra.mxu0 0
      %1266 = vmatprep.subr.bf16.mxu0 0
      %1267 = vmatpush1.bf16.msra.mxu0 0
      %1268 = vmatprep.subr.bf16.mxu0 0
      %1269 = vmatpush1.bf16.msra.mxu0 0
      %1270 = vmatprep.subr.bf16.mxu0 0
      %1271 = vmatpush1.bf16.msra.mxu0 0
      %1272 = vmatprep.subr.bf16.mxu0 0
      %1273 = vmatpush1.bf16.msra.mxu0 0
      %1274 = vmatprep.subr.bf16.mxu0 0
      %1275 = vmatpush1.bf16.msra.mxu0 0
      %1276 = vmatprep.subr.bf16.mxu0 0
      %1277 = vmatpush1.bf16.msra.mxu0 0
      %1278 = vmatprep.subr.bf16.mxu0 0
      %1279 = vmatpush1.bf16.msra.mxu0 0
      %1280 = vmatprep.subr.bf16.mxu0 0
      %1281 = vmatpush1.bf16.msra.mxu0 0
      %1282 = vmatprep.subr.bf16.mxu0 0
      %1283 = vmatpush1.bf16.msra.mxu0 0
      %1284 = vmatprep.subr.bf16.mxu0 0
      %1285 = vmatpush1.bf16.msra.mxu0 0
      %1286 = vmatprep.subr.bf16.mxu0 0
      %1287 = vmatpush1.bf16.msra.mxu0 0
      %1288 = vmatprep.mubr.bf16.mxu0 0
      %1289 = vmatmul.mubr.bf16.gmra.mrb[0].mxu0 %v1254
      %v1290 = vpop.f32.mrb[0].mxu0
      %v1291 = vadd.f32 %v1239, %v1290
      %v1292 = vpop.f32.mrb[0].mxu0
      %v1293 = vpop.f32.mrb[0].mxu0
      %v1294 = vpop.f32.mrb[0].mxu0
      %1295 = vdwg.mxu0
      %v1296 = vadd.f32 %v697, %v1291
      %v1297 = vld [vmem:[%s6] sm:$0x1]
      %v1298 = vld [vmem:[%s7] sm:$0x1]
      %v1299 = vsel %vm723, %v1296, 0.0
      %1300 = vadd.xlane.f32.xlu0 %v1299
      %v1301 = vpop.xlane.xlu0 %1300
      %v1302 = vrcp.pop 32.0
      %v1303 = vmul.f32 %v1301, %v1302
      %v1304 = vsub.f32 %v1296, %v1303
      %v1305 = vmul.f32 %v1304, %v1304
      %v1306 = vsel %vm723, %v1305, 0.0
      %1307 = vadd.xlane.f32.xlu0 %v1306
      %v1308 = vpop.xlane.xlu0 %1307
      %v1309 = vmul.f32 %v1308, %v1302
      %v1310 = vadd.f32 %v1309, 1e-05
      %v1311 = vrsqrt.pop %v1310
      %v1312 = vmul.f32 %v1304, %v1311
      %v1314 = vlaneseq
      %v1315 = vshrl.u32 %v1314, 7
      %v1316 = vsub.s32 0, %v1315
      %v1317 = vrot.slane %v1297, %v1316
      %v1319 = vmul.f32 %v1312, %v1317
      %v1321 = vlaneseq
      %v1322 = vshrl.u32 %v1321, 7
      %v1323 = vsub.s32 0, %v1322
      %v1324 = vrot.slane %v1298, %v1323
      %v1326 = vadd.f32 %v1319, %v1324
      %v1327 = vpack.c.bf16 %v1326, %v1326
      %v1328 = vld [vmem:[%s8] sm:$0xf]
      %v1329 = vld [vmem:[%s8 + $0x4] sm:$0xf]
      %v1330 = vld [vmem:[%s8 + $0x8] sm:$0xf]
      %v1331 = vld [vmem:[%s8 + $0xc] sm:$0xf]
      %v1332 = vld [vmem:[%s9] sm:$0x1]
      %v1334 = vlaneseq
      %v1335 = vshrl.u32 %v1334, 7
      %v1336 = vsub.s32 0, %v1335
      %v1337 = vrot.slane %v1332, %v1336
      %v1343 = vunpack.c.l.b16 %v1328
      %v1344 = vunpack.c.l.b16 %v1329
      %v1345 = vunpack.c.l.b16 %v1330
      %v1346 = vunpack.c.l.b16 %v1331
      %v1347 = vpack.c.b16 %v1344, %v1343
      %v1348 = vpack.c.b16 %v1346, %v1345
      %v1352 = vsel %vm723, %v1327, 0
      %1354 = vmatprep.subr.bf16.mxu0 0
      %1355 = vmatpush1.bf16.msra.mxu0 %v1347
      %1356 = vmatprep.subr.bf16.mxu0 0
      %1357 = vmatpush1.bf16.msra.mxu0 %v1348
      %1358 = vmatprep.subr.bf16.mxu0 0
      %1359 = vmatpush1.bf16.msra.mxu0 0
      %1360 = vmatprep.subr.bf16.mxu0 0
      %1361 = vmatpush1.bf16.msra.mxu0 0
      %1362 = vmatprep.subr.bf16.mxu0 0
      %1363 = vmatpush1.bf16.msra.mxu0 0
      %1364 = vmatprep.subr.bf16.mxu0 0
      %1365 = vmatpush1.bf16.msra.mxu0 0
      %1366 = vmatprep.subr.bf16.mxu0 0
      %1367 = vmatpush1.bf16.msra.mxu0 0
      %1368 = vmatprep.subr.bf16.mxu0 0
      %1369 = vmatpush1.bf16.msra.mxu0 0
      %1370 = vmatprep.subr.bf16.mxu0 0
      %1371 = vmatpush1.bf16.msra.mxu0 0
      %1372 = vmatprep.subr.bf16.mxu0 0
      %1373 = vmatpush1.bf16.msra.mxu0 0
      %1374 = vmatprep.subr.bf16.mxu0 0
      %1375 = vmatpush1.bf16.msra.mxu0 0
      %1376 = vmatprep.subr.bf16.mxu0 0
      %1377 = vmatpush1.bf16.msra.mxu0 0
      %1378 = vmatprep.subr.bf16.mxu0 0
      %1379 = vmatpush1.bf16.msra.mxu0 0
      %1380 = vmatprep.subr.bf16.mxu0 0
      %1381 = vmatpush1.bf16.msra.mxu0 0
      %1382 = vmatprep.subr.bf16.mxu0 0
      %1383 = vmatpush1.bf16.msra.mxu0 0
      %1384 = vmatprep.subr.bf16.mxu0 0
      %1385 = vmatpush1.bf16.msra.mxu0 0
      %1386 = vmatprep.mubr.bf16.mxu0 0
      %1387 = vmatmul.mubr.bf16.gmra.mrb[0].mxu0 %v1352
      %v1388 = vpop.f32.mrb[0].mxu0
      %v1389 = vadd.f32 %v1337, %v1388
      %v1390 = vpop.f32.mrb[0].mxu0
      %v1391 = vpop.f32.mrb[0].mxu0
      %v1392 = vpop.f32.mrb[0].mxu0
      %1393 = vdwg.mxu0
      %v1394 = vpack.c.bf16 %v698, %v698
      %v1395 = vld [vmem:[%s10] sm:$0xf]
      %v1396 = vld [vmem:[%s10 + $0x4] sm:$0xf]
      %v1397 = vld [vmem:[%s10 + $0x8] sm:$0xf]
      %v1398 = vld [vmem:[%s10 + $0xc] sm:$0xf]
      %v1399 = vld [vmem:[%s11] sm:$0x1]
      %v1401 = vlaneseq
      %v1402 = vshrl.u32 %v1401, 7
      %v1403 = vsub.s32 0, %v1402
      %v1404 = vrot.slane %v1399, %v1403
      %v1410 = vunpack.c.l.b16 %v1395
      %v1411 = vunpack.c.l.b16 %v1396
      %v1412 = vunpack.c.l.b16 %v1397
      %v1413 = vunpack.c.l.b16 %v1398
      %v1414 = vpack.c.b16 %v1411, %v1410
      %v1415 = vpack.c.b16 %v1413, %v1412
      %v1419 = vsel %vm723, %v1394, 0
      %1421 = vmatprep.subr.bf16.mxu0 0
      %1422 = vmatpush1.bf16.msra.mxu0 %v1414
      %1423 = vmatprep.subr.bf16.mxu0 0
      %1424 = vmatpush1.bf16.msra.mxu0 %v1415
      %1425 = vmatprep.subr.bf16.mxu0 0
      %1426 = vmatpush1.bf16.msra.mxu0 0
      %1427 = vmatprep.subr.bf16.mxu0 0
      %1428 = vmatpush1.bf16.msra.mxu0 0
      %1429 = vmatprep.subr.bf16.mxu0 0
      %1430 = vmatpush1.bf16.msra.mxu0 0
      %1431 = vmatprep.subr.bf16.mxu0 0
      %1432 = vmatpush1.bf16.msra.mxu0 0
      %1433 = vmatprep.subr.bf16.mxu0 0
      %1434 = vmatpush1.bf16.msra.mxu0 0
      %1435 = vmatprep.subr.bf16.mxu0 0
      %1436 = vmatpush1.bf16.msra.mxu0 0
      %1437 = vmatprep.subr.bf16.mxu0 0
      %1438 = vmatpush1.bf16.msra.mxu0 0
      %1439 = vmatprep.subr.bf16.mxu0 0
      %1440 = vmatpush1.bf16.msra.mxu0 0
      %1441 = vmatprep.subr.bf16.mxu0 0
      %1442 = vmatpush1.bf16.msra.mxu0 0
      %1443 = vmatprep.subr.bf16.mxu0 0
      %1444 = vmatpush1.bf16.msra.mxu0 0
      %1445 = vmatprep.subr.bf16.mxu0 0
      %1446 = vmatpush1.bf16.msra.mxu0 0
      %1447 = vmatprep.subr.bf16.mxu0 0
      %1448 = vmatpush1.bf16.msra.mxu0 0
      %1449 = vmatprep.subr.bf16.mxu0 0
      %1450 = vmatpush1.bf16.msra.mxu0 0
      %1451 = vmatprep.subr.bf16.mxu0 0
      %1452 = vmatpush1.bf16.msra.mxu0 0
      %1453 = vmatprep.mubr.bf16.mxu0 0
      %1454 = vmatmul.mubr.bf16.gmra.mrb[0].mxu0 %v1419
      %v1455 = vpop.f32.mrb[0].mxu0
      %v1456 = vadd.f32 %v1404, %v1455
      %v1457 = vpop.f32.mrb[0].mxu0
      %v1458 = vpop.f32.mrb[0].mxu0
      %v1459 = vpop.f32.mrb[0].mxu0
      %1460 = vdwg.mxu0
      %v1461 = vld [vmem:[%s12] sm:$0xf]
      %v1462 = vld [vmem:[%s12 + $0x4] sm:$0xf]
      %v1463 = vld [vmem:[%s12 + $0x8] sm:$0xf]
      %v1464 = vld [vmem:[%s12 + $0xc] sm:$0xf]
      %v1465 = vld [vmem:[%s13] sm:$0x1]
      %v1466 = vmul.f32 %v1389, 0.35355338
      %v1467 = vpack.c.bf16 %v1466, %v1466
      %v1468 = vpack.c.bf16 %v1456, %v1456
      %v1470 = vsel %vm778, %v1467, 0
      %v1473 = vsel %vm778, %v1468, 0
      %1475 = vmatprep.subr.bf16.mxu0 0
      %1476 = vmatpush1.bf16.xpose.msra.mxu0 %v1473
      %1477 = vmatprep.subr.bf16.mxu0 0
      %1478 = vmatpush1.bf16.xpose.msra.mxu0 0
      %1479 = vmatprep.subr.bf16.mxu0 0
      %1480 = vmatpush1.bf16.xpose.msra.mxu0 0
      %1481 = vmatprep.subr.bf16.mxu0 0
      %1482 = vmatpush1.bf16.xpose.msra.mxu0 0
      %1483 = vmatprep.subr.bf16.mxu0 0
      %1484 = vmatpush1.bf16.xpose.msra.mxu0 0
      %1485 = vmatprep.subr.bf16.mxu0 0
      %1486 = vmatpush1.bf16.xpose.msra.mxu0 0
      %1487 = vmatprep.subr.bf16.mxu0 0
      %1488 = vmatpush1.bf16.xpose.msra.mxu0 0
      %1489 = vmatprep.subr.bf16.mxu0 0
      %1490 = vmatpush1.bf16.xpose.msra.mxu0 0
      %1491 = vmatprep.subr.bf16.mxu0 0
      %1492 = vmatpush1.bf16.xpose.msra.mxu0 0
      %1493 = vmatprep.subr.bf16.mxu0 0
      %1494 = vmatpush1.bf16.xpose.msra.mxu0 0
      %1495 = vmatprep.subr.bf16.mxu0 0
      %1496 = vmatpush1.bf16.xpose.msra.mxu0 0
      %1497 = vmatprep.subr.bf16.mxu0 0
      %1498 = vmatpush1.bf16.xpose.msra.mxu0 0
      %1499 = vmatprep.subr.bf16.mxu0 0
      %1500 = vmatpush1.bf16.xpose.msra.mxu0 0
      %1501 = vmatprep.subr.bf16.mxu0 0
      %1502 = vmatpush1.bf16.xpose.msra.mxu0 0
      %1503 = vmatprep.subr.bf16.mxu0 0
      %1504 = vmatpush1.bf16.xpose.msra.mxu0 0
      %1505 = vmatprep.subr.bf16.mxu0 0
      %1506 = vmatpush1.bf16.xpose.msra.mxu0 0
      %1507 = vmatprep.mubr.bf16.mxu0 0
      %1508 = vmatmul.mubr.bf16.gmra.mrb[0].mxu0 %v1470
      %v1509 = vpop.f32.mrb[0].mxu0
      %v1510 = vadd.f32 0.0, %v1509
      %v1511 = vpop.f32.mrb[0].mxu0
      %v1512 = vpop.f32.mrb[0].mxu0
      %v1513 = vpop.f32.mrb[0].mxu0
      %1514 = vdwg.mxu0
      %1516 = vrot.lane.b32.xlu0 %v1467, 120
      %v1517 = vpop.permute.xlu0 %1516
      %1519 = vrot.lane.b32.xlu0 %v1468, 120
      %v1520 = vpop.permute.xlu0 %1519
      %v1522 = vsel %vm778, %v1517, 0
      %v1525 = vsel %vm778, %v1520, 0
      %1527 = vmatprep.subr.bf16.mxu0 0
      %1528 = vmatpush1.bf16.xpose.msra.mxu0 %v1525
      %1529 = vmatprep.subr.bf16.mxu0 0
      %1530 = vmatpush1.bf16.xpose.msra.mxu0 0
      %1531 = vmatprep.subr.bf16.mxu0 0
      %1532 = vmatpush1.bf16.xpose.msra.mxu0 0
      %1533 = vmatprep.subr.bf16.mxu0 0
      %1534 = vmatpush1.bf16.xpose.msra.mxu0 0
      %1535 = vmatprep.subr.bf16.mxu0 0
      %1536 = vmatpush1.bf16.xpose.msra.mxu0 0
      %1537 = vmatprep.subr.bf16.mxu0 0
      %1538 = vmatpush1.bf16.xpose.msra.mxu0 0
      %1539 = vmatprep.subr.bf16.mxu0 0
      %1540 = vmatpush1.bf16.xpose.msra.mxu0 0
      %1541 = vmatprep.subr.bf16.mxu0 0
      %1542 = vmatpush1.bf16.xpose.msra.mxu0 0
      %1543 = vmatprep.subr.bf16.mxu0 0
      %1544 = vmatpush1.bf16.xpose.msra.mxu0 0
      %1545 = vmatprep.subr.bf16.mxu0 0
      %1546 = vmatpush1.bf16.xpose.msra.mxu0 0
      %1547 = vmatprep.subr.bf16.mxu0 0
      %1548 = vmatpush1.bf16.xpose.msra.mxu0 0
      %1549 = vmatprep.subr.bf16.mxu0 0
      %1550 = vmatpush1.bf16.xpose.msra.mxu0 0
      %1551 = vmatprep.subr.bf16.mxu0 0
      %1552 = vmatpush1.bf16.xpose.msra.mxu0 0
      %1553 = vmatprep.subr.bf16.mxu0 0
      %1554 = vmatpush1.bf16.xpose.msra.mxu0 0
      %1555 = vmatprep.subr.bf16.mxu0 0
      %1556 = vmatpush1.bf16.xpose.msra.mxu0 0
      %1557 = vmatprep.subr.bf16.mxu0 0
      %1558 = vmatpush1.bf16.xpose.msra.mxu0 0
      %1559 = vmatprep.mubr.bf16.mxu0 0
      %1560 = vmatmul.mubr.bf16.gmra.mrb[0].mxu0 %v1522
      %v1561 = vpop.f32.mrb[0].mxu0
      %v1562 = vadd.f32 0.0, %v1561
      %v1563 = vpop.f32.mrb[0].mxu0
      %v1564 = vpop.f32.mrb[0].mxu0
      %v1565 = vpop.f32.mrb[0].mxu0
      %1566 = vdwg.mxu0
      %1567 = vrot.lane.b32.xlu0 %v1467, 112
      %v1568 = vpop.permute.xlu0 %1567
      %1569 = vrot.lane.b32.xlu0 %v1468, 112
      %v1570 = vpop.permute.xlu0 %1569
      %v1572 = vsel %vm778, %v1568, 0
      %v1575 = vsel %vm778, %v1570, 0
      %1577 = vmatprep.subr.bf16.mxu0 0
      %1578 = vmatpush1.bf16.xpose.msra.mxu0 %v1575
      %1579 = vmatprep.subr.bf16.mxu0 0
      %1580 = vmatpush1.bf16.xpose.msra.mxu0 0
      %1581 = vmatprep.subr.bf16.mxu0 0
      %1582 = vmatpush1.bf16.xpose.msra.mxu0 0
      %1583 = vmatprep.subr.bf16.mxu0 0
      %1584 = vmatpush1.bf16.xpose.msra.mxu0 0
      %1585 = vmatprep.subr.bf16.mxu0 0
      %1586 = vmatpush1.bf16.xpose.msra.mxu0 0
      %1587 = vmatprep.subr.bf16.mxu0 0
      %1588 = vmatpush1.bf16.xpose.msra.mxu0 0
      %1589 = vmatprep.subr.bf16.mxu0 0
      %1590 = vmatpush1.bf16.xpose.msra.mxu0 0
      %1591 = vmatprep.subr.bf16.mxu0 0
      %1592 = vmatpush1.bf16.xpose.msra.mxu0 0
      %1593 = vmatprep.subr.bf16.mxu0 0
      %1594 = vmatpush1.bf16.xpose.msra.mxu0 0
      %1595 = vmatprep.subr.bf16.mxu0 0
      %1596 = vmatpush1.bf16.xpose.msra.mxu0 0
      %1597 = vmatprep.subr.bf16.mxu0 0
      %1598 = vmatpush1.bf16.xpose.msra.mxu0 0
      %1599 = vmatprep.subr.bf16.mxu0 0
      %1600 = vmatpush1.bf16.xpose.msra.mxu0 0
      %1601 = vmatprep.subr.bf16.mxu0 0
      %1602 = vmatpush1.bf16.xpose.msra.mxu0 0
      %1603 = vmatprep.subr.bf16.mxu0 0
      %1604 = vmatpush1.bf16.xpose.msra.mxu0 0
      %1605 = vmatprep.subr.bf16.mxu0 0
      %1606 = vmatpush1.bf16.xpose.msra.mxu0 0
      %1607 = vmatprep.subr.bf16.mxu0 0
      %1608 = vmatpush1.bf16.xpose.msra.mxu0 0
      %1609 = vmatprep.mubr.bf16.mxu0 0
      %1610 = vmatmul.mubr.bf16.gmra.mrb[0].mxu0 %v1572
      %v1611 = vpop.f32.mrb[0].mxu0
      %v1612 = vadd.f32 0.0, %v1611
      %v1613 = vpop.f32.mrb[0].mxu0
      %v1614 = vpop.f32.mrb[0].mxu0
      %v1615 = vpop.f32.mrb[0].mxu0
      %1616 = vdwg.mxu0
      %1617 = vrot.lane.b32.xlu0 %v1467, 104
      %v1618 = vpop.permute.xlu0 %1617
      %1619 = vrot.lane.b32.xlu0 %v1468, 104
      %v1620 = vpop.permute.xlu0 %1619
      %v1622 = vsel %vm778, %v1618, 0
      %v1625 = vsel %vm778, %v1620, 0
      %1627 = vmatprep.subr.bf16.mxu0 0
      %1628 = vmatpush1.bf16.xpose.msra.mxu0 %v1625
      %1629 = vmatprep.subr.bf16.mxu0 0
      %1630 = vmatpush1.bf16.xpose.msra.mxu0 0
      %1631 = vmatprep.subr.bf16.mxu0 0
      %1632 = vmatpush1.bf16.xpose.msra.mxu0 0
      %1633 = vmatprep.subr.bf16.mxu0 0
      %1634 = vmatpush1.bf16.xpose.msra.mxu0 0
      %1635 = vmatprep.subr.bf16.mxu0 0
      %1636 = vmatpush1.bf16.xpose.msra.mxu0 0
      %1637 = vmatprep.subr.bf16.mxu0 0
      %1638 = vmatpush1.bf16.xpose.msra.mxu0 0
      %1639 = vmatprep.subr.bf16.mxu0 0
      %1640 = vmatpush1.bf16.xpose.msra.mxu0 0
      %1641 = vmatprep.subr.bf16.mxu0 0
      %1642 = vmatpush1.bf16.xpose.msra.mxu0 0
      %1643 = vmatprep.subr.bf16.mxu0 0
      %1644 = vmatpush1.bf16.xpose.msra.mxu0 0
      %1645 = vmatprep.subr.bf16.mxu0 0
      %1646 = vmatpush1.bf16.xpose.msra.mxu0 0
      %1647 = vmatprep.subr.bf16.mxu0 0
      %1648 = vmatpush1.bf16.xpose.msra.mxu0 0
      %1649 = vmatprep.subr.bf16.mxu0 0
      %1650 = vmatpush1.bf16.xpose.msra.mxu0 0
      %1651 = vmatprep.subr.bf16.mxu0 0
      %1652 = vmatpush1.bf16.xpose.msra.mxu0 0
      %1653 = vmatprep.subr.bf16.mxu0 0
      %1654 = vmatpush1.bf16.xpose.msra.mxu0 0
      %1655 = vmatprep.subr.bf16.mxu0 0
      %1656 = vmatpush1.bf16.xpose.msra.mxu0 0
      %1657 = vmatprep.subr.bf16.mxu0 0
      %1658 = vmatpush1.bf16.xpose.msra.mxu0 0
      %1659 = vmatprep.mubr.bf16.mxu0 0
      %1660 = vmatmul.mubr.bf16.gmra.mrb[0].mxu0 %v1622
      %v1661 = vpop.f32.mrb[0].mxu0
      %v1662 = vadd.f32 0.0, %v1661
      %v1663 = vpop.f32.mrb[0].mxu0
      %v1664 = vpop.f32.mrb[0].mxu0
      %v1665 = vpop.f32.mrb[0].mxu0
      %1666 = vdwg.mxu0
      %v1667 = vsel %vm778, %v1510, -inf
      %1668 = vmax.xlane.f32.xlu0 %v1667
      %v1669 = vpop.xlane.xlu0 %1668
      %v1670 = vsel %vm778, %v1562, -inf
      %1671 = vmax.xlane.f32.xlu0 %v1670
      %v1672 = vpop.xlane.xlu0 %1671
      %v1673 = vsel %vm778, %v1612, -inf
      %1674 = vmax.xlane.f32.xlu0 %v1673
      %v1675 = vpop.xlane.xlu0 %1674
      %v1676 = vsel %vm778, %v1662, -inf
      %1677 = vmax.xlane.f32.xlu0 %v1676
      %v1678 = vpop.xlane.xlu0 %1677
      %v1679 = vsub.f32 %v1510, %v1669
      %v1680 = vsub.f32 %v1562, %v1672
      %v1681 = vsub.f32 %v1612, %v1675
      %v1682 = vsub.f32 %v1662, %v1678
      %v1683 = vmul.f32 %v1679, 1.442695
      %v1684 = vpow.pop %v1683
      %v1685 = vmul.f32 %v1680, 1.442695
      %v1686 = vpow.pop %v1685
      %v1687 = vmul.f32 %v1681, 1.442695
      %v1688 = vpow.pop %v1687
      %v1689 = vmul.f32 %v1682, 1.442695
      %v1690 = vpow.pop %v1689
      %v1691 = vsel %vm778, %v1684, 0.0
      %1692 = vadd.xlane.f32.xlu0 %v1691
      %v1693 = vpop.xlane.xlu0 %1692
      %v1694 = vsel %vm778, %v1686, 0.0
      %1695 = vadd.xlane.f32.xlu0 %v1694
      %v1696 = vpop.xlane.xlu0 %1695
      %v1697 = vsel %vm778, %v1688, 0.0
      %1698 = vadd.xlane.f32.xlu0 %v1697
      %v1699 = vpop.xlane.xlu0 %1698
      %v1700 = vsel %vm778, %v1690, 0.0
      %1701 = vadd.xlane.f32.xlu0 %v1700
      %v1702 = vpop.xlane.xlu0 %1701
      %v1703 = vrcp.pop %v1693
      %v1704 = vrcp.pop %v1696
      %v1705 = vrcp.pop %v1699
      %v1706 = vrcp.pop %v1702
      %v1707 = vmul.f32 %v1684, %v1703
      %v1708 = vmul.f32 %v1686, %v1704
      %v1709 = vmul.f32 %v1688, %v1705
      %v1710 = vmul.f32 %v1690, %v1706
      %v1711 = vpack.c.bf16 %v1707, %v1707
      %v1712 = vpack.c.bf16 %v1708, %v1708
      %v1713 = vpack.c.bf16 %v1709, %v1709
      %v1714 = vpack.c.bf16 %v1710, %v1710
      %1715 = vrot.lane.b32.xlu0 %v1468, 96
      %v1716 = vpop.permute.xlu0 %1715
      %v1718 = vsel %vm778, %v1711, 0
      %v1721 = vsel %vm1029, %v1716, 0
      %1723 = vmatprep.subr.bf16.mxu0 0
      %1724 = vmatpush1.bf16.msra.mxu0 %v1721
      %1725 = vmatprep.subr.bf16.mxu0 0
      %1726 = vmatpush1.bf16.msra.mxu0 0
      %1727 = vmatprep.subr.bf16.mxu0 0
      %1728 = vmatpush1.bf16.msra.mxu0 0
      %1729 = vmatprep.subr.bf16.mxu0 0
      %1730 = vmatpush1.bf16.msra.mxu0 0
      %1731 = vmatprep.subr.bf16.mxu0 0
      %1732 = vmatpush1.bf16.msra.mxu0 0
      %1733 = vmatprep.subr.bf16.mxu0 0
      %1734 = vmatpush1.bf16.msra.mxu0 0
      %1735 = vmatprep.subr.bf16.mxu0 0
      %1736 = vmatpush1.bf16.msra.mxu0 0
      %1737 = vmatprep.subr.bf16.mxu0 0
      %1738 = vmatpush1.bf16.msra.mxu0 0
      %1739 = vmatprep.subr.bf16.mxu0 0
      %1740 = vmatpush1.bf16.msra.mxu0 0
      %1741 = vmatprep.subr.bf16.mxu0 0
      %1742 = vmatpush1.bf16.msra.mxu0 0
      %1743 = vmatprep.subr.bf16.mxu0 0
      %1744 = vmatpush1.bf16.msra.mxu0 0
      %1745 = vmatprep.subr.bf16.mxu0 0
      %1746 = vmatpush1.bf16.msra.mxu0 0
      %1747 = vmatprep.subr.bf16.mxu0 0
      %1748 = vmatpush1.bf16.msra.mxu0 0
      %1749 = vmatprep.subr.bf16.mxu0 0
      %1750 = vmatpush1.bf16.msra.mxu0 0
      %1751 = vmatprep.subr.bf16.mxu0 0
      %1752 = vmatpush1.bf16.msra.mxu0 0
      %1753 = vmatprep.subr.bf16.mxu0 0
      %1754 = vmatpush1.bf16.msra.mxu0 0
      %1755 = vmatprep.mubr.bf16.mxu0 0
      %1756 = vmatmul.mubr.bf16.gmra.mrb[0].mxu0 %v1718
      %v1757 = vpop.f32.mrb[0].mxu0
      %v1758 = vadd.f32 0.0, %v1757
      %v1759 = vpop.f32.mrb[0].mxu0
      %v1760 = vpop.f32.mrb[0].mxu0
      %v1761 = vpop.f32.mrb[0].mxu0
      %1762 = vdwg.mxu0
      %1763 = vrot.lane.b32.xlu0 %v1468, 88
      %v1764 = vpop.permute.xlu0 %1763
      %v1766 = vsel %vm778, %v1712, 0
      %v1769 = vsel %vm1029, %v1764, 0
      %1771 = vmatprep.subr.bf16.mxu0 0
      %1772 = vmatpush1.bf16.msra.mxu0 %v1769
      %1773 = vmatprep.subr.bf16.mxu0 0
      %1774 = vmatpush1.bf16.msra.mxu0 0
      %1775 = vmatprep.subr.bf16.mxu0 0
      %1776 = vmatpush1.bf16.msra.mxu0 0
      %1777 = vmatprep.subr.bf16.mxu0 0
      %1778 = vmatpush1.bf16.msra.mxu0 0
      %1779 = vmatprep.subr.bf16.mxu0 0
      %1780 = vmatpush1.bf16.msra.mxu0 0
      %1781 = vmatprep.subr.bf16.mxu0 0
      %1782 = vmatpush1.bf16.msra.mxu0 0
      %1783 = vmatprep.subr.bf16.mxu0 0
      %1784 = vmatpush1.bf16.msra.mxu0 0
      %1785 = vmatprep.subr.bf16.mxu0 0
      %1786 = vmatpush1.bf16.msra.mxu0 0
      %1787 = vmatprep.subr.bf16.mxu0 0
      %1788 = vmatpush1.bf16.msra.mxu0 0
      %1789 = vmatprep.subr.bf16.mxu0 0
      %1790 = vmatpush1.bf16.msra.mxu0 0
      %1791 = vmatprep.subr.bf16.mxu0 0
      %1792 = vmatpush1.bf16.msra.mxu0 0
      %1793 = vmatprep.subr.bf16.mxu0 0
      %1794 = vmatpush1.bf16.msra.mxu0 0
      %1795 = vmatprep.subr.bf16.mxu0 0
      %1796 = vmatpush1.bf16.msra.mxu0 0
      %1797 = vmatprep.subr.bf16.mxu0 0
      %1798 = vmatpush1.bf16.msra.mxu0 0
      %1799 = vmatprep.subr.bf16.mxu0 0
      %1800 = vmatpush1.bf16.msra.mxu0 0
      %1801 = vmatprep.subr.bf16.mxu0 0
      %1802 = vmatpush1.bf16.msra.mxu0 0
      %1803 = vmatprep.mubr.bf16.mxu0 0
      %1804 = vmatmul.mubr.bf16.gmra.mrb[0].mxu0 %v1766
      %v1805 = vpop.f32.mrb[0].mxu0
      %v1806 = vadd.f32 0.0, %v1805
      %v1807 = vpop.f32.mrb[0].mxu0
      %v1808 = vpop.f32.mrb[0].mxu0
      %v1809 = vpop.f32.mrb[0].mxu0
      %1810 = vdwg.mxu0
      %1811 = vrot.lane.b32.xlu0 %v1468, 80
      %v1812 = vpop.permute.xlu0 %1811
      %v1814 = vsel %vm778, %v1713, 0
      %v1817 = vsel %vm1029, %v1812, 0
      %1819 = vmatprep.subr.bf16.mxu0 0
      %1820 = vmatpush1.bf16.msra.mxu0 %v1817
      %1821 = vmatprep.subr.bf16.mxu0 0
      %1822 = vmatpush1.bf16.msra.mxu0 0
      %1823 = vmatprep.subr.bf16.mxu0 0
      %1824 = vmatpush1.bf16.msra.mxu0 0
      %1825 = vmatprep.subr.bf16.mxu0 0
      %1826 = vmatpush1.bf16.msra.mxu0 0
      %1827 = vmatprep.subr.bf16.mxu0 0
      %1828 = vmatpush1.bf16.msra.mxu0 0
      %1829 = vmatprep.subr.bf16.mxu0 0
      %1830 = vmatpush1.bf16.msra.mxu0 0
      %1831 = vmatprep.subr.bf16.mxu0 0
      %1832 = vmatpush1.bf16.msra.mxu0 0
      %1833 = vmatprep.subr.bf16.mxu0 0
      %1834 = vmatpush1.bf16.msra.mxu0 0
      %1835 = vmatprep.subr.bf16.mxu0 0
      %1836 = vmatpush1.bf16.msra.mxu0 0
      %1837 = vmatprep.subr.bf16.mxu0 0
      %1838 = vmatpush1.bf16.msra.mxu0 0
      %1839 = vmatprep.subr.bf16.mxu0 0
      %1840 = vmatpush1.bf16.msra.mxu0 0
      %1841 = vmatprep.subr.bf16.mxu0 0
      %1842 = vmatpush1.bf16.msra.mxu0 0
      %1843 = vmatprep.subr.bf16.mxu0 0
      %1844 = vmatpush1.bf16.msra.mxu0 0
      %1845 = vmatprep.subr.bf16.mxu0 0
      %1846 = vmatpush1.bf16.msra.mxu0 0
      %1847 = vmatprep.subr.bf16.mxu0 0
      %1848 = vmatpush1.bf16.msra.mxu0 0
      %1849 = vmatprep.subr.bf16.mxu0 0
      %1850 = vmatpush1.bf16.msra.mxu0 0
      %1851 = vmatprep.mubr.bf16.mxu0 0
      %1852 = vmatmul.mubr.bf16.gmra.mrb[0].mxu0 %v1814
      %v1853 = vpop.f32.mrb[0].mxu0
      %v1854 = vadd.f32 0.0, %v1853
      %v1855 = vpop.f32.mrb[0].mxu0
      %v1856 = vpop.f32.mrb[0].mxu0
      %v1857 = vpop.f32.mrb[0].mxu0
      %1858 = vdwg.mxu0
      %1859 = vrot.lane.b32.xlu0 %v1468, 72
      %v1860 = vpop.permute.xlu0 %1859
      %v1862 = vsel %vm778, %v1714, 0
      %v1865 = vsel %vm1029, %v1860, 0
      %1867 = vmatprep.subr.bf16.mxu0 0
      %1868 = vmatpush1.bf16.msra.mxu0 %v1865
      %1869 = vmatprep.subr.bf16.mxu0 0
      %1870 = vmatpush1.bf16.msra.mxu0 0
      %1871 = vmatprep.subr.bf16.mxu0 0
      %1872 = vmatpush1.bf16.msra.mxu0 0
      %1873 = vmatprep.subr.bf16.mxu0 0
      %1874 = vmatpush1.bf16.msra.mxu0 0
      %1875 = vmatprep.subr.bf16.mxu0 0
      %1876 = vmatpush1.bf16.msra.mxu0 0
      %1877 = vmatprep.subr.bf16.mxu0 0
      %1878 = vmatpush1.bf16.msra.mxu0 0
      %1879 = vmatprep.subr.bf16.mxu0 0
      %1880 = vmatpush1.bf16.msra.mxu0 0
      %1881 = vmatprep.subr.bf16.mxu0 0
      %1882 = vmatpush1.bf16.msra.mxu0 0
      %1883 = vmatprep.subr.bf16.mxu0 0
      %1884 = vmatpush1.bf16.msra.mxu0 0
      %1885 = vmatprep.subr.bf16.mxu0 0
      %1886 = vmatpush1.bf16.msra.mxu0 0
      %1887 = vmatprep.subr.bf16.mxu0 0
      %1888 = vmatpush1.bf16.msra.mxu0 0
      %1889 = vmatprep.subr.bf16.mxu0 0
      %1890 = vmatpush1.bf16.msra.mxu0 0
      %1891 = vmatprep.subr.bf16.mxu0 0
      %1892 = vmatpush1.bf16.msra.mxu0 0
      %1893 = vmatprep.subr.bf16.mxu0 0
      %1894 = vmatpush1.bf16.msra.mxu0 0
      %1895 = vmatprep.subr.bf16.mxu0 0
      %1896 = vmatpush1.bf16.msra.mxu0 0
      %1897 = vmatprep.subr.bf16.mxu0 0
      %1898 = vmatpush1.bf16.msra.mxu0 0
      %1899 = vmatprep.mubr.bf16.mxu0 0
      %1900 = vmatmul.mubr.bf16.gmra.mrb[0].mxu0 %v1862
      %v1901 = vpop.f32.mrb[0].mxu0
      %v1902 = vadd.f32 0.0, %v1901
      %v1903 = vpop.f32.mrb[0].mxu0
      %v1904 = vpop.f32.mrb[0].mxu0
      %v1905 = vpop.f32.mrb[0].mxu0
      %1906 = vdwg.mxu0
      %1908 = vrot.lane.b32.xlu0 %v1806, 8
      %v1909 = vpop.permute.xlu0 %1908
      %1912 = vrot.lane.b32.xlu0 %v1854, 16
      %v1913 = vpop.permute.xlu0 %1912
      %1916 = vrot.lane.b32.xlu0 %v1902, 24
      %v1917 = vpop.permute.xlu0 %1916
      %v1919 = vsel %vm778, %v1758, %v1909
      %v1920 = vsel %vm1230, %v1919, %v1913
      %v1921 = vsel %vm1232, %v1920, %v1917
      %v1922 = vpack.c.bf16 %v1921, %v1921
      %v1924 = vlaneseq
      %v1925 = vshrl.u32 %v1924, 7
      %v1926 = vsub.s32 0, %v1925
      %v1927 = vrot.slane %v1465, %v1926
      %v1933 = vunpack.c.l.b16 %v1461
      %v1934 = vunpack.c.l.b16 %v1462
      %v1935 = vunpack.c.l.b16 %v1463
      %v1936 = vunpack.c.l.b16 %v1464
      %v1937 = vpack.c.b16 %v1934, %v1933
      %v1938 = vpack.c.b16 %v1936, %v1935
      %v1942 = vsel %vm723, %v1922, 0
      %1944 = vmatprep.subr.bf16.mxu0 0
      %1945 = vmatpush1.bf16.msra.mxu0 %v1937
      %1946 = vmatprep.subr.bf16.mxu0 0
      %1947 = vmatpush1.bf16.msra.mxu0 %v1938
      %1948 = vmatprep.subr.bf16.mxu0 0
      %1949 = vmatpush1.bf16.msra.mxu0 0
      %1950 = vmatprep.subr.bf16.mxu0 0
      %1951 = vmatpush1.bf16.msra.mxu0 0
      %1952 = vmatprep.subr.bf16.mxu0 0
      %1953 = vmatpush1.bf16.msra.mxu0 0
      %1954 = vmatprep.subr.bf16.mxu0 0
      %1955 = vmatpush1.bf16.msra.mxu0 0
      %1956 = vmatprep.subr.bf16.mxu0 0
      %1957 = vmatpush1.bf16.msra.mxu0 0
      %1958 = vmatprep.subr.bf16.mxu0 0
      %1959 = vmatpush1.bf16.msra.mxu0 0
      %1960 = vmatprep.subr.bf16.mxu0 0
      %1961 = vmatpush1.bf16.msra.mxu0 0
      %1962 = vmatprep.subr.bf16.mxu0 0
      %1963 = vmatpush1.bf16.msra.mxu0 0
      %1964 = vmatprep.subr.bf16.mxu0 0
      %1965 = vmatpush1.bf16.msra.mxu0 0
      %1966 = vmatprep.subr.bf16.mxu0 0
      %1967 = vmatpush1.bf16.msra.mxu0 0
      %1968 = vmatprep.subr.bf16.mxu0 0
      %1969 = vmatpush1.bf16.msra.mxu0 0
      %1970 = vmatprep.subr.bf16.mxu0 0
      %1971 = vmatpush1.bf16.msra.mxu0 0
      %1972 = vmatprep.subr.bf16.mxu0 0
      %1973 = vmatpush1.bf16.msra.mxu0 0
      %1974 = vmatprep.subr.bf16.mxu0 0
      %1975 = vmatpush1.bf16.msra.mxu0 0
      %1976 = vmatprep.mubr.bf16.mxu0 0
      %1977 = vmatmul.mubr.bf16.gmra.mrb[0].mxu0 %v1942
      %v1978 = vpop.f32.mrb[0].mxu0
      %v1979 = vadd.f32 %v1927, %v1978
      %v1980 = vpop.f32.mrb[0].mxu0
      %v1981 = vpop.f32.mrb[0].mxu0
      %v1982 = vpop.f32.mrb[0].mxu0
      %1983 = vdwg.mxu0
      %v1984 = vadd.f32 %v1326, %v1979
      %v1985 = vld [vmem:[%s14] sm:$0x1]
      %v1986 = vld [vmem:[%s15] sm:$0x1]
      %v1987 = vsel %vm723, %v1984, 0.0
      %1988 = vadd.xlane.f32.xlu0 %v1987
      %v1989 = vpop.xlane.xlu0 %1988
      %v1990 = vmul.f32 %v1989, %v1302
      %v1991 = vsub.f32 %v1984, %v1990
      %v1992 = vmul.f32 %v1991, %v1991
      %v1993 = vsel %vm723, %v1992, 0.0
      %1994 = vadd.xlane.f32.xlu0 %v1993
      %v1995 = vpop.xlane.xlu0 %1994
      %v1996 = vmul.f32 %v1995, %v1302
      %v1997 = vadd.f32 %v1996, 1e-05
      %v1998 = vrsqrt.pop %v1997
      %v1999 = vmul.f32 %v1991, %v1998
      %v2001 = vlaneseq
      %v2002 = vshrl.u32 %v2001, 7
      %v2003 = vsub.s32 0, %v2002
      %v2004 = vrot.slane %v1985, %v2003
      %v2006 = vmul.f32 %v1999, %v2004
      %v2008 = vlaneseq
      %v2009 = vshrl.u32 %v2008, 7
      %v2010 = vsub.s32 0, %v2009
      %v2011 = vrot.slane %v1986, %v2010
      %v2013 = vadd.f32 %v2006, %v2011
      %v2014 = vld [vmem:[%s16] sm:$0xf]
      %v2015 = vld [vmem:[%s16 + $0x4] sm:$0xf]
      %v2016 = vld [vmem:[%s16 + $0x8] sm:$0xf]
      %v2017 = vld [vmem:[%s16 + $0xc] sm:$0xf]
      %v2018 = vld [vmem:[%s17] sm:$0x1]
      %v2019 = vld [vmem:[%s18] sm:$0xf]
      %v2020 = vld [vmem:[%s18 + $0x4] sm:$0xf]
      %v2021 = vld [vmem:[%s18 + $0x8] sm:$0xf]
      %v2022 = vld [vmem:[%s18 + $0xc] sm:$0xf]
      %v2023 = vld [vmem:[%s18 + $0x10] sm:$0xf]
      %v2024 = vld [vmem:[%s18 + $0x14] sm:$0xf]
      %v2025 = vld [vmem:[%s18 + $0x18] sm:$0xf]
      %v2026 = vld [vmem:[%s18 + $0x1c] sm:$0xf]
      %v2027 = vld [vmem:[%s19] sm:$0x1]
      %v2028 = vpack.c.bf16 %v2013, %v2013
      %v2030 = vlaneseq
      %v2031 = vshrl.u32 %v2030, 7
      %v2032 = vsub.s32 0, %v2031
      %v2033 = vrot.slane %v2018, %v2032
      %v2039 = vunpack.c.l.b16 %v2014
      %v2040 = vunpack.c.l.b16 %v2015
      %v2041 = vunpack.c.l.b16 %v2016
      %v2042 = vunpack.c.l.b16 %v2017
      %v2043 = vpack.c.b16 %v2040, %v2039
      %v2044 = vpack.c.b16 %v2042, %v2041
      %v2048 = vsel %vm723, %v2028, 0
      %2050 = vmatprep.subr.bf16.mxu0 0
      %2051 = vmatpush1.bf16.msra.mxu0 %v2043
      %2052 = vmatprep.subr.bf16.mxu0 0
      %2053 = vmatpush1.bf16.msra.mxu0 %v2044
      %2054 = vmatprep.subr.bf16.mxu0 0
      %2055 = vmatpush1.bf16.msra.mxu0 0
      %2056 = vmatprep.subr.bf16.mxu0 0
      %2057 = vmatpush1.bf16.msra.mxu0 0
      %2058 = vmatprep.subr.bf16.mxu0 0
      %2059 = vmatpush1.bf16.msra.mxu0 0
      %2060 = vmatprep.subr.bf16.mxu0 0
      %2061 = vmatpush1.bf16.msra.mxu0 0
      %2062 = vmatprep.subr.bf16.mxu0 0
      %2063 = vmatpush1.bf16.msra.mxu0 0
      %2064 = vmatprep.subr.bf16.mxu0 0
      %2065 = vmatpush1.bf16.msra.mxu0 0
      %2066 = vmatprep.subr.bf16.mxu0 0
      %2067 = vmatpush1.bf16.msra.mxu0 0
      %2068 = vmatprep.subr.bf16.mxu0 0
      %2069 = vmatpush1.bf16.msra.mxu0 0
      %2070 = vmatprep.subr.bf16.mxu0 0
      %2071 = vmatpush1.bf16.msra.mxu0 0
      %2072 = vmatprep.subr.bf16.mxu0 0
      %2073 = vmatpush1.bf16.msra.mxu0 0
      %2074 = vmatprep.subr.bf16.mxu0 0
      %2075 = vmatpush1.bf16.msra.mxu0 0
      %2076 = vmatprep.subr.bf16.mxu0 0
      %2077 = vmatpush1.bf16.msra.mxu0 0
      %2078 = vmatprep.subr.bf16.mxu0 0
      %2079 = vmatpush1.bf16.msra.mxu0 0
      %2080 = vmatprep.subr.bf16.mxu0 0
      %2081 = vmatpush1.bf16.msra.mxu0 0
      %2082 = vmatprep.mubr.bf16.mxu0 0
      %2083 = vmatmul.mubr.bf16.gmra.mrb[0].mxu0 %v2048
      %v2084 = vpop.f32.mrb[0].mxu0
      %v2085 = vadd.f32 %v2033, %v2084
      %v2086 = vpop.f32.mrb[0].mxu0
      %v2087 = vpop.f32.mrb[0].mxu0
      %v2088 = vpop.f32.mrb[0].mxu0
      %2089 = vdwg.mxu0
      %v2090 = vmax.f32 %v2085, 0.0
      %v2091 = vpack.c.bf16 %v2090, %v2090
      %v2093 = vlaneseq
      %v2094 = vshrl.u32 %v2093, 7
      %v2095 = vsub.s32 0, %v2094
      %v2096 = vrot.slane %v2027, %v2095
      %v2106 = vunpack.c.l.b16 %v2019
      %v2107 = vunpack.c.l.b16 %v2020
      %v2108 = vunpack.c.l.b16 %v2021
      %v2109 = vunpack.c.l.b16 %v2022
      %v2110 = vunpack.c.l.b16 %v2023
      %v2111 = vunpack.c.l.b16 %v2024
      %v2112 = vunpack.c.l.b16 %v2025
      %v2113 = vunpack.c.l.b16 %v2026
      %v2114 = vpack.c.b16 %v2107, %v2106
      %v2115 = vpack.c.b16 %v2109, %v2108
      %v2116 = vpack.c.b16 %v2111, %v2110
      %v2117 = vpack.c.b16 %v2113, %v2112
      %vm2122 = vcmask 523264
      %v2124 = vsel %vm2122, %v2091, 0
      %2126 = vmatprep.subr.bf16.mxu0 0
      %2127 = vmatpush1.bf16.msra.mxu0 %v2114
      %2128 = vmatprep.subr.bf16.mxu0 0
      %2129 = vmatpush1.bf16.msra.mxu0 %v2115
      %2130 = vmatprep.subr.bf16.mxu0 0
      %2131 = vmatpush1.bf16.msra.mxu0 %v2116
      %2132 = vmatprep.subr.bf16.mxu0 0
      %2133 = vmatpush1.bf16.msra.mxu0 %v2117
      %2134 = vmatprep.subr.bf16.mxu0 0
      %2135 = vmatpush1.bf16.msra.mxu0 0
      %2136 = vmatprep.subr.bf16.mxu0 0
      %2137 = vmatpush1.bf16.msra.mxu0 0
      %2138 = vmatprep.subr.bf16.mxu0 0
      %2139 = vmatpush1.bf16.msra.mxu0 0
      %2140 = vmatprep.subr.bf16.mxu0 0
      %2141 = vmatpush1.bf16.msra.mxu0 0
      %2142 = vmatprep.subr.bf16.mxu0 0
      %2143 = vmatpush1.bf16.msra.mxu0 0
      %2144 = vmatprep.subr.bf16.mxu0 0
      %2145 = vmatpush1.bf16.msra.mxu0 0
      %2146 = vmatprep.subr.bf16.mxu0 0
      %2147 = vmatpush1.bf16.msra.mxu0 0
      %2148 = vmatprep.subr.bf16.mxu0 0
      %2149 = vmatpush1.bf16.msra.mxu0 0
      %2150 = vmatprep.subr.bf16.mxu0 0
      %2151 = vmatpush1.bf16.msra.mxu0 0
      %2152 = vmatprep.subr.bf16.mxu0 0
      %2153 = vmatpush1.bf16.msra.mxu0 0
      %2154 = vmatprep.subr.bf16.mxu0 0
      %2155 = vmatpush1.bf16.msra.mxu0 0
      %2156 = vmatprep.subr.bf16.mxu0 0
      %2157 = vmatpush1.bf16.msra.mxu0 0
      %2158 = vmatprep.mubr.bf16.mxu0 0
      %2159 = vmatmul.mubr.bf16.gmra.mrb[0].mxu0 %v2124
      %v2160 = vpop.f32.mrb[0].mxu0
      %v2161 = vadd.f32 %v2096, %v2160
      %v2162 = vpop.f32.mrb[0].mxu0
      %v2163 = vpop.f32.mrb[0].mxu0
      %v2164 = vpop.f32.mrb[0].mxu0
      %2165 = vdwg.mxu0
      %v2166 = vadd.f32 %v2013, %v2161
      %v2167 = vld [vmem:[%s20] sm:$0x1]
      %v2168 = vld [vmem:[%s21] sm:$0x1]
      %v2169 = vsel %vm723, %v2166, 0.0
      %2170 = vadd.xlane.f32.xlu0 %v2169
      %v2171 = vpop.xlane.xlu0 %2170
      %v2172 = vmul.f32 %v2171, %v1302
      %v2173 = vsub.f32 %v2166, %v2172
      %v2174 = vmul.f32 %v2173, %v2173
      %v2175 = vsel %vm723, %v2174, 0.0
      %2176 = vadd.xlane.f32.xlu0 %v2175
      %v2177 = vpop.xlane.xlu0 %2176
      %v2178 = vmul.f32 %v2177, %v1302
      %v2179 = vadd.f32 %v2178, 1e-05
      %v2180 = vrsqrt.pop %v2179
      %v2181 = vmul.f32 %v2173, %v2180
      %v2183 = vlaneseq
      %v2184 = vshrl.u32 %v2183, 7
      %v2185 = vsub.s32 0, %v2184
      %v2186 = vrot.slane %v2167, %v2185
      %v2188 = vmul.f32 %v2181, %v2186
      %v2190 = vlaneseq
      %v2191 = vshrl.u32 %v2190, 7
      %v2192 = vsub.s32 0, %v2191
      %v2193 = vrot.slane %v2168, %v2192
      %v2195 = vadd.f32 %v2188, %v2193
      %2196 = vst.msk [vmem:[%s695] sm:$0xff] %vm723, %v2195
      %p2197 = scmp.lt.s32.totalorder %s33, 1
      %s2198 = scalar_select %p2197, %s33, 1
      %s2199 = smul.addr %s2198, 8
      %s2200 = scalar_lea.vmem %s22, %s2199
      // Predicated region
      $region109: #{transformer_forward.7} parent=107 // pred_check
        %p2201 = pneg %p523
      $region110: #{transformer_forward.7} parent=107 // pred_check_branch
        %2203 = sbr.rel (%p2201) target = $region112
      $region111: #{transformer_forward.7} parent=107 // pred_region
        _
      $region112: #{transformer_forward.7} parent=107 // pred_fallthru
        _
    $region108: #{transformer_forward.7} parent=5 // pred_fallthru
      _
    %p2204 = scmp.le.s32.totalorder 2, %s28
    // Predicated region
    $region113: #{transformer_forward.7} parent=5 // pred_check
      %p2205 = pneg %p2204
    $region114: #{transformer_forward.7} parent=5 // pred_check_branch
      %2207 = sbr.rel (%p2205) target = $region116
    $region115: #{transformer_forward.7} parent=5 // pred_region
      %s2208 = ssub.s32 %s28, 2
      // Predicated region
      $region117: #{transformer_forward.7} parent=115 // pred_check
        %p2209 = pneg %p529
      $region118: #{transformer_forward.7} parent=115 // pred_check_branch
        %2211 = sbr.rel (%p2209) target = $region120
      $region119: #{transformer_forward.7} parent=115 // pred_region
        %p2212 = scmp.lt.s32.totalorder %s34, 1
        %s2213 = scalar_select %p2212, %s34, 1
        %s2214 = smul.addr %s2213, 8
        %s2215 = scalar_lea.vmem %s22, %s2214
      $region120: #{transformer_forward.7} parent=115 // pred_fallthru
        _
    $region116: #{transformer_forward.7} parent=5 // pred_fallthru
      _
  $region6: #{transformer_forward.7} parent=0 // loop_footer
    %s32 = sadd.s32 1, %s28
  $region7: #{transformer_forward.7} parent=0 // loop_footer_branch
    %27 = sbr.rel target = $region3
  $region8: #{transformer_forward.7} parent=0 // loop_exit
    _

</llo_original>
